<compile_context>
chip_gen: v5e
topology: v5e:2x2
jax: 0.10.0
libtpu: 0.0.40
codegen_flags: <defaults>
</compile_context>

<pallas_src>
import functools

import jax
import jax.numpy as jnp
from jax.experimental import pallas as pl
from jax.experimental.pallas import tpu as pltpu

NEG_SLOPE = 0.01   # nn.LeakyReLU default negative_slope
BN_EPS = 1e-5      # nn.BatchNorm2d default eps


def _leaky_relu(x):
    return jnp.where(x >= 0, x, NEG_SLOPE * x)


def _dqn_kernel(x_ref, board_ref, w_ref, scale_ref, shift_ref, hw_ref, hb_ref,
                o_ref, pad_ref, col_ref, *, H, W, C):
    """Fused DQN forward for one batch element.

    x_ref:     [1, H, W, 3]   f32   NHWC input
    board_ref: [1, 1, H*W]    f32   channel 0 of the input (mask source)
    w_ref:     [L, 9*C, C]    bf16  conv weights, im2col-flattened (stem Cin zero-padded)
    scale_ref: [L, 1, C]      f32   folded BN scale  (gamma / sqrt(var + eps))
    shift_ref: [L, 1, C]      f32   folded BN shift  (beta - mean * scale)
    hw_ref:    [1, C]         f32   1x1 head conv weight
    hb_ref:    [1]            f32   head bias (SMEM)
    o_ref:     [1, 1, H*W]    f32   masked Q values (lane-dense)
    pad_ref:   [H+2, W+2, C]  f32   zero-bordered activation scratch
    col_ref:   [H*W, 9*C]     bf16  im2col scratch
    """
    n_layers = w_ref.shape[0]
    n_blocks = (n_layers - 1) // 2

    # Zero the padded scratch once per batch element: keeps the 1-pixel border at 0
    # ("same" padding) and zeroes the unused stem input channels 3..C-1.
    pad_ref[...] = jnp.zeros_like(pad_ref)

    def conv_bn(layer):
        # im2col: 9 shifted HxW windows concatenated along K -> one MXU matmul.
        for t, (dy, dx) in enumerate([(dy, dx) for dy in range(3) for dx in range(3)]):
            patch = pad_ref[dy:dy + H, dx:dx + W, :].reshape(H * W, C)
            col_ref[:, t * C:(t + 1) * C] = patch.astype(col_ref.dtype)
        acc = jnp.dot(col_ref[...], w_ref[layer],
                      preferred_element_type=jnp.float32)          # [H*W, C] f32
        return acc * scale_ref[layer] + shift_ref[layer]

    def write_act(val):                                            # val: [H*W, C] f32
        pad_ref[1:H + 1, 1:W + 1, :] = val.reshape(H, W, C)

    # ---- stem: ConvBlock(3 -> C) = conv3x3 + BN + LeakyReLU --------------------
    pad_ref[1:H + 1, 1:W + 1, 0:x_ref.shape[-1]] = x_ref[0]
    h = _leaky_relu(conv_bn(0))

    # ---- residual blocks -------------------------------------------------------
    for blk in range(n_blocks):
        write_act(h)
        y = _leaky_relu(conv_bn(1 + 2 * blk))      # conv1 + BN + act
        write_act(y)
        y = conv_bn(2 + 2 * blk)                   # conv2 + BN (Identity act)
        h = _leaky_relu(h + y)                     # residual add BEFORE activation

    # ---- head: 1x1 conv (with bias) + tanh, then empty-cell masking ------------
    q = jnp.sum(h.reshape(1, H * W, C) * hw_ref[...].reshape(1, 1, C), axis=-1)
    q = jnp.tanh(q + hb_ref[0])                                    # [1, H*W]
    o_ref[...] = jnp.where(board_ref[...] == 0.0,
                           q.reshape(1, 1, H * W),
                           -jnp.inf).astype(o_ref.dtype)


@jax.jit
def dqn_forward(params, state_nchw):
    """state_nchw: [B, 3, H, W] (PyTorch layout). Returns masked Q of shape [B, H, W]."""
    B, _, H, W = state_nchw.shape
    C = params["head_w"].shape[-1]
    L = params["w"].shape[0]

    x = jnp.transpose(state_nchw, (0, 2, 3, 1)).astype(jnp.float32)        # NHWC
    board = state_nchw[:, 0, :, :].astype(jnp.float32).reshape(B, 1, H * W)

    kernel = functools.partial(_dqn_kernel, H=H, W=W, C=C)
    out = pl.pallas_call(
        kernel,
        grid=(B,),
        in_specs=[
            pl.BlockSpec((1, H, W, x.shape[-1]), lambda b: (b, 0, 0, 0)),  # x
            pl.BlockSpec((1, 1, H * W), lambda b: (b, 0, 0)),              # board
            pl.BlockSpec((L, 9 * C, C), lambda b: (0, 0, 0)),              # conv weights
            pl.BlockSpec((L, 1, C), lambda b: (0, 0, 0)),                  # bn scale
            pl.BlockSpec((L, 1, C), lambda b: (0, 0, 0)),                  # bn shift
            pl.BlockSpec((1, C), lambda b: (0, 0)),                        # head weight
            pl.BlockSpec(memory_space=pltpu.MemorySpace.SMEM),             # head bias
        ],
        out_specs=pl.BlockSpec((1, 1, H * W), lambda b: (b, 0, 0)),
        out_shape=jax.ShapeDtypeStruct((B, 1, H * W), jnp.float32),
        scratch_shapes=[
            pltpu.VMEM((H + 2, W + 2, C), jnp.float32),    # zero-bordered activations
            pltpu.VMEM((H * W, 9 * C), jnp.bfloat16),      # im2col buffer
        ],
        compiler_params=pltpu.CompilerParams(
            dimension_semantics=("parallel",)),
    )(x, board, params["w"], params["scale"], params["shift"],
      params["head_w"], params["head_b"])
    return out.reshape(B, H, W)


def init_params(key, n_blocks=3, n_channels=64):
    """Deterministic synthetic parameters matching the PyTorch module's shapes,
    packed for the fused kernel (BN folded to scale/shift, weights im2col-flattened,
    stem input channels zero-padded to n_channels so all layers share K = 9*C)."""
    C = n_channels

    def conv_bn(k, cin):
        ks = jax.random.split(k, 5)
        w = jax.random.normal(ks[0], (3, 3, cin, C), jnp.float32) / jnp.sqrt(9.0 * cin)
        gamma = 1.0 + 0.1 * jax.random.normal(ks[1], (C,), jnp.float32)
        beta = 0.1 * jax.random.normal(ks[2], (C,), jnp.float32)
        mean = 0.1 * jax.random.normal(ks[3], (C,), jnp.float32)
        var = 1.0 + 0.1 * jnp.abs(jax.random.normal(ks[4], (C,), jnp.float32))
        scale = gamma / jnp.sqrt(var + BN_EPS)
        shift = beta - mean * scale
        if cin < C:
            w = jnp.pad(w, ((0, 0), (0, 0), (0, C - cin), (0, 0)))
        return w.reshape(9 * C, C), scale, shift

    n_layers = 1 + 2 * n_blocks
    keys = jax.random.split(key, n_layers + 2)
    layers = [conv_bn(keys[0], 3)] + [conv_bn(keys[1 + i], C)
                                      for i in range(2 * n_blocks)]
    return {
        "w": jnp.stack([l[0] for l in layers]).astype(jnp.bfloat16),      # [L, 9C, C]
        "scale": jnp.stack([l[1] for l in layers]).reshape(n_layers, 1, C),
        "shift": jnp.stack([l[2] for l in layers]).reshape(n_layers, 1, C),
        "head_w": 0.1 * jax.random.normal(keys[-2], (1, C), jnp.float32),
        "head_b": 0.05 * jax.random.normal(keys[-1], (1,), jnp.float32),
    }


if __name__ == "__main__":
    key = jax.random.PRNGKey(0)
    pkey, dkey = jax.random.split(key)

    n_blocks, n_channels = 3, 64
    B, H, W = 2, 8, 8

    params = init_params(pkey, n_blocks=n_blocks, n_channels=n_channels)

    # Channel 0 is the "board" (cells in {0,1,2}, 0 == empty); channels 1-2 arbitrary.
    k0, k1 = jax.random.split(dkey)
    board = jax.random.randint(k0, (B, 1, H, W), 0, 3).astype(jnp.float32)
    other = jax.random.normal(k1, (B, 2, H, W), jnp.float32)
    state = jnp.concatenate([board, other], axis=1)          # [B, 3, H, W] NCHW

    Q = dqn_forward(params, state)
    jax.block_until_ready(Q)
    assert Q.shape == (B, H, W) and Q.dtype == jnp.float32
    # Occupied cells must be exactly -inf, empty cells finite (tanh output) or NaN-free.
    assert bool(jnp.all(jnp.isneginf(Q) == (state[:, 0] != 0)))
    print("KERNEL_OK")
</pallas_src>

<mosaic_0001>
module attributes {stable_mosaic.version = 11 : i64} {
  func.func @_dqn_kernel(%arg0: i32, %arg1: memref<1x8x8x3xf32, #tpu.memory_space<vmem>>, %arg2: memref<1x1x64xf32, #tpu.memory_space<vmem>>, %arg3: memref<7x576x64xbf16, #tpu.memory_space<vmem>>, %arg4: memref<7x1x64xf32, #tpu.memory_space<vmem>>, %arg5: memref<7x1x64xf32, #tpu.memory_space<vmem>>, %arg6: memref<1x64xf32, #tpu.memory_space<vmem>>, %arg7: memref<1xf32, #tpu.memory_space<smem>>, %arg8: memref<1x1x64xf32, #tpu.memory_space<vmem>>, %arg9: memref<10x10x64xf32, #tpu.memory_space<vmem>>, %arg10: memref<64x576xbf16, #tpu.memory_space<vmem>>) attributes {dimension_semantics = [#tpu.dimension_semantics<parallel>], iteration_bounds = array<i64: 2>, scalar_prefetch = 0 : i64, scratch_operands = 2 : i64, tpu.core_type = #tpu.core_type<tc>, window_params = [{transform_indices = @transform_0, window_bounds = array<i64: 1, 8, 8, 3>}, {transform_indices = @transform_1, window_bounds = array<i64: 1, 1, 64>}, {pipeline_mode = #tpu.pipeline_mode<synchronous>, transform_indices = @transform_2, window_bounds = array<i64: 7, 576, 64>}, {pipeline_mode = #tpu.pipeline_mode<synchronous>, transform_indices = @transform_3, window_bounds = array<i64: 7, 1, 64>}, {pipeline_mode = #tpu.pipeline_mode<synchronous>, transform_indices = @transform_4, window_bounds = array<i64: 7, 1, 64>}, {pipeline_mode = #tpu.pipeline_mode<synchronous>, transform_indices = @transform_5, window_bounds = array<i64: 1, 64>}, {transform_indices = @transform_6, window_bounds = array<i64: 1>}, {transform_indices = @transform_7, window_bounds = array<i64: 1, 1, 64>}]} {
    %cst = arith.constant 0.000000e+00 : f32
    %0 = vector.broadcast %cst : f32 to vector<10x10x64xf32>
    %c0 = arith.constant 0 : index
    %c0_0 = arith.constant 0 : index
    %c0_1 = arith.constant 0 : index
    %1 = vector.load %arg9[%c0, %c0_0, %c0_1] : memref<10x10x64xf32, #tpu.memory_space<vmem>>, vector<10x10x64xf32>
    tpu.vector_store %arg9[%c0, %c0_0, %c0_1], %0 {strides = array<i32>} : memref<10x10x64xf32, #tpu.memory_space<vmem>>, vector<10x10x64xf32>,
    %c0_2 = arith.constant 0 : index
    %c0_3 = arith.constant 0 : index
    %c0_4 = arith.constant 0 : index
    %c0_5 = arith.constant 0 : index
    %2 = vector.load %arg1[%c0_2, %c0_3, %c0_4, %c0_5] : memref<1x8x8x3xf32, #tpu.memory_space<vmem>>, vector<1x8x8x3xf32>
    %3 = vector.shape_cast %2 : vector<1x8x8x3xf32> to vector<8x8x3xf32>
    %c1 = arith.constant 1 : index
    %c1_6 = arith.constant 1 : index
    %c0_7 = arith.constant 0 : index
    %4 = vector.load %arg9[%c1, %c1_6, %c0_7] : memref<10x10x64xf32, #tpu.memory_space<vmem>>, vector<8x8x3xf32>
    tpu.vector_store %arg9[%c1, %c1_6, %c0_7], %3 {strides = array<i32>} : memref<10x10x64xf32, #tpu.memory_space<vmem>>, vector<8x8x3xf32>,
    %c0_8 = arith.constant 0 : index
    %c0_9 = arith.constant 0 : index
    %c0_10 = arith.constant 0 : index
    %5 = vector.load %arg9[%c0_8, %c0_9, %c0_10] : memref<10x10x64xf32, #tpu.memory_space<vmem>>, vector<8x8x64xf32>
    %6 = vector.shape_cast %5 : vector<8x8x64xf32> to vector<64x64xf32>
    %7 = arith.truncf %6 : vector<64x64xf32> to vector<64x64xbf16>
    %c0_11 = arith.constant 0 : index
    %c0_12 = arith.constant 0 : index
    %8 = vector.load %arg10[%c0_11, %c0_12] : memref<64x576xbf16, #tpu.memory_space<vmem>>, vector<64x64xbf16>
    tpu.vector_store %arg10[%c0_11, %c0_12], %7 {strides = array<i32>} : memref<64x576xbf16, #tpu.memory_space<vmem>>, vector<64x64xbf16>,
    %c0_13 = arith.constant 0 : index
    %c1_14 = arith.constant 1 : index
    %c0_15 = arith.constant 0 : index
    %9 = vector.load %arg9[%c0_13, %c1_14, %c0_15] : memref<10x10x64xf32, #tpu.memory_space<vmem>>, vector<8x8x64xf32>
    %10 = vector.shape_cast %9 : vector<8x8x64xf32> to vector<64x64xf32>
    %11 = arith.truncf %10 : vector<64x64xf32> to vector<64x64xbf16>
    %c0_16 = arith.constant 0 : index
    %c64 = arith.constant 64 : index
    %12 = vector.load %arg10[%c0_16, %c64] : memref<64x576xbf16, #tpu.memory_space<vmem>>, vector<64x64xbf16>
    tpu.vector_store %arg10[%c0_16, %c64], %11 {strides = array<i32>} : memref<64x576xbf16, #tpu.memory_space<vmem>>, vector<64x64xbf16>,
    %c0_17 = arith.constant 0 : index
    %c2 = arith.constant 2 : index
    %c0_18 = arith.constant 0 : index
    %13 = vector.load %arg9[%c0_17, %c2, %c0_18] : memref<10x10x64xf32, #tpu.memory_space<vmem>>, vector<8x8x64xf32>
    %14 = vector.shape_cast %13 : vector<8x8x64xf32> to vector<64x64xf32>
    %15 = arith.truncf %14 : vector<64x64xf32> to vector<64x64xbf16>
    %c0_19 = arith.constant 0 : index
    %c128 = arith.constant 128 : index
    %16 = vector.load %arg10[%c0_19, %c128] : memref<64x576xbf16, #tpu.memory_space<vmem>>, vector<64x64xbf16>
    tpu.vector_store %arg10[%c0_19, %c128], %15 {strides = array<i32>} : memref<64x576xbf16, #tpu.memory_space<vmem>>, vector<64x64xbf16>,
    %c1_20 = arith.constant 1 : index
    %c0_21 = arith.constant 0 : index
    %c0_22 = arith.constant 0 : index
    %17 = vector.load %arg9[%c1_20, %c0_21, %c0_22] : memref<10x10x64xf32, #tpu.memory_space<vmem>>, vector<8x8x64xf32>
    %18 = vector.shape_cast %17 : vector<8x8x64xf32> to vector<64x64xf32>
    %19 = arith.truncf %18 : vector<64x64xf32> to vector<64x64xbf16>
    %c0_23 = arith.constant 0 : index
    %c192 = arith.constant 192 : index
    %20 = vector.load %arg10[%c0_23, %c192] : memref<64x576xbf16, #tpu.memory_space<vmem>>, vector<64x64xbf16>
    tpu.vector_store %arg10[%c0_23, %c192], %19 {strides = array<i32>} : memref<64x576xbf16, #tpu.memory_space<vmem>>, vector<64x64xbf16>,
    %c1_24 = arith.constant 1 : index
    %c1_25 = arith.constant 1 : index
    %c0_26 = arith.constant 0 : index
    %21 = vector.load %arg9[%c1_24, %c1_25, %c0_26] : memref<10x10x64xf32, #tpu.memory_space<vmem>>, vector<8x8x64xf32>
    %22 = vector.shape_cast %21 : vector<8x8x64xf32> to vector<64x64xf32>
    %23 = arith.truncf %22 : vector<64x64xf32> to vector<64x64xbf16>
    %c0_27 = arith.constant 0 : index
    %c256 = arith.constant 256 : index
    %24 = vector.load %arg10[%c0_27, %c256] : memref<64x576xbf16, #tpu.memory_space<vmem>>, vector<64x64xbf16>
    tpu.vector_store %arg10[%c0_27, %c256], %23 {strides = array<i32>} : memref<64x576xbf16, #tpu.memory_space<vmem>>, vector<64x64xbf16>,
    %c1_28 = arith.constant 1 : index
    %c2_29 = arith.constant 2 : index
    %c0_30 = arith.constant 0 : index
    %25 = vector.load %arg9[%c1_28, %c2_29, %c0_30] : memref<10x10x64xf32, #tpu.memory_space<vmem>>, vector<8x8x64xf32>
    %26 = vector.shape_cast %25 : vector<8x8x64xf32> to vector<64x64xf32>
    %27 = arith.truncf %26 : vector<64x64xf32> to vector<64x64xbf16>
    %c0_31 = arith.constant 0 : index
    %c320 = arith.constant 320 : index
    %28 = vector.load %arg10[%c0_31, %c320] : memref<64x576xbf16, #tpu.memory_space<vmem>>, vector<64x64xbf16>
    tpu.vector_store %arg10[%c0_31, %c320], %27 {strides = array<i32>} : memref<64x576xbf16, #tpu.memory_space<vmem>>, vector<64x64xbf16>,
    %c2_32 = arith.constant 2 : index
    %c0_33 = arith.constant 0 : index
    %c0_34 = arith.constant 0 : index
    %29 = vector.load %arg9[%c2_32, %c0_33, %c0_34] : memref<10x10x64xf32, #tpu.memory_space<vmem>>, vector<8x8x64xf32>
    %30 = vector.shape_cast %29 : vector<8x8x64xf32> to vector<64x64xf32>
    %31 = arith.truncf %30 : vector<64x64xf32> to vector<64x64xbf16>
    %c0_35 = arith.constant 0 : index
    %c384 = arith.constant 384 : index
    %32 = vector.load %arg10[%c0_35, %c384] : memref<64x576xbf16, #tpu.memory_space<vmem>>, vector<64x64xbf16>
    tpu.vector_store %arg10[%c0_35, %c384], %31 {strides = array<i32>} : memref<64x576xbf16, #tpu.memory_space<vmem>>, vector<64x64xbf16>,
    %c2_36 = arith.constant 2 : index
    %c1_37 = arith.constant 1 : index
    %c0_38 = arith.constant 0 : index
    %33 = vector.load %arg9[%c2_36, %c1_37, %c0_38] : memref<10x10x64xf32, #tpu.memory_space<vmem>>, vector<8x8x64xf32>
    %34 = vector.shape_cast %33 : vector<8x8x64xf32> to vector<64x64xf32>
    %35 = arith.truncf %34 : vector<64x64xf32> to vector<64x64xbf16>
    %c0_39 = arith.constant 0 : index
    %c448 = arith.constant 448 : index
    %36 = vector.load %arg10[%c0_39, %c448] : memref<64x576xbf16, #tpu.memory_space<vmem>>, vector<64x64xbf16>
    tpu.vector_store %arg10[%c0_39, %c448], %35 {strides = array<i32>} : memref<64x576xbf16, #tpu.memory_space<vmem>>, vector<64x64xbf16>,
    %c2_40 = arith.constant 2 : index
    %c2_41 = arith.constant 2 : index
    %c0_42 = arith.constant 0 : index
    %37 = vector.load %arg9[%c2_40, %c2_41, %c0_42] : memref<10x10x64xf32, #tpu.memory_space<vmem>>, vector<8x8x64xf32>
    %38 = vector.shape_cast %37 : vector<8x8x64xf32> to vector<64x64xf32>
    %39 = arith.truncf %38 : vector<64x64xf32> to vector<64x64xbf16>
    %c0_43 = arith.constant 0 : index
    %c512 = arith.constant 512 : index
    %40 = vector.load %arg10[%c0_43, %c512] : memref<64x576xbf16, #tpu.memory_space<vmem>>, vector<64x64xbf16>
    tpu.vector_store %arg10[%c0_43, %c512], %39 {strides = array<i32>} : memref<64x576xbf16, #tpu.memory_space<vmem>>, vector<64x64xbf16>,
    %c0_44 = arith.constant 0 : index
    %c0_45 = arith.constant 0 : index
    %41 = vector.load %arg10[%c0_44, %c0_45] : memref<64x576xbf16, #tpu.memory_space<vmem>>, vector<64x576xbf16>
    %c0_46 = arith.constant 0 : index
    %c0_47 = arith.constant 0 : index
    %c0_48 = arith.constant 0 : index
    %42 = vector.load %arg3[%c0_46, %c0_47, %c0_48] : memref<7x576x64xbf16, #tpu.memory_space<vmem>>, vector<1x576x64xbf16>
    %43 = vector.shape_cast %42 : vector<1x576x64xbf16> to vector<576x64xbf16>
    %cst_49 = arith.constant dense<0.000000e+00> : vector<64x64xf32>
    %44 = tpu.matmul %41, %43, %cst_49 {dimension_numbers = #tpu.dot_dimension_numbers<[1], [0], [0], [1], [0, 0, 1, 1], [], []>} : vector<64x576xbf16>, vector<576x64xbf16>, vector<64x64xf32> -> vector<64x64xf32>
    %c0_50 = arith.constant 0 : index
    %c0_51 = arith.constant 0 : index
    %c0_52 = arith.constant 0 : index
    %45 = vector.load %arg4[%c0_50, %c0_51, %c0_52] : memref<7x1x64xf32, #tpu.memory_space<vmem>>, vector<1x1x64xf32>
    %46 = vector.shape_cast %45 : vector<1x1x64xf32> to vector<1x64xf32>
    %47 = vector.broadcast %46 : vector<1x64xf32> to vector<64x64xf32>
    %48 = arith.mulf %44, %47 : vector<64x64xf32>
    %c0_53 = arith.constant 0 : index
    %c0_54 = arith.constant 0 : index
    %c0_55 = arith.constant 0 : index
    %49 = vector.load %arg5[%c0_53, %c0_54, %c0_55] : memref<7x1x64xf32, #tpu.memory_space<vmem>>, vector<1x1x64xf32>
    %50 = vector.shape_cast %49 : vector<1x1x64xf32> to vector<1x64xf32>
    %51 = vector.broadcast %50 : vector<1x64xf32> to vector<64x64xf32>
    %52 = arith.addf %48, %51 : vector<64x64xf32>
    %cst_56 = arith.constant 0.000000e+00 : f32
    %53 = vector.broadcast %cst_56 : f32 to vector<64x64xf32>
    %54 = arith.cmpf oge, %52, %53 : vector<64x64xf32>
    %cst_57 = arith.constant 0.00999999977 : f32
    %55 = vector.broadcast %cst_57 : f32 to vector<64x64xf32>
    %56 = arith.mulf %55, %52 : vector<64x64xf32>
    %57 = arith.select %54, %52, %56 : vector<64x64xi1>, vector<64x64xf32>
    %58 = vector.shape_cast %57 : vector<64x64xf32> to vector<8x8x64xf32>
    %c1_58 = arith.constant 1 : index
    %c1_59 = arith.constant 1 : index
    %c0_60 = arith.constant 0 : index
    %59 = vector.load %arg9[%c1_58, %c1_59, %c0_60] : memref<10x10x64xf32, #tpu.memory_space<vmem>>, vector<8x8x64xf32>
    tpu.vector_store %arg9[%c1_58, %c1_59, %c0_60], %58 {strides = array<i32>} : memref<10x10x64xf32, #tpu.memory_space<vmem>>, vector<8x8x64xf32>,
    %c0_61 = arith.constant 0 : index
    %c0_62 = arith.constant 0 : index
    %c0_63 = arith.constant 0 : index
    %60 = vector.load %arg9[%c0_61, %c0_62, %c0_63] : memref<10x10x64xf32, #tpu.memory_space<vmem>>, vector<8x8x64xf32>
    %61 = vector.shape_cast %60 : vector<8x8x64xf32> to vector<64x64xf32>
    %62 = arith.truncf %61 : vector<64x64xf32> to vector<64x64xbf16>
    %c0_64 = arith.constant 0 : index
    %c0_65 = arith.constant 0 : index
    %63 = vector.load %arg10[%c0_64, %c0_65] : memref<64x576xbf16, #tpu.memory_space<vmem>>, vector<64x64xbf16>
    tpu.vector_store %arg10[%c0_64, %c0_65], %62 {strides = array<i32>} : memref<64x576xbf16, #tpu.memory_space<vmem>>, vector<64x64xbf16>,
    %c0_66 = arith.constant 0 : index
    %c1_67 = arith.constant 1 : index
    %c0_68 = arith.constant 0 : index
    %64 = vector.load %arg9[%c0_66, %c1_67, %c0_68] : memref<10x10x64xf32, #tpu.memory_space<vmem>>, vector<8x8x64xf32>
    %65 = vector.shape_cast %64 : vector<8x8x64xf32> to vector<64x64xf32>
    %66 = arith.truncf %65 : vector<64x64xf32> to vector<64x64xbf16>
    %c0_69 = arith.constant 0 : index
    %c64_70 = arith.constant 64 : index
    %67 = vector.load %arg10[%c0_69, %c64_70] : memref<64x576xbf16, #tpu.memory_space<vmem>>, vector<64x64xbf16>
    tpu.vector_store %arg10[%c0_69, %c64_70], %66 {strides = array<i32>} : memref<64x576xbf16, #tpu.memory_space<vmem>>, vector<64x64xbf16>,
    %c0_71 = arith.constant 0 : index
    %c2_72 = arith.constant 2 : index
    %c0_73 = arith.constant 0 : index
    %68 = vector.load %arg9[%c0_71, %c2_72, %c0_73] : memref<10x10x64xf32, #tpu.memory_space<vmem>>, vector<8x8x64xf32>
    %69 = vector.shape_cast %68 : vector<8x8x64xf32> to vector<64x64xf32>
    %70 = arith.truncf %69 : vector<64x64xf32> to vector<64x64xbf16>
    %c0_74 = arith.constant 0 : index
    %c128_75 = arith.constant 128 : index
    %71 = vector.load %arg10[%c0_74, %c128_75] : memref<64x576xbf16, #tpu.memory_space<vmem>>, vector<64x64xbf16>
    tpu.vector_store %arg10[%c0_74, %c128_75], %70 {strides = array<i32>} : memref<64x576xbf16, #tpu.memory_space<vmem>>, vector<64x64xbf16>,
    %c1_76 = arith.constant 1 : index
    %c0_77 = arith.constant 0 : index
    %c0_78 = arith.constant 0 : index
    %72 = vector.load %arg9[%c1_76, %c0_77, %c0_78] : memref<10x10x64xf32, #tpu.memory_space<vmem>>, vector<8x8x64xf32>
    %73 = vector.shape_cast %72 : vector<8x8x64xf32> to vector<64x64xf32>
    %74 = arith.truncf %73 : vector<64x64xf32> to vector<64x64xbf16>
    %c0_79 = arith.constant 0 : index
    %c192_80 = arith.constant 192 : index
    %75 = vector.load %arg10[%c0_79, %c192_80] : memref<64x576xbf16, #tpu.memory_space<vmem>>, vector<64x64xbf16>
    tpu.vector_store %arg10[%c0_79, %c192_80], %74 {strides = array<i32>} : memref<64x576xbf16, #tpu.memory_space<vmem>>, vector<64x64xbf16>,
    %c1_81 = arith.constant 1 : index
    %c1_82 = arith.constant 1 : index
    %c0_83 = arith.constant 0 : index
    %76 = vector.load %arg9[%c1_81, %c1_82, %c0_83] : memref<10x10x64xf32, #tpu.memory_space<vmem>>, vector<8x8x64xf32>
    %77 = vector.shape_cast %76 : vector<8x8x64xf32> to vector<64x64xf32>
    %78 = arith.truncf %77 : vector<64x64xf32> to vector<64x64xbf16>
    %c0_84 = arith.constant 0 : index
    %c256_85 = arith.constant 256 : index
    %79 = vector.load %arg10[%c0_84, %c256_85] : memref<64x576xbf16, #tpu.memory_space<vmem>>, vector<64x64xbf16>
    tpu.vector_store %arg10[%c0_84, %c256_85], %78 {strides = array<i32>} : memref<64x576xbf16, #tpu.memory_space<vmem>>, vector<64x64xbf16>,
    %c1_86 = arith.constant 1 : index
    %c2_87 = arith.constant 2 : index
    %c0_88 = arith.constant 0 : index
    %80 = vector.load %arg9[%c1_86, %c2_87, %c0_88] : memref<10x10x64xf32, #tpu.memory_space<vmem>>, vector<8x8x64xf32>
    %81 = vector.shape_cast %80 : vector<8x8x64xf32> to vector<64x64xf32>
    %82 = arith.truncf %81 : vector<64x64xf32> to vector<64x64xbf16>
    %c0_89 = arith.constant 0 : index
    %c320_90 = arith.constant 320 : index
    %83 = vector.load %arg10[%c0_89, %c320_90] : memref<64x576xbf16, #tpu.memory_space<vmem>>, vector<64x64xbf16>
    tpu.vector_store %arg10[%c0_89, %c320_90], %82 {strides = array<i32>} : memref<64x576xbf16, #tpu.memory_space<vmem>>, vector<64x64xbf16>,
    %c2_91 = arith.constant 2 : index
    %c0_92 = arith.constant 0 : index
    %c0_93 = arith.constant 0 : index
    %84 = vector.load %arg9[%c2_91, %c0_92, %c0_93] : memref<10x10x64xf32, #tpu.memory_space<vmem>>, vector<8x8x64xf32>
    %85 = vector.shape_cast %84 : vector<8x8x64xf32> to vector<64x64xf32>
    %86 = arith.truncf %85 : vector<64x64xf32> to vector<64x64xbf16>
    %c0_94 = arith.constant 0 : index
    %c384_95 = arith.constant 384 : index
    %87 = vector.load %arg10[%c0_94, %c384_95] : memref<64x576xbf16, #tpu.memory_space<vmem>>, vector<64x64xbf16>
    tpu.vector_store %arg10[%c0_94, %c384_95], %86 {strides = array<i32>} : memref<64x576xbf16, #tpu.memory_space<vmem>>, vector<64x64xbf16>,
    %c2_96 = arith.constant 2 : index
    %c1_97 = arith.constant 1 : index
    %c0_98 = arith.constant 0 : index
    %88 = vector.load %arg9[%c2_96, %c1_97, %c0_98] : memref<10x10x64xf32, #tpu.memory_space<vmem>>, vector<8x8x64xf32>
    %89 = vector.shape_cast %88 : vector<8x8x64xf32> to vector<64x64xf32>
    %90 = arith.truncf %89 : vector<64x64xf32> to vector<64x64xbf16>
    %c0_99 = arith.constant 0 : index
    %c448_100 = arith.constant 448 : index
    %91 = vector.load %arg10[%c0_99, %c448_100] : memref<64x576xbf16, #tpu.memory_space<vmem>>, vector<64x64xbf16>
    tpu.vector_store %arg10[%c0_99, %c448_100], %90 {strides = array<i32>} : memref<64x576xbf16, #tpu.memory_space<vmem>>, vector<64x64xbf16>,
    %c2_101 = arith.constant 2 : index
    %c2_102 = arith.constant 2 : index
    %c0_103 = arith.constant 0 : index
    %92 = vector.load %arg9[%c2_101, %c2_102, %c0_103] : memref<10x10x64xf32, #tpu.memory_space<vmem>>, vector<8x8x64xf32>
    %93 = vector.shape_cast %92 : vector<8x8x64xf32> to vector<64x64xf32>
    %94 = arith.truncf %93 : vector<64x64xf32> to vector<64x64xbf16>
    %c0_104 = arith.constant 0 : index
    %c512_105 = arith.constant 512 : index
    %95 = vector.load %arg10[%c0_104, %c512_105] : memref<64x576xbf16, #tpu.memory_space<vmem>>, vector<64x64xbf16>
    tpu.vector_store %arg10[%c0_104, %c512_105], %94 {strides = array<i32>} : memref<64x576xbf16, #tpu.memory_space<vmem>>, vector<64x64xbf16>,
    %c0_106 = arith.constant 0 : index
    %c0_107 = arith.constant 0 : index
    %96 = vector.load %arg10[%c0_106, %c0_107] : memref<64x576xbf16, #tpu.memory_space<vmem>>, vector<64x576xbf16>
    %c1_108 = arith.constant 1 : index
    %c0_109 = arith.constant 0 : index
    %c0_110 = arith.constant 0 : index
    %97 = vector.load %arg3[%c1_108, %c0_109, %c0_110] : memref<7x576x64xbf16, #tpu.memory_space<vmem>>, vector<1x576x64xbf16>
    %98 = vector.shape_cast %97 : vector<1x576x64xbf16> to vector<576x64xbf16>
    %cst_111 = arith.constant dense<0.000000e+00> : vector<64x64xf32>
    %99 = tpu.matmul %96, %98, %cst_111 {dimension_numbers = #tpu.dot_dimension_numbers<[1], [0], [0], [1], [0, 0, 1, 1], [], []>} : vector<64x576xbf16>, vector<576x64xbf16>, vector<64x64xf32> -> vector<64x64xf32>
    %c1_112 = arith.constant 1 : index
    %c0_113 = arith.constant 0 : index
    %c0_114 = arith.constant 0 : index
    %100 = vector.load %arg4[%c1_112, %c0_113, %c0_114] : memref<7x1x64xf32, #tpu.memory_space<vmem>>, vector<1x1x64xf32>
    %101 = vector.shape_cast %100 : vector<1x1x64xf32> to vector<1x64xf32>
    %102 = vector.broadcast %101 : vector<1x64xf32> to vector<64x64xf32>
    %103 = arith.mulf %99, %102 : vector<64x64xf32>
    %c1_115 = arith.constant 1 : index
    %c0_116 = arith.constant 0 : index
    %c0_117 = arith.constant 0 : index
    %104 = vector.load %arg5[%c1_115, %c0_116, %c0_117] : memref<7x1x64xf32, #tpu.memory_space<vmem>>, vector<1x1x64xf32>
    %105 = vector.shape_cast %104 : vector<1x1x64xf32> to vector<1x64xf32>
    %106 = vector.broadcast %105 : vector<1x64xf32> to vector<64x64xf32>
    %107 = arith.addf %103, %106 : vector<64x64xf32>
    %cst_118 = arith.constant 0.000000e+00 : f32
    %108 = vector.broadcast %cst_118 : f32 to vector<64x64xf32>
    %109 = arith.cmpf oge, %107, %108 : vector<64x64xf32>
    %cst_119 = arith.constant 0.00999999977 : f32
    %110 = vector.broadcast %cst_119 : f32 to vector<64x64xf32>
    %111 = arith.mulf %110, %107 : vector<64x64xf32>
    %112 = arith.select %109, %107, %111 : vector<64x64xi1>, vector<64x64xf32>
    %113 = vector.shape_cast %112 : vector<64x64xf32> to vector<8x8x64xf32>
    %c1_120 = arith.constant 1 : index
    %c1_121 = arith.constant 1 : index
    %c0_122 = arith.constant 0 : index
    %114 = vector.load %arg9[%c1_120, %c1_121, %c0_122] : memref<10x10x64xf32, #tpu.memory_space<vmem>>, vector<8x8x64xf32>
    tpu.vector_store %arg9[%c1_120, %c1_121, %c0_122], %113 {strides = array<i32>} : memref<10x10x64xf32, #tpu.memory_space<vmem>>, vector<8x8x64xf32>,
    %c0_123 = arith.constant 0 : index
    %c0_124 = arith.constant 0 : index
    %c0_125 = arith.constant 0 : index
    %115 = vector.load %arg9[%c0_123, %c0_124, %c0_125] : memref<10x10x64xf32, #tpu.memory_space<vmem>>, vector<8x8x64xf32>
    %116 = vector.shape_cast %115 : vector<8x8x64xf32> to vector<64x64xf32>
    %117 = arith.truncf %116 : vector<64x64xf32> to vector<64x64xbf16>
    %c0_126 = arith.constant 0 : index
    %c0_127 = arith.constant 0 : index
    %118 = vector.load %arg10[%c0_126, %c0_127] : memref<64x576xbf16, #tpu.memory_space<vmem>>, vector<64x64xbf16>
    tpu.vector_store %arg10[%c0_126, %c0_127], %117 {strides = array<i32>} : memref<64x576xbf16, #tpu.memory_space<vmem>>, vector<64x64xbf16>,
    %c0_128 = arith.constant 0 : index
    %c1_129 = arith.constant 1 : index
    %c0_130 = arith.constant 0 : index
    %119 = vector.load %arg9[%c0_128, %c1_129, %c0_130] : memref<10x10x64xf32, #tpu.memory_space<vmem>>, vector<8x8x64xf32>
    %120 = vector.shape_cast %119 : vector<8x8x64xf32> to vector<64x64xf32>
    %121 = arith.truncf %120 : vector<64x64xf32> to vector<64x64xbf16>
    %c0_131 = arith.constant 0 : index
    %c64_132 = arith.constant 64 : index
    %122 = vector.load %arg10[%c0_131, %c64_132] : memref<64x576xbf16, #tpu.memory_space<vmem>>, vector<64x64xbf16>
    tpu.vector_store %arg10[%c0_131, %c64_132], %121 {strides = array<i32>} : memref<64x576xbf16, #tpu.memory_space<vmem>>, vector<64x64xbf16>,
    %c0_133 = arith.constant 0 : index
    %c2_134 = arith.constant 2 : index
    %c0_135 = arith.constant 0 : index
    %123 = vector.load %arg9[%c0_133, %c2_134, %c0_135] : memref<10x10x64xf32, #tpu.memory_space<vmem>>, vector<8x8x64xf32>
    %124 = vector.shape_cast %123 : vector<8x8x64xf32> to vector<64x64xf32>
    %125 = arith.truncf %124 : vector<64x64xf32> to vector<64x64xbf16>
    %c0_136 = arith.constant 0 : index
    %c128_137 = arith.constant 128 : index
    %126 = vector.load %arg10[%c0_136, %c128_137] : memref<64x576xbf16, #tpu.memory_space<vmem>>, vector<64x64xbf16>
    tpu.vector_store %arg10[%c0_136, %c128_137], %125 {strides = array<i32>} : memref<64x576xbf16, #tpu.memory_space<vmem>>, vector<64x64xbf16>,
    %c1_138 = arith.constant 1 : index
    %c0_139 = arith.constant 0 : index
    %c0_140 = arith.constant 0 : index
    %127 = vector.load %arg9[%c1_138, %c0_139, %c0_140] : memref<10x10x64xf32, #tpu.memory_space<vmem>>, vector<8x8x64xf32>
    %128 = vector.shape_cast %127 : vector<8x8x64xf32> to vector<64x64xf32>
    %129 = arith.truncf %128 : vector<64x64xf32> to vector<64x64xbf16>
    %c0_141 = arith.constant 0 : index
    %c192_142 = arith.constant 192 : index
    %130 = vector.load %arg10[%c0_141, %c192_142] : memref<64x576xbf16, #tpu.memory_space<vmem>>, vector<64x64xbf16>
    tpu.vector_store %arg10[%c0_141, %c192_142], %129 {strides = array<i32>} : memref<64x576xbf16, #tpu.memory_space<vmem>>, vector<64x64xbf16>,
    %c1_143 = arith.constant 1 : index
    %c1_144 = arith.constant 1 : index
    %c0_145 = arith.constant 0 : index
    %131 = vector.load %arg9[%c1_143, %c1_144, %c0_145] : memref<10x10x64xf32, #tpu.memory_space<vmem>>, vector<8x8x64xf32>
    %132 = vector.shape_cast %131 : vector<8x8x64xf32> to vector<64x64xf32>
    %133 = arith.truncf %132 : vector<64x64xf32> to vector<64x64xbf16>
    %c0_146 = arith.constant 0 : index
    %c256_147 = arith.constant 256 : index
    %134 = vector.load %arg10[%c0_146, %c256_147] : memref<64x576xbf16, #tpu.memory_space<vmem>>, vector<64x64xbf16>
    tpu.vector_store %arg10[%c0_146, %c256_147], %133 {strides = array<i32>} : memref<64x576xbf16, #tpu.memory_space<vmem>>, vector<64x64xbf16>,
    %c1_148 = arith.constant 1 : index
    %c2_149 = arith.constant 2 : index
    %c0_150 = arith.constant 0 : index
    %135 = vector.load %arg9[%c1_148, %c2_149, %c0_150] : memref<10x10x64xf32, #tpu.memory_space<vmem>>, vector<8x8x64xf32>
    %136 = vector.shape_cast %135 : vector<8x8x64xf32> to vector<64x64xf32>
    %137 = arith.truncf %136 : vector<64x64xf32> to vector<64x64xbf16>
    %c0_151 = arith.constant 0 : index
    %c320_152 = arith.constant 320 : index
    %138 = vector.load %arg10[%c0_151, %c320_152] : memref<64x576xbf16, #tpu.memory_space<vmem>>, vector<64x64xbf16>
    tpu.vector_store %arg10[%c0_151, %c320_152], %137 {strides = array<i32>} : memref<64x576xbf16, #tpu.memory_space<vmem>>, vector<64x64xbf16>,
    %c2_153 = arith.constant 2 : index
    %c0_154 = arith.constant 0 : index
    %c0_155 = arith.constant 0 : index
    %139 = vector.load %arg9[%c2_153, %c0_154, %c0_155] : memref<10x10x64xf32, #tpu.memory_space<vmem>>, vector<8x8x64xf32>
    %140 = vector.shape_cast %139 : vector<8x8x64xf32> to vector<64x64xf32>
    %141 = arith.truncf %140 : vector<64x64xf32> to vector<64x64xbf16>
    %c0_156 = arith.constant 0 : index
    %c384_157 = arith.constant 384 : index
    %142 = vector.load %arg10[%c0_156, %c384_157] : memref<64x576xbf16, #tpu.memory_space<vmem>>, vector<64x64xbf16>
    tpu.vector_store %arg10[%c0_156, %c384_157], %141 {strides = array<i32>} : memref<64x576xbf16, #tpu.memory_space<vmem>>, vector<64x64xbf16>,
    %c2_158 = arith.constant 2 : index
    %c1_159 = arith.constant 1 : index
    %c0_160 = arith.constant 0 : index
    %143 = vector.load %arg9[%c2_158, %c1_159, %c0_160] : memref<10x10x64xf32, #tpu.memory_space<vmem>>, vector<8x8x64xf32>
    %144 = vector.shape_cast %143 : vector<8x8x64xf32> to vector<64x64xf32>
    %145 = arith.truncf %144 : vector<64x64xf32> to vector<64x64xbf16>
    %c0_161 = arith.constant 0 : index
    %c448_162 = arith.constant 448 : index
    %146 = vector.load %arg10[%c0_161, %c448_162] : memref<64x576xbf16, #tpu.memory_space<vmem>>, vector<64x64xbf16>
    tpu.vector_store %arg10[%c0_161, %c448_162], %145 {strides = array<i32>} : memref<64x576xbf16, #tpu.memory_space<vmem>>, vector<64x64xbf16>,
    %c2_163 = arith.constant 2 : index
    %c2_164 = arith.constant 2 : index
    %c0_165 = arith.constant 0 : index
    %147 = vector.load %arg9[%c2_163, %c2_164, %c0_165] : memref<10x10x64xf32, #tpu.memory_space<vmem>>, vector<8x8x64xf32>
    %148 = vector.shape_cast %147 : vector<8x8x64xf32> to vector<64x64xf32>
    %149 = arith.truncf %148 : vector<64x64xf32> to vector<64x64xbf16>
    %c0_166 = arith.constant 0 : index
    %c512_167 = arith.constant 512 : index
    %150 = vector.load %arg10[%c0_166, %c512_167] : memref<64x576xbf16, #tpu.memory_space<vmem>>, vector<64x64xbf16>
    tpu.vector_store %arg10[%c0_166, %c512_167], %149 {strides = array<i32>} : memref<64x576xbf16, #tpu.memory_space<vmem>>, vector<64x64xbf16>,
    %c0_168 = arith.constant 0 : index
    %c0_169 = arith.constant 0 : index
    %151 = vector.load %arg10[%c0_168, %c0_169] : memref<64x576xbf16, #tpu.memory_space<vmem>>, vector<64x576xbf16>
    %c2_170 = arith.constant 2 : index
    %c0_171 = arith.constant 0 : index
    %c0_172 = arith.constant 0 : index
    %152 = vector.load %arg3[%c2_170, %c0_171, %c0_172] : memref<7x576x64xbf16, #tpu.memory_space<vmem>>, vector<1x576x64xbf16>
    %153 = vector.shape_cast %152 : vector<1x576x64xbf16> to vector<576x64xbf16>
    %cst_173 = arith.constant dense<0.000000e+00> : vector<64x64xf32>
    %154 = tpu.matmul %151, %153, %cst_173 {dimension_numbers = #tpu.dot_dimension_numbers<[1], [0], [0], [1], [0, 0, 1, 1], [], []>} : vector<64x576xbf16>, vector<576x64xbf16>, vector<64x64xf32> -> vector<64x64xf32>
    %c2_174 = arith.constant 2 : index
    %c0_175 = arith.constant 0 : index
    %c0_176 = arith.constant 0 : index
    %155 = vector.load %arg4[%c2_174, %c0_175, %c0_176] : memref<7x1x64xf32, #tpu.memory_space<vmem>>, vector<1x1x64xf32>
    %156 = vector.shape_cast %155 : vector<1x1x64xf32> to vector<1x64xf32>
    %157 = vector.broadcast %156 : vector<1x64xf32> to vector<64x64xf32>
    %158 = arith.mulf %154, %157 : vector<64x64xf32>
    %c2_177 = arith.constant 2 : index
    %c0_178 = arith.constant 0 : index
    %c0_179 = arith.constant 0 : index
    %159 = vector.load %arg5[%c2_177, %c0_178, %c0_179] : memref<7x1x64xf32, #tpu.memory_space<vmem>>, vector<1x1x64xf32>
    %160 = vector.shape_cast %159 : vector<1x1x64xf32> to vector<1x64xf32>
    %161 = vector.broadcast %160 : vector<1x64xf32> to vector<64x64xf32>
    %162 = arith.addf %158, %161 : vector<64x64xf32>
    %163 = arith.addf %57, %162 : vector<64x64xf32>
    %cst_180 = arith.constant 0.000000e+00 : f32
    %164 = vector.broadcast %cst_180 : f32 to vector<64x64xf32>
    %165 = arith.cmpf oge, %163, %164 : vector<64x64xf32>
    %cst_181 = arith.constant 0.00999999977 : f32
    %166 = vector.broadcast %cst_181 : f32 to vector<64x64xf32>
    %167 = arith.mulf %166, %163 : vector<64x64xf32>
    %168 = arith.select %165, %163, %167 : vector<64x64xi1>, vector<64x64xf32>
    %169 = vector.shape_cast %168 : vector<64x64xf32> to vector<8x8x64xf32>
    %c1_182 = arith.constant 1 : index
    %c1_183 = arith.constant 1 : index
    %c0_184 = arith.constant 0 : index
    %170 = vector.load %arg9[%c1_182, %c1_183, %c0_184] : memref<10x10x64xf32, #tpu.memory_space<vmem>>, vector<8x8x64xf32>
    tpu.vector_store %arg9[%c1_182, %c1_183, %c0_184], %169 {strides = array<i32>} : memref<10x10x64xf32, #tpu.memory_space<vmem>>, vector<8x8x64xf32>,
    %c0_185 = arith.constant 0 : index
    %c0_186 = arith.constant 0 : index
    %c0_187 = arith.constant 0 : index
    %171 = vector.load %arg9[%c0_185, %c0_186, %c0_187] : memref<10x10x64xf32, #tpu.memory_space<vmem>>, vector<8x8x64xf32>
    %172 = vector.shape_cast %171 : vector<8x8x64xf32> to vector<64x64xf32>
    %173 = arith.truncf %172 : vector<64x64xf32> to vector<64x64xbf16>
    %c0_188 = arith.constant 0 : index
    %c0_189 = arith.constant 0 : index
    %174 = vector.load %arg10[%c0_188, %c0_189] : memref<64x576xbf16, #tpu.memory_space<vmem>>, vector<64x64xbf16>
    tpu.vector_store %arg10[%c0_188, %c0_189], %173 {strides = array<i32>} : memref<64x576xbf16, #tpu.memory_space<vmem>>, vector<64x64xbf16>,
    %c0_190 = arith.constant 0 : index
    %c1_191 = arith.constant 1 : index
    %c0_192 = arith.constant 0 : index
    %175 = vector.load %arg9[%c0_190, %c1_191, %c0_192] : memref<10x10x64xf32, #tpu.memory_space<vmem>>, vector<8x8x64xf32>
    %176 = vector.shape_cast %175 : vector<8x8x64xf32> to vector<64x64xf32>
    %177 = arith.truncf %176 : vector<64x64xf32> to vector<64x64xbf16>
    %c0_193 = arith.constant 0 : index
    %c64_194 = arith.constant 64 : index
    %178 = vector.load %arg10[%c0_193, %c64_194] : memref<64x576xbf16, #tpu.memory_space<vmem>>, vector<64x64xbf16>
    tpu.vector_store %arg10[%c0_193, %c64_194], %177 {strides = array<i32>} : memref<64x576xbf16, #tpu.memory_space<vmem>>, vector<64x64xbf16>,
    %c0_195 = arith.constant 0 : index
    %c2_196 = arith.constant 2 : index
    %c0_197 = arith.constant 0 : index
    %179 = vector.load %arg9[%c0_195, %c2_196, %c0_197] : memref<10x10x64xf32, #tpu.memory_space<vmem>>, vector<8x8x64xf32>
    %180 = vector.shape_cast %179 : vector<8x8x64xf32> to vector<64x64xf32>
    %181 = arith.truncf %180 : vector<64x64xf32> to vector<64x64xbf16>
    %c0_198 = arith.constant 0 : index
    %c128_199 = arith.constant 128 : index
    %182 = vector.load %arg10[%c0_198, %c128_199] : memref<64x576xbf16, #tpu.memory_space<vmem>>, vector<64x64xbf16>
    tpu.vector_store %arg10[%c0_198, %c128_199], %181 {strides = array<i32>} : memref<64x576xbf16, #tpu.memory_space<vmem>>, vector<64x64xbf16>,
    %c1_200 = arith.constant 1 : index
    %c0_201 = arith.constant 0 : index
    %c0_202 = arith.constant 0 : index
    %183 = vector.load %arg9[%c1_200, %c0_201, %c0_202] : memref<10x10x64xf32, #tpu.memory_space<vmem>>, vector<8x8x64xf32>
    %184 = vector.shape_cast %183 : vector<8x8x64xf32> to vector<64x64xf32>
    %185 = arith.truncf %184 : vector<64x64xf32> to vector<64x64xbf16>
    %c0_203 = arith.constant 0 : index
    %c192_204 = arith.constant 192 : index
    %186 = vector.load %arg10[%c0_203, %c192_204] : memref<64x576xbf16, #tpu.memory_space<vmem>>, vector<64x64xbf16>
    tpu.vector_store %arg10[%c0_203, %c192_204], %185 {strides = array<i32>} : memref<64x576xbf16, #tpu.memory_space<vmem>>, vector<64x64xbf16>,
    %c1_205 = arith.constant 1 : index
    %c1_206 = arith.constant 1 : index
    %c0_207 = arith.constant 0 : index
    %187 = vector.load %arg9[%c1_205, %c1_206, %c0_207] : memref<10x10x64xf32, #tpu.memory_space<vmem>>, vector<8x8x64xf32>
    %188 = vector.shape_cast %187 : vector<8x8x64xf32> to vector<64x64xf32>
    %189 = arith.truncf %188 : vector<64x64xf32> to vector<64x64xbf16>
    %c0_208 = arith.constant 0 : index
    %c256_209 = arith.constant 256 : index
    %190 = vector.load %arg10[%c0_208, %c256_209] : memref<64x576xbf16, #tpu.memory_space<vmem>>, vector<64x64xbf16>
    tpu.vector_store %arg10[%c0_208, %c256_209], %189 {strides = array<i32>} : memref<64x576xbf16, #tpu.memory_space<vmem>>, vector<64x64xbf16>,
    %c1_210 = arith.constant 1 : index
    %c2_211 = arith.constant 2 : index
    %c0_212 = arith.constant 0 : index
    %191 = vector.load %arg9[%c1_210, %c2_211, %c0_212] : memref<10x10x64xf32, #tpu.memory_space<vmem>>, vector<8x8x64xf32>
    %192 = vector.shape_cast %191 : vector<8x8x64xf32> to vector<64x64xf32>
    %193 = arith.truncf %192 : vector<64x64xf32> to vector<64x64xbf16>
    %c0_213 = arith.constant 0 : index
    %c320_214 = arith.constant 320 : index
    %194 = vector.load %arg10[%c0_213, %c320_214] : memref<64x576xbf16, #tpu.memory_space<vmem>>, vector<64x64xbf16>
    tpu.vector_store %arg10[%c0_213, %c320_214], %193 {strides = array<i32>} : memref<64x576xbf16, #tpu.memory_space<vmem>>, vector<64x64xbf16>,
    %c2_215 = arith.constant 2 : index
    %c0_216 = arith.constant 0 : index
    %c0_217 = arith.constant 0 : index
    %195 = vector.load %arg9[%c2_215, %c0_216, %c0_217] : memref<10x10x64xf32, #tpu.memory_space<vmem>>, vector<8x8x64xf32>
    %196 = vector.shape_cast %195 : vector<8x8x64xf32> to vector<64x64xf32>
    %197 = arith.truncf %196 : vector<64x64xf32> to vector<64x64xbf16>
    %c0_218 = arith.constant 0 : index
    %c384_219 = arith.constant 384 : index
    %198 = vector.load %arg10[%c0_218, %c384_219] : memref<64x576xbf16, #tpu.memory_space<vmem>>, vector<64x64xbf16>
    tpu.vector_store %arg10[%c0_218, %c384_219], %197 {strides = array<i32>} : memref<64x576xbf16, #tpu.memory_space<vmem>>, vector<64x64xbf16>,
    %c2_220 = arith.constant 2 : index
    %c1_221 = arith.constant 1 : index
    %c0_222 = arith.constant 0 : index
    %199 = vector.load %arg9[%c2_220, %c1_221, %c0_222] : memref<10x10x64xf32, #tpu.memory_space<vmem>>, vector<8x8x64xf32>
    %200 = vector.shape_cast %199 : vector<8x8x64xf32> to vector<64x64xf32>
    %201 = arith.truncf %200 : vector<64x64xf32> to vector<64x64xbf16>
    %c0_223 = arith.constant 0 : index
    %c448_224 = arith.constant 448 : index
    %202 = vector.load %arg10[%c0_223, %c448_224] : memref<64x576xbf16, #tpu.memory_space<vmem>>, vector<64x64xbf16>
    tpu.vector_store %arg10[%c0_223, %c448_224], %201 {strides = array<i32>} : memref<64x576xbf16, #tpu.memory_space<vmem>>, vector<64x64xbf16>,
    %c2_225 = arith.constant 2 : index
    %c2_226 = arith.constant 2 : index
    %c0_227 = arith.constant 0 : index
    %203 = vector.load %arg9[%c2_225, %c2_226, %c0_227] : memref<10x10x64xf32, #tpu.memory_space<vmem>>, vector<8x8x64xf32>
    %204 = vector.shape_cast %203 : vector<8x8x64xf32> to vector<64x64xf32>
    %205 = arith.truncf %204 : vector<64x64xf32> to vector<64x64xbf16>
    %c0_228 = arith.constant 0 : index
    %c512_229 = arith.constant 512 : index
    %206 = vector.load %arg10[%c0_228, %c512_229] : memref<64x576xbf16, #tpu.memory_space<vmem>>, vector<64x64xbf16>
    tpu.vector_store %arg10[%c0_228, %c512_229], %205 {strides = array<i32>} : memref<64x576xbf16, #tpu.memory_space<vmem>>, vector<64x64xbf16>,
    %c0_230 = arith.constant 0 : index
    %c0_231 = arith.constant 0 : index
    %207 = vector.load %arg10[%c0_230, %c0_231] : memref<64x576xbf16, #tpu.memory_space<vmem>>, vector<64x576xbf16>
    %c3 = arith.constant 3 : index
    %c0_232 = arith.constant 0 : index
    %c0_233 = arith.constant 0 : index
    %208 = vector.load %arg3[%c3, %c0_232, %c0_233] : memref<7x576x64xbf16, #tpu.memory_space<vmem>>, vector<1x576x64xbf16>
    %209 = vector.shape_cast %208 : vector<1x576x64xbf16> to vector<576x64xbf16>
    %cst_234 = arith.constant dense<0.000000e+00> : vector<64x64xf32>
    %210 = tpu.matmul %207, %209, %cst_234 {dimension_numbers = #tpu.dot_dimension_numbers<[1], [0], [0], [1], [0, 0, 1, 1], [], []>} : vector<64x576xbf16>, vector<576x64xbf16>, vector<64x64xf32> -> vector<64x64xf32>
    %c3_235 = arith.constant 3 : index
    %c0_236 = arith.constant 0 : index
    %c0_237 = arith.constant 0 : index
    %211 = vector.load %arg4[%c3_235, %c0_236, %c0_237] : memref<7x1x64xf32, #tpu.memory_space<vmem>>, vector<1x1x64xf32>
    %212 = vector.shape_cast %211 : vector<1x1x64xf32> to vector<1x64xf32>
    %213 = vector.broadcast %212 : vector<1x64xf32> to vector<64x64xf32>
    %214 = arith.mulf %210, %213 : vector<64x64xf32>
    %c3_238 = arith.constant 3 : index
    %c0_239 = arith.constant 0 : index
    %c0_240 = arith.constant 0 : index
    %215 = vector.load %arg5[%c3_238, %c0_239, %c0_240] : memref<7x1x64xf32, #tpu.memory_space<vmem>>, vector<1x1x64xf32>
    %216 = vector.shape_cast %215 : vector<1x1x64xf32> to vector<1x64xf32>
    %217 = vector.broadcast %216 : vector<1x64xf32> to vector<64x64xf32>
    %218 = arith.addf %214, %217 : vector<64x64xf32>
    %cst_241 = arith.constant 0.000000e+00 : f32
    %219 = vector.broadcast %cst_241 : f32 to vector<64x64xf32>
    %220 = arith.cmpf oge, %218, %219 : vector<64x64xf32>
    %cst_242 = arith.constant 0.00999999977 : f32
    %221 = vector.broadcast %cst_242 : f32 to vector<64x64xf32>
    %222 = arith.mulf %221, %218 : vector<64x64xf32>
    %223 = arith.select %220, %218, %222 : vector<64x64xi1>, vector<64x64xf32>
    %224 = vector.shape_cast %223 : vector<64x64xf32> to vector<8x8x64xf32>
    %c1_243 = arith.constant 1 : index
    %c1_244 = arith.constant 1 : index
    %c0_245 = arith.constant 0 : index
    %225 = vector.load %arg9[%c1_243, %c1_244, %c0_245] : memref<10x10x64xf32, #tpu.memory_space<vmem>>, vector<8x8x64xf32>
    tpu.vector_store %arg9[%c1_243, %c1_244, %c0_245], %224 {strides = array<i32>} : memref<10x10x64xf32, #tpu.memory_space<vmem>>, vector<8x8x64xf32>,
    %c0_246 = arith.constant 0 : index
    %c0_247 = arith.constant 0 : index
    %c0_248 = arith.constant 0 : index
    %226 = vector.load %arg9[%c0_246, %c0_247, %c0_248] : memref<10x10x64xf32, #tpu.memory_space<vmem>>, vector<8x8x64xf32>
    %227 = vector.shape_cast %226 : vector<8x8x64xf32> to vector<64x64xf32>
    %228 = arith.truncf %227 : vector<64x64xf32> to vector<64x64xbf16>
    %c0_249 = arith.constant 0 : index
    %c0_250 = arith.constant 0 : index
    %229 = vector.load %arg10[%c0_249, %c0_250] : memref<64x576xbf16, #tpu.memory_space<vmem>>, vector<64x64xbf16>
    tpu.vector_store %arg10[%c0_249, %c0_250], %228 {strides = array<i32>} : memref<64x576xbf16, #tpu.memory_space<vmem>>, vector<64x64xbf16>,
    %c0_251 = arith.constant 0 : index
    %c1_252 = arith.constant 1 : index
    %c0_253 = arith.constant 0 : index
    %230 = vector.load %arg9[%c0_251, %c1_252, %c0_253] : memref<10x10x64xf32, #tpu.memory_space<vmem>>, vector<8x8x64xf32>
    %231 = vector.shape_cast %230 : vector<8x8x64xf32> to vector<64x64xf32>
    %232 = arith.truncf %231 : vector<64x64xf32> to vector<64x64xbf16>
    %c0_254 = arith.constant 0 : index
    %c64_255 = arith.constant 64 : index
    %233 = vector.load %arg10[%c0_254, %c64_255] : memref<64x576xbf16, #tpu.memory_space<vmem>>, vector<64x64xbf16>
    tpu.vector_store %arg10[%c0_254, %c64_255], %232 {strides = array<i32>} : memref<64x576xbf16, #tpu.memory_space<vmem>>, vector<64x64xbf16>,
    %c0_256 = arith.constant 0 : index
    %c2_257 = arith.constant 2 : index
    %c0_258 = arith.constant 0 : index
    %234 = vector.load %arg9[%c0_256, %c2_257, %c0_258] : memref<10x10x64xf32, #tpu.memory_space<vmem>>, vector<8x8x64xf32>
    %235 = vector.shape_cast %234 : vector<8x8x64xf32> to vector<64x64xf32>
    %236 = arith.truncf %235 : vector<64x64xf32> to vector<64x64xbf16>
    %c0_259 = arith.constant 0 : index
    %c128_260 = arith.constant 128 : index
    %237 = vector.load %arg10[%c0_259, %c128_260] : memref<64x576xbf16, #tpu.memory_space<vmem>>, vector<64x64xbf16>
    tpu.vector_store %arg10[%c0_259, %c128_260], %236 {strides = array<i32>} : memref<64x576xbf16, #tpu.memory_space<vmem>>, vector<64x64xbf16>,
    %c1_261 = arith.constant 1 : index
    %c0_262 = arith.constant 0 : index
    %c0_263 = arith.constant 0 : index
    %238 = vector.load %arg9[%c1_261, %c0_262, %c0_263] : memref<10x10x64xf32, #tpu.memory_space<vmem>>, vector<8x8x64xf32>
    %239 = vector.shape_cast %238 : vector<8x8x64xf32> to vector<64x64xf32>
    %240 = arith.truncf %239 : vector<64x64xf32> to vector<64x64xbf16>
    %c0_264 = arith.constant 0 : index
    %c192_265 = arith.constant 192 : index
    %241 = vector.load %arg10[%c0_264, %c192_265] : memref<64x576xbf16, #tpu.memory_space<vmem>>, vector<64x64xbf16>
    tpu.vector_store %arg10[%c0_264, %c192_265], %240 {strides = array<i32>} : memref<64x576xbf16, #tpu.memory_space<vmem>>, vector<64x64xbf16>,
    %c1_266 = arith.constant 1 : index
    %c1_267 = arith.constant 1 : index
    %c0_268 = arith.constant 0 : index
    %242 = vector.load %arg9[%c1_266, %c1_267, %c0_268] : memref<10x10x64xf32, #tpu.memory_space<vmem>>, vector<8x8x64xf32>
    %243 = vector.shape_cast %242 : vector<8x8x64xf32> to vector<64x64xf32>
    %244 = arith.truncf %243 : vector<64x64xf32> to vector<64x64xbf16>
    %c0_269 = arith.constant 0 : index
    %c256_270 = arith.constant 256 : index
    %245 = vector.load %arg10[%c0_269, %c256_270] : memref<64x576xbf16, #tpu.memory_space<vmem>>, vector<64x64xbf16>
    tpu.vector_store %arg10[%c0_269, %c256_270], %244 {strides = array<i32>} : memref<64x576xbf16, #tpu.memory_space<vmem>>, vector<64x64xbf16>,
    %c1_271 = arith.constant 1 : index
    %c2_272 = arith.constant 2 : index
    %c0_273 = arith.constant 0 : index
    %246 = vector.load %arg9[%c1_271, %c2_272, %c0_273] : memref<10x10x64xf32, #tpu.memory_space<vmem>>, vector<8x8x64xf32>
    %247 = vector.shape_cast %246 : vector<8x8x64xf32> to vector<64x64xf32>
    %248 = arith.truncf %247 : vector<64x64xf32> to vector<64x64xbf16>
    %c0_274 = arith.constant 0 : index
    %c320_275 = arith.constant 320 : index
    %249 = vector.load %arg10[%c0_274, %c320_275] : memref<64x576xbf16, #tpu.memory_space<vmem>>, vector<64x64xbf16>
    tpu.vector_store %arg10[%c0_274, %c320_275], %248 {strides = array<i32>} : memref<64x576xbf16, #tpu.memory_space<vmem>>, vector<64x64xbf16>,
    %c2_276 = arith.constant 2 : index
    %c0_277 = arith.constant 0 : index
    %c0_278 = arith.constant 0 : index
    %250 = vector.load %arg9[%c2_276, %c0_277, %c0_278] : memref<10x10x64xf32, #tpu.memory_space<vmem>>, vector<8x8x64xf32>
    %251 = vector.shape_cast %250 : vector<8x8x64xf32> to vector<64x64xf32>
    %252 = arith.truncf %251 : vector<64x64xf32> to vector<64x64xbf16>
    %c0_279 = arith.constant 0 : index
    %c384_280 = arith.constant 384 : index
    %253 = vector.load %arg10[%c0_279, %c384_280] : memref<64x576xbf16, #tpu.memory_space<vmem>>, vector<64x64xbf16>
    tpu.vector_store %arg10[%c0_279, %c384_280], %252 {strides = array<i32>} : memref<64x576xbf16, #tpu.memory_space<vmem>>, vector<64x64xbf16>,
    %c2_281 = arith.constant 2 : index
    %c1_282 = arith.constant 1 : index
    %c0_283 = arith.constant 0 : index
    %254 = vector.load %arg9[%c2_281, %c1_282, %c0_283] : memref<10x10x64xf32, #tpu.memory_space<vmem>>, vector<8x8x64xf32>
    %255 = vector.shape_cast %254 : vector<8x8x64xf32> to vector<64x64xf32>
    %256 = arith.truncf %255 : vector<64x64xf32> to vector<64x64xbf16>
    %c0_284 = arith.constant 0 : index
    %c448_285 = arith.constant 448 : index
    %257 = vector.load %arg10[%c0_284, %c448_285] : memref<64x576xbf16, #tpu.memory_space<vmem>>, vector<64x64xbf16>
    tpu.vector_store %arg10[%c0_284, %c448_285], %256 {strides = array<i32>} : memref<64x576xbf16, #tpu.memory_space<vmem>>, vector<64x64xbf16>,
    %c2_286 = arith.constant 2 : index
    %c2_287 = arith.constant 2 : index
    %c0_288 = arith.constant 0 : index
    %258 = vector.load %arg9[%c2_286, %c2_287, %c0_288] : memref<10x10x64xf32, #tpu.memory_space<vmem>>, vector<8x8x64xf32>
    %259 = vector.shape_cast %258 : vector<8x8x64xf32> to vector<64x64xf32>
    %260 = arith.truncf %259 : vector<64x64xf32> to vector<64x64xbf16>
    %c0_289 = arith.constant 0 : index
    %c512_290 = arith.constant 512 : index
    %261 = vector.load %arg10[%c0_289, %c512_290] : memref<64x576xbf16, #tpu.memory_space<vmem>>, vector<64x64xbf16>
    tpu.vector_store %arg10[%c0_289, %c512_290], %260 {strides = array<i32>} : memref<64x576xbf16, #tpu.memory_space<vmem>>, vector<64x64xbf16>,
    %c0_291 = arith.constant 0 : index
    %c0_292 = arith.constant 0 : index
    %262 = vector.load %arg10[%c0_291, %c0_292] : memref<64x576xbf16, #tpu.memory_space<vmem>>, vector<64x576xbf16>
    %c4 = arith.constant 4 : index
    %c0_293 = arith.constant 0 : index
    %c0_294 = arith.constant 0 : index
    %263 = vector.load %arg3[%c4, %c0_293, %c0_294] : memref<7x576x64xbf16, #tpu.memory_space<vmem>>, vector<1x576x64xbf16>
    %264 = vector.shape_cast %263 : vector<1x576x64xbf16> to vector<576x64xbf16>
    %cst_295 = arith.constant dense<0.000000e+00> : vector<64x64xf32>
    %265 = tpu.matmul %262, %264, %cst_295 {dimension_numbers = #tpu.dot_dimension_numbers<[1], [0], [0], [1], [0, 0, 1, 1], [], []>} : vector<64x576xbf16>, vector<576x64xbf16>, vector<64x64xf32> -> vector<64x64xf32>
    %c4_296 = arith.constant 4 : index
    %c0_297 = arith.constant 0 : index
    %c0_298 = arith.constant 0 : index
    %266 = vector.load %arg4[%c4_296, %c0_297, %c0_298] : memref<7x1x64xf32, #tpu.memory_space<vmem>>, vector<1x1x64xf32>
    %267 = vector.shape_cast %266 : vector<1x1x64xf32> to vector<1x64xf32>
    %268 = vector.broadcast %267 : vector<1x64xf32> to vector<64x64xf32>
    %269 = arith.mulf %265, %268 : vector<64x64xf32>
    %c4_299 = arith.constant 4 : index
    %c0_300 = arith.constant 0 : index
    %c0_301 = arith.constant 0 : index
    %270 = vector.load %arg5[%c4_299, %c0_300, %c0_301] : memref<7x1x64xf32, #tpu.memory_space<vmem>>, vector<1x1x64xf32>
    %271 = vector.shape_cast %270 : vector<1x1x64xf32> to vector<1x64xf32>
    %272 = vector.broadcast %271 : vector<1x64xf32> to vector<64x64xf32>
    %273 = arith.addf %269, %272 : vector<64x64xf32>
    %274 = arith.addf %168, %273 : vector<64x64xf32>
    %cst_302 = arith.constant 0.000000e+00 : f32
    %275 = vector.broadcast %cst_302 : f32 to vector<64x64xf32>
    %276 = arith.cmpf oge, %274, %275 : vector<64x64xf32>
    %cst_303 = arith.constant 0.00999999977 : f32
    %277 = vector.broadcast %cst_303 : f32 to vector<64x64xf32>
    %278 = arith.mulf %277, %274 : vector<64x64xf32>
    %279 = arith.select %276, %274, %278 : vector<64x64xi1>, vector<64x64xf32>
    %280 = vector.shape_cast %279 : vector<64x64xf32> to vector<8x8x64xf32>
    %c1_304 = arith.constant 1 : index
    %c1_305 = arith.constant 1 : index
    %c0_306 = arith.constant 0 : index
    %281 = vector.load %arg9[%c1_304, %c1_305, %c0_306] : memref<10x10x64xf32, #tpu.memory_space<vmem>>, vector<8x8x64xf32>
    tpu.vector_store %arg9[%c1_304, %c1_305, %c0_306], %280 {strides = array<i32>} : memref<10x10x64xf32, #tpu.memory_space<vmem>>, vector<8x8x64xf32>,
    %c0_307 = arith.constant 0 : index
    %c0_308 = arith.constant 0 : index
    %c0_309 = arith.constant 0 : index
    %282 = vector.load %arg9[%c0_307, %c0_308, %c0_309] : memref<10x10x64xf32, #tpu.memory_space<vmem>>, vector<8x8x64xf32>
    %283 = vector.shape_cast %282 : vector<8x8x64xf32> to vector<64x64xf32>
    %284 = arith.truncf %283 : vector<64x64xf32> to vector<64x64xbf16>
    %c0_310 = arith.constant 0 : index
    %c0_311 = arith.constant 0 : index
    %285 = vector.load %arg10[%c0_310, %c0_311] : memref<64x576xbf16, #tpu.memory_space<vmem>>, vector<64x64xbf16>
    tpu.vector_store %arg10[%c0_310, %c0_311], %284 {strides = array<i32>} : memref<64x576xbf16, #tpu.memory_space<vmem>>, vector<64x64xbf16>,
    %c0_312 = arith.constant 0 : index
    %c1_313 = arith.constant 1 : index
    %c0_314 = arith.constant 0 : index
    %286 = vector.load %arg9[%c0_312, %c1_313, %c0_314] : memref<10x10x64xf32, #tpu.memory_space<vmem>>, vector<8x8x64xf32>
    %287 = vector.shape_cast %286 : vector<8x8x64xf32> to vector<64x64xf32>
    %288 = arith.truncf %287 : vector<64x64xf32> to vector<64x64xbf16>
    %c0_315 = arith.constant 0 : index
    %c64_316 = arith.constant 64 : index
    %289 = vector.load %arg10[%c0_315, %c64_316] : memref<64x576xbf16, #tpu.memory_space<vmem>>, vector<64x64xbf16>
    tpu.vector_store %arg10[%c0_315, %c64_316], %288 {strides = array<i32>} : memref<64x576xbf16, #tpu.memory_space<vmem>>, vector<64x64xbf16>,
    %c0_317 = arith.constant 0 : index
    %c2_318 = arith.constant 2 : index
    %c0_319 = arith.constant 0 : index
    %290 = vector.load %arg9[%c0_317, %c2_318, %c0_319] : memref<10x10x64xf32, #tpu.memory_space<vmem>>, vector<8x8x64xf32>
    %291 = vector.shape_cast %290 : vector<8x8x64xf32> to vector<64x64xf32>
    %292 = arith.truncf %291 : vector<64x64xf32> to vector<64x64xbf16>
    %c0_320 = arith.constant 0 : index
    %c128_321 = arith.constant 128 : index
    %293 = vector.load %arg10[%c0_320, %c128_321] : memref<64x576xbf16, #tpu.memory_space<vmem>>, vector<64x64xbf16>
    tpu.vector_store %arg10[%c0_320, %c128_321], %292 {strides = array<i32>} : memref<64x576xbf16, #tpu.memory_space<vmem>>, vector<64x64xbf16>,
    %c1_322 = arith.constant 1 : index
    %c0_323 = arith.constant 0 : index
    %c0_324 = arith.constant 0 : index
    %294 = vector.load %arg9[%c1_322, %c0_323, %c0_324] : memref<10x10x64xf32, #tpu.memory_space<vmem>>, vector<8x8x64xf32>
    %295 = vector.shape_cast %294 : vector<8x8x64xf32> to vector<64x64xf32>
    %296 = arith.truncf %295 : vector<64x64xf32> to vector<64x64xbf16>
    %c0_325 = arith.constant 0 : index
    %c192_326 = arith.constant 192 : index
    %297 = vector.load %arg10[%c0_325, %c192_326] : memref<64x576xbf16, #tpu.memory_space<vmem>>, vector<64x64xbf16>
    tpu.vector_store %arg10[%c0_325, %c192_326], %296 {strides = array<i32>} : memref<64x576xbf16, #tpu.memory_space<vmem>>, vector<64x64xbf16>,
    %c1_327 = arith.constant 1 : index
    %c1_328 = arith.constant 1 : index
    %c0_329 = arith.constant 0 : index
    %298 = vector.load %arg9[%c1_327, %c1_328, %c0_329] : memref<10x10x64xf32, #tpu.memory_space<vmem>>, vector<8x8x64xf32>
    %299 = vector.shape_cast %298 : vector<8x8x64xf32> to vector<64x64xf32>
    %300 = arith.truncf %299 : vector<64x64xf32> to vector<64x64xbf16>
    %c0_330 = arith.constant 0 : index
    %c256_331 = arith.constant 256 : index
    %301 = vector.load %arg10[%c0_330, %c256_331] : memref<64x576xbf16, #tpu.memory_space<vmem>>, vector<64x64xbf16>
    tpu.vector_store %arg10[%c0_330, %c256_331], %300 {strides = array<i32>} : memref<64x576xbf16, #tpu.memory_space<vmem>>, vector<64x64xbf16>,
    %c1_332 = arith.constant 1 : index
    %c2_333 = arith.constant 2 : index
    %c0_334 = arith.constant 0 : index
    %302 = vector.load %arg9[%c1_332, %c2_333, %c0_334] : memref<10x10x64xf32, #tpu.memory_space<vmem>>, vector<8x8x64xf32>
    %303 = vector.shape_cast %302 : vector<8x8x64xf32> to vector<64x64xf32>
    %304 = arith.truncf %303 : vector<64x64xf32> to vector<64x64xbf16>
    %c0_335 = arith.constant 0 : index
    %c320_336 = arith.constant 320 : index
    %305 = vector.load %arg10[%c0_335, %c320_336] : memref<64x576xbf16, #tpu.memory_space<vmem>>, vector<64x64xbf16>
    tpu.vector_store %arg10[%c0_335, %c320_336], %304 {strides = array<i32>} : memref<64x576xbf16, #tpu.memory_space<vmem>>, vector<64x64xbf16>,
    %c2_337 = arith.constant 2 : index
    %c0_338 = arith.constant 0 : index
    %c0_339 = arith.constant 0 : index
    %306 = vector.load %arg9[%c2_337, %c0_338, %c0_339] : memref<10x10x64xf32, #tpu.memory_space<vmem>>, vector<8x8x64xf32>
    %307 = vector.shape_cast %306 : vector<8x8x64xf32> to vector<64x64xf32>
    %308 = arith.truncf %307 : vector<64x64xf32> to vector<64x64xbf16>
    %c0_340 = arith.constant 0 : index
    %c384_341 = arith.constant 384 : index
    %309 = vector.load %arg10[%c0_340, %c384_341] : memref<64x576xbf16, #tpu.memory_space<vmem>>, vector<64x64xbf16>
    tpu.vector_store %arg10[%c0_340, %c384_341], %308 {strides = array<i32>} : memref<64x576xbf16, #tpu.memory_space<vmem>>, vector<64x64xbf16>,
    %c2_342 = arith.constant 2 : index
    %c1_343 = arith.constant 1 : index
    %c0_344 = arith.constant 0 : index
    %310 = vector.load %arg9[%c2_342, %c1_343, %c0_344] : memref<10x10x64xf32, #tpu.memory_space<vmem>>, vector<8x8x64xf32>
    %311 = vector.shape_cast %310 : vector<8x8x64xf32> to vector<64x64xf32>
    %312 = arith.truncf %311 : vector<64x64xf32> to vector<64x64xbf16>
    %c0_345 = arith.constant 0 : index
    %c448_346 = arith.constant 448 : index
    %313 = vector.load %arg10[%c0_345, %c448_346] : memref<64x576xbf16, #tpu.memory_space<vmem>>, vector<64x64xbf16>
    tpu.vector_store %arg10[%c0_345, %c448_346], %312 {strides = array<i32>} : memref<64x576xbf16, #tpu.memory_space<vmem>>, vector<64x64xbf16>,
    %c2_347 = arith.constant 2 : index
    %c2_348 = arith.constant 2 : index
    %c0_349 = arith.constant 0 : index
    %314 = vector.load %arg9[%c2_347, %c2_348, %c0_349] : memref<10x10x64xf32, #tpu.memory_space<vmem>>, vector<8x8x64xf32>
    %315 = vector.shape_cast %314 : vector<8x8x64xf32> to vector<64x64xf32>
    %316 = arith.truncf %315 : vector<64x64xf32> to vector<64x64xbf16>
    %c0_350 = arith.constant 0 : index
    %c512_351 = arith.constant 512 : index
    %317 = vector.load %arg10[%c0_350, %c512_351] : memref<64x576xbf16, #tpu.memory_space<vmem>>, vector<64x64xbf16>
    tpu.vector_store %arg10[%c0_350, %c512_351], %316 {strides = array<i32>} : memref<64x576xbf16, #tpu.memory_space<vmem>>, vector<64x64xbf16>,
    %c0_352 = arith.constant 0 : index
    %c0_353 = arith.constant 0 : index
    %318 = vector.load %arg10[%c0_352, %c0_353] : memref<64x576xbf16, #tpu.memory_space<vmem>>, vector<64x576xbf16>
    %c5 = arith.constant 5 : index
    %c0_354 = arith.constant 0 : index
    %c0_355 = arith.constant 0 : index
    %319 = vector.load %arg3[%c5, %c0_354, %c0_355] : memref<7x576x64xbf16, #tpu.memory_space<vmem>>, vector<1x576x64xbf16>
    %320 = vector.shape_cast %319 : vector<1x576x64xbf16> to vector<576x64xbf16>
    %cst_356 = arith.constant dense<0.000000e+00> : vector<64x64xf32>
    %321 = tpu.matmul %318, %320, %cst_356 {dimension_numbers = #tpu.dot_dimension_numbers<[1], [0], [0], [1], [0, 0, 1, 1], [], []>} : vector<64x576xbf16>, vector<576x64xbf16>, vector<64x64xf32> -> vector<64x64xf32>
    %c5_357 = arith.constant 5 : index
    %c0_358 = arith.constant 0 : index
    %c0_359 = arith.constant 0 : index
    %322 = vector.load %arg4[%c5_357, %c0_358, %c0_359] : memref<7x1x64xf32, #tpu.memory_space<vmem>>, vector<1x1x64xf32>
    %323 = vector.shape_cast %322 : vector<1x1x64xf32> to vector<1x64xf32>
    %324 = vector.broadcast %323 : vector<1x64xf32> to vector<64x64xf32>
    %325 = arith.mulf %321, %324 : vector<64x64xf32>
    %c5_360 = arith.constant 5 : index
    %c0_361 = arith.constant 0 : index
    %c0_362 = arith.constant 0 : index
    %326 = vector.load %arg5[%c5_360, %c0_361, %c0_362] : memref<7x1x64xf32, #tpu.memory_space<vmem>>, vector<1x1x64xf32>
    %327 = vector.shape_cast %326 : vector<1x1x64xf32> to vector<1x64xf32>
    %328 = vector.broadcast %327 : vector<1x64xf32> to vector<64x64xf32>
    %329 = arith.addf %325, %328 : vector<64x64xf32>
    %cst_363 = arith.constant 0.000000e+00 : f32
    %330 = vector.broadcast %cst_363 : f32 to vector<64x64xf32>
    %331 = arith.cmpf oge, %329, %330 : vector<64x64xf32>
    %cst_364 = arith.constant 0.00999999977 : f32
    %332 = vector.broadcast %cst_364 : f32 to vector<64x64xf32>
    %333 = arith.mulf %332, %329 : vector<64x64xf32>
    %334 = arith.select %331, %329, %333 : vector<64x64xi1>, vector<64x64xf32>
    %335 = vector.shape_cast %334 : vector<64x64xf32> to vector<8x8x64xf32>
    %c1_365 = arith.constant 1 : index
    %c1_366 = arith.constant 1 : index
    %c0_367 = arith.constant 0 : index
    %336 = vector.load %arg9[%c1_365, %c1_366, %c0_367] : memref<10x10x64xf32, #tpu.memory_space<vmem>>, vector<8x8x64xf32>
    tpu.vector_store %arg9[%c1_365, %c1_366, %c0_367], %335 {strides = array<i32>} : memref<10x10x64xf32, #tpu.memory_space<vmem>>, vector<8x8x64xf32>,
    %c0_368 = arith.constant 0 : index
    %c0_369 = arith.constant 0 : index
    %c0_370 = arith.constant 0 : index
    %337 = vector.load %arg9[%c0_368, %c0_369, %c0_370] : memref<10x10x64xf32, #tpu.memory_space<vmem>>, vector<8x8x64xf32>
    %338 = vector.shape_cast %337 : vector<8x8x64xf32> to vector<64x64xf32>
    %339 = arith.truncf %338 : vector<64x64xf32> to vector<64x64xbf16>
    %c0_371 = arith.constant 0 : index
    %c0_372 = arith.constant 0 : index
    %340 = vector.load %arg10[%c0_371, %c0_372] : memref<64x576xbf16, #tpu.memory_space<vmem>>, vector<64x64xbf16>
    tpu.vector_store %arg10[%c0_371, %c0_372], %339 {strides = array<i32>} : memref<64x576xbf16, #tpu.memory_space<vmem>>, vector<64x64xbf16>,
    %c0_373 = arith.constant 0 : index
    %c1_374 = arith.constant 1 : index
    %c0_375 = arith.constant 0 : index
    %341 = vector.load %arg9[%c0_373, %c1_374, %c0_375] : memref<10x10x64xf32, #tpu.memory_space<vmem>>, vector<8x8x64xf32>
    %342 = vector.shape_cast %341 : vector<8x8x64xf32> to vector<64x64xf32>
    %343 = arith.truncf %342 : vector<64x64xf32> to vector<64x64xbf16>
    %c0_376 = arith.constant 0 : index
    %c64_377 = arith.constant 64 : index
    %344 = vector.load %arg10[%c0_376, %c64_377] : memref<64x576xbf16, #tpu.memory_space<vmem>>, vector<64x64xbf16>
    tpu.vector_store %arg10[%c0_376, %c64_377], %343 {strides = array<i32>} : memref<64x576xbf16, #tpu.memory_space<vmem>>, vector<64x64xbf16>,
    %c0_378 = arith.constant 0 : index
    %c2_379 = arith.constant 2 : index
    %c0_380 = arith.constant 0 : index
    %345 = vector.load %arg9[%c0_378, %c2_379, %c0_380] : memref<10x10x64xf32, #tpu.memory_space<vmem>>, vector<8x8x64xf32>
    %346 = vector.shape_cast %345 : vector<8x8x64xf32> to vector<64x64xf32>
    %347 = arith.truncf %346 : vector<64x64xf32> to vector<64x64xbf16>
    %c0_381 = arith.constant 0 : index
    %c128_382 = arith.constant 128 : index
    %348 = vector.load %arg10[%c0_381, %c128_382] : memref<64x576xbf16, #tpu.memory_space<vmem>>, vector<64x64xbf16>
    tpu.vector_store %arg10[%c0_381, %c128_382], %347 {strides = array<i32>} : memref<64x576xbf16, #tpu.memory_space<vmem>>, vector<64x64xbf16>,
    %c1_383 = arith.constant 1 : index
    %c0_384 = arith.constant 0 : index
    %c0_385 = arith.constant 0 : index
    %349 = vector.load %arg9[%c1_383, %c0_384, %c0_385] : memref<10x10x64xf32, #tpu.memory_space<vmem>>, vector<8x8x64xf32>
    %350 = vector.shape_cast %349 : vector<8x8x64xf32> to vector<64x64xf32>
    %351 = arith.truncf %350 : vector<64x64xf32> to vector<64x64xbf16>
    %c0_386 = arith.constant 0 : index
    %c192_387 = arith.constant 192 : index
    %352 = vector.load %arg10[%c0_386, %c192_387] : memref<64x576xbf16, #tpu.memory_space<vmem>>, vector<64x64xbf16>
    tpu.vector_store %arg10[%c0_386, %c192_387], %351 {strides = array<i32>} : memref<64x576xbf16, #tpu.memory_space<vmem>>, vector<64x64xbf16>,
    %c1_388 = arith.constant 1 : index
    %c1_389 = arith.constant 1 : index
    %c0_390 = arith.constant 0 : index
    %353 = vector.load %arg9[%c1_388, %c1_389, %c0_390] : memref<10x10x64xf32, #tpu.memory_space<vmem>>, vector<8x8x64xf32>
    %354 = vector.shape_cast %353 : vector<8x8x64xf32> to vector<64x64xf32>
    %355 = arith.truncf %354 : vector<64x64xf32> to vector<64x64xbf16>
    %c0_391 = arith.constant 0 : index
    %c256_392 = arith.constant 256 : index
    %356 = vector.load %arg10[%c0_391, %c256_392] : memref<64x576xbf16, #tpu.memory_space<vmem>>, vector<64x64xbf16>
    tpu.vector_store %arg10[%c0_391, %c256_392], %355 {strides = array<i32>} : memref<64x576xbf16, #tpu.memory_space<vmem>>, vector<64x64xbf16>,
    %c1_393 = arith.constant 1 : index
    %c2_394 = arith.constant 2 : index
    %c0_395 = arith.constant 0 : index
    %357 = vector.load %arg9[%c1_393, %c2_394, %c0_395] : memref<10x10x64xf32, #tpu.memory_space<vmem>>, vector<8x8x64xf32>
    %358 = vector.shape_cast %357 : vector<8x8x64xf32> to vector<64x64xf32>
    %359 = arith.truncf %358 : vector<64x64xf32> to vector<64x64xbf16>
    %c0_396 = arith.constant 0 : index
    %c320_397 = arith.constant 320 : index
    %360 = vector.load %arg10[%c0_396, %c320_397] : memref<64x576xbf16, #tpu.memory_space<vmem>>, vector<64x64xbf16>
    tpu.vector_store %arg10[%c0_396, %c320_397], %359 {strides = array<i32>} : memref<64x576xbf16, #tpu.memory_space<vmem>>, vector<64x64xbf16>,
    %c2_398 = arith.constant 2 : index
    %c0_399 = arith.constant 0 : index
    %c0_400 = arith.constant 0 : index
    %361 = vector.load %arg9[%c2_398, %c0_399, %c0_400] : memref<10x10x64xf32, #tpu.memory_space<vmem>>, vector<8x8x64xf32>
    %362 = vector.shape_cast %361 : vector<8x8x64xf32> to vector<64x64xf32>
    %363 = arith.truncf %362 : vector<64x64xf32> to vector<64x64xbf16>
    %c0_401 = arith.constant 0 : index
    %c384_402 = arith.constant 384 : index
    %364 = vector.load %arg10[%c0_401, %c384_402] : memref<64x576xbf16, #tpu.memory_space<vmem>>, vector<64x64xbf16>
    tpu.vector_store %arg10[%c0_401, %c384_402], %363 {strides = array<i32>} : memref<64x576xbf16, #tpu.memory_space<vmem>>, vector<64x64xbf16>,
    %c2_403 = arith.constant 2 : index
    %c1_404 = arith.constant 1 : index
    %c0_405 = arith.constant 0 : index
    %365 = vector.load %arg9[%c2_403, %c1_404, %c0_405] : memref<10x10x64xf32, #tpu.memory_space<vmem>>, vector<8x8x64xf32>
    %366 = vector.shape_cast %365 : vector<8x8x64xf32> to vector<64x64xf32>
    %367 = arith.truncf %366 : vector<64x64xf32> to vector<64x64xbf16>
    %c0_406 = arith.constant 0 : index
    %c448_407 = arith.constant 448 : index
    %368 = vector.load %arg10[%c0_406, %c448_407] : memref<64x576xbf16, #tpu.memory_space<vmem>>, vector<64x64xbf16>
    tpu.vector_store %arg10[%c0_406, %c448_407], %367 {strides = array<i32>} : memref<64x576xbf16, #tpu.memory_space<vmem>>, vector<64x64xbf16>,
    %c2_408 = arith.constant 2 : index
    %c2_409 = arith.constant 2 : index
    %c0_410 = arith.constant 0 : index
    %369 = vector.load %arg9[%c2_408, %c2_409, %c0_410] : memref<10x10x64xf32, #tpu.memory_space<vmem>>, vector<8x8x64xf32>
    %370 = vector.shape_cast %369 : vector<8x8x64xf32> to vector<64x64xf32>
    %371 = arith.truncf %370 : vector<64x64xf32> to vector<64x64xbf16>
    %c0_411 = arith.constant 0 : index
    %c512_412 = arith.constant 512 : index
    %372 = vector.load %arg10[%c0_411, %c512_412] : memref<64x576xbf16, #tpu.memory_space<vmem>>, vector<64x64xbf16>
    tpu.vector_store %arg10[%c0_411, %c512_412], %371 {strides = array<i32>} : memref<64x576xbf16, #tpu.memory_space<vmem>>, vector<64x64xbf16>,
    %c0_413 = arith.constant 0 : index
    %c0_414 = arith.constant 0 : index
    %373 = vector.load %arg10[%c0_413, %c0_414] : memref<64x576xbf16, #tpu.memory_space<vmem>>, vector<64x576xbf16>
    %c6 = arith.constant 6 : index
    %c0_415 = arith.constant 0 : index
    %c0_416 = arith.constant 0 : index
    %374 = vector.load %arg3[%c6, %c0_415, %c0_416] : memref<7x576x64xbf16, #tpu.memory_space<vmem>>, vector<1x576x64xbf16>
    %375 = vector.shape_cast %374 : vector<1x576x64xbf16> to vector<576x64xbf16>
    %cst_417 = arith.constant dense<0.000000e+00> : vector<64x64xf32>
    %376 = tpu.matmul %373, %375, %cst_417 {dimension_numbers = #tpu.dot_dimension_numbers<[1], [0], [0], [1], [0, 0, 1, 1], [], []>} : vector<64x576xbf16>, vector<576x64xbf16>, vector<64x64xf32> -> vector<64x64xf32>
    %c6_418 = arith.constant 6 : index
    %c0_419 = arith.constant 0 : index
    %c0_420 = arith.constant 0 : index
    %377 = vector.load %arg4[%c6_418, %c0_419, %c0_420] : memref<7x1x64xf32, #tpu.memory_space<vmem>>, vector<1x1x64xf32>
    %378 = vector.shape_cast %377 : vector<1x1x64xf32> to vector<1x64xf32>
    %379 = vector.broadcast %378 : vector<1x64xf32> to vector<64x64xf32>
    %380 = arith.mulf %376, %379 : vector<64x64xf32>
    %c6_421 = arith.constant 6 : index
    %c0_422 = arith.constant 0 : index
    %c0_423 = arith.constant 0 : index
    %381 = vector.load %arg5[%c6_421, %c0_422, %c0_423] : memref<7x1x64xf32, #tpu.memory_space<vmem>>, vector<1x1x64xf32>
    %382 = vector.shape_cast %381 : vector<1x1x64xf32> to vector<1x64xf32>
    %383 = vector.broadcast %382 : vector<1x64xf32> to vector<64x64xf32>
    %384 = arith.addf %380, %383 : vector<64x64xf32>
    %385 = arith.addf %279, %384 : vector<64x64xf32>
    %cst_424 = arith.constant 0.000000e+00 : f32
    %386 = vector.broadcast %cst_424 : f32 to vector<64x64xf32>
    %387 = arith.cmpf oge, %385, %386 : vector<64x64xf32>
    %cst_425 = arith.constant 0.00999999977 : f32
    %388 = vector.broadcast %cst_425 : f32 to vector<64x64xf32>
    %389 = arith.mulf %388, %385 : vector<64x64xf32>
    %390 = arith.select %387, %385, %389 : vector<64x64xi1>, vector<64x64xf32>
    %391 = vector.shape_cast %390 : vector<64x64xf32> to vector<1x64x64xf32>
    %c0_426 = arith.constant 0 : index
    %c0_427 = arith.constant 0 : index
    %392 = vector.load %arg6[%c0_426, %c0_427] : memref<1x64xf32, #tpu.memory_space<vmem>>, vector<1x64xf32>
    %393 = vector.shape_cast %392 : vector<1x64xf32> to vector<1x1x64xf32>
    %394 = vector.broadcast %393 : vector<1x1x64xf32> to vector<1x64x64xf32>
    %395 = arith.mulf %391, %394 : vector<1x64x64xf32>
    %cst_428 = arith.constant dense<0.000000e+00> : vector<1x64xf32>
    %396 = vector.multi_reduction <add>, %395, %cst_428 [2] : vector<1x64x64xf32> to vector<1x64xf32>
    %c0_429 = arith.constant 0 : index
    %397 = memref.load %arg7[%c0_429] : memref<1xf32, #tpu.memory_space<smem>>
    %398 = vector.broadcast %397 : f32 to vector<1x64xf32>
    %399 = arith.addf %396, %398 : vector<1x64xf32>
    %400 = math.tanh %399 : vector<1x64xf32>
    %c0_430 = arith.constant 0 : index
    %c0_431 = arith.constant 0 : index
    %c0_432 = arith.constant 0 : index
    %401 = vector.load %arg2[%c0_430, %c0_431, %c0_432] : memref<1x1x64xf32, #tpu.memory_space<vmem>>, vector<1x1x64xf32>
    %cst_433 = arith.constant 0.000000e+00 : f32
    %402 = vector.broadcast %cst_433 : f32 to vector<1x1x64xf32>
    %403 = arith.cmpf oeq, %401, %402 : vector<1x1x64xf32>
    %404 = vector.shape_cast %400 : vector<1x64xf32> to vector<1x1x64xf32>
    %cst_434 = arith.constant 0xFF800000 : f32
    %405 = vector.broadcast %cst_434 : f32 to vector<1x1x64xf32>
    %406 = arith.select %403, %404, %405 : vector<1x1x64xi1>, vector<1x1x64xf32>
    %c0_435 = arith.constant 0 : index
    %c0_436 = arith.constant 0 : index
    %c0_437 = arith.constant 0 : index
    %407 = vector.load %arg8[%c0_435, %c0_436, %c0_437] : memref<1x1x64xf32, #tpu.memory_space<vmem>>, vector<1x1x64xf32>
    tpu.vector_store %arg8[%c0_435, %c0_436, %c0_437], %406 {strides = array<i32>} : memref<1x1x64xf32, #tpu.memory_space<vmem>>, vector<1x1x64xf32>,
    return
  }
  func.func @transform_0(%arg0: i32) -> (i32, i32, i32, i32) {
    %c0_i32 = arith.constant 0 : i32
    %c0_i32_0 = arith.constant 0 : i32
    %c0_i32_1 = arith.constant 0 : i32
    %c0_i32_2 = arith.constant 0 : i32
    return %arg0, %c0_i32, %c0_i32_0, %c0_i32_1 : i32, i32, i32, i32
  }
  func.func @transform_1(%arg0: i32) -> (i32, i32, i32) {
    %c0_i32 = arith.constant 0 : i32
    %c0_i32_0 = arith.constant 0 : i32
    %c0_i32_1 = arith.constant 0 : i32
    return %arg0, %c0_i32, %c0_i32_0 : i32, i32, i32
  }
  func.func @transform_2(%arg0: i32) -> (i32, i32, i32) {
    %c0_i32 = arith.constant 0 : i32
    %c0_i32_0 = arith.constant 0 : i32
    %c0_i32_1 = arith.constant 0 : i32
    %c0_i32_2 = arith.constant 0 : i32
    return %c0_i32, %c0_i32_0, %c0_i32_1 : i32, i32, i32
  }
  func.func @transform_3(%arg0: i32) -> (i32, i32, i32) {
    %c0_i32 = arith.constant 0 : i32
    %c0_i32_0 = arith.constant 0 : i32
    %c0_i32_1 = arith.constant 0 : i32
    %c0_i32_2 = arith.constant 0 : i32
    return %c0_i32, %c0_i32_0, %c0_i32_1 : i32, i32, i32
  }
  func.func @transform_4(%arg0: i32) -> (i32, i32, i32) {
    %c0_i32 = arith.constant 0 : i32
    %c0_i32_0 = arith.constant 0 : i32
    %c0_i32_1 = arith.constant 0 : i32
    %c0_i32_2 = arith.constant 0 : i32
    return %c0_i32, %c0_i32_0, %c0_i32_1 : i32, i32, i32
  }
  func.func @transform_5(%arg0: i32) -> (i32, i32) {
    %c0_i32 = arith.constant 0 : i32
    %c0_i32_0 = arith.constant 0 : i32
    %c0_i32_1 = arith.constant 0 : i32
    return %c0_i32, %c0_i32_0 : i32, i32
  }
  func.func @transform_6(%arg0: i32) -> i32 {
    %c0_i32 = arith.constant 0 : i32
    %c0_i32_0 = arith.constant 0 : i32
    return %c0_i32 : i32
  }
  func.func @transform_7(%arg0: i32) -> (i32, i32, i32) {
    %c0_i32 = arith.constant 0 : i32
    %c0_i32_0 = arith.constant 0 : i32
    %c0_i32_1 = arith.constant 0 : i32
    return %arg0, %c0_i32, %c0_i32_0 : i32, i32, i32
  }
}

</mosaic_0001>

<llo_original>
// kernel: squeeze.1
$region0: #{squeeze.1}
  %s0 = inlined_call_operand.vmem [shape: f32[2,1,8,8], index: 0, kind: input, shape index: {}]
  %s1 = inlined_call_operand.vmem [shape: f32[2,1,64], index: 1, kind: output, shape index: {}]
  $region1: #{squeeze.1} parent=0
    #allocation0 [shape = 'u8[4096]{0}', space=vmem, size = 0x1000, scoped, tag = 'scoped mem for output reshape']
    %s2 = smov 3
    %v3 = vld [vmem:[%s0] ss:$8 sm:%s2]
    %vm4 = vcmask 64512
    %5 = vst.msk [vmem:[#allocation0] sm:$0x3] %vm4, %v3
    %s6 = scalar_lea.vmem %s0, 7
    %s7 = smov 3
    %v8 = vld [vmem:[%s6] ss:$8 sm:%s7]
    %9 = vrot.lane.b32.xlu0 %v8, 56
    %v10 = vpop.permute.xlu0 %9
    %vm11 = vcmask 523712
    %12 = vst.msk [vmem:[#allocation0] sm:$0x3] %vm11, %v10
    %s13 = scalar_lea.vmem %s0, 6
    %s14 = smov 3
    %v15 = vld [vmem:[%s13] ss:$8 sm:%s14]
    %16 = vrot.lane.b32.xlu0 %v15, 48
    %v17 = vpop.permute.xlu0 %16
    %vm18 = vcmask 458112
    %19 = vst.msk [vmem:[#allocation0] sm:$0x3] %vm18, %v17
    %s20 = scalar_lea.vmem %s0, 5
    %s21 = smov 3
    %v22 = vld [vmem:[%s20] ss:$8 sm:%s21]
    %23 = vrot.lane.b32.xlu0 %v22, 40
    %v24 = vpop.permute.xlu0 %23
    %vm25 = vcmask 392512
    %26 = vst.msk [vmem:[#allocation0] sm:$0x3] %vm25, %v24
    %s27 = scalar_lea.vmem %s0, 4
    %s28 = smov 3
    %v29 = vld [vmem:[%s27] ss:$8 sm:%s28]
    %30 = vrot.lane.b32.xlu0 %v29, 32
    %v31 = vpop.permute.xlu0 %30
    %vm32 = vcmask 326912
    %33 = vst.msk [vmem:[#allocation0] sm:$0x3] %vm32, %v31
    %s34 = scalar_lea.vmem %s0, 3
    %s35 = smov 3
    %v36 = vld [vmem:[%s34] ss:$8 sm:%s35]
    %37 = vrot.lane.b32.xlu0 %v36, 24
    %v38 = vpop.permute.xlu0 %37
    %vm39 = vcmask 261312
    %40 = vst.msk [vmem:[#allocation0] sm:$0x3] %vm39, %v38
    %s41 = scalar_lea.vmem %s0, 2
    %s42 = smov 3
    %v43 = vld [vmem:[%s41] ss:$8 sm:%s42]
    %44 = vrot.lane.b32.xlu0 %v43, 16
    %v45 = vpop.permute.xlu0 %44
    %vm46 = vcmask 195712
    %47 = vst.msk [vmem:[#allocation0] sm:$0x3] %vm46, %v45
    %s48 = scalar_lea.vmem %s0, 1
    %s49 = smov 3
    %v50 = vld [vmem:[%s48] ss:$8 sm:%s49]
    %51 = vrot.lane.b32.xlu0 %v50, 8
    %v52 = vpop.permute.xlu0 %51
    %vm53 = vcmask 130112
    %54 = vst.msk [vmem:[#allocation0] sm:$0x3] %vm53, %v52
    %s56 = ssub.s32 4, 1
    %v57 = vld [vmem:[#allocation0] sm:%s56]
    %s59 = ssub.s32 4, 1
    %60 = vst [vmem:[%s1] sm:%s59] %v57

// kernel: dqn_forward.1
$region0: #{dqn_forward.1}
  #allocation0 [shape = 'u32[]', space=smem, size = 0x4, offset = 0x4, fixed_abs, tag = 'smem constant byte address 0x4 - core index']
  #allocation1 [shape = 'u32[72,128]{1,0:T(1,128)}', space=vmem, size = 0x9000, scoped, tag = 'internal scratch']
  #allocation2 [shape = 'f32[10,10,64]{2,1,0:T(8,128)}', space=vmem, size = 0x14000, scoped, tag = 'scratch operand']
  #allocation3 [shape = 'bf16[64,576]{1,0:T(8,128)(2,1)}', space=vmem, size = 0x14000, scoped, tag = 'scratch operand']
  #allocation4 [shape = 'f32[1]{0:T(128)S(6)}', space=smem, size = 0x200, scoped, tag = 'scoped memory for dqn_forward.1']
  %s0 = inlined_call_operand.vmem [shape: f32[2,8,8,3], index: 0, kind: input, shape index: {}]
  %s1 = inlined_call_operand.vmem [shape: f32[2,1,64], index: 1, kind: input, shape index: {}]
  %s2 = inlined_call_operand.vmem [shape: bf16[7,576,64], index: 2, kind: input, shape index: {}]
  %s3 = inlined_call_operand.vmem [shape: f32[7,1,64], index: 3, kind: input, shape index: {}]
  %s4 = inlined_call_operand.vmem [shape: f32[7,1,64], index: 4, kind: input, shape index: {}]
  %s5 = inlined_call_operand.vmem [shape: f32[1,64], index: 5, kind: input, shape index: {}]
  %s6 = inlined_call_operand.<no memory space> [shape: f32[1], index: 6, kind: input, shape index: {}]
  %s7 = inlined_call_operand.vmem [shape: f32[2,1,64], index: 7, kind: output, shape index: {}]
  %s8 = sld [smem:[#allocation0]]
  $region61: #{dqn_forward.1} parent=0
    _
  %s10 = ssub.s32 1, %s8
  %s11 = scalar_select 0, %s10, %s8
  %12 = sst [smem:[#allocation4]] %s6
  loop: start=0, step=1, limit=4
  $region2: #{dqn_forward.1} parent=0 // loop_pre_header
    _
  $region3: #{dqn_forward.1} parent=0 // loop_header
    %s14 = sphi 0, %s18
    %p15 = scmp.ge.s32.totalorder %s14, 4
    %s24 = sphi 0, %s26
    %s27 = sphi 0, %s24
    %s28 = sphi 0, %s27
    %s44 = sphi 0, %s28
    %s50 = sphi 0, %s52
    %s53 = sphi 0, %s50
    %s54 = sphi 0, %s53
    %s70 = sphi 0, %s54
    %s74 = sphi 0, %s74
    %s76 = sphi 0, %s74
    %s77 = sphi 0, %s76
    %s91 = sphi 0, %s77
    %s95 = sphi 0, %s95
    %s97 = sphi 0, %s95
    %s98 = sphi 0, %s97
    %s112 = sphi 0, %s98
    %s116 = sphi 0, %s116
    %s118 = sphi 0, %s116
    %s119 = sphi 0, %s118
    %s133 = sphi 0, %s119
    %s137 = sphi 0, %s137
    %s139 = sphi 0, %s137
    %s140 = sphi 0, %s139
    %s154 = sphi 0, %s140
    %s158 = sphi 0, %s158
    %s160 = sphi 0, %s158
    %s161 = sphi 0, %s160
    %s175 = sphi 0, %s161
    %s181 = sphi 0, %s183
    %s184 = sphi 0, %s181
    %s185 = sphi 0, %s184
    %s201 = sphi 0, %s185
  $region4: #{dqn_forward.1} parent=0 // loop_header_branch
    %17 = sbr.rel (%p15) target = $region8
  $region5: #{dqn_forward.1} parent=0 // loop_body
    %s19 = ssub.s32 %s14, 1
    %s20 = ssub.s32 %s14, 2
    %s21 = sadd.s32 %s14, 1
    %s22 = ssub.s32 %s14, %s21
    %p23 = scmp.eq.s32.totalorder %s22, 0
    %s25 = sadd.s32 %s24, 1
    %s26 = scalar_select %p23, %s24, %s25
    %p29 = pneg %p23
    %p30 = scmp.eq.s32.totalorder %s14, 1
    %p31 = por %p29, %p30
    %p32 = scmp.ne.s32.totalorder %s24, %s27
    %p33 = scmp.eq.s32.totalorder %s14, 0
    %p34 = por %p32, %p33
    %p35 = scmp.ne.s32.totalorder %s24, %s27
    %p36 = scmp.eq.s32.totalorder %s19, 1
    %p37 = por %p35, %p36
    %p38 = scmp.ne.s32.totalorder %s27, %s28
    %p39 = scmp.eq.s32.totalorder %s19, 0
    %p40 = por %p38, %p39
    %p41 = scmp.ne.s32.totalorder %s27, %s28
    %p42 = scmp.eq.s32.totalorder %s20, 1
    %p43 = por %p41, %p42
    %p45 = scmp.ne.s32.totalorder %s28, %s44
    %p46 = scmp.eq.s32.totalorder %s20, 0
    %p47 = por %p45, %p46
    %s48 = ssub.s32 %s14, %s21
    %p49 = scmp.eq.s32.totalorder %s48, 0
    %s51 = sadd.s32 %s50, 1
    %s52 = scalar_select %p49, %s50, %s51
    %p55 = pneg %p49
    %p56 = scmp.eq.s32.totalorder %s14, 1
    %p57 = por %p55, %p56
    %p58 = scmp.ne.s32.totalorder %s50, %s53
    %p59 = scmp.eq.s32.totalorder %s14, 0
    %p60 = por %p58, %p59
    %p61 = scmp.ne.s32.totalorder %s50, %s53
    %p62 = scmp.eq.s32.totalorder %s19, 1
    %p63 = por %p61, %p62
    %p64 = scmp.ne.s32.totalorder %s53, %s54
    %p65 = scmp.eq.s32.totalorder %s19, 0
    %p66 = por %p64, %p65
    %p67 = scmp.ne.s32.totalorder %s53, %s54
    %p68 = scmp.eq.s32.totalorder %s20, 1
    %p69 = por %p67, %p68
    %p71 = scmp.ne.s32.totalorder %s54, %s70
    %p72 = scmp.eq.s32.totalorder %s20, 0
    %p73 = por %p71, %p72
    %s75 = sadd.s32 %s74, 1
    %p78 = scmp.eq.s32.totalorder %s14, 1
    %p79 = scmp.ne.s32.totalorder %s74, %s76
    %p80 = scmp.eq.s32.totalorder %s14, 0
    %p81 = por %p79, %p80
    %p82 = scmp.ne.s32.totalorder %s74, %s76
    %p83 = scmp.eq.s32.totalorder %s19, 1
    %p84 = por %p82, %p83
    %p85 = scmp.ne.s32.totalorder %s76, %s77
    %p86 = scmp.eq.s32.totalorder %s19, 0
    %p87 = por %p85, %p86
    %p88 = scmp.ne.s32.totalorder %s76, %s77
    %p89 = scmp.eq.s32.totalorder %s20, 1
    %p90 = por %p88, %p89
    %p92 = scmp.ne.s32.totalorder %s77, %s91
    %p93 = scmp.eq.s32.totalorder %s20, 0
    %p94 = por %p92, %p93
    %s96 = sadd.s32 %s95, 1
    %p99 = scmp.eq.s32.totalorder %s14, 1
    %p100 = scmp.ne.s32.totalorder %s95, %s97
    %p101 = scmp.eq.s32.totalorder %s14, 0
    %p102 = por %p100, %p101
    %p103 = scmp.ne.s32.totalorder %s95, %s97
    %p104 = scmp.eq.s32.totalorder %s19, 1
    %p105 = por %p103, %p104
    %p106 = scmp.ne.s32.totalorder %s97, %s98
    %p107 = scmp.eq.s32.totalorder %s19, 0
    %p108 = por %p106, %p107
    %p109 = scmp.ne.s32.totalorder %s97, %s98
    %p110 = scmp.eq.s32.totalorder %s20, 1
    %p111 = por %p109, %p110
    %p113 = scmp.ne.s32.totalorder %s98, %s112
    %p114 = scmp.eq.s32.totalorder %s20, 0
    %p115 = por %p113, %p114
    %s117 = sadd.s32 %s116, 1
    %p120 = scmp.eq.s32.totalorder %s14, 1
    %p121 = scmp.ne.s32.totalorder %s116, %s118
    %p122 = scmp.eq.s32.totalorder %s14, 0
    %p123 = por %p121, %p122
    %p124 = scmp.ne.s32.totalorder %s116, %s118
    %p125 = scmp.eq.s32.totalorder %s19, 1
    %p126 = por %p124, %p125
    %p127 = scmp.ne.s32.totalorder %s118, %s119
    %p128 = scmp.eq.s32.totalorder %s19, 0
    %p129 = por %p127, %p128
    %p130 = scmp.ne.s32.totalorder %s118, %s119
    %p131 = scmp.eq.s32.totalorder %s20, 1
    %p132 = por %p130, %p131
    %p134 = scmp.ne.s32.totalorder %s119, %s133
    %p135 = scmp.eq.s32.totalorder %s20, 0
    %p136 = por %p134, %p135
    %s138 = sadd.s32 %s137, 1
    %p141 = scmp.eq.s32.totalorder %s14, 1
    %p142 = scmp.ne.s32.totalorder %s137, %s139
    %p143 = scmp.eq.s32.totalorder %s14, 0
    %p144 = por %p142, %p143
    %p145 = scmp.ne.s32.totalorder %s137, %s139
    %p146 = scmp.eq.s32.totalorder %s19, 1
    %p147 = por %p145, %p146
    %p148 = scmp.ne.s32.totalorder %s139, %s140
    %p149 = scmp.eq.s32.totalorder %s19, 0
    %p150 = por %p148, %p149
    %p151 = scmp.ne.s32.totalorder %s139, %s140
    %p152 = scmp.eq.s32.totalorder %s20, 1
    %p153 = por %p151, %p152
    %p155 = scmp.ne.s32.totalorder %s140, %s154
    %p156 = scmp.eq.s32.totalorder %s20, 0
    %p157 = por %p155, %p156
    %s159 = sadd.s32 %s158, 1
    %p162 = scmp.eq.s32.totalorder %s14, 1
    %p163 = scmp.ne.s32.totalorder %s158, %s160
    %p164 = scmp.eq.s32.totalorder %s14, 0
    %p165 = por %p163, %p164
    %p166 = scmp.ne.s32.totalorder %s158, %s160
    %p167 = scmp.eq.s32.totalorder %s19, 1
    %p168 = por %p166, %p167
    %p169 = scmp.ne.s32.totalorder %s160, %s161
    %p170 = scmp.eq.s32.totalorder %s19, 0
    %p171 = por %p169, %p170
    %p172 = scmp.ne.s32.totalorder %s160, %s161
    %p173 = scmp.eq.s32.totalorder %s20, 1
    %p174 = por %p172, %p173
    %p176 = scmp.ne.s32.totalorder %s161, %s175
    %p177 = scmp.eq.s32.totalorder %s20, 0
    %p178 = por %p176, %p177
    %s179 = ssub.s32 %s14, %s21
    %p180 = scmp.eq.s32.totalorder %s179, 0
    %s182 = sadd.s32 %s181, 1
    %s183 = scalar_select %p180, %s181, %s182
    %p186 = pneg %p180
    %p187 = scmp.eq.s32.totalorder %s14, 1
    %p188 = por %p186, %p187
    %p189 = scmp.ne.s32.totalorder %s181, %s184
    %p190 = scmp.eq.s32.totalorder %s14, 0
    %p191 = por %p189, %p190
    %p192 = scmp.ne.s32.totalorder %s181, %s184
    %p193 = scmp.eq.s32.totalorder %s19, 1
    %p194 = por %p192, %p193
    %p195 = scmp.ne.s32.totalorder %s184, %s185
    %p196 = scmp.eq.s32.totalorder %s19, 0
    %p197 = por %p195, %p196
    %p198 = scmp.ne.s32.totalorder %s184, %s185
    %p199 = scmp.eq.s32.totalorder %s20, 1
    %p200 = por %p198, %p199
    %p202 = scmp.ne.s32.totalorder %s185, %s201
    %p203 = scmp.eq.s32.totalorder %s20, 0
    %p204 = por %p202, %p203
    %p205 = scmp.le.s32.totalorder 1, %s14
    %p206 = scmp.lt.s32.totalorder %s14, 3
    %p207 = pnand %p205, %p206
    %p208 = pneg %p207
    // Predicated region
    $region9: #{dqn_forward.1} parent=5 // pred_check
      _
    $region10: #{dqn_forward.1} parent=5 // pred_check_branch
      %210 = sbr.rel (%p207) target = $region12
    $region11: #{dqn_forward.1} parent=5 // pred_region
      %s211 = ssub.s32 %s14, 1
      // Predicated region
      $region13: #{dqn_forward.1} parent=11 // pred_check
        %p212 = pneg %p87
      $region14: #{dqn_forward.1} parent=11 // pred_check_branch
        %214 = sbr.rel (%p212) target = $region16
      $region15: #{dqn_forward.1} parent=11 // pred_region
        _
      $region16: #{dqn_forward.1} parent=11 // pred_fallthru
        _
      // Predicated region
      $region17: #{dqn_forward.1} parent=11 // pred_check
        %p215 = pneg %p108
      $region18: #{dqn_forward.1} parent=11 // pred_check_branch
        %217 = sbr.rel (%p215) target = $region20
      $region19: #{dqn_forward.1} parent=11 // pred_region
        _
      $region20: #{dqn_forward.1} parent=11 // pred_fallthru
        _
      // Predicated region
      $region21: #{dqn_forward.1} parent=11 // pred_check
        %p218 = pneg %p129
      $region22: #{dqn_forward.1} parent=11 // pred_check_branch
        %220 = sbr.rel (%p218) target = $region24
      $region23: #{dqn_forward.1} parent=11 // pred_region
        _
      $region24: #{dqn_forward.1} parent=11 // pred_fallthru
        _
      // Predicated region
      $region25: #{dqn_forward.1} parent=11 // pred_check
        %p221 = pneg %p150
      $region26: #{dqn_forward.1} parent=11 // pred_check_branch
        %223 = sbr.rel (%p221) target = $region28
      $region27: #{dqn_forward.1} parent=11 // pred_region
        _
      $region28: #{dqn_forward.1} parent=11 // pred_fallthru
        _
      // Predicated region
      $region29: #{dqn_forward.1} parent=11 // pred_check
        %p224 = pneg %p171
      $region30: #{dqn_forward.1} parent=11 // pred_check_branch
        %226 = sbr.rel (%p224) target = $region32
      $region31: #{dqn_forward.1} parent=11 // pred_region
        _
      $region32: #{dqn_forward.1} parent=11 // pred_fallthru
        _
    $region12: #{dqn_forward.1} parent=5 // pred_fallthru
      _
    %p227 = scmp.lt.s32.totalorder %s14, 2
    // Predicated region
    $region33: #{dqn_forward.1} parent=5 // pred_check
      %p228 = pneg %p227
    $region34: #{dqn_forward.1} parent=5 // pred_check_branch
      %230 = sbr.rel (%p228) target = $region36
    $region35: #{dqn_forward.1} parent=5 // pred_region
      // Predicated region
      $region37: #{dqn_forward.1} parent=35 // pred_check
        %p231 = pneg %p34
      $region38: #{dqn_forward.1} parent=35 // pred_check_branch
        %233 = sbr.rel (%p231) target = $region40
      $region39: #{dqn_forward.1} parent=35 // pred_region
        %p234 = scmp.lt.s32.totalorder %s14, 1
        %s235 = scalar_select %p234, %s14, 1
        %s236 = smul.addr %s235, 8
        %s237 = smul.addr %s236, 8
        %s238 = scalar_lea.vmem %s0, %s237
      $region40: #{dqn_forward.1} parent=35 // pred_fallthru
        _
      // Predicated region
      $region41: #{dqn_forward.1} parent=35 // pred_check
        %p239 = pneg %p60
      $region42: #{dqn_forward.1} parent=35 // pred_check_branch
        %241 = sbr.rel (%p239) target = $region44
      $region43: #{dqn_forward.1} parent=35 // pred_region
        %p242 = scmp.lt.s32.totalorder %s14, 1
        %s243 = scalar_select %p242, %s14, 1
        %s244 = scalar_lea.vmem %s1, %s243
      $region44: #{dqn_forward.1} parent=35 // pred_fallthru
        _
    $region36: #{dqn_forward.1} parent=5 // pred_fallthru
      _
    %p245 = scmp.le.s32.totalorder 1, %s14
    %p246 = scmp.lt.s32.totalorder %s14, 3
    %p247 = pnand %p245, %p246
    %p248 = pneg %p247
    // Predicated region
    $region45: #{dqn_forward.1} parent=5 // pred_check
      _
    $region46: #{dqn_forward.1} parent=5 // pred_check_branch
      %250 = sbr.rel (%p247) target = $region48
    $region47: #{dqn_forward.1} parent=5 // pred_region
      %s251 = ssub.s32 %s14, 1
      %p252 = scmp.lt.s32.totalorder %s19, 1
      %s253 = scalar_select %p252, %s19, 1
      %s254 = smul.addr %s253, 8
      %s255 = smul.addr %s254, 8
      %s256 = scalar_lea.vmem %s0, %s255
      %p257 = pneg %p40
      %p258 = pneg %p37
      %p259 = scmp.lt.s32.totalorder %s19, 1
      %s260 = scalar_select %p259, %s19, 1
      %s261 = scalar_lea.vmem %s1, %s260
      %p262 = pneg %p66
      %p263 = pneg %p63
      %p264 = pneg %p87
      %p265 = pneg %p84
      %p266 = pneg %p108
      %p267 = pneg %p105
      %p268 = pneg %p129
      %p269 = pneg %p126
      %p270 = pneg %p150
      %p271 = pneg %p147
      %p272 = pneg %p171
      %p273 = pneg %p168
      %p274 = pneg %p197
      %p275 = pneg %p194
      %p276 = scmp.lt.s32.totalorder %s19, 1
      %s277 = scalar_select %p276, %s19, 1
      %s278 = scalar_lea.vmem %s7, %s277
      %p279 = scmp.lt.s32.totalorder %s19, 1
      %s280 = scalar_select %p279, %s19, 1
      %s281 = smul.addr %s280, 8
      %s282 = smul.addr %s281, 8
      %s283 = scalar_lea.vmem %s0, %s282
      %p284 = scmp.lt.s32.totalorder %s19, 1
      %s285 = scalar_select %p284, %s19, 1
      %s286 = scalar_lea.vmem %s1, %s285
      %p287 = scmp.lt.s32.totalorder %s19, 1
      %s288 = scalar_select %p287, %s19, 1
      %s289 = scalar_lea.vmem %s7, %s288
      %vm291 = vcmask 523264
      %292 = vst.msk [vmem:[#allocation2] sm:$0xff] %vm291, 0.0
      %vm293 = vcmask 517120
      %294 = vst.msk [vmem:[#allocation2 + $0x8] sm:$0x3] %vm293, 0.0
      %295 = vst.msk [vmem:[#allocation2 + $0x10] sm:$0xff] %vm291, 0.0
      %296 = vst.msk [vmem:[#allocation2 + $0x18] sm:$0x3] %vm293, 0.0
      %297 = vst.msk [vmem:[#allocation2 + $0x20] sm:$0xff] %vm291, 0.0
      %298 = vst.msk [vmem:[#allocation2 + $0x28] sm:$0x3] %vm293, 0.0
      %299 = vst.msk [vmem:[#allocation2 + $0x30] sm:$0xff] %vm291, 0.0
      %300 = vst.msk [vmem:[#allocation2 + $0x38] sm:$0x3] %vm293, 0.0
      %301 = vst.msk [vmem:[#allocation2 + $0x40] sm:$0xff] %vm291, 0.0
      %302 = vst.msk [vmem:[#allocation2 + $0x48] sm:$0x3] %vm293, 0.0
      %303 = vst.msk [vmem:[#allocation2 + $0x50] sm:$0xff] %vm291, 0.0
      %304 = vst.msk [vmem:[#allocation2 + $0x58] sm:$0x3] %vm293, 0.0
      %305 = vst.msk [vmem:[#allocation2 + $0x60] sm:$0xff] %vm291, 0.0
      %306 = vst.msk [vmem:[#allocation2 + $0x68] sm:$0x3] %vm293, 0.0
      %307 = vst.msk [vmem:[#allocation2 + $0x70] sm:$0xff] %vm291, 0.0
      %308 = vst.msk [vmem:[#allocation2 + $0x78] sm:$0x3] %vm293, 0.0
      %309 = vst.msk [vmem:[#allocation2 + $0x80] sm:$0xff] %vm291, 0.0
      %310 = vst.msk [vmem:[#allocation2 + $0x88] sm:$0x3] %vm293, 0.0
      %311 = vst.msk [vmem:[#allocation2 + $0x90] sm:$0xff] %vm291, 0.0
      %312 = vst.msk [vmem:[#allocation2 + $0x98] sm:$0x3] %vm293, 0.0
      %v313 = vld [vmem:[%s283] sm:$0xff]
      %v314 = vld [vmem:[%s283 + $0x8] sm:$0xff]
      %v315 = vld [vmem:[%s283 + $0x10] sm:$0xff]
      %v316 = vld [vmem:[%s283 + $0x18] sm:$0xff]
      %v317 = vld [vmem:[%s283 + $0x20] sm:$0xff]
      %v318 = vld [vmem:[%s283 + $0x28] sm:$0xff]
      %v319 = vld [vmem:[%s283 + $0x30] sm:$0xff]
      %v320 = vld [vmem:[%s283 + $0x38] sm:$0xff]
      %s321 = scalar_lea.vmem [#allocation2], 16
      %vm322 = vcmask 23552
      %323 = vst.msk [vmem:[%s321 + $0x1] sm:$0xff] %vm322, %v313
      %324 = vst.msk [vmem:[%s321 + $0x11] sm:$0xff] %vm322, %v314
      %325 = vst.msk [vmem:[%s321 + $0x21] sm:$0xff] %vm322, %v315
      %326 = vst.msk [vmem:[%s321 + $0x31] sm:$0xff] %vm322, %v316
      %327 = vst.msk [vmem:[%s321 + $0x41] sm:$0xff] %vm322, %v317
      %328 = vst.msk [vmem:[%s321 + $0x51] sm:$0xff] %vm322, %v318
      %329 = vst.msk [vmem:[%s321 + $0x61] sm:$0xff] %vm322, %v319
      %330 = vst.msk [vmem:[%s321 + $0x71] sm:$0xff] %vm322, %v320
      %v331 = vld [vmem:[#allocation2] sm:$0xff]
      %v332 = vld [vmem:[#allocation2 + $0x10] sm:$0xff]
      %v333 = vld [vmem:[#allocation2 + $0x20] sm:$0xff]
      %v334 = vld [vmem:[#allocation2 + $0x30] sm:$0xff]
      %v335 = vld [vmem:[#allocation2 + $0x40] sm:$0xff]
      %v336 = vld [vmem:[#allocation2 + $0x50] sm:$0xff]
      %v337 = vld [vmem:[#allocation2 + $0x60] sm:$0xff]
      %v338 = vld [vmem:[#allocation2 + $0x70] sm:$0xff]
      %v339 = vpack.c.bf16 %v331, %v331
      %v340 = vpack.c.bf16 %v332, %v332
      %v341 = vpack.c.bf16 %v333, %v333
      %v342 = vpack.c.bf16 %v334, %v334
      %v343 = vpack.c.bf16 %v335, %v335
      %v344 = vpack.c.bf16 %v336, %v336
      %v345 = vpack.c.bf16 %v337, %v337
      %v346 = vpack.c.bf16 %v338, %v338
      %vm347 = vcmask 519168
      %348 = vst.msk [vmem:[#allocation3] sm:$0xf] %vm347, %v339
      %349 = vst.msk [vmem:[#allocation3 + $0x14] sm:$0xf] %vm347, %v340
      %350 = vst.msk [vmem:[#allocation3 + $0x28] sm:$0xf] %vm347, %v341
      %351 = vst.msk [vmem:[#allocation3 + $0x3c] sm:$0xf] %vm347, %v342
      %352 = vst.msk [vmem:[#allocation3 + $0x50] sm:$0xf] %vm347, %v343
      %353 = vst.msk [vmem:[#allocation3 + $0x64] sm:$0xf] %vm347, %v344
      %354 = vst.msk [vmem:[#allocation3 + $0x78] sm:$0xf] %vm347, %v345
      %355 = vst.msk [vmem:[#allocation3 + $0x8c] sm:$0xf] %vm347, %v346
      %v356 = vld [vmem:[#allocation2 + $0x1] sm:$0xff]
      %v357 = vld [vmem:[#allocation2 + $0x11] sm:$0xff]
      %v358 = vld [vmem:[#allocation2 + $0x21] sm:$0xff]
      %v359 = vld [vmem:[#allocation2 + $0x31] sm:$0xff]
      %v360 = vld [vmem:[#allocation2 + $0x41] sm:$0xff]
      %v361 = vld [vmem:[#allocation2 + $0x51] sm:$0xff]
      %v362 = vld [vmem:[#allocation2 + $0x61] sm:$0xff]
      %v363 = vld [vmem:[#allocation2 + $0x71] sm:$0xff]
      %v364 = vpack.c.bf16 %v356, %v356
      %v365 = vpack.c.bf16 %v357, %v357
      %v366 = vpack.c.bf16 %v358, %v358
      %v367 = vpack.c.bf16 %v359, %v359
      %v368 = vpack.c.bf16 %v360, %v360
      %v369 = vpack.c.bf16 %v361, %v361
      %v370 = vpack.c.bf16 %v362, %v362
      %v371 = vpack.c.bf16 %v363, %v363
      %380 = vrot.lane.b32.xlu0 %v364, 64
      %v381 = vpop.permute.xlu0 %380
      %382 = vrot.lane.b32.xlu0 %v365, 64
      %v383 = vpop.permute.xlu0 %382
      %384 = vrot.lane.b32.xlu0 %v366, 64
      %v385 = vpop.permute.xlu0 %384
      %386 = vrot.lane.b32.xlu0 %v367, 64
      %v387 = vpop.permute.xlu0 %386
      %388 = vrot.lane.b32.xlu0 %v368, 64
      %v389 = vpop.permute.xlu0 %388
      %390 = vrot.lane.b32.xlu0 %v369, 64
      %v391 = vpop.permute.xlu0 %390
      %392 = vrot.lane.b32.xlu0 %v370, 64
      %v393 = vpop.permute.xlu0 %392
      %394 = vrot.lane.b32.xlu0 %v371, 64
      %v395 = vpop.permute.xlu0 %394
      %vm404 = vcmask 1043968
      %405 = vst.msk [vmem:[#allocation3] sm:$0xf] %vm404, %v381
      %406 = vst.msk [vmem:[#allocation3 + $0x14] sm:$0xf] %vm404, %v383
      %407 = vst.msk [vmem:[#allocation3 + $0x28] sm:$0xf] %vm404, %v385
      %408 = vst.msk [vmem:[#allocation3 + $0x3c] sm:$0xf] %vm404, %v387
      %409 = vst.msk [vmem:[#allocation3 + $0x50] sm:$0xf] %vm404, %v389
      %410 = vst.msk [vmem:[#allocation3 + $0x64] sm:$0xf] %vm404, %v391
      %411 = vst.msk [vmem:[#allocation3 + $0x78] sm:$0xf] %vm404, %v393
      %412 = vst.msk [vmem:[#allocation3 + $0x8c] sm:$0xf] %vm404, %v395
      %v413 = vld [vmem:[#allocation2 + $0x2] sm:$0xff]
      %v414 = vld [vmem:[#allocation2 + $0x12] sm:$0xff]
      %v415 = vld [vmem:[#allocation2 + $0x22] sm:$0xff]
      %v416 = vld [vmem:[#allocation2 + $0x32] sm:$0xff]
      %v417 = vld [vmem:[#allocation2 + $0x42] sm:$0xff]
      %v418 = vld [vmem:[#allocation2 + $0x52] sm:$0xff]
      %v419 = vld [vmem:[#allocation2 + $0x62] sm:$0xff]
      %v420 = vld [vmem:[#allocation2 + $0x72] sm:$0xff]
      %v421 = vpack.c.bf16 %v413, %v413
      %v422 = vpack.c.bf16 %v414, %v414
      %v423 = vpack.c.bf16 %v415, %v415
      %v424 = vpack.c.bf16 %v416, %v416
      %v425 = vpack.c.bf16 %v417, %v417
      %v426 = vpack.c.bf16 %v418, %v418
      %v427 = vpack.c.bf16 %v419, %v419
      %v428 = vpack.c.bf16 %v420, %v420
      %429 = vst.msk [vmem:[#allocation3 + $0x4] sm:$0xf] %vm347, %v421
      %430 = vst.msk [vmem:[#allocation3 + $0x18] sm:$0xf] %vm347, %v422
      %431 = vst.msk [vmem:[#allocation3 + $0x2c] sm:$0xf] %vm347, %v423
      %432 = vst.msk [vmem:[#allocation3 + $0x40] sm:$0xf] %vm347, %v424
      %433 = vst.msk [vmem:[#allocation3 + $0x54] sm:$0xf] %vm347, %v425
      %434 = vst.msk [vmem:[#allocation3 + $0x68] sm:$0xf] %vm347, %v426
      %435 = vst.msk [vmem:[#allocation3 + $0x7c] sm:$0xf] %vm347, %v427
      %436 = vst.msk [vmem:[#allocation3 + $0x90] sm:$0xf] %vm347, %v428
      %v437 = vld [vmem:[%s321] sm:$0xff]
      %v438 = vld [vmem:[%s321 + $0x10] sm:$0xff]
      %v439 = vld [vmem:[%s321 + $0x20] sm:$0xff]
      %v440 = vld [vmem:[%s321 + $0x30] sm:$0xff]
      %v441 = vld [vmem:[%s321 + $0x40] sm:$0xff]
      %v442 = vld [vmem:[%s321 + $0x50] sm:$0xff]
      %v443 = vld [vmem:[%s321 + $0x60] sm:$0xff]
      %v444 = vld [vmem:[%s321 + $0x70] sm:$0xff]
      %v445 = vpack.c.bf16 %v437, %v437
      %v446 = vpack.c.bf16 %v438, %v438
      %v447 = vpack.c.bf16 %v439, %v439
      %v448 = vpack.c.bf16 %v440, %v440
      %v449 = vpack.c.bf16 %v441, %v441
      %v450 = vpack.c.bf16 %v442, %v442
      %v451 = vpack.c.bf16 %v443, %v443
      %v452 = vpack.c.bf16 %v444, %v444
      %461 = vrot.lane.b32.xlu0 %v445, 64
      %v462 = vpop.permute.xlu0 %461
      %463 = vrot.lane.b32.xlu0 %v446, 64
      %v464 = vpop.permute.xlu0 %463
      %465 = vrot.lane.b32.xlu0 %v447, 64
      %v466 = vpop.permute.xlu0 %465
      %467 = vrot.lane.b32.xlu0 %v448, 64
      %v468 = vpop.permute.xlu0 %467
      %469 = vrot.lane.b32.xlu0 %v449, 64
      %v470 = vpop.permute.xlu0 %469
      %471 = vrot.lane.b32.xlu0 %v450, 64
      %v472 = vpop.permute.xlu0 %471
      %473 = vrot.lane.b32.xlu0 %v451, 64
      %v474 = vpop.permute.xlu0 %473
      %475 = vrot.lane.b32.xlu0 %v452, 64
      %v476 = vpop.permute.xlu0 %475
      %485 = vst.msk [vmem:[#allocation3 + $0x4] sm:$0xf] %vm404, %v462
      %486 = vst.msk [vmem:[#allocation3 + $0x18] sm:$0xf] %vm404, %v464
      %487 = vst.msk [vmem:[#allocation3 + $0x2c] sm:$0xf] %vm404, %v466
      %488 = vst.msk [vmem:[#allocation3 + $0x40] sm:$0xf] %vm404, %v468
      %489 = vst.msk [vmem:[#allocation3 + $0x54] sm:$0xf] %vm404, %v470
      %490 = vst.msk [vmem:[#allocation3 + $0x68] sm:$0xf] %vm404, %v472
      %491 = vst.msk [vmem:[#allocation3 + $0x7c] sm:$0xf] %vm404, %v474
      %492 = vst.msk [vmem:[#allocation3 + $0x90] sm:$0xf] %vm404, %v476
      %v493 = vld [vmem:[%s321 + $0x1] sm:$0xff]
      %v494 = vld [vmem:[%s321 + $0x11] sm:$0xff]
      %v495 = vld [vmem:[%s321 + $0x21] sm:$0xff]
      %v496 = vld [vmem:[%s321 + $0x31] sm:$0xff]
      %v497 = vld [vmem:[%s321 + $0x41] sm:$0xff]
      %v498 = vld [vmem:[%s321 + $0x51] sm:$0xff]
      %v499 = vld [vmem:[%s321 + $0x61] sm:$0xff]
      %v500 = vld [vmem:[%s321 + $0x71] sm:$0xff]
      %v501 = vpack.c.bf16 %v493, %v493
      %v502 = vpack.c.bf16 %v494, %v494
      %v503 = vpack.c.bf16 %v495, %v495
      %v504 = vpack.c.bf16 %v496, %v496
      %v505 = vpack.c.bf16 %v497, %v497
      %v506 = vpack.c.bf16 %v498, %v498
      %v507 = vpack.c.bf16 %v499, %v499
      %v508 = vpack.c.bf16 %v500, %v500
      %509 = vst.msk [vmem:[#allocation3 + $0x8] sm:$0xf] %vm347, %v501
      %510 = vst.msk [vmem:[#allocation3 + $0x1c] sm:$0xf] %vm347, %v502
      %511 = vst.msk [vmem:[#allocation3 + $0x30] sm:$0xf] %vm347, %v503
      %512 = vst.msk [vmem:[#allocation3 + $0x44] sm:$0xf] %vm347, %v504
      %513 = vst.msk [vmem:[#allocation3 + $0x58] sm:$0xf] %vm347, %v505
      %514 = vst.msk [vmem:[#allocation3 + $0x6c] sm:$0xf] %vm347, %v506
      %515 = vst.msk [vmem:[#allocation3 + $0x80] sm:$0xf] %vm347, %v507
      %516 = vst.msk [vmem:[#allocation3 + $0x94] sm:$0xf] %vm347, %v508
      %v517 = vld [vmem:[%s321 + $0x2] sm:$0xff]
      %v518 = vld [vmem:[%s321 + $0x12] sm:$0xff]
      %v519 = vld [vmem:[%s321 + $0x22] sm:$0xff]
      %v520 = vld [vmem:[%s321 + $0x32] sm:$0xff]
      %v521 = vld [vmem:[%s321 + $0x42] sm:$0xff]
      %v522 = vld [vmem:[%s321 + $0x52] sm:$0xff]
      %v523 = vld [vmem:[%s321 + $0x62] sm:$0xff]
      %v524 = vld [vmem:[%s321 + $0x72] sm:$0xff]
      %v525 = vpack.c.bf16 %v517, %v517
      %v526 = vpack.c.bf16 %v518, %v518
      %v527 = vpack.c.bf16 %v519, %v519
      %v528 = vpack.c.bf16 %v520, %v520
      %v529 = vpack.c.bf16 %v521, %v521
      %v530 = vpack.c.bf16 %v522, %v522
      %v531 = vpack.c.bf16 %v523, %v523
      %v532 = vpack.c.bf16 %v524, %v524
      %541 = vrot.lane.b32.xlu0 %v525, 64
      %v542 = vpop.permute.xlu0 %541
      %543 = vrot.lane.b32.xlu0 %v526, 64
      %v544 = vpop.permute.xlu0 %543
      %545 = vrot.lane.b32.xlu0 %v527, 64
      %v546 = vpop.permute.xlu0 %545
      %547 = vrot.lane.b32.xlu0 %v528, 64
      %v548 = vpop.permute.xlu0 %547
      %549 = vrot.lane.b32.xlu0 %v529, 64
      %v550 = vpop.permute.xlu0 %549
      %551 = vrot.lane.b32.xlu0 %v530, 64
      %v552 = vpop.permute.xlu0 %551
      %553 = vrot.lane.b32.xlu0 %v531, 64
      %v554 = vpop.permute.xlu0 %553
      %555 = vrot.lane.b32.xlu0 %v532, 64
      %v556 = vpop.permute.xlu0 %555
      %565 = vst.msk [vmem:[#allocation3 + $0x8] sm:$0xf] %vm404, %v542
      %566 = vst.msk [vmem:[#allocation3 + $0x1c] sm:$0xf] %vm404, %v544
      %567 = vst.msk [vmem:[#allocation3 + $0x30] sm:$0xf] %vm404, %v546
      %568 = vst.msk [vmem:[#allocation3 + $0x44] sm:$0xf] %vm404, %v548
      %569 = vst.msk [vmem:[#allocation3 + $0x58] sm:$0xf] %vm404, %v550
      %570 = vst.msk [vmem:[#allocation3 + $0x6c] sm:$0xf] %vm404, %v552
      %571 = vst.msk [vmem:[#allocation3 + $0x80] sm:$0xf] %vm404, %v554
      %572 = vst.msk [vmem:[#allocation3 + $0x94] sm:$0xf] %vm404, %v556
      %s573 = scalar_lea.vmem [#allocation2], 32
      %v574 = vld [vmem:[%s573] sm:$0xff]
      %v575 = vld [vmem:[%s573 + $0x10] sm:$0xff]
      %v576 = vld [vmem:[%s573 + $0x20] sm:$0xff]
      %v577 = vld [vmem:[%s573 + $0x30] sm:$0xff]
      %v578 = vld [vmem:[%s573 + $0x40] sm:$0xff]
      %v579 = vld [vmem:[%s573 + $0x50] sm:$0xff]
      %v580 = vld [vmem:[%s573 + $0x60] sm:$0xff]
      %v581 = vld [vmem:[%s573 + $0x70] sm:$0xff]
      %v582 = vpack.c.bf16 %v574, %v574
      %v583 = vpack.c.bf16 %v575, %v575
      %v584 = vpack.c.bf16 %v576, %v576
      %v585 = vpack.c.bf16 %v577, %v577
      %v586 = vpack.c.bf16 %v578, %v578
      %v587 = vpack.c.bf16 %v579, %v579
      %v588 = vpack.c.bf16 %v580, %v580
      %v589 = vpack.c.bf16 %v581, %v581
      %590 = vst.msk [vmem:[#allocation3 + $0xc] sm:$0xf] %vm347, %v582
      %591 = vst.msk [vmem:[#allocation3 + $0x20] sm:$0xf] %vm347, %v583
      %592 = vst.msk [vmem:[#allocation3 + $0x34] sm:$0xf] %vm347, %v584
      %593 = vst.msk [vmem:[#allocation3 + $0x48] sm:$0xf] %vm347, %v585
      %594 = vst.msk [vmem:[#allocation3 + $0x5c] sm:$0xf] %vm347, %v586
      %595 = vst.msk [vmem:[#allocation3 + $0x70] sm:$0xf] %vm347, %v587
      %596 = vst.msk [vmem:[#allocation3 + $0x84] sm:$0xf] %vm347, %v588
      %597 = vst.msk [vmem:[#allocation3 + $0x98] sm:$0xf] %vm347, %v589
      %v598 = vld [vmem:[%s573 + $0x1] sm:$0xff]
      %v599 = vld [vmem:[%s573 + $0x11] sm:$0xff]
      %v600 = vld [vmem:[%s573 + $0x21] sm:$0xff]
      %v601 = vld [vmem:[%s573 + $0x31] sm:$0xff]
      %v602 = vld [vmem:[%s573 + $0x41] sm:$0xff]
      %v603 = vld [vmem:[%s573 + $0x51] sm:$0xff]
      %v604 = vld [vmem:[%s573 + $0x61] sm:$0xff]
      %v605 = vld [vmem:[%s573 + $0x71] sm:$0xff]
      %v606 = vpack.c.bf16 %v598, %v598
      %v607 = vpack.c.bf16 %v599, %v599
      %v608 = vpack.c.bf16 %v600, %v600
      %v609 = vpack.c.bf16 %v601, %v601
      %v610 = vpack.c.bf16 %v602, %v602
      %v611 = vpack.c.bf16 %v603, %v603
      %v612 = vpack.c.bf16 %v604, %v604
      %v613 = vpack.c.bf16 %v605, %v605
      %622 = vrot.lane.b32.xlu0 %v606, 64
      %v623 = vpop.permute.xlu0 %622
      %624 = vrot.lane.b32.xlu0 %v607, 64
      %v625 = vpop.permute.xlu0 %624
      %626 = vrot.lane.b32.xlu0 %v608, 64
      %v627 = vpop.permute.xlu0 %626
      %628 = vrot.lane.b32.xlu0 %v609, 64
      %v629 = vpop.permute.xlu0 %628
      %630 = vrot.lane.b32.xlu0 %v610, 64
      %v631 = vpop.permute.xlu0 %630
      %632 = vrot.lane.b32.xlu0 %v611, 64
      %v633 = vpop.permute.xlu0 %632
      %634 = vrot.lane.b32.xlu0 %v612, 64
      %v635 = vpop.permute.xlu0 %634
      %636 = vrot.lane.b32.xlu0 %v613, 64
      %v637 = vpop.permute.xlu0 %636
      %646 = vst.msk [vmem:[#allocation3 + $0xc] sm:$0xf] %vm404, %v623
      %647 = vst.msk [vmem:[#allocation3 + $0x20] sm:$0xf] %vm404, %v625
      %648 = vst.msk [vmem:[#allocation3 + $0x34] sm:$0xf] %vm404, %v627
      %649 = vst.msk [vmem:[#allocation3 + $0x48] sm:$0xf] %vm404, %v629
      %650 = vst.msk [vmem:[#allocation3 + $0x5c] sm:$0xf] %vm404, %v631
      %651 = vst.msk [vmem:[#allocation3 + $0x70] sm:$0xf] %vm404, %v633
      %652 = vst.msk [vmem:[#allocation3 + $0x84] sm:$0xf] %vm404, %v635
      %653 = vst.msk [vmem:[#allocation3 + $0x98] sm:$0xf] %vm404, %v637
      %v654 = vld [vmem:[%s573 + $0x2] sm:$0xff]
      %v655 = vld [vmem:[%s573 + $0x12] sm:$0xff]
      %v656 = vld [vmem:[%s573 + $0x22] sm:$0xff]
      %v657 = vld [vmem:[%s573 + $0x32] sm:$0xff]
      %v658 = vld [vmem:[%s573 + $0x42] sm:$0xff]
      %v659 = vld [vmem:[%s573 + $0x52] sm:$0xff]
      %v660 = vld [vmem:[%s573 + $0x62] sm:$0xff]
      %v661 = vld [vmem:[%s573 + $0x72] sm:$0xff]
      %v662 = vpack.c.bf16 %v654, %v654
      %v663 = vpack.c.bf16 %v655, %v655
      %v664 = vpack.c.bf16 %v656, %v656
      %v665 = vpack.c.bf16 %v657, %v657
      %v666 = vpack.c.bf16 %v658, %v658
      %v667 = vpack.c.bf16 %v659, %v659
      %v668 = vpack.c.bf16 %v660, %v660
      %v669 = vpack.c.bf16 %v661, %v661
      %670 = vst.msk [vmem:[#allocation3 + $0x10] sm:$0xf] %vm347, %v662
      %671 = vst.msk [vmem:[#allocation3 + $0x24] sm:$0xf] %vm347, %v663
      %672 = vst.msk [vmem:[#allocation3 + $0x38] sm:$0xf] %vm347, %v664
      %673 = vst.msk [vmem:[#allocation3 + $0x4c] sm:$0xf] %vm347, %v665
      %674 = vst.msk [vmem:[#allocation3 + $0x60] sm:$0xf] %vm347, %v666
      %675 = vst.msk [vmem:[#allocation3 + $0x74] sm:$0xf] %vm347, %v667
      %676 = vst.msk [vmem:[#allocation3 + $0x88] sm:$0xf] %vm347, %v668
      %677 = vst.msk [vmem:[#allocation3 + $0x9c] sm:$0xf] %vm347, %v669
      %v678 = vld [vmem:[#allocation3] sm:$0xff]
      %v679 = vld [vmem:[#allocation3 + $0x8] sm:$0xff]
      %v680 = vld [vmem:[#allocation3 + $0x10] sm:$0xf]
      %v681 = vld [vmem:[#allocation3 + $0x14] sm:$0xff]
      %v682 = vld [vmem:[#allocation3 + $0x1c] sm:$0xff]
      %v683 = vld [vmem:[#allocation3 + $0x24] sm:$0xf]
      %v684 = vld [vmem:[#allocation3 + $0x28] sm:$0xff]
      %v685 = vld [vmem:[#allocation3 + $0x30] sm:$0xff]
      %v686 = vld [vmem:[#allocation3 + $0x38] sm:$0xf]
      %v687 = vld [vmem:[#allocation3 + $0x3c] sm:$0xff]
      %v688 = vld [vmem:[#allocation3 + $0x44] sm:$0xff]
      %v689 = vld [vmem:[#allocation3 + $0x4c] sm:$0xf]
      %v690 = vld [vmem:[#allocation3 + $0x50] sm:$0xff]
      %v691 = vld [vmem:[#allocation3 + $0x58] sm:$0xff]
      %v692 = vld [vmem:[#allocation3 + $0x60] sm:$0xf]
      %v693 = vld [vmem:[#allocation3 + $0x64] sm:$0xff]
      %v694 = vld [vmem:[#allocation3 + $0x6c] sm:$0xff]
      %v695 = vld [vmem:[#allocation3 + $0x74] sm:$0xf]
      %v696 = vld [vmem:[#allocation3 + $0x78] sm:$0xff]
      %v697 = vld [vmem:[#allocation3 + $0x80] sm:$0xff]
      %v698 = vld [vmem:[#allocation3 + $0x88] sm:$0xf]
      %v699 = vld [vmem:[#allocation3 + $0x8c] sm:$0xff]
      %v700 = vld [vmem:[#allocation3 + $0x94] sm:$0xff]
      %v701 = vld [vmem:[#allocation3 + $0x9c] sm:$0xf]
      %v702 = vld [vmem:[%s2] sm:$0xf]
      %v703 = vld [vmem:[%s2 + $0x4] sm:$0xf]
      %v704 = vld [vmem:[%s2 + $0x8] sm:$0xf]
      %v705 = vld [vmem:[%s2 + $0xc] sm:$0xf]
      %v706 = vld [vmem:[%s2 + $0x10] sm:$0xf]
      %v707 = vld [vmem:[%s2 + $0x14] sm:$0xf]
      %v708 = vld [vmem:[%s2 + $0x18] sm:$0xf]
      %v709 = vld [vmem:[%s2 + $0x1c] sm:$0xf]
      %v710 = vld [vmem:[%s2 + $0x20] sm:$0xf]
      %v711 = vld [vmem:[%s2 + $0x24] sm:$0xf]
      %v712 = vld [vmem:[%s2 + $0x28] sm:$0xf]
      %v713 = vld [vmem:[%s2 + $0x2c] sm:$0xf]
      %v714 = vld [vmem:[%s2 + $0x30] sm:$0xf]
      %v715 = vld [vmem:[%s2 + $0x34] sm:$0xf]
      %v716 = vld [vmem:[%s2 + $0x38] sm:$0xf]
      %v717 = vld [vmem:[%s2 + $0x3c] sm:$0xf]
      %v718 = vld [vmem:[%s2 + $0x40] sm:$0xf]
      %v719 = vld [vmem:[%s2 + $0x44] sm:$0xf]
      %v720 = vld [vmem:[%s2 + $0x48] sm:$0xf]
      %v721 = vld [vmem:[%s2 + $0x4c] sm:$0xf]
      %v722 = vld [vmem:[%s2 + $0x50] sm:$0xf]
      %v723 = vld [vmem:[%s2 + $0x54] sm:$0xf]
      %v724 = vld [vmem:[%s2 + $0x58] sm:$0xf]
      %v725 = vld [vmem:[%s2 + $0x5c] sm:$0xf]
      %v726 = vld [vmem:[%s2 + $0x60] sm:$0xf]
      %v727 = vld [vmem:[%s2 + $0x64] sm:$0xf]
      %v728 = vld [vmem:[%s2 + $0x68] sm:$0xf]
      %v729 = vld [vmem:[%s2 + $0x6c] sm:$0xf]
      %v730 = vld [vmem:[%s2 + $0x70] sm:$0xf]
      %v731 = vld [vmem:[%s2 + $0x74] sm:$0xf]
      %v732 = vld [vmem:[%s2 + $0x78] sm:$0xf]
      %v733 = vld [vmem:[%s2 + $0x7c] sm:$0xf]
      %v734 = vld [vmem:[%s2 + $0x80] sm:$0xf]
      %v735 = vld [vmem:[%s2 + $0x84] sm:$0xf]
      %v736 = vld [vmem:[%s2 + $0x88] sm:$0xf]
      %v737 = vld [vmem:[%s2 + $0x8c] sm:$0xf]
      %v738 = vld [vmem:[%s2 + $0x90] sm:$0xf]
      %v739 = vld [vmem:[%s2 + $0x94] sm:$0xf]
      %v740 = vld [vmem:[%s2 + $0x98] sm:$0xf]
      %v741 = vld [vmem:[%s2 + $0x9c] sm:$0xf]
      %v742 = vld [vmem:[%s2 + $0xa0] sm:$0xf]
      %v743 = vld [vmem:[%s2 + $0xa4] sm:$0xf]
      %v744 = vld [vmem:[%s2 + $0xa8] sm:$0xf]
      %v745 = vld [vmem:[%s2 + $0xac] sm:$0xf]
      %v746 = vld [vmem:[%s2 + $0xb0] sm:$0xf]
      %v747 = vld [vmem:[%s2 + $0xb4] sm:$0xf]
      %v748 = vld [vmem:[%s2 + $0xb8] sm:$0xf]
      %v749 = vld [vmem:[%s2 + $0xbc] sm:$0xf]
      %v750 = vld [vmem:[%s2 + $0xc0] sm:$0xf]
      %v751 = vld [vmem:[%s2 + $0xc4] sm:$0xf]
      %v752 = vld [vmem:[%s2 + $0xc8] sm:$0xf]
      %v753 = vld [vmem:[%s2 + $0xcc] sm:$0xf]
      %v754 = vld [vmem:[%s2 + $0xd0] sm:$0xf]
      %v755 = vld [vmem:[%s2 + $0xd4] sm:$0xf]
      %v756 = vld [vmem:[%s2 + $0xd8] sm:$0xf]
      %v757 = vld [vmem:[%s2 + $0xdc] sm:$0xf]
      %v758 = vld [vmem:[%s2 + $0xe0] sm:$0xf]
      %v759 = vld [vmem:[%s2 + $0xe4] sm:$0xf]
      %v760 = vld [vmem:[%s2 + $0xe8] sm:$0xf]
      %v761 = vld [vmem:[%s2 + $0xec] sm:$0xf]
      %v762 = vld [vmem:[%s2 + $0xf0] sm:$0xf]
      %v763 = vld [vmem:[%s2 + $0xf4] sm:$0xf]
      %v764 = vld [vmem:[%s2 + $0xf8] sm:$0xf]
      %v765 = vld [vmem:[%s2 + $0xfc] sm:$0xf]
      %v766 = vld [vmem:[%s2 + $0x100] sm:$0xf]
      %v767 = vld [vmem:[%s2 + $0x104] sm:$0xf]
      %v768 = vld [vmem:[%s2 + $0x108] sm:$0xf]
      %v769 = vld [vmem:[%s2 + $0x10c] sm:$0xf]
      %v770 = vld [vmem:[%s2 + $0x110] sm:$0xf]
      %v771 = vld [vmem:[%s2 + $0x114] sm:$0xf]
      %v772 = vld [vmem:[%s2 + $0x118] sm:$0xf]
      %v773 = vld [vmem:[%s2 + $0x11c] sm:$0xf]
      %v798 = vunpack.c.l.b16 %v678
      %v799 = vunpack.c.h.b16 %v678
      %v800 = vunpack.c.l.b16 %v679
      %v801 = vunpack.c.h.b16 %v679
      %v802 = vunpack.c.l.b16 %v680
      %v803 = vunpack.c.l.b16 %v681
      %v804 = vunpack.c.h.b16 %v681
      %v805 = vunpack.c.l.b16 %v682
      %v806 = vunpack.c.h.b16 %v682
      %v807 = vunpack.c.l.b16 %v683
      %v808 = vunpack.c.l.b16 %v684
      %v809 = vunpack.c.h.b16 %v684
      %v810 = vunpack.c.l.b16 %v685
      %v811 = vunpack.c.h.b16 %v685
      %v812 = vunpack.c.l.b16 %v686
      %v813 = vunpack.c.l.b16 %v687
      %v814 = vunpack.c.h.b16 %v687
      %v815 = vunpack.c.l.b16 %v688
      %v816 = vunpack.c.h.b16 %v688
      %v817 = vunpack.c.l.b16 %v689
      %v818 = vunpack.c.l.b16 %v690
      %v819 = vunpack.c.h.b16 %v690
      %v820 = vunpack.c.l.b16 %v691
      %v821 = vunpack.c.h.b16 %v691
      %v822 = vunpack.c.l.b16 %v692
      %v823 = vunpack.c.l.b16 %v693
      %v824 = vunpack.c.h.b16 %v693
      %v825 = vunpack.c.l.b16 %v694
      %v826 = vunpack.c.h.b16 %v694
      %v827 = vunpack.c.l.b16 %v695
      %v828 = vunpack.c.l.b16 %v696
      %v829 = vunpack.c.h.b16 %v696
      %v830 = vunpack.c.l.b16 %v697
      %v831 = vunpack.c.h.b16 %v697
      %v832 = vunpack.c.l.b16 %v698
      %v833 = vunpack.c.l.b16 %v699
      %v834 = vunpack.c.h.b16 %v699
      %v835 = vunpack.c.l.b16 %v700
      %v836 = vunpack.c.h.b16 %v700
      %v837 = vunpack.c.l.b16 %v701
      %v838 = vpack.c.b16 %v803, %v798
      %v839 = vpack.c.b16 %v804, %v799
      %v840 = vpack.c.b16 %v805, %v800
      %v841 = vpack.c.b16 %v806, %v801
      %v842 = vpack.c.b16 %v807, %v802
      %v843 = vpack.c.b16 %v813, %v808
      %v844 = vpack.c.b16 %v814, %v809
      %v845 = vpack.c.b16 %v815, %v810
      %v846 = vpack.c.b16 %v816, %v811
      %v847 = vpack.c.b16 %v817, %v812
      %v848 = vpack.c.b16 %v823, %v818
      %v849 = vpack.c.b16 %v824, %v819
      %v850 = vpack.c.b16 %v825, %v820
      %v851 = vpack.c.b16 %v826, %v821
      %v852 = vpack.c.b16 %v827, %v822
      %v853 = vpack.c.b16 %v833, %v828
      %v854 = vpack.c.b16 %v834, %v829
      %v855 = vpack.c.b16 %v835, %v830
      %v856 = vpack.c.b16 %v836, %v831
      %v857 = vpack.c.b16 %v837, %v832
      %v946 = vunpack.c.l.b16 %v702
      %v947 = vunpack.c.l.b16 %v703
      %v948 = vunpack.c.l.b16 %v704
      %v949 = vunpack.c.l.b16 %v705
      %v950 = vunpack.c.l.b16 %v706
      %v951 = vunpack.c.l.b16 %v707
      %v952 = vunpack.c.l.b16 %v708
      %v953 = vunpack.c.l.b16 %v709
      %v954 = vunpack.c.l.b16 %v710
      %v955 = vunpack.c.l.b16 %v711
      %v956 = vunpack.c.l.b16 %v712
      %v957 = vunpack.c.l.b16 %v713
      %v958 = vunpack.c.l.b16 %v714
      %v959 = vunpack.c.l.b16 %v715
      %v960 = vunpack.c.l.b16 %v716
      %v961 = vunpack.c.l.b16 %v717
      %v962 = vunpack.c.l.b16 %v718
      %v963 = vunpack.c.l.b16 %v719
      %v964 = vunpack.c.l.b16 %v720
      %v965 = vunpack.c.l.b16 %v721
      %v966 = vunpack.c.l.b16 %v722
      %v967 = vunpack.c.l.b16 %v723
      %v968 = vunpack.c.l.b16 %v724
      %v969 = vunpack.c.l.b16 %v725
      %v970 = vunpack.c.l.b16 %v726
      %v971 = vunpack.c.l.b16 %v727
      %v972 = vunpack.c.l.b16 %v728
      %v973 = vunpack.c.l.b16 %v729
      %v974 = vunpack.c.l.b16 %v730
      %v975 = vunpack.c.l.b16 %v731
      %v976 = vunpack.c.l.b16 %v732
      %v977 = vunpack.c.l.b16 %v733
      %v978 = vunpack.c.l.b16 %v734
      %v979 = vunpack.c.l.b16 %v735
      %v980 = vunpack.c.l.b16 %v736
      %v981 = vunpack.c.l.b16 %v737
      %v982 = vunpack.c.l.b16 %v738
      %v983 = vunpack.c.l.b16 %v739
      %v984 = vunpack.c.l.b16 %v740
      %v985 = vunpack.c.l.b16 %v741
      %v986 = vunpack.c.l.b16 %v742
      %v987 = vunpack.c.l.b16 %v743
      %v988 = vunpack.c.l.b16 %v744
      %v989 = vunpack.c.l.b16 %v745
      %v990 = vunpack.c.l.b16 %v746
      %v991 = vunpack.c.l.b16 %v747
      %v992 = vunpack.c.l.b16 %v748
      %v993 = vunpack.c.l.b16 %v749
      %v994 = vunpack.c.l.b16 %v750
      %v995 = vunpack.c.l.b16 %v751
      %v996 = vunpack.c.l.b16 %v752
      %v997 = vunpack.c.l.b16 %v753
      %v998 = vunpack.c.l.b16 %v754
      %v999 = vunpack.c.l.b16 %v755
      %v1000 = vunpack.c.l.b16 %v756
      %v1001 = vunpack.c.l.b16 %v757
      %v1002 = vunpack.c.l.b16 %v758
      %v1003 = vunpack.c.l.b16 %v759
      %v1004 = vunpack.c.l.b16 %v760
      %v1005 = vunpack.c.l.b16 %v761
      %v1006 = vunpack.c.l.b16 %v762
      %v1007 = vunpack.c.l.b16 %v763
      %v1008 = vunpack.c.l.b16 %v764
      %v1009 = vunpack.c.l.b16 %v765
      %v1010 = vunpack.c.l.b16 %v766
      %v1011 = vunpack.c.l.b16 %v767
      %v1012 = vunpack.c.l.b16 %v768
      %v1013 = vunpack.c.l.b16 %v769
      %v1014 = vunpack.c.l.b16 %v770
      %v1015 = vunpack.c.l.b16 %v771
      %v1016 = vunpack.c.l.b16 %v772
      %v1017 = vunpack.c.l.b16 %v773
      %v1018 = vpack.c.b16 %v947, %v946
      %v1019 = vpack.c.b16 %v949, %v948
      %v1020 = vpack.c.b16 %v951, %v950
      %v1021 = vpack.c.b16 %v953, %v952
      %v1022 = vpack.c.b16 %v955, %v954
      %v1023 = vpack.c.b16 %v957, %v956
      %v1024 = vpack.c.b16 %v959, %v958
      %v1025 = vpack.c.b16 %v961, %v960
      %v1026 = vpack.c.b16 %v963, %v962
      %v1027 = vpack.c.b16 %v965, %v964
      %v1028 = vpack.c.b16 %v967, %v966
      %v1029 = vpack.c.b16 %v969, %v968
      %v1030 = vpack.c.b16 %v971, %v970
      %v1031 = vpack.c.b16 %v973, %v972
      %v1032 = vpack.c.b16 %v975, %v974
      %v1033 = vpack.c.b16 %v977, %v976
      %v1034 = vpack.c.b16 %v979, %v978
      %v1035 = vpack.c.b16 %v981, %v980
      %v1036 = vpack.c.b16 %v983, %v982
      %v1037 = vpack.c.b16 %v985, %v984
      %v1038 = vpack.c.b16 %v987, %v986
      %v1039 = vpack.c.b16 %v989, %v988
      %v1040 = vpack.c.b16 %v991, %v990
      %v1041 = vpack.c.b16 %v993, %v992
      %v1042 = vpack.c.b16 %v995, %v994
      %v1043 = vpack.c.b16 %v997, %v996
      %v1044 = vpack.c.b16 %v999, %v998
      %v1045 = vpack.c.b16 %v1001, %v1000
      %v1046 = vpack.c.b16 %v1003, %v1002
      %v1047 = vpack.c.b16 %v1005, %v1004
      %v1048 = vpack.c.b16 %v1007, %v1006
      %v1049 = vpack.c.b16 %v1009, %v1008
      %v1050 = vpack.c.b16 %v1011, %v1010
      %v1051 = vpack.c.b16 %v1013, %v1012
      %v1052 = vpack.c.b16 %v1015, %v1014
      %v1053 = vpack.c.b16 %v1017, %v1016
      %v1091 = vsel %vm291, %v842, 0
      %v1094 = vsel %vm291, %v847, 0
      %v1097 = vsel %vm291, %v852, 0
      %v1100 = vsel %vm291, %v857, 0
      %1102 = vmatpush.bf16.msra.mxu0 %v1025
      %1103 = vmatpush.bf16.msra.mxu0 %v1024
      %1104 = vmatpush.bf16.msra.mxu0 %v1023
      %1105 = vmatpush.bf16.msra.mxu0 %v1022
      %1106 = vmatpush.bf16.msra.mxu0 %v1021
      %1107 = vmatpush.bf16.msra.mxu0 %v1020
      %1108 = vmatpush.bf16.msra.mxu0 %v1019
      %1109 = vmatpush.bf16.msra.mxu0 %v1018
      %1110 = vmatmul.bf16.gmra.mxu0 %v838
      %v1111 = vpop.f32.mrf.mxu0
      %v1112 = vadd.f32 0.0, %v1111
      %v1113 = vpop.f32.mrf.mxu0
      %v1114 = vadd.f32 0.0, %v1113
      %1115 = vmatmul.bf16.gmra.mxu0 %v843
      %v1116 = vpop.f32.mrf.mxu0
      %v1117 = vadd.f32 0.0, %v1116
      %v1118 = vpop.f32.mrf.mxu0
      %v1119 = vadd.f32 0.0, %v1118
      %1120 = vmatmul.bf16.gmra.mxu0 %v848
      %v1121 = vpop.f32.mrf.mxu0
      %v1122 = vadd.f32 0.0, %v1121
      %v1123 = vpop.f32.mrf.mxu0
      %v1124 = vadd.f32 0.0, %v1123
      %1125 = vmatmul.bf16.gmra.mxu0 %v853
      %v1126 = vpop.f32.mrf.mxu0
      %v1127 = vadd.f32 0.0, %v1126
      %v1128 = vpop.f32.mrf.mxu0
      %v1129 = vadd.f32 0.0, %v1128
      %1130 = vdwg.mxu0
      %1131 = vmatpush.bf16.msra.mxu0 %v1033
      %1132 = vmatpush.bf16.msra.mxu0 %v1032
      %1133 = vmatpush.bf16.msra.mxu0 %v1031
      %1134 = vmatpush.bf16.msra.mxu0 %v1030
      %1135 = vmatpush.bf16.msra.mxu0 %v1029
      %1136 = vmatpush.bf16.msra.mxu0 %v1028
      %1137 = vmatpush.bf16.msra.mxu0 %v1027
      %1138 = vmatpush.bf16.msra.mxu0 %v1026
      %1139 = vmatmul.bf16.gmra.mxu0 %v839
      %v1140 = vpop.f32.mrf.mxu0
      %v1141 = vadd.f32 %v1112, %v1140
      %v1142 = vpop.f32.mrf.mxu0
      %v1143 = vadd.f32 %v1114, %v1142
      %1144 = vmatmul.bf16.gmra.mxu0 %v844
      %v1145 = vpop.f32.mrf.mxu0
      %v1146 = vadd.f32 %v1117, %v1145
      %v1147 = vpop.f32.mrf.mxu0
      %v1148 = vadd.f32 %v1119, %v1147
      %1149 = vmatmul.bf16.gmra.mxu0 %v849
      %v1150 = vpop.f32.mrf.mxu0
      %v1151 = vadd.f32 %v1122, %v1150
      %v1152 = vpop.f32.mrf.mxu0
      %v1153 = vadd.f32 %v1124, %v1152
      %1154 = vmatmul.bf16.gmra.mxu0 %v854
      %v1155 = vpop.f32.mrf.mxu0
      %v1156 = vadd.f32 %v1127, %v1155
      %v1157 = vpop.f32.mrf.mxu0
      %v1158 = vadd.f32 %v1129, %v1157
      %1159 = vdwg.mxu0
      %1160 = vmatpush.bf16.msra.mxu0 %v1041
      %1161 = vmatpush.bf16.msra.mxu0 %v1040
      %1162 = vmatpush.bf16.msra.mxu0 %v1039
      %1163 = vmatpush.bf16.msra.mxu0 %v1038
      %1164 = vmatpush.bf16.msra.mxu0 %v1037
      %1165 = vmatpush.bf16.msra.mxu0 %v1036
      %1166 = vmatpush.bf16.msra.mxu0 %v1035
      %1167 = vmatpush.bf16.msra.mxu0 %v1034
      %1168 = vmatmul.bf16.gmra.mxu0 %v840
      %v1169 = vpop.f32.mrf.mxu0
      %v1170 = vadd.f32 %v1141, %v1169
      %v1171 = vpop.f32.mrf.mxu0
      %v1172 = vadd.f32 %v1143, %v1171
      %1173 = vmatmul.bf16.gmra.mxu0 %v845
      %v1174 = vpop.f32.mrf.mxu0
      %v1175 = vadd.f32 %v1146, %v1174
      %v1176 = vpop.f32.mrf.mxu0
      %v1177 = vadd.f32 %v1148, %v1176
      %1178 = vmatmul.bf16.gmra.mxu0 %v850
      %v1179 = vpop.f32.mrf.mxu0
      %v1180 = vadd.f32 %v1151, %v1179
      %v1181 = vpop.f32.mrf.mxu0
      %v1182 = vadd.f32 %v1153, %v1181
      %1183 = vmatmul.bf16.gmra.mxu0 %v855
      %v1184 = vpop.f32.mrf.mxu0
      %v1185 = vadd.f32 %v1156, %v1184
      %v1186 = vpop.f32.mrf.mxu0
      %v1187 = vadd.f32 %v1158, %v1186
      %1188 = vdwg.mxu0
      %1189 = vmatpush.bf16.msra.mxu0 %v1049
      %1190 = vmatpush.bf16.msra.mxu0 %v1048
      %1191 = vmatpush.bf16.msra.mxu0 %v1047
      %1192 = vmatpush.bf16.msra.mxu0 %v1046
      %1193 = vmatpush.bf16.msra.mxu0 %v1045
      %1194 = vmatpush.bf16.msra.mxu0 %v1044
      %1195 = vmatpush.bf16.msra.mxu0 %v1043
      %1196 = vmatpush.bf16.msra.mxu0 %v1042
      %1197 = vmatmul.bf16.gmra.mxu0 %v841
      %v1198 = vpop.f32.mrf.mxu0
      %v1199 = vadd.f32 %v1170, %v1198
      %v1200 = vpop.f32.mrf.mxu0
      %v1201 = vadd.f32 %v1172, %v1200
      %1202 = vmatmul.bf16.gmra.mxu0 %v846
      %v1203 = vpop.f32.mrf.mxu0
      %v1204 = vadd.f32 %v1175, %v1203
      %v1205 = vpop.f32.mrf.mxu0
      %v1206 = vadd.f32 %v1177, %v1205
      %1207 = vmatmul.bf16.gmra.mxu0 %v851
      %v1208 = vpop.f32.mrf.mxu0
      %v1209 = vadd.f32 %v1180, %v1208
      %v1210 = vpop.f32.mrf.mxu0
      %v1211 = vadd.f32 %v1182, %v1210
      %1212 = vmatmul.bf16.gmra.mxu0 %v856
      %v1213 = vpop.f32.mrf.mxu0
      %v1214 = vadd.f32 %v1185, %v1213
      %v1215 = vpop.f32.mrf.mxu0
      %v1216 = vadd.f32 %v1187, %v1215
      %1217 = vdwg.mxu0
      %1218 = vmatpush.bf16.msra.mxu0 0
      %1219 = vmatpush.bf16.msra.mxu0 0
      %1220 = vmatpush.bf16.msra.mxu0 0
      %1221 = vmatpush.bf16.msra.mxu0 0
      %1222 = vmatpush.bf16.msra.mxu0 %v1053
      %1223 = vmatpush.bf16.msra.mxu0 %v1052
      %1224 = vmatpush.bf16.msra.mxu0 %v1051
      %1225 = vmatpush.bf16.msra.mxu0 %v1050
      %1226 = vmatmul.bf16.gmra.mxu0 %v1091
      %v1227 = vpop.f32.mrf.mxu0
      %v1228 = vadd.f32 %v1199, %v1227
      %v1229 = vpop.f32.mrf.mxu0
      %v1230 = vadd.f32 %v1201, %v1229
      %1231 = vmatmul.bf16.gmra.mxu0 %v1094
      %v1232 = vpop.f32.mrf.mxu0
      %v1233 = vadd.f32 %v1204, %v1232
      %v1234 = vpop.f32.mrf.mxu0
      %v1235 = vadd.f32 %v1206, %v1234
      %1236 = vmatmul.bf16.gmra.mxu0 %v1097
      %v1237 = vpop.f32.mrf.mxu0
      %v1238 = vadd.f32 %v1209, %v1237
      %v1239 = vpop.f32.mrf.mxu0
      %v1240 = vadd.f32 %v1211, %v1239
      %1241 = vmatmul.bf16.gmra.mxu0 %v1100
      %v1242 = vpop.f32.mrf.mxu0
      %v1243 = vadd.f32 %v1214, %v1242
      %v1244 = vpop.f32.mrf.mxu0
      %v1245 = vadd.f32 %v1216, %v1244
      %1246 = vdwg.mxu0
      %v1247 = vld [vmem:[%s3] sm:$0x1]
      %v1249 = vperm.slane %v1247, 0
      %v1251 = vmul.f32 %v1228, %v1249
      %v1252 = vmul.f32 %v1230, %v1249
      %v1253 = vmul.f32 %v1233, %v1249
      %v1254 = vmul.f32 %v1235, %v1249
      %v1255 = vmul.f32 %v1238, %v1249
      %v1256 = vmul.f32 %v1240, %v1249
      %v1257 = vmul.f32 %v1243, %v1249
      %v1258 = vmul.f32 %v1245, %v1249
      %v1259 = vld [vmem:[%s4] sm:$0x1]
      %v1261 = vperm.slane %v1259, 0
      %v1263 = vadd.f32 %v1251, %v1261
      %v1264 = vadd.f32 %v1252, %v1261
      %v1265 = vadd.f32 %v1253, %v1261
      %v1266 = vadd.f32 %v1254, %v1261
      %v1267 = vadd.f32 %v1255, %v1261
      %v1268 = vadd.f32 %v1256, %v1261
      %v1269 = vadd.f32 %v1257, %v1261
      %v1270 = vadd.f32 %v1258, %v1261
      %vm1271 = vcmp.ge.f32.partialorder %v1263, 0.0
      %vm1272 = vcmp.ge.f32.partialorder %v1264, 0.0
      %vm1273 = vcmp.ge.f32.partialorder %v1265, 0.0
      %vm1274 = vcmp.ge.f32.partialorder %v1266, 0.0
      %vm1275 = vcmp.ge.f32.partialorder %v1267, 0.0
      %vm1276 = vcmp.ge.f32.partialorder %v1268, 0.0
      %vm1277 = vcmp.ge.f32.partialorder %v1269, 0.0
      %vm1278 = vcmp.ge.f32.partialorder %v1270, 0.0
      %v1279 = vmul.f32 %v1263, 0.01
      %v1280 = vmul.f32 %v1264, 0.01
      %v1281 = vmul.f32 %v1265, 0.01
      %v1282 = vmul.f32 %v1266, 0.01
      %v1283 = vmul.f32 %v1267, 0.01
      %v1284 = vmul.f32 %v1268, 0.01
      %v1285 = vmul.f32 %v1269, 0.01
      %v1286 = vmul.f32 %v1270, 0.01
      %v1287 = vsel %vm1271, %v1263, %v1279
      %v1288 = vsel %vm1272, %v1264, %v1280
      %v1289 = vsel %vm1273, %v1265, %v1281
      %v1290 = vsel %vm1274, %v1266, %v1282
      %v1291 = vsel %vm1275, %v1267, %v1283
      %v1292 = vsel %vm1276, %v1268, %v1284
      %v1293 = vsel %vm1277, %v1269, %v1285
      %v1294 = vsel %vm1278, %v1270, %v1286
      %1295 = vst.msk [vmem:[%s321 + $0x1] sm:$0xff] %vm291, %v1287
      %1296 = vst.msk [vmem:[%s321 + $0x11] sm:$0xff] %vm291, %v1288
      %1297 = vst.msk [vmem:[%s321 + $0x21] sm:$0xff] %vm291, %v1289
      %1298 = vst.msk [vmem:[%s321 + $0x31] sm:$0xff] %vm291, %v1290
      %1299 = vst.msk [vmem:[%s321 + $0x41] sm:$0xff] %vm291, %v1291
      %1300 = vst.msk [vmem:[%s321 + $0x51] sm:$0xff] %vm291, %v1292
      %1301 = vst.msk [vmem:[%s321 + $0x61] sm:$0xff] %vm291, %v1293
      %1302 = vst.msk [vmem:[%s321 + $0x71] sm:$0xff] %vm291, %v1294
      %v1303 = vld [vmem:[#allocation2] sm:$0xff]
      %v1304 = vld [vmem:[#allocation2 + $0x10] sm:$0xff]
      %v1305 = vld [vmem:[#allocation2 + $0x20] sm:$0xff]
      %v1306 = vld [vmem:[#allocation2 + $0x30] sm:$0xff]
      %v1307 = vld [vmem:[#allocation2 + $0x40] sm:$0xff]
      %v1308 = vld [vmem:[#allocation2 + $0x50] sm:$0xff]
      %v1309 = vld [vmem:[#allocation2 + $0x60] sm:$0xff]
      %v1310 = vld [vmem:[#allocation2 + $0x70] sm:$0xff]
      %v1311 = vpack.c.bf16 %v1303, %v1303
      %v1312 = vpack.c.bf16 %v1304, %v1304
      %v1313 = vpack.c.bf16 %v1305, %v1305
      %v1314 = vpack.c.bf16 %v1306, %v1306
      %v1315 = vpack.c.bf16 %v1307, %v1307
      %v1316 = vpack.c.bf16 %v1308, %v1308
      %v1317 = vpack.c.bf16 %v1309, %v1309
      %v1318 = vpack.c.bf16 %v1310, %v1310
      %1319 = vst.msk [vmem:[#allocation3] sm:$0xf] %vm347, %v1311
      %1320 = vst.msk [vmem:[#allocation3 + $0x14] sm:$0xf] %vm347, %v1312
      %1321 = vst.msk [vmem:[#allocation3 + $0x28] sm:$0xf] %vm347, %v1313
      %1322 = vst.msk [vmem:[#allocation3 + $0x3c] sm:$0xf] %vm347, %v1314
      %1323 = vst.msk [vmem:[#allocation3 + $0x50] sm:$0xf] %vm347, %v1315
      %1324 = vst.msk [vmem:[#allocation3 + $0x64] sm:$0xf] %vm347, %v1316
      %1325 = vst.msk [vmem:[#allocation3 + $0x78] sm:$0xf] %vm347, %v1317
      %1326 = vst.msk [vmem:[#allocation3 + $0x8c] sm:$0xf] %vm347, %v1318
      %v1327 = vld [vmem:[#allocation2 + $0x1] sm:$0xff]
      %v1328 = vld [vmem:[#allocation2 + $0x11] sm:$0xff]
      %v1329 = vld [vmem:[#allocation2 + $0x21] sm:$0xff]
      %v1330 = vld [vmem:[#allocation2 + $0x31] sm:$0xff]
      %v1331 = vld [vmem:[#allocation2 + $0x41] sm:$0xff]
      %v1332 = vld [vmem:[#allocation2 + $0x51] sm:$0xff]
      %v1333 = vld [vmem:[#allocation2 + $0x61] sm:$0xff]
      %v1334 = vld [vmem:[#allocation2 + $0x71] sm:$0xff]
      %v1335 = vpack.c.bf16 %v1327, %v1327
      %v1336 = vpack.c.bf16 %v1328, %v1328
      %v1337 = vpack.c.bf16 %v1329, %v1329
      %v1338 = vpack.c.bf16 %v1330, %v1330
      %v1339 = vpack.c.bf16 %v1331, %v1331
      %v1340 = vpack.c.bf16 %v1332, %v1332
      %v1341 = vpack.c.bf16 %v1333, %v1333
      %v1342 = vpack.c.bf16 %v1334, %v1334
      %1351 = vrot.lane.b32.xlu0 %v1335, 64
      %v1352 = vpop.permute.xlu0 %1351
      %1353 = vrot.lane.b32.xlu0 %v1336, 64
      %v1354 = vpop.permute.xlu0 %1353
      %1355 = vrot.lane.b32.xlu0 %v1337, 64
      %v1356 = vpop.permute.xlu0 %1355
      %1357 = vrot.lane.b32.xlu0 %v1338, 64
      %v1358 = vpop.permute.xlu0 %1357
      %1359 = vrot.lane.b32.xlu0 %v1339, 64
      %v1360 = vpop.permute.xlu0 %1359
      %1361 = vrot.lane.b32.xlu0 %v1340, 64
      %v1362 = vpop.permute.xlu0 %1361
      %1363 = vrot.lane.b32.xlu0 %v1341, 64
      %v1364 = vpop.permute.xlu0 %1363
      %1365 = vrot.lane.b32.xlu0 %v1342, 64
      %v1366 = vpop.permute.xlu0 %1365
      %1375 = vst.msk [vmem:[#allocation3] sm:$0xf] %vm404, %v1352
      %1376 = vst.msk [vmem:[#allocation3 + $0x14] sm:$0xf] %vm404, %v1354
      %1377 = vst.msk [vmem:[#allocation3 + $0x28] sm:$0xf] %vm404, %v1356
      %1378 = vst.msk [vmem:[#allocation3 + $0x3c] sm:$0xf] %vm404, %v1358
      %1379 = vst.msk [vmem:[#allocation3 + $0x50] sm:$0xf] %vm404, %v1360
      %1380 = vst.msk [vmem:[#allocation3 + $0x64] sm:$0xf] %vm404, %v1362
      %1381 = vst.msk [vmem:[#allocation3 + $0x78] sm:$0xf] %vm404, %v1364
      %1382 = vst.msk [vmem:[#allocation3 + $0x8c] sm:$0xf] %vm404, %v1366
      %v1383 = vld [vmem:[#allocation2 + $0x2] sm:$0xff]
      %v1384 = vld [vmem:[#allocation2 + $0x12] sm:$0xff]
      %v1385 = vld [vmem:[#allocation2 + $0x22] sm:$0xff]
      %v1386 = vld [vmem:[#allocation2 + $0x32] sm:$0xff]
      %v1387 = vld [vmem:[#allocation2 + $0x42] sm:$0xff]
      %v1388 = vld [vmem:[#allocation2 + $0x52] sm:$0xff]
      %v1389 = vld [vmem:[#allocation2 + $0x62] sm:$0xff]
      %v1390 = vld [vmem:[#allocation2 + $0x72] sm:$0xff]
      %v1391 = vpack.c.bf16 %v1383, %v1383
      %v1392 = vpack.c.bf16 %v1384, %v1384
      %v1393 = vpack.c.bf16 %v1385, %v1385
      %v1394 = vpack.c.bf16 %v1386, %v1386
      %v1395 = vpack.c.bf16 %v1387, %v1387
      %v1396 = vpack.c.bf16 %v1388, %v1388
      %v1397 = vpack.c.bf16 %v1389, %v1389
      %v1398 = vpack.c.bf16 %v1390, %v1390
      %1399 = vst.msk [vmem:[#allocation3 + $0x4] sm:$0xf] %vm347, %v1391
      %1400 = vst.msk [vmem:[#allocation3 + $0x18] sm:$0xf] %vm347, %v1392
      %1401 = vst.msk [vmem:[#allocation3 + $0x2c] sm:$0xf] %vm347, %v1393
      %1402 = vst.msk [vmem:[#allocation3 + $0x40] sm:$0xf] %vm347, %v1394
      %1403 = vst.msk [vmem:[#allocation3 + $0x54] sm:$0xf] %vm347, %v1395
      %1404 = vst.msk [vmem:[#allocation3 + $0x68] sm:$0xf] %vm347, %v1396
      %1405 = vst.msk [vmem:[#allocation3 + $0x7c] sm:$0xf] %vm347, %v1397
      %1406 = vst.msk [vmem:[#allocation3 + $0x90] sm:$0xf] %vm347, %v1398
      %v1407 = vld [vmem:[%s321] sm:$0xff]
      %v1408 = vld [vmem:[%s321 + $0x10] sm:$0xff]
      %v1409 = vld [vmem:[%s321 + $0x20] sm:$0xff]
      %v1410 = vld [vmem:[%s321 + $0x30] sm:$0xff]
      %v1411 = vld [vmem:[%s321 + $0x40] sm:$0xff]
      %v1412 = vld [vmem:[%s321 + $0x50] sm:$0xff]
      %v1413 = vld [vmem:[%s321 + $0x60] sm:$0xff]
      %v1414 = vld [vmem:[%s321 + $0x70] sm:$0xff]
      %v1415 = vpack.c.bf16 %v1407, %v1407
      %v1416 = vpack.c.bf16 %v1408, %v1408
      %v1417 = vpack.c.bf16 %v1409, %v1409
      %v1418 = vpack.c.bf16 %v1410, %v1410
      %v1419 = vpack.c.bf16 %v1411, %v1411
      %v1420 = vpack.c.bf16 %v1412, %v1412
      %v1421 = vpack.c.bf16 %v1413, %v1413
      %v1422 = vpack.c.bf16 %v1414, %v1414
      %1431 = vrot.lane.b32.xlu0 %v1415, 64
      %v1432 = vpop.permute.xlu0 %1431
      %1433 = vrot.lane.b32.xlu0 %v1416, 64
      %v1434 = vpop.permute.xlu0 %1433
      %1435 = vrot.lane.b32.xlu0 %v1417, 64
      %v1436 = vpop.permute.xlu0 %1435
      %1437 = vrot.lane.b32.xlu0 %v1418, 64
      %v1438 = vpop.permute.xlu0 %1437
      %1439 = vrot.lane.b32.xlu0 %v1419, 64
      %v1440 = vpop.permute.xlu0 %1439
      %1441 = vrot.lane.b32.xlu0 %v1420, 64
      %v1442 = vpop.permute.xlu0 %1441
      %1443 = vrot.lane.b32.xlu0 %v1421, 64
      %v1444 = vpop.permute.xlu0 %1443
      %1445 = vrot.lane.b32.xlu0 %v1422, 64
      %v1446 = vpop.permute.xlu0 %1445
      %1455 = vst.msk [vmem:[#allocation3 + $0x4] sm:$0xf] %vm404, %v1432
      %1456 = vst.msk [vmem:[#allocation3 + $0x18] sm:$0xf] %vm404, %v1434
      %1457 = vst.msk [vmem:[#allocation3 + $0x2c] sm:$0xf] %vm404, %v1436
      %1458 = vst.msk [vmem:[#allocation3 + $0x40] sm:$0xf] %vm404, %v1438
      %1459 = vst.msk [vmem:[#allocation3 + $0x54] sm:$0xf] %vm404, %v1440
      %1460 = vst.msk [vmem:[#allocation3 + $0x68] sm:$0xf] %vm404, %v1442
      %1461 = vst.msk [vmem:[#allocation3 + $0x7c] sm:$0xf] %vm404, %v1444
      %1462 = vst.msk [vmem:[#allocation3 + $0x90] sm:$0xf] %vm404, %v1446
      %v1463 = vld [vmem:[%s321 + $0x1] sm:$0xff]
      %v1464 = vld [vmem:[%s321 + $0x11] sm:$0xff]
      %v1465 = vld [vmem:[%s321 + $0x21] sm:$0xff]
      %v1466 = vld [vmem:[%s321 + $0x31] sm:$0xff]
      %v1467 = vld [vmem:[%s321 + $0x41] sm:$0xff]
      %v1468 = vld [vmem:[%s321 + $0x51] sm:$0xff]
      %v1469 = vld [vmem:[%s321 + $0x61] sm:$0xff]
      %v1470 = vld [vmem:[%s321 + $0x71] sm:$0xff]
      %v1471 = vpack.c.bf16 %v1463, %v1463
      %v1472 = vpack.c.bf16 %v1464, %v1464
      %v1473 = vpack.c.bf16 %v1465, %v1465
      %v1474 = vpack.c.bf16 %v1466, %v1466
      %v1475 = vpack.c.bf16 %v1467, %v1467
      %v1476 = vpack.c.bf16 %v1468, %v1468
      %v1477 = vpack.c.bf16 %v1469, %v1469
      %v1478 = vpack.c.bf16 %v1470, %v1470
      %1479 = vst.msk [vmem:[#allocation3 + $0x8] sm:$0xf] %vm347, %v1471
      %1480 = vst.msk [vmem:[#allocation3 + $0x1c] sm:$0xf] %vm347, %v1472
      %1481 = vst.msk [vmem:[#allocation3 + $0x30] sm:$0xf] %vm347, %v1473
      %1482 = vst.msk [vmem:[#allocation3 + $0x44] sm:$0xf] %vm347, %v1474
      %1483 = vst.msk [vmem:[#allocation3 + $0x58] sm:$0xf] %vm347, %v1475
      %1484 = vst.msk [vmem:[#allocation3 + $0x6c] sm:$0xf] %vm347, %v1476
      %1485 = vst.msk [vmem:[#allocation3 + $0x80] sm:$0xf] %vm347, %v1477
      %1486 = vst.msk [vmem:[#allocation3 + $0x94] sm:$0xf] %vm347, %v1478
      %v1487 = vld [vmem:[%s321 + $0x2] sm:$0xff]
      %v1488 = vld [vmem:[%s321 + $0x12] sm:$0xff]
      %v1489 = vld [vmem:[%s321 + $0x22] sm:$0xff]
      %v1490 = vld [vmem:[%s321 + $0x32] sm:$0xff]
      %v1491 = vld [vmem:[%s321 + $0x42] sm:$0xff]
      %v1492 = vld [vmem:[%s321 + $0x52] sm:$0xff]
      %v1493 = vld [vmem:[%s321 + $0x62] sm:$0xff]
      %v1494 = vld [vmem:[%s321 + $0x72] sm:$0xff]
      %v1495 = vpack.c.bf16 %v1487, %v1487
      %v1496 = vpack.c.bf16 %v1488, %v1488
      %v1497 = vpack.c.bf16 %v1489, %v1489
      %v1498 = vpack.c.bf16 %v1490, %v1490
      %v1499 = vpack.c.bf16 %v1491, %v1491
      %v1500 = vpack.c.bf16 %v1492, %v1492
      %v1501 = vpack.c.bf16 %v1493, %v1493
      %v1502 = vpack.c.bf16 %v1494, %v1494
      %1511 = vrot.lane.b32.xlu0 %v1495, 64
      %v1512 = vpop.permute.xlu0 %1511
      %1513 = vrot.lane.b32.xlu0 %v1496, 64
      %v1514 = vpop.permute.xlu0 %1513
      %1515 = vrot.lane.b32.xlu0 %v1497, 64
      %v1516 = vpop.permute.xlu0 %1515
      %1517 = vrot.lane.b32.xlu0 %v1498, 64
      %v1518 = vpop.permute.xlu0 %1517
      %1519 = vrot.lane.b32.xlu0 %v1499, 64
      %v1520 = vpop.permute.xlu0 %1519
      %1521 = vrot.lane.b32.xlu0 %v1500, 64
      %v1522 = vpop.permute.xlu0 %1521
      %1523 = vrot.lane.b32.xlu0 %v1501, 64
      %v1524 = vpop.permute.xlu0 %1523
      %1525 = vrot.lane.b32.xlu0 %v1502, 64
      %v1526 = vpop.permute.xlu0 %1525
      %1535 = vst.msk [vmem:[#allocation3 + $0x8] sm:$0xf] %vm404, %v1512
      %1536 = vst.msk [vmem:[#allocation3 + $0x1c] sm:$0xf] %vm404, %v1514
      %1537 = vst.msk [vmem:[#allocation3 + $0x30] sm:$0xf] %vm404, %v1516
      %1538 = vst.msk [vmem:[#allocation3 + $0x44] sm:$0xf] %vm404, %v1518
      %1539 = vst.msk [vmem:[#allocation3 + $0x58] sm:$0xf] %vm404, %v1520
      %1540 = vst.msk [vmem:[#allocation3 + $0x6c] sm:$0xf] %vm404, %v1522
      %1541 = vst.msk [vmem:[#allocation3 + $0x80] sm:$0xf] %vm404, %v1524
      %1542 = vst.msk [vmem:[#allocation3 + $0x94] sm:$0xf] %vm404, %v1526
      %v1543 = vld [vmem:[%s573] sm:$0xff]
      %v1544 = vld [vmem:[%s573 + $0x10] sm:$0xff]
      %v1545 = vld [vmem:[%s573 + $0x20] sm:$0xff]
      %v1546 = vld [vmem:[%s573 + $0x30] sm:$0xff]
      %v1547 = vld [vmem:[%s573 + $0x40] sm:$0xff]
      %v1548 = vld [vmem:[%s573 + $0x50] sm:$0xff]
      %v1549 = vld [vmem:[%s573 + $0x60] sm:$0xff]
      %v1550 = vld [vmem:[%s573 + $0x70] sm:$0xff]
      %v1551 = vpack.c.bf16 %v1543, %v1543
      %v1552 = vpack.c.bf16 %v1544, %v1544
      %v1553 = vpack.c.bf16 %v1545, %v1545
      %v1554 = vpack.c.bf16 %v1546, %v1546
      %v1555 = vpack.c.bf16 %v1547, %v1547
      %v1556 = vpack.c.bf16 %v1548, %v1548
      %v1557 = vpack.c.bf16 %v1549, %v1549
      %v1558 = vpack.c.bf16 %v1550, %v1550
      %1559 = vst.msk [vmem:[#allocation3 + $0xc] sm:$0xf] %vm347, %v1551
      %1560 = vst.msk [vmem:[#allocation3 + $0x20] sm:$0xf] %vm347, %v1552
      %1561 = vst.msk [vmem:[#allocation3 + $0x34] sm:$0xf] %vm347, %v1553
      %1562 = vst.msk [vmem:[#allocation3 + $0x48] sm:$0xf] %vm347, %v1554
      %1563 = vst.msk [vmem:[#allocation3 + $0x5c] sm:$0xf] %vm347, %v1555
      %1564 = vst.msk [vmem:[#allocation3 + $0x70] sm:$0xf] %vm347, %v1556
      %1565 = vst.msk [vmem:[#allocation3 + $0x84] sm:$0xf] %vm347, %v1557
      %1566 = vst.msk [vmem:[#allocation3 + $0x98] sm:$0xf] %vm347, %v1558
      %v1567 = vld [vmem:[%s573 + $0x1] sm:$0xff]
      %v1568 = vld [vmem:[%s573 + $0x11] sm:$0xff]
      %v1569 = vld [vmem:[%s573 + $0x21] sm:$0xff]
      %v1570 = vld [vmem:[%s573 + $0x31] sm:$0xff]
      %v1571 = vld [vmem:[%s573 + $0x41] sm:$0xff]
      %v1572 = vld [vmem:[%s573 + $0x51] sm:$0xff]
      %v1573 = vld [vmem:[%s573 + $0x61] sm:$0xff]
      %v1574 = vld [vmem:[%s573 + $0x71] sm:$0xff]
      %v1575 = vpack.c.bf16 %v1567, %v1567
      %v1576 = vpack.c.bf16 %v1568, %v1568
      %v1577 = vpack.c.bf16 %v1569, %v1569
      %v1578 = vpack.c.bf16 %v1570, %v1570
      %v1579 = vpack.c.bf16 %v1571, %v1571
      %v1580 = vpack.c.bf16 %v1572, %v1572
      %v1581 = vpack.c.bf16 %v1573, %v1573
      %v1582 = vpack.c.bf16 %v1574, %v1574
      %1591 = vrot.lane.b32.xlu0 %v1575, 64
      %v1592 = vpop.permute.xlu0 %1591
      %1593 = vrot.lane.b32.xlu0 %v1576, 64
      %v1594 = vpop.permute.xlu0 %1593
      %1595 = vrot.lane.b32.xlu0 %v1577, 64
      %v1596 = vpop.permute.xlu0 %1595
      %1597 = vrot.lane.b32.xlu0 %v1578, 64
      %v1598 = vpop.permute.xlu0 %1597
      %1599 = vrot.lane.b32.xlu0 %v1579, 64
      %v1600 = vpop.permute.xlu0 %1599
      %1601 = vrot.lane.b32.xlu0 %v1580, 64
      %v1602 = vpop.permute.xlu0 %1601
      %1603 = vrot.lane.b32.xlu0 %v1581, 64
      %v1604 = vpop.permute.xlu0 %1603
      %1605 = vrot.lane.b32.xlu0 %v1582, 64
      %v1606 = vpop.permute.xlu0 %1605
      %1615 = vst.msk [vmem:[#allocation3 + $0xc] sm:$0xf] %vm404, %v1592
      %1616 = vst.msk [vmem:[#allocation3 + $0x20] sm:$0xf] %vm404, %v1594
      %1617 = vst.msk [vmem:[#allocation3 + $0x34] sm:$0xf] %vm404, %v1596
      %1618 = vst.msk [vmem:[#allocation3 + $0x48] sm:$0xf] %vm404, %v1598
      %1619 = vst.msk [vmem:[#allocation3 + $0x5c] sm:$0xf] %vm404, %v1600
      %1620 = vst.msk [vmem:[#allocation3 + $0x70] sm:$0xf] %vm404, %v1602
      %1621 = vst.msk [vmem:[#allocation3 + $0x84] sm:$0xf] %vm404, %v1604
      %1622 = vst.msk [vmem:[#allocation3 + $0x98] sm:$0xf] %vm404, %v1606
      %v1623 = vld [vmem:[%s573 + $0x2] sm:$0xff]
      %v1624 = vld [vmem:[%s573 + $0x12] sm:$0xff]
      %v1625 = vld [vmem:[%s573 + $0x22] sm:$0xff]
      %v1626 = vld [vmem:[%s573 + $0x32] sm:$0xff]
      %v1627 = vld [vmem:[%s573 + $0x42] sm:$0xff]
      %v1628 = vld [vmem:[%s573 + $0x52] sm:$0xff]
      %v1629 = vld [vmem:[%s573 + $0x62] sm:$0xff]
      %v1630 = vld [vmem:[%s573 + $0x72] sm:$0xff]
      %v1631 = vpack.c.bf16 %v1623, %v1623
      %v1632 = vpack.c.bf16 %v1624, %v1624
      %v1633 = vpack.c.bf16 %v1625, %v1625
      %v1634 = vpack.c.bf16 %v1626, %v1626
      %v1635 = vpack.c.bf16 %v1627, %v1627
      %v1636 = vpack.c.bf16 %v1628, %v1628
      %v1637 = vpack.c.bf16 %v1629, %v1629
      %v1638 = vpack.c.bf16 %v1630, %v1630
      %1639 = vst.msk [vmem:[#allocation3 + $0x10] sm:$0xf] %vm347, %v1631
      %1640 = vst.msk [vmem:[#allocation3 + $0x24] sm:$0xf] %vm347, %v1632
      %1641 = vst.msk [vmem:[#allocation3 + $0x38] sm:$0xf] %vm347, %v1633
      %1642 = vst.msk [vmem:[#allocation3 + $0x4c] sm:$0xf] %vm347, %v1634
      %1643 = vst.msk [vmem:[#allocation3 + $0x60] sm:$0xf] %vm347, %v1635
      %1644 = vst.msk [vmem:[#allocation3 + $0x74] sm:$0xf] %vm347, %v1636
      %1645 = vst.msk [vmem:[#allocation3 + $0x88] sm:$0xf] %vm347, %v1637
      %1646 = vst.msk [vmem:[#allocation3 + $0x9c] sm:$0xf] %vm347, %v1638
      %v1647 = vld [vmem:[#allocation3] sm:$0xff]
      %v1648 = vld [vmem:[#allocation3 + $0x8] sm:$0xff]
      %v1649 = vld [vmem:[#allocation3 + $0x10] sm:$0xf]
      %v1650 = vld [vmem:[#allocation3 + $0x14] sm:$0xff]
      %v1651 = vld [vmem:[#allocation3 + $0x1c] sm:$0xff]
      %v1652 = vld [vmem:[#allocation3 + $0x24] sm:$0xf]
      %v1653 = vld [vmem:[#allocation3 + $0x28] sm:$0xff]
      %v1654 = vld [vmem:[#allocation3 + $0x30] sm:$0xff]
      %v1655 = vld [vmem:[#allocation3 + $0x38] sm:$0xf]
      %v1656 = vld [vmem:[#allocation3 + $0x3c] sm:$0xff]
      %v1657 = vld [vmem:[#allocation3 + $0x44] sm:$0xff]
      %v1658 = vld [vmem:[#allocation3 + $0x4c] sm:$0xf]
      %v1659 = vld [vmem:[#allocation3 + $0x50] sm:$0xff]
      %v1660 = vld [vmem:[#allocation3 + $0x58] sm:$0xff]
      %v1661 = vld [vmem:[#allocation3 + $0x60] sm:$0xf]
      %v1662 = vld [vmem:[#allocation3 + $0x64] sm:$0xff]
      %v1663 = vld [vmem:[#allocation3 + $0x6c] sm:$0xff]
      %v1664 = vld [vmem:[#allocation3 + $0x74] sm:$0xf]
      %v1665 = vld [vmem:[#allocation3 + $0x78] sm:$0xff]
      %v1666 = vld [vmem:[#allocation3 + $0x80] sm:$0xff]
      %v1667 = vld [vmem:[#allocation3 + $0x88] sm:$0xf]
      %v1668 = vld [vmem:[#allocation3 + $0x8c] sm:$0xff]
      %v1669 = vld [vmem:[#allocation3 + $0x94] sm:$0xff]
      %v1670 = vld [vmem:[#allocation3 + $0x9c] sm:$0xf]
      %s1671 = scalar_lea.vmem %s2, 288
      %v1672 = vld [vmem:[%s1671] sm:$0xf]
      %v1673 = vld [vmem:[%s1671 + $0x4] sm:$0xf]
      %v1674 = vld [vmem:[%s1671 + $0x8] sm:$0xf]
      %v1675 = vld [vmem:[%s1671 + $0xc] sm:$0xf]
      %v1676 = vld [vmem:[%s1671 + $0x10] sm:$0xf]
      %v1677 = vld [vmem:[%s1671 + $0x14] sm:$0xf]
      %v1678 = vld [vmem:[%s1671 + $0x18] sm:$0xf]
      %v1679 = vld [vmem:[%s1671 + $0x1c] sm:$0xf]
      %v1680 = vld [vmem:[%s1671 + $0x20] sm:$0xf]
      %v1681 = vld [vmem:[%s1671 + $0x24] sm:$0xf]
      %v1682 = vld [vmem:[%s1671 + $0x28] sm:$0xf]
      %v1683 = vld [vmem:[%s1671 + $0x2c] sm:$0xf]
      %v1684 = vld [vmem:[%s1671 + $0x30] sm:$0xf]
      %v1685 = vld [vmem:[%s1671 + $0x34] sm:$0xf]
      %v1686 = vld [vmem:[%s1671 + $0x38] sm:$0xf]
      %v1687 = vld [vmem:[%s1671 + $0x3c] sm:$0xf]
      %v1688 = vld [vmem:[%s1671 + $0x40] sm:$0xf]
      %v1689 = vld [vmem:[%s1671 + $0x44] sm:$0xf]
      %v1690 = vld [vmem:[%s1671 + $0x48] sm:$0xf]
      %v1691 = vld [vmem:[%s1671 + $0x4c] sm:$0xf]
      %v1692 = vld [vmem:[%s1671 + $0x50] sm:$0xf]
      %v1693 = vld [vmem:[%s1671 + $0x54] sm:$0xf]
      %v1694 = vld [vmem:[%s1671 + $0x58] sm:$0xf]
      %v1695 = vld [vmem:[%s1671 + $0x5c] sm:$0xf]
      %v1696 = vld [vmem:[%s1671 + $0x60] sm:$0xf]
      %v1697 = vld [vmem:[%s1671 + $0x64] sm:$0xf]
      %v1698 = vld [vmem:[%s1671 + $0x68] sm:$0xf]
      %v1699 = vld [vmem:[%s1671 + $0x6c] sm:$0xf]
      %v1700 = vld [vmem:[%s1671 + $0x70] sm:$0xf]
      %v1701 = vld [vmem:[%s1671 + $0x74] sm:$0xf]
      %v1702 = vld [vmem:[%s1671 + $0x78] sm:$0xf]
      %v1703 = vld [vmem:[%s1671 + $0x7c] sm:$0xf]
      %v1704 = vld [vmem:[%s1671 + $0x80] sm:$0xf]
      %v1705 = vld [vmem:[%s1671 + $0x84] sm:$0xf]
      %v1706 = vld [vmem:[%s1671 + $0x88] sm:$0xf]
      %v1707 = vld [vmem:[%s1671 + $0x8c] sm:$0xf]
      %v1708 = vld [vmem:[%s1671 + $0x90] sm:$0xf]
      %v1709 = vld [vmem:[%s1671 + $0x94] sm:$0xf]
      %v1710 = vld [vmem:[%s1671 + $0x98] sm:$0xf]
      %v1711 = vld [vmem:[%s1671 + $0x9c] sm:$0xf]
      %v1712 = vld [vmem:[%s1671 + $0xa0] sm:$0xf]
      %v1713 = vld [vmem:[%s1671 + $0xa4] sm:$0xf]
      %v1714 = vld [vmem:[%s1671 + $0xa8] sm:$0xf]
      %v1715 = vld [vmem:[%s1671 + $0xac] sm:$0xf]
      %v1716 = vld [vmem:[%s1671 + $0xb0] sm:$0xf]
      %v1717 = vld [vmem:[%s1671 + $0xb4] sm:$0xf]
      %v1718 = vld [vmem:[%s1671 + $0xb8] sm:$0xf]
      %v1719 = vld [vmem:[%s1671 + $0xbc] sm:$0xf]
      %v1720 = vld [vmem:[%s1671 + $0xc0] sm:$0xf]
      %v1721 = vld [vmem:[%s1671 + $0xc4] sm:$0xf]
      %v1722 = vld [vmem:[%s1671 + $0xc8] sm:$0xf]
      %v1723 = vld [vmem:[%s1671 + $0xcc] sm:$0xf]
      %v1724 = vld [vmem:[%s1671 + $0xd0] sm:$0xf]
      %v1725 = vld [vmem:[%s1671 + $0xd4] sm:$0xf]
      %v1726 = vld [vmem:[%s1671 + $0xd8] sm:$0xf]
      %v1727 = vld [vmem:[%s1671 + $0xdc] sm:$0xf]
      %v1728 = vld [vmem:[%s1671 + $0xe0] sm:$0xf]
      %v1729 = vld [vmem:[%s1671 + $0xe4] sm:$0xf]
      %v1730 = vld [vmem:[%s1671 + $0xe8] sm:$0xf]
      %v1731 = vld [vmem:[%s1671 + $0xec] sm:$0xf]
      %v1732 = vld [vmem:[%s1671 + $0xf0] sm:$0xf]
      %v1733 = vld [vmem:[%s1671 + $0xf4] sm:$0xf]
      %v1734 = vld [vmem:[%s1671 + $0xf8] sm:$0xf]
      %v1735 = vld [vmem:[%s1671 + $0xfc] sm:$0xf]
      %v1736 = vld [vmem:[%s1671 + $0x100] sm:$0xf]
      %v1737 = vld [vmem:[%s1671 + $0x104] sm:$0xf]
      %v1738 = vld [vmem:[%s1671 + $0x108] sm:$0xf]
      %v1739 = vld [vmem:[%s1671 + $0x10c] sm:$0xf]
      %v1740 = vld [vmem:[%s1671 + $0x110] sm:$0xf]
      %v1741 = vld [vmem:[%s1671 + $0x114] sm:$0xf]
      %v1742 = vld [vmem:[%s1671 + $0x118] sm:$0xf]
      %v1743 = vld [vmem:[%s1671 + $0x11c] sm:$0xf]
      %v1768 = vunpack.c.l.b16 %v1647
      %v1769 = vunpack.c.h.b16 %v1647
      %v1770 = vunpack.c.l.b16 %v1648
      %v1771 = vunpack.c.h.b16 %v1648
      %v1772 = vunpack.c.l.b16 %v1649
      %v1773 = vunpack.c.l.b16 %v1650
      %v1774 = vunpack.c.h.b16 %v1650
      %v1775 = vunpack.c.l.b16 %v1651
      %v1776 = vunpack.c.h.b16 %v1651
      %v1777 = vunpack.c.l.b16 %v1652
      %v1778 = vunpack.c.l.b16 %v1653
      %v1779 = vunpack.c.h.b16 %v1653
      %v1780 = vunpack.c.l.b16 %v1654
      %v1781 = vunpack.c.h.b16 %v1654
      %v1782 = vunpack.c.l.b16 %v1655
      %v1783 = vunpack.c.l.b16 %v1656
      %v1784 = vunpack.c.h.b16 %v1656
      %v1785 = vunpack.c.l.b16 %v1657
      %v1786 = vunpack.c.h.b16 %v1657
      %v1787 = vunpack.c.l.b16 %v1658
      %v1788 = vunpack.c.l.b16 %v1659
      %v1789 = vunpack.c.h.b16 %v1659
      %v1790 = vunpack.c.l.b16 %v1660
      %v1791 = vunpack.c.h.b16 %v1660
      %v1792 = vunpack.c.l.b16 %v1661
      %v1793 = vunpack.c.l.b16 %v1662
      %v1794 = vunpack.c.h.b16 %v1662
      %v1795 = vunpack.c.l.b16 %v1663
      %v1796 = vunpack.c.h.b16 %v1663
      %v1797 = vunpack.c.l.b16 %v1664
      %v1798 = vunpack.c.l.b16 %v1665
      %v1799 = vunpack.c.h.b16 %v1665
      %v1800 = vunpack.c.l.b16 %v1666
      %v1801 = vunpack.c.h.b16 %v1666
      %v1802 = vunpack.c.l.b16 %v1667
      %v1803 = vunpack.c.l.b16 %v1668
      %v1804 = vunpack.c.h.b16 %v1668
      %v1805 = vunpack.c.l.b16 %v1669
      %v1806 = vunpack.c.h.b16 %v1669
      %v1807 = vunpack.c.l.b16 %v1670
      %v1808 = vpack.c.b16 %v1773, %v1768
      %v1809 = vpack.c.b16 %v1774, %v1769
      %v1810 = vpack.c.b16 %v1775, %v1770
      %v1811 = vpack.c.b16 %v1776, %v1771
      %v1812 = vpack.c.b16 %v1777, %v1772
      %v1813 = vpack.c.b16 %v1783, %v1778
      %v1814 = vpack.c.b16 %v1784, %v1779
      %v1815 = vpack.c.b16 %v1785, %v1780
      %v1816 = vpack.c.b16 %v1786, %v1781
      %v1817 = vpack.c.b16 %v1787, %v1782
      %v1818 = vpack.c.b16 %v1793, %v1788
      %v1819 = vpack.c.b16 %v1794, %v1789
      %v1820 = vpack.c.b16 %v1795, %v1790
      %v1821 = vpack.c.b16 %v1796, %v1791
      %v1822 = vpack.c.b16 %v1797, %v1792
      %v1823 = vpack.c.b16 %v1803, %v1798
      %v1824 = vpack.c.b16 %v1804, %v1799
      %v1825 = vpack.c.b16 %v1805, %v1800
      %v1826 = vpack.c.b16 %v1806, %v1801
      %v1827 = vpack.c.b16 %v1807, %v1802
      %v1916 = vunpack.c.l.b16 %v1672
      %v1917 = vunpack.c.l.b16 %v1673
      %v1918 = vunpack.c.l.b16 %v1674
      %v1919 = vunpack.c.l.b16 %v1675
      %v1920 = vunpack.c.l.b16 %v1676
      %v1921 = vunpack.c.l.b16 %v1677
      %v1922 = vunpack.c.l.b16 %v1678
      %v1923 = vunpack.c.l.b16 %v1679
      %v1924 = vunpack.c.l.b16 %v1680
      %v1925 = vunpack.c.l.b16 %v1681
      %v1926 = vunpack.c.l.b16 %v1682
      %v1927 = vunpack.c.l.b16 %v1683
      %v1928 = vunpack.c.l.b16 %v1684
      %v1929 = vunpack.c.l.b16 %v1685
      %v1930 = vunpack.c.l.b16 %v1686
      %v1931 = vunpack.c.l.b16 %v1687
      %v1932 = vunpack.c.l.b16 %v1688
      %v1933 = vunpack.c.l.b16 %v1689
      %v1934 = vunpack.c.l.b16 %v1690
      %v1935 = vunpack.c.l.b16 %v1691
      %v1936 = vunpack.c.l.b16 %v1692
      %v1937 = vunpack.c.l.b16 %v1693
      %v1938 = vunpack.c.l.b16 %v1694
      %v1939 = vunpack.c.l.b16 %v1695
      %v1940 = vunpack.c.l.b16 %v1696
      %v1941 = vunpack.c.l.b16 %v1697
      %v1942 = vunpack.c.l.b16 %v1698
      %v1943 = vunpack.c.l.b16 %v1699
      %v1944 = vunpack.c.l.b16 %v1700
      %v1945 = vunpack.c.l.b16 %v1701
      %v1946 = vunpack.c.l.b16 %v1702
      %v1947 = vunpack.c.l.b16 %v1703
      %v1948 = vunpack.c.l.b16 %v1704
      %v1949 = vunpack.c.l.b16 %v1705
      %v1950 = vunpack.c.l.b16 %v1706
      %v1951 = vunpack.c.l.b16 %v1707
      %v1952 = vunpack.c.l.b16 %v1708
      %v1953 = vunpack.c.l.b16 %v1709
      %v1954 = vunpack.c.l.b16 %v1710
      %v1955 = vunpack.c.l.b16 %v1711
      %v1956 = vunpack.c.l.b16 %v1712
      %v1957 = vunpack.c.l.b16 %v1713
      %v1958 = vunpack.c.l.b16 %v1714
      %v1959 = vunpack.c.l.b16 %v1715
      %v1960 = vunpack.c.l.b16 %v1716
      %v1961 = vunpack.c.l.b16 %v1717
      %v1962 = vunpack.c.l.b16 %v1718
      %v1963 = vunpack.c.l.b16 %v1719
      %v1964 = vunpack.c.l.b16 %v1720
      %v1965 = vunpack.c.l.b16 %v1721
      %v1966 = vunpack.c.l.b16 %v1722
      %v1967 = vunpack.c.l.b16 %v1723
      %v1968 = vunpack.c.l.b16 %v1724
      %v1969 = vunpack.c.l.b16 %v1725
      %v1970 = vunpack.c.l.b16 %v1726
      %v1971 = vunpack.c.l.b16 %v1727
      %v1972 = vunpack.c.l.b16 %v1728
      %v1973 = vunpack.c.l.b16 %v1729
      %v1974 = vunpack.c.l.b16 %v1730
      %v1975 = vunpack.c.l.b16 %v1731
      %v1976 = vunpack.c.l.b16 %v1732
      %v1977 = vunpack.c.l.b16 %v1733
      %v1978 = vunpack.c.l.b16 %v1734
      %v1979 = vunpack.c.l.b16 %v1735
      %v1980 = vunpack.c.l.b16 %v1736
      %v1981 = vunpack.c.l.b16 %v1737
      %v1982 = vunpack.c.l.b16 %v1738
      %v1983 = vunpack.c.l.b16 %v1739
      %v1984 = vunpack.c.l.b16 %v1740
      %v1985 = vunpack.c.l.b16 %v1741
      %v1986 = vunpack.c.l.b16 %v1742
      %v1987 = vunpack.c.l.b16 %v1743
      %v1988 = vpack.c.b16 %v1917, %v1916
      %v1989 = vpack.c.b16 %v1919, %v1918
      %v1990 = vpack.c.b16 %v1921, %v1920
      %v1991 = vpack.c.b16 %v1923, %v1922
      %v1992 = vpack.c.b16 %v1925, %v1924
      %v1993 = vpack.c.b16 %v1927, %v1926
      %v1994 = vpack.c.b16 %v1929, %v1928
      %v1995 = vpack.c.b16 %v1931, %v1930
      %v1996 = vpack.c.b16 %v1933, %v1932
      %v1997 = vpack.c.b16 %v1935, %v1934
      %v1998 = vpack.c.b16 %v1937, %v1936
      %v1999 = vpack.c.b16 %v1939, %v1938
      %v2000 = vpack.c.b16 %v1941, %v1940
      %v2001 = vpack.c.b16 %v1943, %v1942
      %v2002 = vpack.c.b16 %v1945, %v1944
      %v2003 = vpack.c.b16 %v1947, %v1946
      %v2004 = vpack.c.b16 %v1949, %v1948
      %v2005 = vpack.c.b16 %v1951, %v1950
      %v2006 = vpack.c.b16 %v1953, %v1952
      %v2007 = vpack.c.b16 %v1955, %v1954
      %v2008 = vpack.c.b16 %v1957, %v1956
      %v2009 = vpack.c.b16 %v1959, %v1958
      %v2010 = vpack.c.b16 %v1961, %v1960
      %v2011 = vpack.c.b16 %v1963, %v1962
      %v2012 = vpack.c.b16 %v1965, %v1964
      %v2013 = vpack.c.b16 %v1967, %v1966
      %v2014 = vpack.c.b16 %v1969, %v1968
      %v2015 = vpack.c.b16 %v1971, %v1970
      %v2016 = vpack.c.b16 %v1973, %v1972
      %v2017 = vpack.c.b16 %v1975, %v1974
      %v2018 = vpack.c.b16 %v1977, %v1976
      %v2019 = vpack.c.b16 %v1979, %v1978
      %v2020 = vpack.c.b16 %v1981, %v1980
      %v2021 = vpack.c.b16 %v1983, %v1982
      %v2022 = vpack.c.b16 %v1985, %v1984
      %v2023 = vpack.c.b16 %v1987, %v1986
      %v2061 = vsel %vm291, %v1812, 0
      %v2064 = vsel %vm291, %v1817, 0
      %v2067 = vsel %vm291, %v1822, 0
      %v2070 = vsel %vm291, %v1827, 0
      %2072 = vmatpush.bf16.msra.mxu0 %v1995
      %2073 = vmatpush.bf16.msra.mxu0 %v1994
      %2074 = vmatpush.bf16.msra.mxu0 %v1993
      %2075 = vmatpush.bf16.msra.mxu0 %v1992
      %2076 = vmatpush.bf16.msra.mxu0 %v1991
      %2077 = vmatpush.bf16.msra.mxu0 %v1990
      %2078 = vmatpush.bf16.msra.mxu0 %v1989
      %2079 = vmatpush.bf16.msra.mxu0 %v1988
      %2080 = vmatmul.bf16.gmra.mxu0 %v1808
      %v2081 = vpop.f32.mrf.mxu0
      %v2082 = vadd.f32 0.0, %v2081
      %v2083 = vpop.f32.mrf.mxu0
      %v2084 = vadd.f32 0.0, %v2083
      %2085 = vmatmul.bf16.gmra.mxu0 %v1813
      %v2086 = vpop.f32.mrf.mxu0
      %v2087 = vadd.f32 0.0, %v2086
      %v2088 = vpop.f32.mrf.mxu0
      %v2089 = vadd.f32 0.0, %v2088
      %2090 = vmatmul.bf16.gmra.mxu0 %v1818
      %v2091 = vpop.f32.mrf.mxu0
      %v2092 = vadd.f32 0.0, %v2091
      %v2093 = vpop.f32.mrf.mxu0
      %v2094 = vadd.f32 0.0, %v2093
      %2095 = vmatmul.bf16.gmra.mxu0 %v1823
      %v2096 = vpop.f32.mrf.mxu0
      %v2097 = vadd.f32 0.0, %v2096
      %v2098 = vpop.f32.mrf.mxu0
      %v2099 = vadd.f32 0.0, %v2098
      %2100 = vdwg.mxu0
      %2101 = vmatpush.bf16.msra.mxu0 %v2003
      %2102 = vmatpush.bf16.msra.mxu0 %v2002
      %2103 = vmatpush.bf16.msra.mxu0 %v2001
      %2104 = vmatpush.bf16.msra.mxu0 %v2000
      %2105 = vmatpush.bf16.msra.mxu0 %v1999
      %2106 = vmatpush.bf16.msra.mxu0 %v1998
      %2107 = vmatpush.bf16.msra.mxu0 %v1997
      %2108 = vmatpush.bf16.msra.mxu0 %v1996
      %2109 = vmatmul.bf16.gmra.mxu0 %v1809
      %v2110 = vpop.f32.mrf.mxu0
      %v2111 = vadd.f32 %v2082, %v2110
      %v2112 = vpop.f32.mrf.mxu0
      %v2113 = vadd.f32 %v2084, %v2112
      %2114 = vmatmul.bf16.gmra.mxu0 %v1814
      %v2115 = vpop.f32.mrf.mxu0
      %v2116 = vadd.f32 %v2087, %v2115
      %v2117 = vpop.f32.mrf.mxu0
      %v2118 = vadd.f32 %v2089, %v2117
      %2119 = vmatmul.bf16.gmra.mxu0 %v1819
      %v2120 = vpop.f32.mrf.mxu0
      %v2121 = vadd.f32 %v2092, %v2120
      %v2122 = vpop.f32.mrf.mxu0
      %v2123 = vadd.f32 %v2094, %v2122
      %2124 = vmatmul.bf16.gmra.mxu0 %v1824
      %v2125 = vpop.f32.mrf.mxu0
      %v2126 = vadd.f32 %v2097, %v2125
      %v2127 = vpop.f32.mrf.mxu0
      %v2128 = vadd.f32 %v2099, %v2127
      %2129 = vdwg.mxu0
      %2130 = vmatpush.bf16.msra.mxu0 %v2011
      %2131 = vmatpush.bf16.msra.mxu0 %v2010
      %2132 = vmatpush.bf16.msra.mxu0 %v2009
      %2133 = vmatpush.bf16.msra.mxu0 %v2008
      %2134 = vmatpush.bf16.msra.mxu0 %v2007
      %2135 = vmatpush.bf16.msra.mxu0 %v2006
      %2136 = vmatpush.bf16.msra.mxu0 %v2005
      %2137 = vmatpush.bf16.msra.mxu0 %v2004
      %2138 = vmatmul.bf16.gmra.mxu0 %v1810
      %v2139 = vpop.f32.mrf.mxu0
      %v2140 = vadd.f32 %v2111, %v2139
      %v2141 = vpop.f32.mrf.mxu0
      %v2142 = vadd.f32 %v2113, %v2141
      %2143 = vmatmul.bf16.gmra.mxu0 %v1815
      %v2144 = vpop.f32.mrf.mxu0
      %v2145 = vadd.f32 %v2116, %v2144
      %v2146 = vpop.f32.mrf.mxu0
      %v2147 = vadd.f32 %v2118, %v2146
      %2148 = vmatmul.bf16.gmra.mxu0 %v1820
      %v2149 = vpop.f32.mrf.mxu0
      %v2150 = vadd.f32 %v2121, %v2149
      %v2151 = vpop.f32.mrf.mxu0
      %v2152 = vadd.f32 %v2123, %v2151
      %2153 = vmatmul.bf16.gmra.mxu0 %v1825
      %v2154 = vpop.f32.mrf.mxu0
      %v2155 = vadd.f32 %v2126, %v2154
      %v2156 = vpop.f32.mrf.mxu0
      %v2157 = vadd.f32 %v2128, %v2156
      %2158 = vdwg.mxu0
      %2159 = vmatpush.bf16.msra.mxu0 %v2019
      %2160 = vmatpush.bf16.msra.mxu0 %v2018
      %2161 = vmatpush.bf16.msra.mxu0 %v2017
      %2162 = vmatpush.bf16.msra.mxu0 %v2016
      %2163 = vmatpush.bf16.msra.mxu0 %v2015
      %2164 = vmatpush.bf16.msra.mxu0 %v2014
      %2165 = vmatpush.bf16.msra.mxu0 %v2013
      %2166 = vmatpush.bf16.msra.mxu0 %v2012
      %2167 = vmatmul.bf16.gmra.mxu0 %v1811
      %v2168 = vpop.f32.mrf.mxu0
      %v2169 = vadd.f32 %v2140, %v2168
      %v2170 = vpop.f32.mrf.mxu0
      %v2171 = vadd.f32 %v2142, %v2170
      %2172 = vmatmul.bf16.gmra.mxu0 %v1816
      %v2173 = vpop.f32.mrf.mxu0
      %v2174 = vadd.f32 %v2145, %v2173
      %v2175 = vpop.f32.mrf.mxu0
      %v2176 = vadd.f32 %v2147, %v2175
      %2177 = vmatmul.bf16.gmra.mxu0 %v1821
      %v2178 = vpop.f32.mrf.mxu0
      %v2179 = vadd.f32 %v2150, %v2178
      %v2180 = vpop.f32.mrf.mxu0
      %v2181 = vadd.f32 %v2152, %v2180
      %2182 = vmatmul.bf16.gmra.mxu0 %v1826
      %v2183 = vpop.f32.mrf.mxu0
      %v2184 = vadd.f32 %v2155, %v2183
      %v2185 = vpop.f32.mrf.mxu0
      %v2186 = vadd.f32 %v2157, %v2185
      %2187 = vdwg.mxu0
      %2188 = vmatpush.bf16.msra.mxu0 0
      %2189 = vmatpush.bf16.msra.mxu0 0
      %2190 = vmatpush.bf16.msra.mxu0 0
      %2191 = vmatpush.bf16.msra.mxu0 0
      %2192 = vmatpush.bf16.msra.mxu0 %v2023
      %2193 = vmatpush.bf16.msra.mxu0 %v2022
      %2194 = vmatpush.bf16.msra.mxu0 %v2021
      %2195 = vmatpush.bf16.msra.mxu0 %v2020
      %2196 = vmatmul.bf16.gmra.mxu0 %v2061
      %v2197 = vpop.f32.mrf.mxu0
      %v2198 = vadd.f32 %v2169, %v2197
      %v2199 = vpop.f32.mrf.mxu0
      %v2200 = vadd.f32 %v2171, %v2199
      %2201 = vmatmul.bf16.gmra.mxu0 %v2064
      %v2202 = vpop.f32.mrf.mxu0
      %v2203 = vadd.f32 %v2174, %v2202
      %v2204 = vpop.f32.mrf.mxu0
      %v2205 = vadd.f32 %v2176, %v2204
      %2206 = vmatmul.bf16.gmra.mxu0 %v2067
      %v2207 = vpop.f32.mrf.mxu0
      %v2208 = vadd.f32 %v2179, %v2207
      %v2209 = vpop.f32.mrf.mxu0
      %v2210 = vadd.f32 %v2181, %v2209
      %2211 = vmatmul.bf16.gmra.mxu0 %v2070
      %v2212 = vpop.f32.mrf.mxu0
      %v2213 = vadd.f32 %v2184, %v2212
      %v2214 = vpop.f32.mrf.mxu0
      %v2215 = vadd.f32 %v2186, %v2214
      %2216 = vdwg.mxu0
      %s2217 = scalar_lea.vmem %s3, 1
      %v2218 = vld [vmem:[%s2217] sm:$0x1]
      %v2220 = vperm.slane %v2218, 0
      %v2222 = vmul.f32 %v2198, %v2220
      %v2223 = vmul.f32 %v2200, %v2220
      %v2224 = vmul.f32 %v2203, %v2220
      %v2225 = vmul.f32 %v2205, %v2220
      %v2226 = vmul.f32 %v2208, %v2220
      %v2227 = vmul.f32 %v2210, %v2220
      %v2228 = vmul.f32 %v2213, %v2220
      %v2229 = vmul.f32 %v2215, %v2220
      %s2230 = scalar_lea.vmem %s4, 1
      %v2231 = vld [vmem:[%s2230] sm:$0x1]
      %v2233 = vperm.slane %v2231, 0
      %v2235 = vadd.f32 %v2222, %v2233
      %v2236 = vadd.f32 %v2223, %v2233
      %v2237 = vadd.f32 %v2224, %v2233
      %v2238 = vadd.f32 %v2225, %v2233
      %v2239 = vadd.f32 %v2226, %v2233
      %v2240 = vadd.f32 %v2227, %v2233
      %v2241 = vadd.f32 %v2228, %v2233
      %v2242 = vadd.f32 %v2229, %v2233
      %vm2243 = vcmp.ge.f32.partialorder %v2235, 0.0
      %vm2244 = vcmp.ge.f32.partialorder %v2236, 0.0
      %vm2245 = vcmp.ge.f32.partialorder %v2237, 0.0
      %vm2246 = vcmp.ge.f32.partialorder %v2238, 0.0
      %vm2247 = vcmp.ge.f32.partialorder %v2239, 0.0
      %vm2248 = vcmp.ge.f32.partialorder %v2240, 0.0
      %vm2249 = vcmp.ge.f32.partialorder %v2241, 0.0
      %vm2250 = vcmp.ge.f32.partialorder %v2242, 0.0
      %v2251 = vmul.f32 %v2235, 0.01
      %v2252 = vmul.f32 %v2236, 0.01
      %v2253 = vmul.f32 %v2237, 0.01
      %v2254 = vmul.f32 %v2238, 0.01
      %v2255 = vmul.f32 %v2239, 0.01
      %v2256 = vmul.f32 %v2240, 0.01
      %v2257 = vmul.f32 %v2241, 0.01
      %v2258 = vmul.f32 %v2242, 0.01
      %v2259 = vsel %vm2243, %v2235, %v2251
      %v2260 = vsel %vm2244, %v2236, %v2252
      %v2261 = vsel %vm2245, %v2237, %v2253
      %v2262 = vsel %vm2246, %v2238, %v2254
      %v2263 = vsel %vm2247, %v2239, %v2255
      %v2264 = vsel %vm2248, %v2240, %v2256
      %v2265 = vsel %vm2249, %v2241, %v2257
      %v2266 = vsel %vm2250, %v2242, %v2258
      %2267 = vst.msk [vmem:[%s321 + $0x1] sm:$0xff] %vm291, %v2259
      %2268 = vst.msk [vmem:[%s321 + $0x11] sm:$0xff] %vm291, %v2260
      %2269 = vst.msk [vmem:[%s321 + $0x21] sm:$0xff] %vm291, %v2261
      %2270 = vst.msk [vmem:[%s321 + $0x31] sm:$0xff] %vm291, %v2262
      %2271 = vst.msk [vmem:[%s321 + $0x41] sm:$0xff] %vm291, %v2263
      %2272 = vst.msk [vmem:[%s321 + $0x51] sm:$0xff] %vm291, %v2264
      %2273 = vst.msk [vmem:[%s321 + $0x61] sm:$0xff] %vm291, %v2265
      %2274 = vst.msk [vmem:[%s321 + $0x71] sm:$0xff] %vm291, %v2266
      %v2275 = vld [vmem:[#allocation2] sm:$0xff]
      %v2276 = vld [vmem:[#allocation2 + $0x10] sm:$0xff]
      %v2277 = vld [vmem:[#allocation2 + $0x20] sm:$0xff]
      %v2278 = vld [vmem:[#allocation2 + $0x30] sm:$0xff]
      %v2279 = vld [vmem:[#allocation2 + $0x40] sm:$0xff]
      %v2280 = vld [vmem:[#allocation2 + $0x50] sm:$0xff]
      %v2281 = vld [vmem:[#allocation2 + $0x60] sm:$0xff]
      %v2282 = vld [vmem:[#allocation2 + $0x70] sm:$0xff]
      %v2283 = vpack.c.bf16 %v2275, %v2275
      %v2284 = vpack.c.bf16 %v2276, %v2276
      %v2285 = vpack.c.bf16 %v2277, %v2277
      %v2286 = vpack.c.bf16 %v2278, %v2278
      %v2287 = vpack.c.bf16 %v2279, %v2279
      %v2288 = vpack.c.bf16 %v2280, %v2280
      %v2289 = vpack.c.bf16 %v2281, %v2281
      %v2290 = vpack.c.bf16 %v2282, %v2282
      %2291 = vst.msk [vmem:[#allocation3] sm:$0xf] %vm347, %v2283
      %2292 = vst.msk [vmem:[#allocation3 + $0x14] sm:$0xf] %vm347, %v2284
      %2293 = vst.msk [vmem:[#allocation3 + $0x28] sm:$0xf] %vm347, %v2285
      %2294 = vst.msk [vmem:[#allocation3 + $0x3c] sm:$0xf] %vm347, %v2286
      %2295 = vst.msk [vmem:[#allocation3 + $0x50] sm:$0xf] %vm347, %v2287
      %2296 = vst.msk [vmem:[#allocation3 + $0x64] sm:$0xf] %vm347, %v2288
      %2297 = vst.msk [vmem:[#allocation3 + $0x78] sm:$0xf] %vm347, %v2289
      %2298 = vst.msk [vmem:[#allocation3 + $0x8c] sm:$0xf] %vm347, %v2290
      %v2299 = vld [vmem:[#allocation2 + $0x1] sm:$0xff]
      %v2300 = vld [vmem:[#allocation2 + $0x11] sm:$0xff]
      %v2301 = vld [vmem:[#allocation2 + $0x21] sm:$0xff]
      %v2302 = vld [vmem:[#allocation2 + $0x31] sm:$0xff]
      %v2303 = vld [vmem:[#allocation2 + $0x41] sm:$0xff]
      %v2304 = vld [vmem:[#allocation2 + $0x51] sm:$0xff]
      %v2305 = vld [vmem:[#allocation2 + $0x61] sm:$0xff]
      %v2306 = vld [vmem:[#allocation2 + $0x71] sm:$0xff]
      %v2307 = vpack.c.bf16 %v2299, %v2299
      %v2308 = vpack.c.bf16 %v2300, %v2300
      %v2309 = vpack.c.bf16 %v2301, %v2301
      %v2310 = vpack.c.bf16 %v2302, %v2302
      %v2311 = vpack.c.bf16 %v2303, %v2303
      %v2312 = vpack.c.bf16 %v2304, %v2304
      %v2313 = vpack.c.bf16 %v2305, %v2305
      %v2314 = vpack.c.bf16 %v2306, %v2306
      %2323 = vrot.lane.b32.xlu0 %v2307, 64
      %v2324 = vpop.permute.xlu0 %2323
      %2325 = vrot.lane.b32.xlu0 %v2308, 64
      %v2326 = vpop.permute.xlu0 %2325
      %2327 = vrot.lane.b32.xlu0 %v2309, 64
      %v2328 = vpop.permute.xlu0 %2327
      %2329 = vrot.lane.b32.xlu0 %v2310, 64
      %v2330 = vpop.permute.xlu0 %2329
      %2331 = vrot.lane.b32.xlu0 %v2311, 64
      %v2332 = vpop.permute.xlu0 %2331
      %2333 = vrot.lane.b32.xlu0 %v2312, 64
      %v2334 = vpop.permute.xlu0 %2333
      %2335 = vrot.lane.b32.xlu0 %v2313, 64
      %v2336 = vpop.permute.xlu0 %2335
      %2337 = vrot.lane.b32.xlu0 %v2314, 64
      %v2338 = vpop.permute.xlu0 %2337
      %2347 = vst.msk [vmem:[#allocation3] sm:$0xf] %vm404, %v2324
      %2348 = vst.msk [vmem:[#allocation3 + $0x14] sm:$0xf] %vm404, %v2326
      %2349 = vst.msk [vmem:[#allocation3 + $0x28] sm:$0xf] %vm404, %v2328
      %2350 = vst.msk [vmem:[#allocation3 + $0x3c] sm:$0xf] %vm404, %v2330
      %2351 = vst.msk [vmem:[#allocation3 + $0x50] sm:$0xf] %vm404, %v2332
      %2352 = vst.msk [vmem:[#allocation3 + $0x64] sm:$0xf] %vm404, %v2334
      %2353 = vst.msk [vmem:[#allocation3 + $0x78] sm:$0xf] %vm404, %v2336
      %2354 = vst.msk [vmem:[#allocation3 + $0x8c] sm:$0xf] %vm404, %v2338
      %v2355 = vld [vmem:[#allocation2 + $0x2] sm:$0xff]
      %v2356 = vld [vmem:[#allocation2 + $0x12] sm:$0xff]
      %v2357 = vld [vmem:[#allocation2 + $0x22] sm:$0xff]
      %v2358 = vld [vmem:[#allocation2 + $0x32] sm:$0xff]
      %v2359 = vld [vmem:[#allocation2 + $0x42] sm:$0xff]
      %v2360 = vld [vmem:[#allocation2 + $0x52] sm:$0xff]
      %v2361 = vld [vmem:[#allocation2 + $0x62] sm:$0xff]
      %v2362 = vld [vmem:[#allocation2 + $0x72] sm:$0xff]
      %v2363 = vpack.c.bf16 %v2355, %v2355
      %v2364 = vpack.c.bf16 %v2356, %v2356
      %v2365 = vpack.c.bf16 %v2357, %v2357
      %v2366 = vpack.c.bf16 %v2358, %v2358
      %v2367 = vpack.c.bf16 %v2359, %v2359
      %v2368 = vpack.c.bf16 %v2360, %v2360
      %v2369 = vpack.c.bf16 %v2361, %v2361
      %v2370 = vpack.c.bf16 %v2362, %v2362
      %2371 = vst.msk [vmem:[#allocation3 + $0x4] sm:$0xf] %vm347, %v2363
      %2372 = vst.msk [vmem:[#allocation3 + $0x18] sm:$0xf] %vm347, %v2364
      %2373 = vst.msk [vmem:[#allocation3 + $0x2c] sm:$0xf] %vm347, %v2365
      %2374 = vst.msk [vmem:[#allocation3 + $0x40] sm:$0xf] %vm347, %v2366
      %2375 = vst.msk [vmem:[#allocation3 + $0x54] sm:$0xf] %vm347, %v2367
      %2376 = vst.msk [vmem:[#allocation3 + $0x68] sm:$0xf] %vm347, %v2368
      %2377 = vst.msk [vmem:[#allocation3 + $0x7c] sm:$0xf] %vm347, %v2369
      %2378 = vst.msk [vmem:[#allocation3 + $0x90] sm:$0xf] %vm347, %v2370
      %v2379 = vld [vmem:[%s321] sm:$0xff]
      %v2380 = vld [vmem:[%s321 + $0x10] sm:$0xff]
      %v2381 = vld [vmem:[%s321 + $0x20] sm:$0xff]
      %v2382 = vld [vmem:[%s321 + $0x30] sm:$0xff]
      %v2383 = vld [vmem:[%s321 + $0x40] sm:$0xff]
      %v2384 = vld [vmem:[%s321 + $0x50] sm:$0xff]
      %v2385 = vld [vmem:[%s321 + $0x60] sm:$0xff]
      %v2386 = vld [vmem:[%s321 + $0x70] sm:$0xff]
      %v2387 = vpack.c.bf16 %v2379, %v2379
      %v2388 = vpack.c.bf16 %v2380, %v2380
      %v2389 = vpack.c.bf16 %v2381, %v2381
      %v2390 = vpack.c.bf16 %v2382, %v2382
      %v2391 = vpack.c.bf16 %v2383, %v2383
      %v2392 = vpack.c.bf16 %v2384, %v2384
      %v2393 = vpack.c.bf16 %v2385, %v2385
      %v2394 = vpack.c.bf16 %v2386, %v2386
      %2403 = vrot.lane.b32.xlu0 %v2387, 64
      %v2404 = vpop.permute.xlu0 %2403
      %2405 = vrot.lane.b32.xlu0 %v2388, 64
      %v2406 = vpop.permute.xlu0 %2405
      %2407 = vrot.lane.b32.xlu0 %v2389, 64
      %v2408 = vpop.permute.xlu0 %2407
      %2409 = vrot.lane.b32.xlu0 %v2390, 64
      %v2410 = vpop.permute.xlu0 %2409
      %2411 = vrot.lane.b32.xlu0 %v2391, 64
      %v2412 = vpop.permute.xlu0 %2411
      %2413 = vrot.lane.b32.xlu0 %v2392, 64
      %v2414 = vpop.permute.xlu0 %2413
      %2415 = vrot.lane.b32.xlu0 %v2393, 64
      %v2416 = vpop.permute.xlu0 %2415
      %2417 = vrot.lane.b32.xlu0 %v2394, 64
      %v2418 = vpop.permute.xlu0 %2417
      %2427 = vst.msk [vmem:[#allocation3 + $0x4] sm:$0xf] %vm404, %v2404
      %2428 = vst.msk [vmem:[#allocation3 + $0x18] sm:$0xf] %vm404, %v2406
      %2429 = vst.msk [vmem:[#allocation3 + $0x2c] sm:$0xf] %vm404, %v2408
      %2430 = vst.msk [vmem:[#allocation3 + $0x40] sm:$0xf] %vm404, %v2410
      %2431 = vst.msk [vmem:[#allocation3 + $0x54] sm:$0xf] %vm404, %v2412
      %2432 = vst.msk [vmem:[#allocation3 + $0x68] sm:$0xf] %vm404, %v2414
      %2433 = vst.msk [vmem:[#allocation3 + $0x7c] sm:$0xf] %vm404, %v2416
      %2434 = vst.msk [vmem:[#allocation3 + $0x90] sm:$0xf] %vm404, %v2418
      %v2435 = vld [vmem:[%s321 + $0x1] sm:$0xff]
      %v2436 = vld [vmem:[%s321 + $0x11] sm:$0xff]
      %v2437 = vld [vmem:[%s321 + $0x21] sm:$0xff]
      %v2438 = vld [vmem:[%s321 + $0x31] sm:$0xff]
      %v2439 = vld [vmem:[%s321 + $0x41] sm:$0xff]
      %v2440 = vld [vmem:[%s321 + $0x51] sm:$0xff]
      %v2441 = vld [vmem:[%s321 + $0x61] sm:$0xff]
      %v2442 = vld [vmem:[%s321 + $0x71] sm:$0xff]
      %v2443 = vpack.c.bf16 %v2435, %v2435
      %v2444 = vpack.c.bf16 %v2436, %v2436
      %v2445 = vpack.c.bf16 %v2437, %v2437
      %v2446 = vpack.c.bf16 %v2438, %v2438
      %v2447 = vpack.c.bf16 %v2439, %v2439
      %v2448 = vpack.c.bf16 %v2440, %v2440
      %v2449 = vpack.c.bf16 %v2441, %v2441
      %v2450 = vpack.c.bf16 %v2442, %v2442
      %2451 = vst.msk [vmem:[#allocation3 + $0x8] sm:$0xf] %vm347, %v2443
      %2452 = vst.msk [vmem:[#allocation3 + $0x1c] sm:$0xf] %vm347, %v2444
      %2453 = vst.msk [vmem:[#allocation3 + $0x30] sm:$0xf] %vm347, %v2445
      %2454 = vst.msk [vmem:[#allocation3 + $0x44] sm:$0xf] %vm347, %v2446
      %2455 = vst.msk [vmem:[#allocation3 + $0x58] sm:$0xf] %vm347, %v2447
      %2456 = vst.msk [vmem:[#allocation3 + $0x6c] sm:$0xf] %vm347, %v2448
      %2457 = vst.msk [vmem:[#allocation3 + $0x80] sm:$0xf] %vm347, %v2449
      %2458 = vst.msk [vmem:[#allocation3 + $0x94] sm:$0xf] %vm347, %v2450
      %v2459 = vld [vmem:[%s321 + $0x2] sm:$0xff]
      %v2460 = vld [vmem:[%s321 + $0x12] sm:$0xff]
      %v2461 = vld [vmem:[%s321 + $0x22] sm:$0xff]
      %v2462 = vld [vmem:[%s321 + $0x32] sm:$0xff]
      %v2463 = vld [vmem:[%s321 + $0x42] sm:$0xff]
      %v2464 = vld [vmem:[%s321 + $0x52] sm:$0xff]
      %v2465 = vld [vmem:[%s321 + $0x62] sm:$0xff]
      %v2466 = vld [vmem:[%s321 + $0x72] sm:$0xff]
      %v2467 = vpack.c.bf16 %v2459, %v2459
      %v2468 = vpack.c.bf16 %v2460, %v2460
      %v2469 = vpack.c.bf16 %v2461, %v2461
      %v2470 = vpack.c.bf16 %v2462, %v2462
      %v2471 = vpack.c.bf16 %v2463, %v2463
      %v2472 = vpack.c.bf16 %v2464, %v2464
      %v2473 = vpack.c.bf16 %v2465, %v2465
      %v2474 = vpack.c.bf16 %v2466, %v2466
      %2483 = vrot.lane.b32.xlu0 %v2467, 64
      %v2484 = vpop.permute.xlu0 %2483
      %2485 = vrot.lane.b32.xlu0 %v2468, 64
      %v2486 = vpop.permute.xlu0 %2485
      %2487 = vrot.lane.b32.xlu0 %v2469, 64
      %v2488 = vpop.permute.xlu0 %2487
      %2489 = vrot.lane.b32.xlu0 %v2470, 64
      %v2490 = vpop.permute.xlu0 %2489
      %2491 = vrot.lane.b32.xlu0 %v2471, 64
      %v2492 = vpop.permute.xlu0 %2491
      %2493 = vrot.lane.b32.xlu0 %v2472, 64
      %v2494 = vpop.permute.xlu0 %2493
      %2495 = vrot.lane.b32.xlu0 %v2473, 64
      %v2496 = vpop.permute.xlu0 %2495
      %2497 = vrot.lane.b32.xlu0 %v2474, 64
      %v2498 = vpop.permute.xlu0 %2497
      %2507 = vst.msk [vmem:[#allocation3 + $0x8] sm:$0xf] %vm404, %v2484
      %2508 = vst.msk [vmem:[#allocation3 + $0x1c] sm:$0xf] %vm404, %v2486
      %2509 = vst.msk [vmem:[#allocation3 + $0x30] sm:$0xf] %vm404, %v2488
      %2510 = vst.msk [vmem:[#allocation3 + $0x44] sm:$0xf] %vm404, %v2490
      %2511 = vst.msk [vmem:[#allocation3 + $0x58] sm:$0xf] %vm404, %v2492
      %2512 = vst.msk [vmem:[#allocation3 + $0x6c] sm:$0xf] %vm404, %v2494
      %2513 = vst.msk [vmem:[#allocation3 + $0x80] sm:$0xf] %vm404, %v2496
      %2514 = vst.msk [vmem:[#allocation3 + $0x94] sm:$0xf] %vm404, %v2498
      %v2515 = vld [vmem:[%s573] sm:$0xff]
      %v2516 = vld [vmem:[%s573 + $0x10] sm:$0xff]
      %v2517 = vld [vmem:[%s573 + $0x20] sm:$0xff]
      %v2518 = vld [vmem:[%s573 + $0x30] sm:$0xff]
      %v2519 = vld [vmem:[%s573 + $0x40] sm:$0xff]
      %v2520 = vld [vmem:[%s573 + $0x50] sm:$0xff]
      %v2521 = vld [vmem:[%s573 + $0x60] sm:$0xff]
      %v2522 = vld [vmem:[%s573 + $0x70] sm:$0xff]
      %v2523 = vpack.c.bf16 %v2515, %v2515
      %v2524 = vpack.c.bf16 %v2516, %v2516
      %v2525 = vpack.c.bf16 %v2517, %v2517
      %v2526 = vpack.c.bf16 %v2518, %v2518
      %v2527 = vpack.c.bf16 %v2519, %v2519
      %v2528 = vpack.c.bf16 %v2520, %v2520
      %v2529 = vpack.c.bf16 %v2521, %v2521
      %v2530 = vpack.c.bf16 %v2522, %v2522
      %2531 = vst.msk [vmem:[#allocation3 + $0xc] sm:$0xf] %vm347, %v2523
      %2532 = vst.msk [vmem:[#allocation3 + $0x20] sm:$0xf] %vm347, %v2524
      %2533 = vst.msk [vmem:[#allocation3 + $0x34] sm:$0xf] %vm347, %v2525
      %2534 = vst.msk [vmem:[#allocation3 + $0x48] sm:$0xf] %vm347, %v2526
      %2535 = vst.msk [vmem:[#allocation3 + $0x5c] sm:$0xf] %vm347, %v2527
      %2536 = vst.msk [vmem:[#allocation3 + $0x70] sm:$0xf] %vm347, %v2528
      %2537 = vst.msk [vmem:[#allocation3 + $0x84] sm:$0xf] %vm347, %v2529
      %2538 = vst.msk [vmem:[#allocation3 + $0x98] sm:$0xf] %vm347, %v2530
      %v2539 = vld [vmem:[%s573 + $0x1] sm:$0xff]
      %v2540 = vld [vmem:[%s573 + $0x11] sm:$0xff]
      %v2541 = vld [vmem:[%s573 + $0x21] sm:$0xff]
      %v2542 = vld [vmem:[%s573 + $0x31] sm:$0xff]
      %v2543 = vld [vmem:[%s573 + $0x41] sm:$0xff]
      %v2544 = vld [vmem:[%s573 + $0x51] sm:$0xff]
      %v2545 = vld [vmem:[%s573 + $0x61] sm:$0xff]
      %v2546 = vld [vmem:[%s573 + $0x71] sm:$0xff]
      %v2547 = vpack.c.bf16 %v2539, %v2539
      %v2548 = vpack.c.bf16 %v2540, %v2540
      %v2549 = vpack.c.bf16 %v2541, %v2541
      %v2550 = vpack.c.bf16 %v2542, %v2542
      %v2551 = vpack.c.bf16 %v2543, %v2543
      %v2552 = vpack.c.bf16 %v2544, %v2544
      %v2553 = vpack.c.bf16 %v2545, %v2545
      %v2554 = vpack.c.bf16 %v2546, %v2546
      %2563 = vrot.lane.b32.xlu0 %v2547, 64
      %v2564 = vpop.permute.xlu0 %2563
      %2565 = vrot.lane.b32.xlu0 %v2548, 64
      %v2566 = vpop.permute.xlu0 %2565
      %2567 = vrot.lane.b32.xlu0 %v2549, 64
      %v2568 = vpop.permute.xlu0 %2567
      %2569 = vrot.lane.b32.xlu0 %v2550, 64
      %v2570 = vpop.permute.xlu0 %2569
      %2571 = vrot.lane.b32.xlu0 %v2551, 64
      %v2572 = vpop.permute.xlu0 %2571
      %2573 = vrot.lane.b32.xlu0 %v2552, 64
      %v2574 = vpop.permute.xlu0 %2573
      %2575 = vrot.lane.b32.xlu0 %v2553, 64
      %v2576 = vpop.permute.xlu0 %2575
      %2577 = vrot.lane.b32.xlu0 %v2554, 64
      %v2578 = vpop.permute.xlu0 %2577
      %2587 = vst.msk [vmem:[#allocation3 + $0xc] sm:$0xf] %vm404, %v2564
      %2588 = vst.msk [vmem:[#allocation3 + $0x20] sm:$0xf] %vm404, %v2566
      %2589 = vst.msk [vmem:[#allocation3 + $0x34] sm:$0xf] %vm404, %v2568
      %2590 = vst.msk [vmem:[#allocation3 + $0x48] sm:$0xf] %vm404, %v2570
      %2591 = vst.msk [vmem:[#allocation3 + $0x5c] sm:$0xf] %vm404, %v2572
      %2592 = vst.msk [vmem:[#allocation3 + $0x70] sm:$0xf] %vm404, %v2574
      %2593 = vst.msk [vmem:[#allocation3 + $0x84] sm:$0xf] %vm404, %v2576
      %2594 = vst.msk [vmem:[#allocation3 + $0x98] sm:$0xf] %vm404, %v2578
      %v2595 = vld [vmem:[%s573 + $0x2] sm:$0xff]
      %v2596 = vld [vmem:[%s573 + $0x12] sm:$0xff]
      %v2597 = vld [vmem:[%s573 + $0x22] sm:$0xff]
      %v2598 = vld [vmem:[%s573 + $0x32] sm:$0xff]
      %v2599 = vld [vmem:[%s573 + $0x42] sm:$0xff]
      %v2600 = vld [vmem:[%s573 + $0x52] sm:$0xff]
      %v2601 = vld [vmem:[%s573 + $0x62] sm:$0xff]
      %v2602 = vld [vmem:[%s573 + $0x72] sm:$0xff]
      %v2603 = vpack.c.bf16 %v2595, %v2595
      %v2604 = vpack.c.bf16 %v2596, %v2596
      %v2605 = vpack.c.bf16 %v2597, %v2597
      %v2606 = vpack.c.bf16 %v2598, %v2598
      %v2607 = vpack.c.bf16 %v2599, %v2599
      %v2608 = vpack.c.bf16 %v2600, %v2600
      %v2609 = vpack.c.bf16 %v2601, %v2601
      %v2610 = vpack.c.bf16 %v2602, %v2602
      %2611 = vst.msk [vmem:[#allocation3 + $0x10] sm:$0xf] %vm347, %v2603
      %2612 = vst.msk [vmem:[#allocation3 + $0x24] sm:$0xf] %vm347, %v2604
      %2613 = vst.msk [vmem:[#allocation3 + $0x38] sm:$0xf] %vm347, %v2605
      %2614 = vst.msk [vmem:[#allocation3 + $0x4c] sm:$0xf] %vm347, %v2606
      %2615 = vst.msk [vmem:[#allocation3 + $0x60] sm:$0xf] %vm347, %v2607
      %2616 = vst.msk [vmem:[#allocation3 + $0x74] sm:$0xf] %vm347, %v2608
      %2617 = vst.msk [vmem:[#allocation3 + $0x88] sm:$0xf] %vm347, %v2609
      %2618 = vst.msk [vmem:[#allocation3 + $0x9c] sm:$0xf] %vm347, %v2610
      %v2619 = vld [vmem:[#allocation3] sm:$0xff]
      %v2620 = vld [vmem:[#allocation3 + $0x8] sm:$0xff]
      %v2621 = vld [vmem:[#allocation3 + $0x10] sm:$0xf]
      %v2622 = vld [vmem:[#allocation3 + $0x14] sm:$0xff]
      %v2623 = vld [vmem:[#allocation3 + $0x1c] sm:$0xff]
      %v2624 = vld [vmem:[#allocation3 + $0x24] sm:$0xf]
      %v2625 = vld [vmem:[#allocation3 + $0x28] sm:$0xff]
      %v2626 = vld [vmem:[#allocation3 + $0x30] sm:$0xff]
      %v2627 = vld [vmem:[#allocation3 + $0x38] sm:$0xf]
      %v2628 = vld [vmem:[#allocation3 + $0x3c] sm:$0xff]
      %v2629 = vld [vmem:[#allocation3 + $0x44] sm:$0xff]
      %v2630 = vld [vmem:[#allocation3 + $0x4c] sm:$0xf]
      %v2631 = vld [vmem:[#allocation3 + $0x50] sm:$0xff]
      %v2632 = vld [vmem:[#allocation3 + $0x58] sm:$0xff]
      %v2633 = vld [vmem:[#allocation3 + $0x60] sm:$0xf]
      %v2634 = vld [vmem:[#allocation3 + $0x64] sm:$0xff]
      %v2635 = vld [vmem:[#allocation3 + $0x6c] sm:$0xff]
      %v2636 = vld [vmem:[#allocation3 + $0x74] sm:$0xf]
      %v2637 = vld [vmem:[#allocation3 + $0x78] sm:$0xff]
      %v2638 = vld [vmem:[#allocation3 + $0x80] sm:$0xff]
      %v2639 = vld [vmem:[#allocation3 + $0x88] sm:$0xf]
      %v2640 = vld [vmem:[#allocation3 + $0x8c] sm:$0xff]
      %v2641 = vld [vmem:[#allocation3 + $0x94] sm:$0xff]
      %v2642 = vld [vmem:[#allocation3 + $0x9c] sm:$0xf]
      %s2643 = scalar_lea.vmem %s2, 576
      %v2644 = vld [vmem:[%s2643] sm:$0xf]
      %v2645 = vld [vmem:[%s2643 + $0x4] sm:$0xf]
      %v2646 = vld [vmem:[%s2643 + $0x8] sm:$0xf]
      %v2647 = vld [vmem:[%s2643 + $0xc] sm:$0xf]
      %v2648 = vld [vmem:[%s2643 + $0x10] sm:$0xf]
      %v2649 = vld [vmem:[%s2643 + $0x14] sm:$0xf]
      %v2650 = vld [vmem:[%s2643 + $0x18] sm:$0xf]
      %v2651 = vld [vmem:[%s2643 + $0x1c] sm:$0xf]
      %v2652 = vld [vmem:[%s2643 + $0x20] sm:$0xf]
      %v2653 = vld [vmem:[%s2643 + $0x24] sm:$0xf]
      %v2654 = vld [vmem:[%s2643 + $0x28] sm:$0xf]
      %v2655 = vld [vmem:[%s2643 + $0x2c] sm:$0xf]
      %v2656 = vld [vmem:[%s2643 + $0x30] sm:$0xf]
      %v2657 = vld [vmem:[%s2643 + $0x34] sm:$0xf]
      %v2658 = vld [vmem:[%s2643 + $0x38] sm:$0xf]
      %v2659 = vld [vmem:[%s2643 + $0x3c] sm:$0xf]
      %v2660 = vld [vmem:[%s2643 + $0x40] sm:$0xf]
      %v2661 = vld [vmem:[%s2643 + $0x44] sm:$0xf]
      %v2662 = vld [vmem:[%s2643 + $0x48] sm:$0xf]
      %v2663 = vld [vmem:[%s2643 + $0x4c] sm:$0xf]
      %v2664 = vld [vmem:[%s2643 + $0x50] sm:$0xf]
      %v2665 = vld [vmem:[%s2643 + $0x54] sm:$0xf]
      %v2666 = vld [vmem:[%s2643 + $0x58] sm:$0xf]
      %v2667 = vld [vmem:[%s2643 + $0x5c] sm:$0xf]
      %v2668 = vld [vmem:[%s2643 + $0x60] sm:$0xf]
      %v2669 = vld [vmem:[%s2643 + $0x64] sm:$0xf]
      %v2670 = vld [vmem:[%s2643 + $0x68] sm:$0xf]
      %v2671 = vld [vmem:[%s2643 + $0x6c] sm:$0xf]
      %v2672 = vld [vmem:[%s2643 + $0x70] sm:$0xf]
      %v2673 = vld [vmem:[%s2643 + $0x74] sm:$0xf]
      %v2674 = vld [vmem:[%s2643 + $0x78] sm:$0xf]
      %v2675 = vld [vmem:[%s2643 + $0x7c] sm:$0xf]
      %v2676 = vld [vmem:[%s2643 + $0x80] sm:$0xf]
      %v2677 = vld [vmem:[%s2643 + $0x84] sm:$0xf]
      %v2678 = vld [vmem:[%s2643 + $0x88] sm:$0xf]
      %v2679 = vld [vmem:[%s2643 + $0x8c] sm:$0xf]
      %v2680 = vld [vmem:[%s2643 + $0x90] sm:$0xf]
      %v2681 = vld [vmem:[%s2643 + $0x94] sm:$0xf]
      %v2682 = vld [vmem:[%s2643 + $0x98] sm:$0xf]
      %v2683 = vld [vmem:[%s2643 + $0x9c] sm:$0xf]
      %v2684 = vld [vmem:[%s2643 + $0xa0] sm:$0xf]
      %v2685 = vld [vmem:[%s2643 + $0xa4] sm:$0xf]
      %v2686 = vld [vmem:[%s2643 + $0xa8] sm:$0xf]
      %v2687 = vld [vmem:[%s2643 + $0xac] sm:$0xf]
      %v2688 = vld [vmem:[%s2643 + $0xb0] sm:$0xf]
      %v2689 = vld [vmem:[%s2643 + $0xb4] sm:$0xf]
      %v2690 = vld [vmem:[%s2643 + $0xb8] sm:$0xf]
      %v2691 = vld [vmem:[%s2643 + $0xbc] sm:$0xf]
      %v2692 = vld [vmem:[%s2643 + $0xc0] sm:$0xf]
      %v2693 = vld [vmem:[%s2643 + $0xc4] sm:$0xf]
      %v2694 = vld [vmem:[%s2643 + $0xc8] sm:$0xf]
      %v2695 = vld [vmem:[%s2643 + $0xcc] sm:$0xf]
      %v2696 = vld [vmem:[%s2643 + $0xd0] sm:$0xf]
      %v2697 = vld [vmem:[%s2643 + $0xd4] sm:$0xf]
      %v2698 = vld [vmem:[%s2643 + $0xd8] sm:$0xf]
      %v2699 = vld [vmem:[%s2643 + $0xdc] sm:$0xf]
      %v2700 = vld [vmem:[%s2643 + $0xe0] sm:$0xf]
      %v2701 = vld [vmem:[%s2643 + $0xe4] sm:$0xf]
      %v2702 = vld [vmem:[%s2643 + $0xe8] sm:$0xf]
      %v2703 = vld [vmem:[%s2643 + $0xec] sm:$0xf]
      %v2704 = vld [vmem:[%s2643 + $0xf0] sm:$0xf]
      %v2705 = vld [vmem:[%s2643 + $0xf4] sm:$0xf]
      %v2706 = vld [vmem:[%s2643 + $0xf8] sm:$0xf]
      %v2707 = vld [vmem:[%s2643 + $0xfc] sm:$0xf]
      %v2708 = vld [vmem:[%s2643 + $0x100] sm:$0xf]
      %v2709 = vld [vmem:[%s2643 + $0x104] sm:$0xf]
      %v2710 = vld [vmem:[%s2643 + $0x108] sm:$0xf]
      %v2711 = vld [vmem:[%s2643 + $0x10c] sm:$0xf]
      %v2712 = vld [vmem:[%s2643 + $0x110] sm:$0xf]
      %v2713 = vld [vmem:[%s2643 + $0x114] sm:$0xf]
      %v2714 = vld [vmem:[%s2643 + $0x118] sm:$0xf]
      %v2715 = vld [vmem:[%s2643 + $0x11c] sm:$0xf]
      %v2740 = vunpack.c.l.b16 %v2619
      %v2741 = vunpack.c.h.b16 %v2619
      %v2742 = vunpack.c.l.b16 %v2620
      %v2743 = vunpack.c.h.b16 %v2620
      %v2744 = vunpack.c.l.b16 %v2621
      %v2745 = vunpack.c.l.b16 %v2622
      %v2746 = vunpack.c.h.b16 %v2622
      %v2747 = vunpack.c.l.b16 %v2623
      %v2748 = vunpack.c.h.b16 %v2623
      %v2749 = vunpack.c.l.b16 %v2624
      %v2750 = vunpack.c.l.b16 %v2625
      %v2751 = vunpack.c.h.b16 %v2625
      %v2752 = vunpack.c.l.b16 %v2626
      %v2753 = vunpack.c.h.b16 %v2626
      %v2754 = vunpack.c.l.b16 %v2627
      %v2755 = vunpack.c.l.b16 %v2628
      %v2756 = vunpack.c.h.b16 %v2628
      %v2757 = vunpack.c.l.b16 %v2629
      %v2758 = vunpack.c.h.b16 %v2629
      %v2759 = vunpack.c.l.b16 %v2630
      %v2760 = vunpack.c.l.b16 %v2631
      %v2761 = vunpack.c.h.b16 %v2631
      %v2762 = vunpack.c.l.b16 %v2632
      %v2763 = vunpack.c.h.b16 %v2632
      %v2764 = vunpack.c.l.b16 %v2633
      %v2765 = vunpack.c.l.b16 %v2634
      %v2766 = vunpack.c.h.b16 %v2634
      %v2767 = vunpack.c.l.b16 %v2635
      %v2768 = vunpack.c.h.b16 %v2635
      %v2769 = vunpack.c.l.b16 %v2636
      %v2770 = vunpack.c.l.b16 %v2637
      %v2771 = vunpack.c.h.b16 %v2637
      %v2772 = vunpack.c.l.b16 %v2638
      %v2773 = vunpack.c.h.b16 %v2638
      %v2774 = vunpack.c.l.b16 %v2639
      %v2775 = vunpack.c.l.b16 %v2640
      %v2776 = vunpack.c.h.b16 %v2640
      %v2777 = vunpack.c.l.b16 %v2641
      %v2778 = vunpack.c.h.b16 %v2641
      %v2779 = vunpack.c.l.b16 %v2642
      %v2780 = vpack.c.b16 %v2745, %v2740
      %v2781 = vpack.c.b16 %v2746, %v2741
      %v2782 = vpack.c.b16 %v2747, %v2742
      %v2783 = vpack.c.b16 %v2748, %v2743
      %v2784 = vpack.c.b16 %v2749, %v2744
      %v2785 = vpack.c.b16 %v2755, %v2750
      %v2786 = vpack.c.b16 %v2756, %v2751
      %v2787 = vpack.c.b16 %v2757, %v2752
      %v2788 = vpack.c.b16 %v2758, %v2753
      %v2789 = vpack.c.b16 %v2759, %v2754
      %v2790 = vpack.c.b16 %v2765, %v2760
      %v2791 = vpack.c.b16 %v2766, %v2761
      %v2792 = vpack.c.b16 %v2767, %v2762
      %v2793 = vpack.c.b16 %v2768, %v2763
      %v2794 = vpack.c.b16 %v2769, %v2764
      %v2795 = vpack.c.b16 %v2775, %v2770
      %v2796 = vpack.c.b16 %v2776, %v2771
      %v2797 = vpack.c.b16 %v2777, %v2772
      %v2798 = vpack.c.b16 %v2778, %v2773
      %v2799 = vpack.c.b16 %v2779, %v2774
      %v2888 = vunpack.c.l.b16 %v2644
      %v2889 = vunpack.c.l.b16 %v2645
      %v2890 = vunpack.c.l.b16 %v2646
      %v2891 = vunpack.c.l.b16 %v2647
      %v2892 = vunpack.c.l.b16 %v2648
      %v2893 = vunpack.c.l.b16 %v2649
      %v2894 = vunpack.c.l.b16 %v2650
      %v2895 = vunpack.c.l.b16 %v2651
      %v2896 = vunpack.c.l.b16 %v2652
      %v2897 = vunpack.c.l.b16 %v2653
      %v2898 = vunpack.c.l.b16 %v2654
      %v2899 = vunpack.c.l.b16 %v2655
      %v2900 = vunpack.c.l.b16 %v2656
      %v2901 = vunpack.c.l.b16 %v2657
      %v2902 = vunpack.c.l.b16 %v2658
      %v2903 = vunpack.c.l.b16 %v2659
      %v2904 = vunpack.c.l.b16 %v2660
      %v2905 = vunpack.c.l.b16 %v2661
      %v2906 = vunpack.c.l.b16 %v2662
      %v2907 = vunpack.c.l.b16 %v2663
      %v2908 = vunpack.c.l.b16 %v2664
      %v2909 = vunpack.c.l.b16 %v2665
      %v2910 = vunpack.c.l.b16 %v2666
      %v2911 = vunpack.c.l.b16 %v2667
      %v2912 = vunpack.c.l.b16 %v2668
      %v2913 = vunpack.c.l.b16 %v2669
      %v2914 = vunpack.c.l.b16 %v2670
      %v2915 = vunpack.c.l.b16 %v2671
      %v2916 = vunpack.c.l.b16 %v2672
      %v2917 = vunpack.c.l.b16 %v2673
      %v2918 = vunpack.c.l.b16 %v2674
      %v2919 = vunpack.c.l.b16 %v2675
      %v2920 = vunpack.c.l.b16 %v2676
      %v2921 = vunpack.c.l.b16 %v2677
      %v2922 = vunpack.c.l.b16 %v2678
      %v2923 = vunpack.c.l.b16 %v2679
      %v2924 = vunpack.c.l.b16 %v2680
      %v2925 = vunpack.c.l.b16 %v2681
      %v2926 = vunpack.c.l.b16 %v2682
      %v2927 = vunpack.c.l.b16 %v2683
      %v2928 = vunpack.c.l.b16 %v2684
      %v2929 = vunpack.c.l.b16 %v2685
      %v2930 = vunpack.c.l.b16 %v2686
      %v2931 = vunpack.c.l.b16 %v2687
      %v2932 = vunpack.c.l.b16 %v2688
      %v2933 = vunpack.c.l.b16 %v2689
      %v2934 = vunpack.c.l.b16 %v2690
      %v2935 = vunpack.c.l.b16 %v2691
      %v2936 = vunpack.c.l.b16 %v2692
      %v2937 = vunpack.c.l.b16 %v2693
      %v2938 = vunpack.c.l.b16 %v2694
      %v2939 = vunpack.c.l.b16 %v2695
      %v2940 = vunpack.c.l.b16 %v2696
      %v2941 = vunpack.c.l.b16 %v2697
      %v2942 = vunpack.c.l.b16 %v2698
      %v2943 = vunpack.c.l.b16 %v2699
      %v2944 = vunpack.c.l.b16 %v2700
      %v2945 = vunpack.c.l.b16 %v2701
      %v2946 = vunpack.c.l.b16 %v2702
      %v2947 = vunpack.c.l.b16 %v2703
      %v2948 = vunpack.c.l.b16 %v2704
      %v2949 = vunpack.c.l.b16 %v2705
      %v2950 = vunpack.c.l.b16 %v2706
      %v2951 = vunpack.c.l.b16 %v2707
      %v2952 = vunpack.c.l.b16 %v2708
      %v2953 = vunpack.c.l.b16 %v2709
      %v2954 = vunpack.c.l.b16 %v2710
      %v2955 = vunpack.c.l.b16 %v2711
      %v2956 = vunpack.c.l.b16 %v2712
      %v2957 = vunpack.c.l.b16 %v2713
      %v2958 = vunpack.c.l.b16 %v2714
      %v2959 = vunpack.c.l.b16 %v2715
      %v2960 = vpack.c.b16 %v2889, %v2888
      %v2961 = vpack.c.b16 %v2891, %v2890
      %v2962 = vpack.c.b16 %v2893, %v2892
      %v2963 = vpack.c.b16 %v2895, %v2894
      %v2964 = vpack.c.b16 %v2897, %v2896
      %v2965 = vpack.c.b16 %v2899, %v2898
      %v2966 = vpack.c.b16 %v2901, %v2900
      %v2967 = vpack.c.b16 %v2903, %v2902
      %v2968 = vpack.c.b16 %v2905, %v2904
      %v2969 = vpack.c.b16 %v2907, %v2906
      %v2970 = vpack.c.b16 %v2909, %v2908
      %v2971 = vpack.c.b16 %v2911, %v2910
      %v2972 = vpack.c.b16 %v2913, %v2912
      %v2973 = vpack.c.b16 %v2915, %v2914
      %v2974 = vpack.c.b16 %v2917, %v2916
      %v2975 = vpack.c.b16 %v2919, %v2918
      %v2976 = vpack.c.b16 %v2921, %v2920
      %v2977 = vpack.c.b16 %v2923, %v2922
      %v2978 = vpack.c.b16 %v2925, %v2924
      %v2979 = vpack.c.b16 %v2927, %v2926
      %v2980 = vpack.c.b16 %v2929, %v2928
      %v2981 = vpack.c.b16 %v2931, %v2930
      %v2982 = vpack.c.b16 %v2933, %v2932
      %v2983 = vpack.c.b16 %v2935, %v2934
      %v2984 = vpack.c.b16 %v2937, %v2936
      %v2985 = vpack.c.b16 %v2939, %v2938
      %v2986 = vpack.c.b16 %v2941, %v2940
      %v2987 = vpack.c.b16 %v2943, %v2942
      %v2988 = vpack.c.b16 %v2945, %v2944
      %v2989 = vpack.c.b16 %v2947, %v2946
      %v2990 = vpack.c.b16 %v2949, %v2948
      %v2991 = vpack.c.b16 %v2951, %v2950
      %v2992 = vpack.c.b16 %v2953, %v2952
      %v2993 = vpack.c.b16 %v2955, %v2954
      %v2994 = vpack.c.b16 %v2957, %v2956
      %v2995 = vpack.c.b16 %v2959, %v2958
      %v3033 = vsel %vm291, %v2784, 0
      %v3036 = vsel %vm291, %v2789, 0
      %v3039 = vsel %vm291, %v2794, 0
      %v3042 = vsel %vm291, %v2799, 0
      %3044 = vmatpush.bf16.msra.mxu0 %v2967
      %3045 = vmatpush.bf16.msra.mxu0 %v2966
      %3046 = vmatpush.bf16.msra.mxu0 %v2965
      %3047 = vmatpush.bf16.msra.mxu0 %v2964
      %3048 = vmatpush.bf16.msra.mxu0 %v2963
      %3049 = vmatpush.bf16.msra.mxu0 %v2962
      %3050 = vmatpush.bf16.msra.mxu0 %v2961
      %3051 = vmatpush.bf16.msra.mxu0 %v2960
      %3052 = vmatmul.bf16.gmra.mxu0 %v2780
      %v3053 = vpop.f32.mrf.mxu0
      %v3054 = vadd.f32 0.0, %v3053
      %v3055 = vpop.f32.mrf.mxu0
      %v3056 = vadd.f32 0.0, %v3055
      %3057 = vmatmul.bf16.gmra.mxu0 %v2785
      %v3058 = vpop.f32.mrf.mxu0
      %v3059 = vadd.f32 0.0, %v3058
      %v3060 = vpop.f32.mrf.mxu0
      %v3061 = vadd.f32 0.0, %v3060
      %3062 = vmatmul.bf16.gmra.mxu0 %v2790
      %v3063 = vpop.f32.mrf.mxu0
      %v3064 = vadd.f32 0.0, %v3063
      %v3065 = vpop.f32.mrf.mxu0
      %v3066 = vadd.f32 0.0, %v3065
      %3067 = vmatmul.bf16.gmra.mxu0 %v2795
      %v3068 = vpop.f32.mrf.mxu0
      %v3069 = vadd.f32 0.0, %v3068
      %v3070 = vpop.f32.mrf.mxu0
      %v3071 = vadd.f32 0.0, %v3070
      %3072 = vdwg.mxu0
      %3073 = vmatpush.bf16.msra.mxu0 %v2975
      %3074 = vmatpush.bf16.msra.mxu0 %v2974
      %3075 = vmatpush.bf16.msra.mxu0 %v2973
      %3076 = vmatpush.bf16.msra.mxu0 %v2972
      %3077 = vmatpush.bf16.msra.mxu0 %v2971
      %3078 = vmatpush.bf16.msra.mxu0 %v2970
      %3079 = vmatpush.bf16.msra.mxu0 %v2969
      %3080 = vmatpush.bf16.msra.mxu0 %v2968
      %3081 = vmatmul.bf16.gmra.mxu0 %v2781
      %v3082 = vpop.f32.mrf.mxu0
      %v3083 = vadd.f32 %v3054, %v3082
      %v3084 = vpop.f32.mrf.mxu0
      %v3085 = vadd.f32 %v3056, %v3084
      %3086 = vmatmul.bf16.gmra.mxu0 %v2786
      %v3087 = vpop.f32.mrf.mxu0
      %v3088 = vadd.f32 %v3059, %v3087
      %v3089 = vpop.f32.mrf.mxu0
      %v3090 = vadd.f32 %v3061, %v3089
      %3091 = vmatmul.bf16.gmra.mxu0 %v2791
      %v3092 = vpop.f32.mrf.mxu0
      %v3093 = vadd.f32 %v3064, %v3092
      %v3094 = vpop.f32.mrf.mxu0
      %v3095 = vadd.f32 %v3066, %v3094
      %3096 = vmatmul.bf16.gmra.mxu0 %v2796
      %v3097 = vpop.f32.mrf.mxu0
      %v3098 = vadd.f32 %v3069, %v3097
      %v3099 = vpop.f32.mrf.mxu0
      %v3100 = vadd.f32 %v3071, %v3099
      %3101 = vdwg.mxu0
      %3102 = vmatpush.bf16.msra.mxu0 %v2983
      %3103 = vmatpush.bf16.msra.mxu0 %v2982
      %3104 = vmatpush.bf16.msra.mxu0 %v2981
      %3105 = vmatpush.bf16.msra.mxu0 %v2980
      %3106 = vmatpush.bf16.msra.mxu0 %v2979
      %3107 = vmatpush.bf16.msra.mxu0 %v2978
      %3108 = vmatpush.bf16.msra.mxu0 %v2977
      %3109 = vmatpush.bf16.msra.mxu0 %v2976
      %3110 = vmatmul.bf16.gmra.mxu0 %v2782
      %v3111 = vpop.f32.mrf.mxu0
      %v3112 = vadd.f32 %v3083, %v3111
      %v3113 = vpop.f32.mrf.mxu0
      %v3114 = vadd.f32 %v3085, %v3113
      %3115 = vmatmul.bf16.gmra.mxu0 %v2787
      %v3116 = vpop.f32.mrf.mxu0
      %v3117 = vadd.f32 %v3088, %v3116
      %v3118 = vpop.f32.mrf.mxu0
      %v3119 = vadd.f32 %v3090, %v3118
      %3120 = vmatmul.bf16.gmra.mxu0 %v2792
      %v3121 = vpop.f32.mrf.mxu0
      %v3122 = vadd.f32 %v3093, %v3121
      %v3123 = vpop.f32.mrf.mxu0
      %v3124 = vadd.f32 %v3095, %v3123
      %3125 = vmatmul.bf16.gmra.mxu0 %v2797
      %v3126 = vpop.f32.mrf.mxu0
      %v3127 = vadd.f32 %v3098, %v3126
      %v3128 = vpop.f32.mrf.mxu0
      %v3129 = vadd.f32 %v3100, %v3128
      %3130 = vdwg.mxu0
      %3131 = vmatpush.bf16.msra.mxu0 %v2991
      %3132 = vmatpush.bf16.msra.mxu0 %v2990
      %3133 = vmatpush.bf16.msra.mxu0 %v2989
      %3134 = vmatpush.bf16.msra.mxu0 %v2988
      %3135 = vmatpush.bf16.msra.mxu0 %v2987
      %3136 = vmatpush.bf16.msra.mxu0 %v2986
      %3137 = vmatpush.bf16.msra.mxu0 %v2985
      %3138 = vmatpush.bf16.msra.mxu0 %v2984
      %3139 = vmatmul.bf16.gmra.mxu0 %v2783
      %v3140 = vpop.f32.mrf.mxu0
      %v3141 = vadd.f32 %v3112, %v3140
      %v3142 = vpop.f32.mrf.mxu0
      %v3143 = vadd.f32 %v3114, %v3142
      %3144 = vmatmul.bf16.gmra.mxu0 %v2788
      %v3145 = vpop.f32.mrf.mxu0
      %v3146 = vadd.f32 %v3117, %v3145
      %v3147 = vpop.f32.mrf.mxu0
      %v3148 = vadd.f32 %v3119, %v3147
      %3149 = vmatmul.bf16.gmra.mxu0 %v2793
      %v3150 = vpop.f32.mrf.mxu0
      %v3151 = vadd.f32 %v3122, %v3150
      %v3152 = vpop.f32.mrf.mxu0
      %v3153 = vadd.f32 %v3124, %v3152
      %3154 = vmatmul.bf16.gmra.mxu0 %v2798
      %v3155 = vpop.f32.mrf.mxu0
      %v3156 = vadd.f32 %v3127, %v3155
      %v3157 = vpop.f32.mrf.mxu0
      %v3158 = vadd.f32 %v3129, %v3157
      %3159 = vdwg.mxu0
      %3160 = vmatpush.bf16.msra.mxu0 0
      %3161 = vmatpush.bf16.msra.mxu0 0
      %3162 = vmatpush.bf16.msra.mxu0 0
      %3163 = vmatpush.bf16.msra.mxu0 0
      %3164 = vmatpush.bf16.msra.mxu0 %v2995
      %3165 = vmatpush.bf16.msra.mxu0 %v2994
      %3166 = vmatpush.bf16.msra.mxu0 %v2993
      %3167 = vmatpush.bf16.msra.mxu0 %v2992
      %3168 = vmatmul.bf16.gmra.mxu0 %v3033
      %v3169 = vpop.f32.mrf.mxu0
      %v3170 = vadd.f32 %v3141, %v3169
      %v3171 = vpop.f32.mrf.mxu0
      %v3172 = vadd.f32 %v3143, %v3171
      %3173 = vmatmul.bf16.gmra.mxu0 %v3036
      %v3174 = vpop.f32.mrf.mxu0
      %v3175 = vadd.f32 %v3146, %v3174
      %v3176 = vpop.f32.mrf.mxu0
      %v3177 = vadd.f32 %v3148, %v3176
      %3178 = vmatmul.bf16.gmra.mxu0 %v3039
      %v3179 = vpop.f32.mrf.mxu0
      %v3180 = vadd.f32 %v3151, %v3179
      %v3181 = vpop.f32.mrf.mxu0
      %v3182 = vadd.f32 %v3153, %v3181
      %3183 = vmatmul.bf16.gmra.mxu0 %v3042
      %v3184 = vpop.f32.mrf.mxu0
      %v3185 = vadd.f32 %v3156, %v3184
      %v3186 = vpop.f32.mrf.mxu0
      %v3187 = vadd.f32 %v3158, %v3186
      %3188 = vdwg.mxu0
      %s3189 = scalar_lea.vmem %s3, 2
      %v3190 = vld [vmem:[%s3189] sm:$0x1]
      %v3192 = vperm.slane %v3190, 0
      %v3194 = vmul.f32 %v3170, %v3192
      %v3195 = vmul.f32 %v3172, %v3192
      %v3196 = vmul.f32 %v3175, %v3192
      %v3197 = vmul.f32 %v3177, %v3192
      %v3198 = vmul.f32 %v3180, %v3192
      %v3199 = vmul.f32 %v3182, %v3192
      %v3200 = vmul.f32 %v3185, %v3192
      %v3201 = vmul.f32 %v3187, %v3192
      %s3202 = scalar_lea.vmem %s4, 2
      %v3203 = vld [vmem:[%s3202] sm:$0x1]
      %v3205 = vperm.slane %v3203, 0
      %v3207 = vadd.f32 %v3194, %v3205
      %v3208 = vadd.f32 %v3195, %v3205
      %v3209 = vadd.f32 %v3196, %v3205
      %v3210 = vadd.f32 %v3197, %v3205
      %v3211 = vadd.f32 %v3198, %v3205
      %v3212 = vadd.f32 %v3199, %v3205
      %v3213 = vadd.f32 %v3200, %v3205
      %v3214 = vadd.f32 %v3201, %v3205
      %v3215 = vadd.f32 %v1287, %v3207
      %v3216 = vadd.f32 %v1288, %v3208
      %v3217 = vadd.f32 %v1289, %v3209
      %v3218 = vadd.f32 %v1290, %v3210
      %v3219 = vadd.f32 %v1291, %v3211
      %v3220 = vadd.f32 %v1292, %v3212
      %v3221 = vadd.f32 %v1293, %v3213
      %v3222 = vadd.f32 %v1294, %v3214
      %vm3223 = vcmp.ge.f32.partialorder %v3215, 0.0
      %vm3224 = vcmp.ge.f32.partialorder %v3216, 0.0
      %vm3225 = vcmp.ge.f32.partialorder %v3217, 0.0
      %vm3226 = vcmp.ge.f32.partialorder %v3218, 0.0
      %vm3227 = vcmp.ge.f32.partialorder %v3219, 0.0
      %vm3228 = vcmp.ge.f32.partialorder %v3220, 0.0
      %vm3229 = vcmp.ge.f32.partialorder %v3221, 0.0
      %vm3230 = vcmp.ge.f32.partialorder %v3222, 0.0
      %v3231 = vmul.f32 %v3215, 0.01
      %v3232 = vmul.f32 %v3216, 0.01
      %v3233 = vmul.f32 %v3217, 0.01
      %v3234 = vmul.f32 %v3218, 0.01
      %v3235 = vmul.f32 %v3219, 0.01
      %v3236 = vmul.f32 %v3220, 0.01
      %v3237 = vmul.f32 %v3221, 0.01
      %v3238 = vmul.f32 %v3222, 0.01
      %v3239 = vsel %vm3223, %v3215, %v3231
      %v3240 = vsel %vm3224, %v3216, %v3232
      %v3241 = vsel %vm3225, %v3217, %v3233
      %v3242 = vsel %vm3226, %v3218, %v3234
      %v3243 = vsel %vm3227, %v3219, %v3235
      %v3244 = vsel %vm3228, %v3220, %v3236
      %v3245 = vsel %vm3229, %v3221, %v3237
      %v3246 = vsel %vm3230, %v3222, %v3238
      %3247 = vst.msk [vmem:[%s321 + $0x1] sm:$0xff] %vm291, %v3239
      %3248 = vst.msk [vmem:[%s321 + $0x11] sm:$0xff] %vm291, %v3240
      %3249 = vst.msk [vmem:[%s321 + $0x21] sm:$0xff] %vm291, %v3241
      %3250 = vst.msk [vmem:[%s321 + $0x31] sm:$0xff] %vm291, %v3242
      %3251 = vst.msk [vmem:[%s321 + $0x41] sm:$0xff] %vm291, %v3243
      %3252 = vst.msk [vmem:[%s321 + $0x51] sm:$0xff] %vm291, %v3244
      %3253 = vst.msk [vmem:[%s321 + $0x61] sm:$0xff] %vm291, %v3245
      %3254 = vst.msk [vmem:[%s321 + $0x71] sm:$0xff] %vm291, %v3246
      %v3255 = vld [vmem:[#allocation2] sm:$0xff]
      %v3256 = vld [vmem:[#allocation2 + $0x10] sm:$0xff]
      %v3257 = vld [vmem:[#allocation2 + $0x20] sm:$0xff]
      %v3258 = vld [vmem:[#allocation2 + $0x30] sm:$0xff]
      %v3259 = vld [vmem:[#allocation2 + $0x40] sm:$0xff]
      %v3260 = vld [vmem:[#allocation2 + $0x50] sm:$0xff]
      %v3261 = vld [vmem:[#allocation2 + $0x60] sm:$0xff]
      %v3262 = vld [vmem:[#allocation2 + $0x70] sm:$0xff]
      %v3263 = vpack.c.bf16 %v3255, %v3255
      %v3264 = vpack.c.bf16 %v3256, %v3256
      %v3265 = vpack.c.bf16 %v3257, %v3257
      %v3266 = vpack.c.bf16 %v3258, %v3258
      %v3267 = vpack.c.bf16 %v3259, %v3259
      %v3268 = vpack.c.bf16 %v3260, %v3260
      %v3269 = vpack.c.bf16 %v3261, %v3261
      %v3270 = vpack.c.bf16 %v3262, %v3262
      %3271 = vst.msk [vmem:[#allocation3] sm:$0xf] %vm347, %v3263
      %3272 = vst.msk [vmem:[#allocation3 + $0x14] sm:$0xf] %vm347, %v3264
      %3273 = vst.msk [vmem:[#allocation3 + $0x28] sm:$0xf] %vm347, %v3265
      %3274 = vst.msk [vmem:[#allocation3 + $0x3c] sm:$0xf] %vm347, %v3266
      %3275 = vst.msk [vmem:[#allocation3 + $0x50] sm:$0xf] %vm347, %v3267
      %3276 = vst.msk [vmem:[#allocation3 + $0x64] sm:$0xf] %vm347, %v3268
      %3277 = vst.msk [vmem:[#allocation3 + $0x78] sm:$0xf] %vm347, %v3269
      %3278 = vst.msk [vmem:[#allocation3 + $0x8c] sm:$0xf] %vm347, %v3270
      %v3279 = vld [vmem:[#allocation2 + $0x1] sm:$0xff]
      %v3280 = vld [vmem:[#allocation2 + $0x11] sm:$0xff]
      %v3281 = vld [vmem:[#allocation2 + $0x21] sm:$0xff]
      %v3282 = vld [vmem:[#allocation2 + $0x31] sm:$0xff]
      %v3283 = vld [vmem:[#allocation2 + $0x41] sm:$0xff]
      %v3284 = vld [vmem:[#allocation2 + $0x51] sm:$0xff]
      %v3285 = vld [vmem:[#allocation2 + $0x61] sm:$0xff]
      %v3286 = vld [vmem:[#allocation2 + $0x71] sm:$0xff]
      %v3287 = vpack.c.bf16 %v3279, %v3279
      %v3288 = vpack.c.bf16 %v3280, %v3280
      %v3289 = vpack.c.bf16 %v3281, %v3281
      %v3290 = vpack.c.bf16 %v3282, %v3282
      %v3291 = vpack.c.bf16 %v3283, %v3283
      %v3292 = vpack.c.bf16 %v3284, %v3284
      %v3293 = vpack.c.bf16 %v3285, %v3285
      %v3294 = vpack.c.bf16 %v3286, %v3286
      %3303 = vrot.lane.b32.xlu0 %v3287, 64
      %v3304 = vpop.permute.xlu0 %3303
      %3305 = vrot.lane.b32.xlu0 %v3288, 64
      %v3306 = vpop.permute.xlu0 %3305
      %3307 = vrot.lane.b32.xlu0 %v3289, 64
      %v3308 = vpop.permute.xlu0 %3307
      %3309 = vrot.lane.b32.xlu0 %v3290, 64
      %v3310 = vpop.permute.xlu0 %3309
      %3311 = vrot.lane.b32.xlu0 %v3291, 64
      %v3312 = vpop.permute.xlu0 %3311
      %3313 = vrot.lane.b32.xlu0 %v3292, 64
      %v3314 = vpop.permute.xlu0 %3313
      %3315 = vrot.lane.b32.xlu0 %v3293, 64
      %v3316 = vpop.permute.xlu0 %3315
      %3317 = vrot.lane.b32.xlu0 %v3294, 64
      %v3318 = vpop.permute.xlu0 %3317
      %3327 = vst.msk [vmem:[#allocation3] sm:$0xf] %vm404, %v3304
      %3328 = vst.msk [vmem:[#allocation3 + $0x14] sm:$0xf] %vm404, %v3306
      %3329 = vst.msk [vmem:[#allocation3 + $0x28] sm:$0xf] %vm404, %v3308
      %3330 = vst.msk [vmem:[#allocation3 + $0x3c] sm:$0xf] %vm404, %v3310
      %3331 = vst.msk [vmem:[#allocation3 + $0x50] sm:$0xf] %vm404, %v3312
      %3332 = vst.msk [vmem:[#allocation3 + $0x64] sm:$0xf] %vm404, %v3314
      %3333 = vst.msk [vmem:[#allocation3 + $0x78] sm:$0xf] %vm404, %v3316
      %3334 = vst.msk [vmem:[#allocation3 + $0x8c] sm:$0xf] %vm404, %v3318
      %v3335 = vld [vmem:[#allocation2 + $0x2] sm:$0xff]
      %v3336 = vld [vmem:[#allocation2 + $0x12] sm:$0xff]
      %v3337 = vld [vmem:[#allocation2 + $0x22] sm:$0xff]
      %v3338 = vld [vmem:[#allocation2 + $0x32] sm:$0xff]
      %v3339 = vld [vmem:[#allocation2 + $0x42] sm:$0xff]
      %v3340 = vld [vmem:[#allocation2 + $0x52] sm:$0xff]
      %v3341 = vld [vmem:[#allocation2 + $0x62] sm:$0xff]
      %v3342 = vld [vmem:[#allocation2 + $0x72] sm:$0xff]
      %v3343 = vpack.c.bf16 %v3335, %v3335
      %v3344 = vpack.c.bf16 %v3336, %v3336
      %v3345 = vpack.c.bf16 %v3337, %v3337
      %v3346 = vpack.c.bf16 %v3338, %v3338
      %v3347 = vpack.c.bf16 %v3339, %v3339
      %v3348 = vpack.c.bf16 %v3340, %v3340
      %v3349 = vpack.c.bf16 %v3341, %v3341
      %v3350 = vpack.c.bf16 %v3342, %v3342
      %3351 = vst.msk [vmem:[#allocation3 + $0x4] sm:$0xf] %vm347, %v3343
      %3352 = vst.msk [vmem:[#allocation3 + $0x18] sm:$0xf] %vm347, %v3344
      %3353 = vst.msk [vmem:[#allocation3 + $0x2c] sm:$0xf] %vm347, %v3345
      %3354 = vst.msk [vmem:[#allocation3 + $0x40] sm:$0xf] %vm347, %v3346
      %3355 = vst.msk [vmem:[#allocation3 + $0x54] sm:$0xf] %vm347, %v3347
      %3356 = vst.msk [vmem:[#allocation3 + $0x68] sm:$0xf] %vm347, %v3348
      %3357 = vst.msk [vmem:[#allocation3 + $0x7c] sm:$0xf] %vm347, %v3349
      %3358 = vst.msk [vmem:[#allocation3 + $0x90] sm:$0xf] %vm347, %v3350
      %v3359 = vld [vmem:[%s321] sm:$0xff]
      %v3360 = vld [vmem:[%s321 + $0x10] sm:$0xff]
      %v3361 = vld [vmem:[%s321 + $0x20] sm:$0xff]
      %v3362 = vld [vmem:[%s321 + $0x30] sm:$0xff]
      %v3363 = vld [vmem:[%s321 + $0x40] sm:$0xff]
      %v3364 = vld [vmem:[%s321 + $0x50] sm:$0xff]
      %v3365 = vld [vmem:[%s321 + $0x60] sm:$0xff]
      %v3366 = vld [vmem:[%s321 + $0x70] sm:$0xff]
      %v3367 = vpack.c.bf16 %v3359, %v3359
      %v3368 = vpack.c.bf16 %v3360, %v3360
      %v3369 = vpack.c.bf16 %v3361, %v3361
      %v3370 = vpack.c.bf16 %v3362, %v3362
      %v3371 = vpack.c.bf16 %v3363, %v3363
      %v3372 = vpack.c.bf16 %v3364, %v3364
      %v3373 = vpack.c.bf16 %v3365, %v3365
      %v3374 = vpack.c.bf16 %v3366, %v3366
      %3383 = vrot.lane.b32.xlu0 %v3367, 64
      %v3384 = vpop.permute.xlu0 %3383
      %3385 = vrot.lane.b32.xlu0 %v3368, 64
      %v3386 = vpop.permute.xlu0 %3385
      %3387 = vrot.lane.b32.xlu0 %v3369, 64
      %v3388 = vpop.permute.xlu0 %3387
      %3389 = vrot.lane.b32.xlu0 %v3370, 64
      %v3390 = vpop.permute.xlu0 %3389
      %3391 = vrot.lane.b32.xlu0 %v3371, 64
      %v3392 = vpop.permute.xlu0 %3391
      %3393 = vrot.lane.b32.xlu0 %v3372, 64
      %v3394 = vpop.permute.xlu0 %3393
      %3395 = vrot.lane.b32.xlu0 %v3373, 64
      %v3396 = vpop.permute.xlu0 %3395
      %3397 = vrot.lane.b32.xlu0 %v3374, 64
      %v3398 = vpop.permute.xlu0 %3397
      %3407 = vst.msk [vmem:[#allocation3 + $0x4] sm:$0xf] %vm404, %v3384
      %3408 = vst.msk [vmem:[#allocation3 + $0x18] sm:$0xf] %vm404, %v3386
      %3409 = vst.msk [vmem:[#allocation3 + $0x2c] sm:$0xf] %vm404, %v3388
      %3410 = vst.msk [vmem:[#allocation3 + $0x40] sm:$0xf] %vm404, %v3390
      %3411 = vst.msk [vmem:[#allocation3 + $0x54] sm:$0xf] %vm404, %v3392
      %3412 = vst.msk [vmem:[#allocation3 + $0x68] sm:$0xf] %vm404, %v3394
      %3413 = vst.msk [vmem:[#allocation3 + $0x7c] sm:$0xf] %vm404, %v3396
      %3414 = vst.msk [vmem:[#allocation3 + $0x90] sm:$0xf] %vm404, %v3398
      %v3415 = vld [vmem:[%s321 + $0x1] sm:$0xff]
      %v3416 = vld [vmem:[%s321 + $0x11] sm:$0xff]
      %v3417 = vld [vmem:[%s321 + $0x21] sm:$0xff]
      %v3418 = vld [vmem:[%s321 + $0x31] sm:$0xff]
      %v3419 = vld [vmem:[%s321 + $0x41] sm:$0xff]
      %v3420 = vld [vmem:[%s321 + $0x51] sm:$0xff]
      %v3421 = vld [vmem:[%s321 + $0x61] sm:$0xff]
      %v3422 = vld [vmem:[%s321 + $0x71] sm:$0xff]
      %v3423 = vpack.c.bf16 %v3415, %v3415
      %v3424 = vpack.c.bf16 %v3416, %v3416
      %v3425 = vpack.c.bf16 %v3417, %v3417
      %v3426 = vpack.c.bf16 %v3418, %v3418
      %v3427 = vpack.c.bf16 %v3419, %v3419
      %v3428 = vpack.c.bf16 %v3420, %v3420
      %v3429 = vpack.c.bf16 %v3421, %v3421
      %v3430 = vpack.c.bf16 %v3422, %v3422
      %3431 = vst.msk [vmem:[#allocation3 + $0x8] sm:$0xf] %vm347, %v3423
      %3432 = vst.msk [vmem:[#allocation3 + $0x1c] sm:$0xf] %vm347, %v3424
      %3433 = vst.msk [vmem:[#allocation3 + $0x30] sm:$0xf] %vm347, %v3425
      %3434 = vst.msk [vmem:[#allocation3 + $0x44] sm:$0xf] %vm347, %v3426
      %3435 = vst.msk [vmem:[#allocation3 + $0x58] sm:$0xf] %vm347, %v3427
      %3436 = vst.msk [vmem:[#allocation3 + $0x6c] sm:$0xf] %vm347, %v3428
      %3437 = vst.msk [vmem:[#allocation3 + $0x80] sm:$0xf] %vm347, %v3429
      %3438 = vst.msk [vmem:[#allocation3 + $0x94] sm:$0xf] %vm347, %v3430
      %v3439 = vld [vmem:[%s321 + $0x2] sm:$0xff]
      %v3440 = vld [vmem:[%s321 + $0x12] sm:$0xff]
      %v3441 = vld [vmem:[%s321 + $0x22] sm:$0xff]
      %v3442 = vld [vmem:[%s321 + $0x32] sm:$0xff]
      %v3443 = vld [vmem:[%s321 + $0x42] sm:$0xff]
      %v3444 = vld [vmem:[%s321 + $0x52] sm:$0xff]
      %v3445 = vld [vmem:[%s321 + $0x62] sm:$0xff]
      %v3446 = vld [vmem:[%s321 + $0x72] sm:$0xff]
      %v3447 = vpack.c.bf16 %v3439, %v3439
      %v3448 = vpack.c.bf16 %v3440, %v3440
      %v3449 = vpack.c.bf16 %v3441, %v3441
      %v3450 = vpack.c.bf16 %v3442, %v3442
      %v3451 = vpack.c.bf16 %v3443, %v3443
      %v3452 = vpack.c.bf16 %v3444, %v3444
      %v3453 = vpack.c.bf16 %v3445, %v3445
      %v3454 = vpack.c.bf16 %v3446, %v3446
      %3463 = vrot.lane.b32.xlu0 %v3447, 64
      %v3464 = vpop.permute.xlu0 %3463
      %3465 = vrot.lane.b32.xlu0 %v3448, 64
      %v3466 = vpop.permute.xlu0 %3465
      %3467 = vrot.lane.b32.xlu0 %v3449, 64
      %v3468 = vpop.permute.xlu0 %3467
      %3469 = vrot.lane.b32.xlu0 %v3450, 64
      %v3470 = vpop.permute.xlu0 %3469
      %3471 = vrot.lane.b32.xlu0 %v3451, 64
      %v3472 = vpop.permute.xlu0 %3471
      %3473 = vrot.lane.b32.xlu0 %v3452, 64
      %v3474 = vpop.permute.xlu0 %3473
      %3475 = vrot.lane.b32.xlu0 %v3453, 64
      %v3476 = vpop.permute.xlu0 %3475
      %3477 = vrot.lane.b32.xlu0 %v3454, 64
      %v3478 = vpop.permute.xlu0 %3477
      %3487 = vst.msk [vmem:[#allocation3 + $0x8] sm:$0xf] %vm404, %v3464
      %3488 = vst.msk [vmem:[#allocation3 + $0x1c] sm:$0xf] %vm404, %v3466
      %3489 = vst.msk [vmem:[#allocation3 + $0x30] sm:$0xf] %vm404, %v3468
      %3490 = vst.msk [vmem:[#allocation3 + $0x44] sm:$0xf] %vm404, %v3470
      %3491 = vst.msk [vmem:[#allocation3 + $0x58] sm:$0xf] %vm404, %v3472
      %3492 = vst.msk [vmem:[#allocation3 + $0x6c] sm:$0xf] %vm404, %v3474
      %3493 = vst.msk [vmem:[#allocation3 + $0x80] sm:$0xf] %vm404, %v3476
      %3494 = vst.msk [vmem:[#allocation3 + $0x94] sm:$0xf] %vm404, %v3478
      %v3495 = vld [vmem:[%s573] sm:$0xff]
      %v3496 = vld [vmem:[%s573 + $0x10] sm:$0xff]
      %v3497 = vld [vmem:[%s573 + $0x20] sm:$0xff]
      %v3498 = vld [vmem:[%s573 + $0x30] sm:$0xff]
      %v3499 = vld [vmem:[%s573 + $0x40] sm:$0xff]
      %v3500 = vld [vmem:[%s573 + $0x50] sm:$0xff]
      %v3501 = vld [vmem:[%s573 + $0x60] sm:$0xff]
      %v3502 = vld [vmem:[%s573 + $0x70] sm:$0xff]
      %v3503 = vpack.c.bf16 %v3495, %v3495
      %v3504 = vpack.c.bf16 %v3496, %v3496
      %v3505 = vpack.c.bf16 %v3497, %v3497
      %v3506 = vpack.c.bf16 %v3498, %v3498
      %v3507 = vpack.c.bf16 %v3499, %v3499
      %v3508 = vpack.c.bf16 %v3500, %v3500
      %v3509 = vpack.c.bf16 %v3501, %v3501
      %v3510 = vpack.c.bf16 %v3502, %v3502
      %3511 = vst.msk [vmem:[#allocation3 + $0xc] sm:$0xf] %vm347, %v3503
      %3512 = vst.msk [vmem:[#allocation3 + $0x20] sm:$0xf] %vm347, %v3504
      %3513 = vst.msk [vmem:[#allocation3 + $0x34] sm:$0xf] %vm347, %v3505
      %3514 = vst.msk [vmem:[#allocation3 + $0x48] sm:$0xf] %vm347, %v3506
      %3515 = vst.msk [vmem:[#allocation3 + $0x5c] sm:$0xf] %vm347, %v3507
      %3516 = vst.msk [vmem:[#allocation3 + $0x70] sm:$0xf] %vm347, %v3508
      %3517 = vst.msk [vmem:[#allocation3 + $0x84] sm:$0xf] %vm347, %v3509
      %3518 = vst.msk [vmem:[#allocation3 + $0x98] sm:$0xf] %vm347, %v3510
      %v3519 = vld [vmem:[%s573 + $0x1] sm:$0xff]
      %v3520 = vld [vmem:[%s573 + $0x11] sm:$0xff]
      %v3521 = vld [vmem:[%s573 + $0x21] sm:$0xff]
      %v3522 = vld [vmem:[%s573 + $0x31] sm:$0xff]
      %v3523 = vld [vmem:[%s573 + $0x41] sm:$0xff]
      %v3524 = vld [vmem:[%s573 + $0x51] sm:$0xff]
      %v3525 = vld [vmem:[%s573 + $0x61] sm:$0xff]
      %v3526 = vld [vmem:[%s573 + $0x71] sm:$0xff]
      %v3527 = vpack.c.bf16 %v3519, %v3519
      %v3528 = vpack.c.bf16 %v3520, %v3520
      %v3529 = vpack.c.bf16 %v3521, %v3521
      %v3530 = vpack.c.bf16 %v3522, %v3522
      %v3531 = vpack.c.bf16 %v3523, %v3523
      %v3532 = vpack.c.bf16 %v3524, %v3524
      %v3533 = vpack.c.bf16 %v3525, %v3525
      %v3534 = vpack.c.bf16 %v3526, %v3526
      %3543 = vrot.lane.b32.xlu0 %v3527, 64
      %v3544 = vpop.permute.xlu0 %3543
      %3545 = vrot.lane.b32.xlu0 %v3528, 64
      %v3546 = vpop.permute.xlu0 %3545
      %3547 = vrot.lane.b32.xlu0 %v3529, 64
      %v3548 = vpop.permute.xlu0 %3547
      %3549 = vrot.lane.b32.xlu0 %v3530, 64
      %v3550 = vpop.permute.xlu0 %3549
      %3551 = vrot.lane.b32.xlu0 %v3531, 64
      %v3552 = vpop.permute.xlu0 %3551
      %3553 = vrot.lane.b32.xlu0 %v3532, 64
      %v3554 = vpop.permute.xlu0 %3553
      %3555 = vrot.lane.b32.xlu0 %v3533, 64
      %v3556 = vpop.permute.xlu0 %3555
      %3557 = vrot.lane.b32.xlu0 %v3534, 64
      %v3558 = vpop.permute.xlu0 %3557
      %3567 = vst.msk [vmem:[#allocation3 + $0xc] sm:$0xf] %vm404, %v3544
      %3568 = vst.msk [vmem:[#allocation3 + $0x20] sm:$0xf] %vm404, %v3546
      %3569 = vst.msk [vmem:[#allocation3 + $0x34] sm:$0xf] %vm404, %v3548
      %3570 = vst.msk [vmem:[#allocation3 + $0x48] sm:$0xf] %vm404, %v3550
      %3571 = vst.msk [vmem:[#allocation3 + $0x5c] sm:$0xf] %vm404, %v3552
      %3572 = vst.msk [vmem:[#allocation3 + $0x70] sm:$0xf] %vm404, %v3554
      %3573 = vst.msk [vmem:[#allocation3 + $0x84] sm:$0xf] %vm404, %v3556
      %3574 = vst.msk [vmem:[#allocation3 + $0x98] sm:$0xf] %vm404, %v3558
      %v3575 = vld [vmem:[%s573 + $0x2] sm:$0xff]
      %v3576 = vld [vmem:[%s573 + $0x12] sm:$0xff]
      %v3577 = vld [vmem:[%s573 + $0x22] sm:$0xff]
      %v3578 = vld [vmem:[%s573 + $0x32] sm:$0xff]
      %v3579 = vld [vmem:[%s573 + $0x42] sm:$0xff]
      %v3580 = vld [vmem:[%s573 + $0x52] sm:$0xff]
      %v3581 = vld [vmem:[%s573 + $0x62] sm:$0xff]
      %v3582 = vld [vmem:[%s573 + $0x72] sm:$0xff]
      %v3583 = vpack.c.bf16 %v3575, %v3575
      %v3584 = vpack.c.bf16 %v3576, %v3576
      %v3585 = vpack.c.bf16 %v3577, %v3577
      %v3586 = vpack.c.bf16 %v3578, %v3578
      %v3587 = vpack.c.bf16 %v3579, %v3579
      %v3588 = vpack.c.bf16 %v3580, %v3580
      %v3589 = vpack.c.bf16 %v3581, %v3581
      %v3590 = vpack.c.bf16 %v3582, %v3582
      %3591 = vst.msk [vmem:[#allocation3 + $0x10] sm:$0xf] %vm347, %v3583
      %3592 = vst.msk [vmem:[#allocation3 + $0x24] sm:$0xf] %vm347, %v3584
      %3593 = vst.msk [vmem:[#allocation3 + $0x38] sm:$0xf] %vm347, %v3585
      %3594 = vst.msk [vmem:[#allocation3 + $0x4c] sm:$0xf] %vm347, %v3586
      %3595 = vst.msk [vmem:[#allocation3 + $0x60] sm:$0xf] %vm347, %v3587
      %3596 = vst.msk [vmem:[#allocation3 + $0x74] sm:$0xf] %vm347, %v3588
      %3597 = vst.msk [vmem:[#allocation3 + $0x88] sm:$0xf] %vm347, %v3589
      %3598 = vst.msk [vmem:[#allocation3 + $0x9c] sm:$0xf] %vm347, %v3590
      %v3599 = vld [vmem:[#allocation3] sm:$0xff]
      %v3600 = vld [vmem:[#allocation3 + $0x8] sm:$0xff]
      %v3601 = vld [vmem:[#allocation3 + $0x10] sm:$0xf]
      %v3602 = vld [vmem:[#allocation3 + $0x14] sm:$0xff]
      %v3603 = vld [vmem:[#allocation3 + $0x1c] sm:$0xff]
      %v3604 = vld [vmem:[#allocation3 + $0x24] sm:$0xf]
      %v3605 = vld [vmem:[#allocation3 + $0x28] sm:$0xff]
      %v3606 = vld [vmem:[#allocation3 + $0x30] sm:$0xff]
      %v3607 = vld [vmem:[#allocation3 + $0x38] sm:$0xf]
      %v3608 = vld [vmem:[#allocation3 + $0x3c] sm:$0xff]
      %v3609 = vld [vmem:[#allocation3 + $0x44] sm:$0xff]
      %v3610 = vld [vmem:[#allocation3 + $0x4c] sm:$0xf]
      %v3611 = vld [vmem:[#allocation3 + $0x50] sm:$0xff]
      %v3612 = vld [vmem:[#allocation3 + $0x58] sm:$0xff]
      %v3613 = vld [vmem:[#allocation3 + $0x60] sm:$0xf]
      %v3614 = vld [vmem:[#allocation3 + $0x64] sm:$0xff]
      %v3615 = vld [vmem:[#allocation3 + $0x6c] sm:$0xff]
      %v3616 = vld [vmem:[#allocation3 + $0x74] sm:$0xf]
      %v3617 = vld [vmem:[#allocation3 + $0x78] sm:$0xff]
      %v3618 = vld [vmem:[#allocation3 + $0x80] sm:$0xff]
      %v3619 = vld [vmem:[#allocation3 + $0x88] sm:$0xf]
      %v3620 = vld [vmem:[#allocation3 + $0x8c] sm:$0xff]
      %v3621 = vld [vmem:[#allocation3 + $0x94] sm:$0xff]
      %v3622 = vld [vmem:[#allocation3 + $0x9c] sm:$0xf]
      %s3623 = scalar_lea.vmem %s2, 864
      %v3624 = vld [vmem:[%s3623] sm:$0xf]
      %v3625 = vld [vmem:[%s3623 + $0x4] sm:$0xf]
      %v3626 = vld [vmem:[%s3623 + $0x8] sm:$0xf]
      %v3627 = vld [vmem:[%s3623 + $0xc] sm:$0xf]
      %v3628 = vld [vmem:[%s3623 + $0x10] sm:$0xf]
      %v3629 = vld [vmem:[%s3623 + $0x14] sm:$0xf]
      %v3630 = vld [vmem:[%s3623 + $0x18] sm:$0xf]
      %v3631 = vld [vmem:[%s3623 + $0x1c] sm:$0xf]
      %v3632 = vld [vmem:[%s3623 + $0x20] sm:$0xf]
      %v3633 = vld [vmem:[%s3623 + $0x24] sm:$0xf]
      %v3634 = vld [vmem:[%s3623 + $0x28] sm:$0xf]
      %v3635 = vld [vmem:[%s3623 + $0x2c] sm:$0xf]
      %v3636 = vld [vmem:[%s3623 + $0x30] sm:$0xf]
      %v3637 = vld [vmem:[%s3623 + $0x34] sm:$0xf]
      %v3638 = vld [vmem:[%s3623 + $0x38] sm:$0xf]
      %v3639 = vld [vmem:[%s3623 + $0x3c] sm:$0xf]
      %v3640 = vld [vmem:[%s3623 + $0x40] sm:$0xf]
      %v3641 = vld [vmem:[%s3623 + $0x44] sm:$0xf]
      %v3642 = vld [vmem:[%s3623 + $0x48] sm:$0xf]
      %v3643 = vld [vmem:[%s3623 + $0x4c] sm:$0xf]
      %v3644 = vld [vmem:[%s3623 + $0x50] sm:$0xf]
      %v3645 = vld [vmem:[%s3623 + $0x54] sm:$0xf]
      %v3646 = vld [vmem:[%s3623 + $0x58] sm:$0xf]
      %v3647 = vld [vmem:[%s3623 + $0x5c] sm:$0xf]
      %v3648 = vld [vmem:[%s3623 + $0x60] sm:$0xf]
      %v3649 = vld [vmem:[%s3623 + $0x64] sm:$0xf]
      %v3650 = vld [vmem:[%s3623 + $0x68] sm:$0xf]
      %v3651 = vld [vmem:[%s3623 + $0x6c] sm:$0xf]
      %v3652 = vld [vmem:[%s3623 + $0x70] sm:$0xf]
      %v3653 = vld [vmem:[%s3623 + $0x74] sm:$0xf]
      %v3654 = vld [vmem:[%s3623 + $0x78] sm:$0xf]
      %v3655 = vld [vmem:[%s3623 + $0x7c] sm:$0xf]
      %v3656 = vld [vmem:[%s3623 + $0x80] sm:$0xf]
      %v3657 = vld [vmem:[%s3623 + $0x84] sm:$0xf]
      %v3658 = vld [vmem:[%s3623 + $0x88] sm:$0xf]
      %v3659 = vld [vmem:[%s3623 + $0x8c] sm:$0xf]
      %v3660 = vld [vmem:[%s3623 + $0x90] sm:$0xf]
      %v3661 = vld [vmem:[%s3623 + $0x94] sm:$0xf]
      %v3662 = vld [vmem:[%s3623 + $0x98] sm:$0xf]
      %v3663 = vld [vmem:[%s3623 + $0x9c] sm:$0xf]
      %v3664 = vld [vmem:[%s3623 + $0xa0] sm:$0xf]
      %v3665 = vld [vmem:[%s3623 + $0xa4] sm:$0xf]
      %v3666 = vld [vmem:[%s3623 + $0xa8] sm:$0xf]
      %v3667 = vld [vmem:[%s3623 + $0xac] sm:$0xf]
      %v3668 = vld [vmem:[%s3623 + $0xb0] sm:$0xf]
      %v3669 = vld [vmem:[%s3623 + $0xb4] sm:$0xf]
      %v3670 = vld [vmem:[%s3623 + $0xb8] sm:$0xf]
      %v3671 = vld [vmem:[%s3623 + $0xbc] sm:$0xf]
      %v3672 = vld [vmem:[%s3623 + $0xc0] sm:$0xf]
      %v3673 = vld [vmem:[%s3623 + $0xc4] sm:$0xf]
      %v3674 = vld [vmem:[%s3623 + $0xc8] sm:$0xf]
      %v3675 = vld [vmem:[%s3623 + $0xcc] sm:$0xf]
      %v3676 = vld [vmem:[%s3623 + $0xd0] sm:$0xf]
      %v3677 = vld [vmem:[%s3623 + $0xd4] sm:$0xf]
      %v3678 = vld [vmem:[%s3623 + $0xd8] sm:$0xf]
      %v3679 = vld [vmem:[%s3623 + $0xdc] sm:$0xf]
      %v3680 = vld [vmem:[%s3623 + $0xe0] sm:$0xf]
      %v3681 = vld [vmem:[%s3623 + $0xe4] sm:$0xf]
      %v3682 = vld [vmem:[%s3623 + $0xe8] sm:$0xf]
      %v3683 = vld [vmem:[%s3623 + $0xec] sm:$0xf]
      %v3684 = vld [vmem:[%s3623 + $0xf0] sm:$0xf]
      %v3685 = vld [vmem:[%s3623 + $0xf4] sm:$0xf]
      %v3686 = vld [vmem:[%s3623 + $0xf8] sm:$0xf]
      %v3687 = vld [vmem:[%s3623 + $0xfc] sm:$0xf]
      %v3688 = vld [vmem:[%s3623 + $0x100] sm:$0xf]
      %v3689 = vld [vmem:[%s3623 + $0x104] sm:$0xf]
      %v3690 = vld [vmem:[%s3623 + $0x108] sm:$0xf]
      %v3691 = vld [vmem:[%s3623 + $0x10c] sm:$0xf]
      %v3692 = vld [vmem:[%s3623 + $0x110] sm:$0xf]
      %v3693 = vld [vmem:[%s3623 + $0x114] sm:$0xf]
      %v3694 = vld [vmem:[%s3623 + $0x118] sm:$0xf]
      %v3695 = vld [vmem:[%s3623 + $0x11c] sm:$0xf]
      %v3720 = vunpack.c.l.b16 %v3599
      %v3721 = vunpack.c.h.b16 %v3599
      %v3722 = vunpack.c.l.b16 %v3600
      %v3723 = vunpack.c.h.b16 %v3600
      %v3724 = vunpack.c.l.b16 %v3601
      %v3725 = vunpack.c.l.b16 %v3602
      %v3726 = vunpack.c.h.b16 %v3602
      %v3727 = vunpack.c.l.b16 %v3603
      %v3728 = vunpack.c.h.b16 %v3603
      %v3729 = vunpack.c.l.b16 %v3604
      %v3730 = vunpack.c.l.b16 %v3605
      %v3731 = vunpack.c.h.b16 %v3605
      %v3732 = vunpack.c.l.b16 %v3606
      %v3733 = vunpack.c.h.b16 %v3606
      %v3734 = vunpack.c.l.b16 %v3607
      %v3735 = vunpack.c.l.b16 %v3608
      %v3736 = vunpack.c.h.b16 %v3608
      %v3737 = vunpack.c.l.b16 %v3609
      %v3738 = vunpack.c.h.b16 %v3609
      %v3739 = vunpack.c.l.b16 %v3610
      %v3740 = vunpack.c.l.b16 %v3611
      %v3741 = vunpack.c.h.b16 %v3611
      %v3742 = vunpack.c.l.b16 %v3612
      %v3743 = vunpack.c.h.b16 %v3612
      %v3744 = vunpack.c.l.b16 %v3613
      %v3745 = vunpack.c.l.b16 %v3614
      %v3746 = vunpack.c.h.b16 %v3614
      %v3747 = vunpack.c.l.b16 %v3615
      %v3748 = vunpack.c.h.b16 %v3615
      %v3749 = vunpack.c.l.b16 %v3616
      %v3750 = vunpack.c.l.b16 %v3617
      %v3751 = vunpack.c.h.b16 %v3617
      %v3752 = vunpack.c.l.b16 %v3618
      %v3753 = vunpack.c.h.b16 %v3618
      %v3754 = vunpack.c.l.b16 %v3619
      %v3755 = vunpack.c.l.b16 %v3620
      %v3756 = vunpack.c.h.b16 %v3620
      %v3757 = vunpack.c.l.b16 %v3621
      %v3758 = vunpack.c.h.b16 %v3621
      %v3759 = vunpack.c.l.b16 %v3622
      %v3760 = vpack.c.b16 %v3725, %v3720
      %v3761 = vpack.c.b16 %v3726, %v3721
      %v3762 = vpack.c.b16 %v3727, %v3722
      %v3763 = vpack.c.b16 %v3728, %v3723
      %v3764 = vpack.c.b16 %v3729, %v3724
      %v3765 = vpack.c.b16 %v3735, %v3730
      %v3766 = vpack.c.b16 %v3736, %v3731
      %v3767 = vpack.c.b16 %v3737, %v3732
      %v3768 = vpack.c.b16 %v3738, %v3733
      %v3769 = vpack.c.b16 %v3739, %v3734
      %v3770 = vpack.c.b16 %v3745, %v3740
      %v3771 = vpack.c.b16 %v3746, %v3741
      %v3772 = vpack.c.b16 %v3747, %v3742
      %v3773 = vpack.c.b16 %v3748, %v3743
      %v3774 = vpack.c.b16 %v3749, %v3744
      %v3775 = vpack.c.b16 %v3755, %v3750
      %v3776 = vpack.c.b16 %v3756, %v3751
      %v3777 = vpack.c.b16 %v3757, %v3752
      %v3778 = vpack.c.b16 %v3758, %v3753
      %v3779 = vpack.c.b16 %v3759, %v3754
      %v3868 = vunpack.c.l.b16 %v3624
      %v3869 = vunpack.c.l.b16 %v3625
      %v3870 = vunpack.c.l.b16 %v3626
      %v3871 = vunpack.c.l.b16 %v3627
      %v3872 = vunpack.c.l.b16 %v3628
      %v3873 = vunpack.c.l.b16 %v3629
      %v3874 = vunpack.c.l.b16 %v3630
      %v3875 = vunpack.c.l.b16 %v3631
      %v3876 = vunpack.c.l.b16 %v3632
      %v3877 = vunpack.c.l.b16 %v3633
      %v3878 = vunpack.c.l.b16 %v3634
      %v3879 = vunpack.c.l.b16 %v3635
      %v3880 = vunpack.c.l.b16 %v3636
      %v3881 = vunpack.c.l.b16 %v3637
      %v3882 = vunpack.c.l.b16 %v3638
      %v3883 = vunpack.c.l.b16 %v3639
      %v3884 = vunpack.c.l.b16 %v3640
      %v3885 = vunpack.c.l.b16 %v3641
      %v3886 = vunpack.c.l.b16 %v3642
      %v3887 = vunpack.c.l.b16 %v3643
      %v3888 = vunpack.c.l.b16 %v3644
      %v3889 = vunpack.c.l.b16 %v3645
      %v3890 = vunpack.c.l.b16 %v3646
      %v3891 = vunpack.c.l.b16 %v3647
      %v3892 = vunpack.c.l.b16 %v3648
      %v3893 = vunpack.c.l.b16 %v3649
      %v3894 = vunpack.c.l.b16 %v3650
      %v3895 = vunpack.c.l.b16 %v3651
      %v3896 = vunpack.c.l.b16 %v3652
      %v3897 = vunpack.c.l.b16 %v3653
      %v3898 = vunpack.c.l.b16 %v3654
      %v3899 = vunpack.c.l.b16 %v3655
      %v3900 = vunpack.c.l.b16 %v3656
      %v3901 = vunpack.c.l.b16 %v3657
      %v3902 = vunpack.c.l.b16 %v3658
      %v3903 = vunpack.c.l.b16 %v3659
      %v3904 = vunpack.c.l.b16 %v3660
      %v3905 = vunpack.c.l.b16 %v3661
      %v3906 = vunpack.c.l.b16 %v3662
      %v3907 = vunpack.c.l.b16 %v3663
      %v3908 = vunpack.c.l.b16 %v3664
      %v3909 = vunpack.c.l.b16 %v3665
      %v3910 = vunpack.c.l.b16 %v3666
      %v3911 = vunpack.c.l.b16 %v3667
      %v3912 = vunpack.c.l.b16 %v3668
      %v3913 = vunpack.c.l.b16 %v3669
      %v3914 = vunpack.c.l.b16 %v3670
      %v3915 = vunpack.c.l.b16 %v3671
      %v3916 = vunpack.c.l.b16 %v3672
      %v3917 = vunpack.c.l.b16 %v3673
      %v3918 = vunpack.c.l.b16 %v3674
      %v3919 = vunpack.c.l.b16 %v3675
      %v3920 = vunpack.c.l.b16 %v3676
      %v3921 = vunpack.c.l.b16 %v3677
      %v3922 = vunpack.c.l.b16 %v3678
      %v3923 = vunpack.c.l.b16 %v3679
      %v3924 = vunpack.c.l.b16 %v3680
      %v3925 = vunpack.c.l.b16 %v3681
      %v3926 = vunpack.c.l.b16 %v3682
      %v3927 = vunpack.c.l.b16 %v3683
      %v3928 = vunpack.c.l.b16 %v3684
      %v3929 = vunpack.c.l.b16 %v3685
      %v3930 = vunpack.c.l.b16 %v3686
      %v3931 = vunpack.c.l.b16 %v3687
      %v3932 = vunpack.c.l.b16 %v3688
      %v3933 = vunpack.c.l.b16 %v3689
      %v3934 = vunpack.c.l.b16 %v3690
      %v3935 = vunpack.c.l.b16 %v3691
      %v3936 = vunpack.c.l.b16 %v3692
      %v3937 = vunpack.c.l.b16 %v3693
      %v3938 = vunpack.c.l.b16 %v3694
      %v3939 = vunpack.c.l.b16 %v3695
      %v3940 = vpack.c.b16 %v3869, %v3868
      %v3941 = vpack.c.b16 %v3871, %v3870
      %v3942 = vpack.c.b16 %v3873, %v3872
      %v3943 = vpack.c.b16 %v3875, %v3874
      %v3944 = vpack.c.b16 %v3877, %v3876
      %v3945 = vpack.c.b16 %v3879, %v3878
      %v3946 = vpack.c.b16 %v3881, %v3880
      %v3947 = vpack.c.b16 %v3883, %v3882
      %v3948 = vpack.c.b16 %v3885, %v3884
      %v3949 = vpack.c.b16 %v3887, %v3886
      %v3950 = vpack.c.b16 %v3889, %v3888
      %v3951 = vpack.c.b16 %v3891, %v3890
      %v3952 = vpack.c.b16 %v3893, %v3892
      %v3953 = vpack.c.b16 %v3895, %v3894
      %v3954 = vpack.c.b16 %v3897, %v3896
      %v3955 = vpack.c.b16 %v3899, %v3898
      %v3956 = vpack.c.b16 %v3901, %v3900
      %v3957 = vpack.c.b16 %v3903, %v3902
      %v3958 = vpack.c.b16 %v3905, %v3904
      %v3959 = vpack.c.b16 %v3907, %v3906
      %v3960 = vpack.c.b16 %v3909, %v3908
      %v3961 = vpack.c.b16 %v3911, %v3910
      %v3962 = vpack.c.b16 %v3913, %v3912
      %v3963 = vpack.c.b16 %v3915, %v3914
      %v3964 = vpack.c.b16 %v3917, %v3916
      %v3965 = vpack.c.b16 %v3919, %v3918
      %v3966 = vpack.c.b16 %v3921, %v3920
      %v3967 = vpack.c.b16 %v3923, %v3922
      %v3968 = vpack.c.b16 %v3925, %v3924
      %v3969 = vpack.c.b16 %v3927, %v3926
      %v3970 = vpack.c.b16 %v3929, %v3928
      %v3971 = vpack.c.b16 %v3931, %v3930
      %v3972 = vpack.c.b16 %v3933, %v3932
      %v3973 = vpack.c.b16 %v3935, %v3934
      %v3974 = vpack.c.b16 %v3937, %v3936
      %v3975 = vpack.c.b16 %v3939, %v3938
      %v4013 = vsel %vm291, %v3764, 0
      %v4016 = vsel %vm291, %v3769, 0
      %v4019 = vsel %vm291, %v3774, 0
      %v4022 = vsel %vm291, %v3779, 0
      %4024 = vmatpush.bf16.msra.mxu0 %v3947
      %4025 = vmatpush.bf16.msra.mxu0 %v3946
      %4026 = vmatpush.bf16.msra.mxu0 %v3945
      %4027 = vmatpush.bf16.msra.mxu0 %v3944
      %4028 = vmatpush.bf16.msra.mxu0 %v3943
      %4029 = vmatpush.bf16.msra.mxu0 %v3942
      %4030 = vmatpush.bf16.msra.mxu0 %v3941
      %4031 = vmatpush.bf16.msra.mxu0 %v3940
      %4032 = vmatmul.bf16.gmra.mxu0 %v3760
      %v4033 = vpop.f32.mrf.mxu0
      %v4034 = vadd.f32 0.0, %v4033
      %v4035 = vpop.f32.mrf.mxu0
      %v4036 = vadd.f32 0.0, %v4035
      %4037 = vmatmul.bf16.gmra.mxu0 %v3765
      %v4038 = vpop.f32.mrf.mxu0
      %v4039 = vadd.f32 0.0, %v4038
      %v4040 = vpop.f32.mrf.mxu0
      %v4041 = vadd.f32 0.0, %v4040
      %4042 = vmatmul.bf16.gmra.mxu0 %v3770
      %v4043 = vpop.f32.mrf.mxu0
      %v4044 = vadd.f32 0.0, %v4043
      %v4045 = vpop.f32.mrf.mxu0
      %v4046 = vadd.f32 0.0, %v4045
      %4047 = vmatmul.bf16.gmra.mxu0 %v3775
      %v4048 = vpop.f32.mrf.mxu0
      %v4049 = vadd.f32 0.0, %v4048
      %v4050 = vpop.f32.mrf.mxu0
      %v4051 = vadd.f32 0.0, %v4050
      %4052 = vdwg.mxu0
      %4053 = vmatpush.bf16.msra.mxu0 %v3955
      %4054 = vmatpush.bf16.msra.mxu0 %v3954
      %4055 = vmatpush.bf16.msra.mxu0 %v3953
      %4056 = vmatpush.bf16.msra.mxu0 %v3952
      %4057 = vmatpush.bf16.msra.mxu0 %v3951
      %4058 = vmatpush.bf16.msra.mxu0 %v3950
      %4059 = vmatpush.bf16.msra.mxu0 %v3949
      %4060 = vmatpush.bf16.msra.mxu0 %v3948
      %4061 = vmatmul.bf16.gmra.mxu0 %v3761
      %v4062 = vpop.f32.mrf.mxu0
      %v4063 = vadd.f32 %v4034, %v4062
      %v4064 = vpop.f32.mrf.mxu0
      %v4065 = vadd.f32 %v4036, %v4064
      %4066 = vmatmul.bf16.gmra.mxu0 %v3766
      %v4067 = vpop.f32.mrf.mxu0
      %v4068 = vadd.f32 %v4039, %v4067
      %v4069 = vpop.f32.mrf.mxu0
      %v4070 = vadd.f32 %v4041, %v4069
      %4071 = vmatmul.bf16.gmra.mxu0 %v3771
      %v4072 = vpop.f32.mrf.mxu0
      %v4073 = vadd.f32 %v4044, %v4072
      %v4074 = vpop.f32.mrf.mxu0
      %v4075 = vadd.f32 %v4046, %v4074
      %4076 = vmatmul.bf16.gmra.mxu0 %v3776
      %v4077 = vpop.f32.mrf.mxu0
      %v4078 = vadd.f32 %v4049, %v4077
      %v4079 = vpop.f32.mrf.mxu0
      %v4080 = vadd.f32 %v4051, %v4079
      %4081 = vdwg.mxu0
      %4082 = vmatpush.bf16.msra.mxu0 %v3963
      %4083 = vmatpush.bf16.msra.mxu0 %v3962
      %4084 = vmatpush.bf16.msra.mxu0 %v3961
      %4085 = vmatpush.bf16.msra.mxu0 %v3960
      %4086 = vmatpush.bf16.msra.mxu0 %v3959
      %4087 = vmatpush.bf16.msra.mxu0 %v3958
      %4088 = vmatpush.bf16.msra.mxu0 %v3957
      %4089 = vmatpush.bf16.msra.mxu0 %v3956
      %4090 = vmatmul.bf16.gmra.mxu0 %v3762
      %v4091 = vpop.f32.mrf.mxu0
      %v4092 = vadd.f32 %v4063, %v4091
      %v4093 = vpop.f32.mrf.mxu0
      %v4094 = vadd.f32 %v4065, %v4093
      %4095 = vmatmul.bf16.gmra.mxu0 %v3767
      %v4096 = vpop.f32.mrf.mxu0
      %v4097 = vadd.f32 %v4068, %v4096
      %v4098 = vpop.f32.mrf.mxu0
      %v4099 = vadd.f32 %v4070, %v4098
      %4100 = vmatmul.bf16.gmra.mxu0 %v3772
      %v4101 = vpop.f32.mrf.mxu0
      %v4102 = vadd.f32 %v4073, %v4101
      %v4103 = vpop.f32.mrf.mxu0
      %v4104 = vadd.f32 %v4075, %v4103
      %4105 = vmatmul.bf16.gmra.mxu0 %v3777
      %v4106 = vpop.f32.mrf.mxu0
      %v4107 = vadd.f32 %v4078, %v4106
      %v4108 = vpop.f32.mrf.mxu0
      %v4109 = vadd.f32 %v4080, %v4108
      %4110 = vdwg.mxu0
      %4111 = vmatpush.bf16.msra.mxu0 %v3971
      %4112 = vmatpush.bf16.msra.mxu0 %v3970
      %4113 = vmatpush.bf16.msra.mxu0 %v3969
      %4114 = vmatpush.bf16.msra.mxu0 %v3968
      %4115 = vmatpush.bf16.msra.mxu0 %v3967
      %4116 = vmatpush.bf16.msra.mxu0 %v3966
      %4117 = vmatpush.bf16.msra.mxu0 %v3965
      %4118 = vmatpush.bf16.msra.mxu0 %v3964
      %4119 = vmatmul.bf16.gmra.mxu0 %v3763
      %v4120 = vpop.f32.mrf.mxu0
      %v4121 = vadd.f32 %v4092, %v4120
      %v4122 = vpop.f32.mrf.mxu0
      %v4123 = vadd.f32 %v4094, %v4122
      %4124 = vmatmul.bf16.gmra.mxu0 %v3768
      %v4125 = vpop.f32.mrf.mxu0
      %v4126 = vadd.f32 %v4097, %v4125
      %v4127 = vpop.f32.mrf.mxu0
      %v4128 = vadd.f32 %v4099, %v4127
      %4129 = vmatmul.bf16.gmra.mxu0 %v3773
      %v4130 = vpop.f32.mrf.mxu0
      %v4131 = vadd.f32 %v4102, %v4130
      %v4132 = vpop.f32.mrf.mxu0
      %v4133 = vadd.f32 %v4104, %v4132
      %4134 = vmatmul.bf16.gmra.mxu0 %v3778
      %v4135 = vpop.f32.mrf.mxu0
      %v4136 = vadd.f32 %v4107, %v4135
      %v4137 = vpop.f32.mrf.mxu0
      %v4138 = vadd.f32 %v4109, %v4137
      %4139 = vdwg.mxu0
      %4140 = vmatpush.bf16.msra.mxu0 0
      %4141 = vmatpush.bf16.msra.mxu0 0
      %4142 = vmatpush.bf16.msra.mxu0 0
      %4143 = vmatpush.bf16.msra.mxu0 0
      %4144 = vmatpush.bf16.msra.mxu0 %v3975
      %4145 = vmatpush.bf16.msra.mxu0 %v3974
      %4146 = vmatpush.bf16.msra.mxu0 %v3973
      %4147 = vmatpush.bf16.msra.mxu0 %v3972
      %4148 = vmatmul.bf16.gmra.mxu0 %v4013
      %v4149 = vpop.f32.mrf.mxu0
      %v4150 = vadd.f32 %v4121, %v4149
      %v4151 = vpop.f32.mrf.mxu0
      %v4152 = vadd.f32 %v4123, %v4151
      %4153 = vmatmul.bf16.gmra.mxu0 %v4016
      %v4154 = vpop.f32.mrf.mxu0
      %v4155 = vadd.f32 %v4126, %v4154
      %v4156 = vpop.f32.mrf.mxu0
      %v4157 = vadd.f32 %v4128, %v4156
      %4158 = vmatmul.bf16.gmra.mxu0 %v4019
      %v4159 = vpop.f32.mrf.mxu0
      %v4160 = vadd.f32 %v4131, %v4159
      %v4161 = vpop.f32.mrf.mxu0
      %v4162 = vadd.f32 %v4133, %v4161
      %4163 = vmatmul.bf16.gmra.mxu0 %v4022
      %v4164 = vpop.f32.mrf.mxu0
      %v4165 = vadd.f32 %v4136, %v4164
      %v4166 = vpop.f32.mrf.mxu0
      %v4167 = vadd.f32 %v4138, %v4166
      %4168 = vdwg.mxu0
      %s4169 = scalar_lea.vmem %s3, 3
      %v4170 = vld [vmem:[%s4169] sm:$0x1]
      %v4172 = vperm.slane %v4170, 0
      %v4174 = vmul.f32 %v4150, %v4172
      %v4175 = vmul.f32 %v4152, %v4172
      %v4176 = vmul.f32 %v4155, %v4172
      %v4177 = vmul.f32 %v4157, %v4172
      %v4178 = vmul.f32 %v4160, %v4172
      %v4179 = vmul.f32 %v4162, %v4172
      %v4180 = vmul.f32 %v4165, %v4172
      %v4181 = vmul.f32 %v4167, %v4172
      %s4182 = scalar_lea.vmem %s4, 3
      %v4183 = vld [vmem:[%s4182] sm:$0x1]
      %v4185 = vperm.slane %v4183, 0
      %v4187 = vadd.f32 %v4174, %v4185
      %v4188 = vadd.f32 %v4175, %v4185
      %v4189 = vadd.f32 %v4176, %v4185
      %v4190 = vadd.f32 %v4177, %v4185
      %v4191 = vadd.f32 %v4178, %v4185
      %v4192 = vadd.f32 %v4179, %v4185
      %v4193 = vadd.f32 %v4180, %v4185
      %v4194 = vadd.f32 %v4181, %v4185
      %vm4195 = vcmp.ge.f32.partialorder %v4187, 0.0
      %vm4196 = vcmp.ge.f32.partialorder %v4188, 0.0
      %vm4197 = vcmp.ge.f32.partialorder %v4189, 0.0
      %vm4198 = vcmp.ge.f32.partialorder %v4190, 0.0
      %vm4199 = vcmp.ge.f32.partialorder %v4191, 0.0
      %vm4200 = vcmp.ge.f32.partialorder %v4192, 0.0
      %vm4201 = vcmp.ge.f32.partialorder %v4193, 0.0
      %vm4202 = vcmp.ge.f32.partialorder %v4194, 0.0
      %v4203 = vmul.f32 %v4187, 0.01
      %v4204 = vmul.f32 %v4188, 0.01
      %v4205 = vmul.f32 %v4189, 0.01
      %v4206 = vmul.f32 %v4190, 0.01
      %v4207 = vmul.f32 %v4191, 0.01
      %v4208 = vmul.f32 %v4192, 0.01
      %v4209 = vmul.f32 %v4193, 0.01
      %v4210 = vmul.f32 %v4194, 0.01
      %v4211 = vsel %vm4195, %v4187, %v4203
      %v4212 = vsel %vm4196, %v4188, %v4204
      %v4213 = vsel %vm4197, %v4189, %v4205
      %v4214 = vsel %vm4198, %v4190, %v4206
      %v4215 = vsel %vm4199, %v4191, %v4207
      %v4216 = vsel %vm4200, %v4192, %v4208
      %v4217 = vsel %vm4201, %v4193, %v4209
      %v4218 = vsel %vm4202, %v4194, %v4210
      %4219 = vst.msk [vmem:[%s321 + $0x1] sm:$0xff] %vm291, %v4211
      %4220 = vst.msk [vmem:[%s321 + $0x11] sm:$0xff] %vm291, %v4212
      %4221 = vst.msk [vmem:[%s321 + $0x21] sm:$0xff] %vm291, %v4213
      %4222 = vst.msk [vmem:[%s321 + $0x31] sm:$0xff] %vm291, %v4214
      %4223 = vst.msk [vmem:[%s321 + $0x41] sm:$0xff] %vm291, %v4215
      %4224 = vst.msk [vmem:[%s321 + $0x51] sm:$0xff] %vm291, %v4216
      %4225 = vst.msk [vmem:[%s321 + $0x61] sm:$0xff] %vm291, %v4217
      %4226 = vst.msk [vmem:[%s321 + $0x71] sm:$0xff] %vm291, %v4218
      %v4227 = vld [vmem:[#allocation2] sm:$0xff]
      %v4228 = vld [vmem:[#allocation2 + $0x10] sm:$0xff]
      %v4229 = vld [vmem:[#allocation2 + $0x20] sm:$0xff]
      %v4230 = vld [vmem:[#allocation2 + $0x30] sm:$0xff]
      %v4231 = vld [vmem:[#allocation2 + $0x40] sm:$0xff]
      %v4232 = vld [vmem:[#allocation2 + $0x50] sm:$0xff]
      %v4233 = vld [vmem:[#allocation2 + $0x60] sm:$0xff]
      %v4234 = vld [vmem:[#allocation2 + $0x70] sm:$0xff]
      %v4235 = vpack.c.bf16 %v4227, %v4227
      %v4236 = vpack.c.bf16 %v4228, %v4228
      %v4237 = vpack.c.bf16 %v4229, %v4229
      %v4238 = vpack.c.bf16 %v4230, %v4230
      %v4239 = vpack.c.bf16 %v4231, %v4231
      %v4240 = vpack.c.bf16 %v4232, %v4232
      %v4241 = vpack.c.bf16 %v4233, %v4233
      %v4242 = vpack.c.bf16 %v4234, %v4234
      %4243 = vst.msk [vmem:[#allocation3] sm:$0xf] %vm347, %v4235
      %4244 = vst.msk [vmem:[#allocation3 + $0x14] sm:$0xf] %vm347, %v4236
      %4245 = vst.msk [vmem:[#allocation3 + $0x28] sm:$0xf] %vm347, %v4237
      %4246 = vst.msk [vmem:[#allocation3 + $0x3c] sm:$0xf] %vm347, %v4238
      %4247 = vst.msk [vmem:[#allocation3 + $0x50] sm:$0xf] %vm347, %v4239
      %4248 = vst.msk [vmem:[#allocation3 + $0x64] sm:$0xf] %vm347, %v4240
      %4249 = vst.msk [vmem:[#allocation3 + $0x78] sm:$0xf] %vm347, %v4241
      %4250 = vst.msk [vmem:[#allocation3 + $0x8c] sm:$0xf] %vm347, %v4242
      %v4251 = vld [vmem:[#allocation2 + $0x1] sm:$0xff]
      %v4252 = vld [vmem:[#allocation2 + $0x11] sm:$0xff]
      %v4253 = vld [vmem:[#allocation2 + $0x21] sm:$0xff]
      %v4254 = vld [vmem:[#allocation2 + $0x31] sm:$0xff]
      %v4255 = vld [vmem:[#allocation2 + $0x41] sm:$0xff]
      %v4256 = vld [vmem:[#allocation2 + $0x51] sm:$0xff]
      %v4257 = vld [vmem:[#allocation2 + $0x61] sm:$0xff]
      %v4258 = vld [vmem:[#allocation2 + $0x71] sm:$0xff]
      %v4259 = vpack.c.bf16 %v4251, %v4251
      %v4260 = vpack.c.bf16 %v4252, %v4252
      %v4261 = vpack.c.bf16 %v4253, %v4253
      %v4262 = vpack.c.bf16 %v4254, %v4254
      %v4263 = vpack.c.bf16 %v4255, %v4255
      %v4264 = vpack.c.bf16 %v4256, %v4256
      %v4265 = vpack.c.bf16 %v4257, %v4257
      %v4266 = vpack.c.bf16 %v4258, %v4258
      %4275 = vrot.lane.b32.xlu0 %v4259, 64
      %v4276 = vpop.permute.xlu0 %4275
      %4277 = vrot.lane.b32.xlu0 %v4260, 64
      %v4278 = vpop.permute.xlu0 %4277
      %4279 = vrot.lane.b32.xlu0 %v4261, 64
      %v4280 = vpop.permute.xlu0 %4279
      %4281 = vrot.lane.b32.xlu0 %v4262, 64
      %v4282 = vpop.permute.xlu0 %4281
      %4283 = vrot.lane.b32.xlu0 %v4263, 64
      %v4284 = vpop.permute.xlu0 %4283
      %4285 = vrot.lane.b32.xlu0 %v4264, 64
      %v4286 = vpop.permute.xlu0 %4285
      %4287 = vrot.lane.b32.xlu0 %v4265, 64
      %v4288 = vpop.permute.xlu0 %4287
      %4289 = vrot.lane.b32.xlu0 %v4266, 64
      %v4290 = vpop.permute.xlu0 %4289
      %4299 = vst.msk [vmem:[#allocation3] sm:$0xf] %vm404, %v4276
      %4300 = vst.msk [vmem:[#allocation3 + $0x14] sm:$0xf] %vm404, %v4278
      %4301 = vst.msk [vmem:[#allocation3 + $0x28] sm:$0xf] %vm404, %v4280
      %4302 = vst.msk [vmem:[#allocation3 + $0x3c] sm:$0xf] %vm404, %v4282
      %4303 = vst.msk [vmem:[#allocation3 + $0x50] sm:$0xf] %vm404, %v4284
      %4304 = vst.msk [vmem:[#allocation3 + $0x64] sm:$0xf] %vm404, %v4286
      %4305 = vst.msk [vmem:[#allocation3 + $0x78] sm:$0xf] %vm404, %v4288
      %4306 = vst.msk [vmem:[#allocation3 + $0x8c] sm:$0xf] %vm404, %v4290
      %v4307 = vld [vmem:[#allocation2 + $0x2] sm:$0xff]
      %v4308 = vld [vmem:[#allocation2 + $0x12] sm:$0xff]
      %v4309 = vld [vmem:[#allocation2 + $0x22] sm:$0xff]
      %v4310 = vld [vmem:[#allocation2 + $0x32] sm:$0xff]
      %v4311 = vld [vmem:[#allocation2 + $0x42] sm:$0xff]
      %v4312 = vld [vmem:[#allocation2 + $0x52] sm:$0xff]
      %v4313 = vld [vmem:[#allocation2 + $0x62] sm:$0xff]
      %v4314 = vld [vmem:[#allocation2 + $0x72] sm:$0xff]
      %v4315 = vpack.c.bf16 %v4307, %v4307
      %v4316 = vpack.c.bf16 %v4308, %v4308
      %v4317 = vpack.c.bf16 %v4309, %v4309
      %v4318 = vpack.c.bf16 %v4310, %v4310
      %v4319 = vpack.c.bf16 %v4311, %v4311
      %v4320 = vpack.c.bf16 %v4312, %v4312
      %v4321 = vpack.c.bf16 %v4313, %v4313
      %v4322 = vpack.c.bf16 %v4314, %v4314
      %4323 = vst.msk [vmem:[#allocation3 + $0x4] sm:$0xf] %vm347, %v4315
      %4324 = vst.msk [vmem:[#allocation3 + $0x18] sm:$0xf] %vm347, %v4316
      %4325 = vst.msk [vmem:[#allocation3 + $0x2c] sm:$0xf] %vm347, %v4317
      %4326 = vst.msk [vmem:[#allocation3 + $0x40] sm:$0xf] %vm347, %v4318
      %4327 = vst.msk [vmem:[#allocation3 + $0x54] sm:$0xf] %vm347, %v4319
      %4328 = vst.msk [vmem:[#allocation3 + $0x68] sm:$0xf] %vm347, %v4320
      %4329 = vst.msk [vmem:[#allocation3 + $0x7c] sm:$0xf] %vm347, %v4321
      %4330 = vst.msk [vmem:[#allocation3 + $0x90] sm:$0xf] %vm347, %v4322
      %v4331 = vld [vmem:[%s321] sm:$0xff]
      %v4332 = vld [vmem:[%s321 + $0x10] sm:$0xff]
      %v4333 = vld [vmem:[%s321 + $0x20] sm:$0xff]
      %v4334 = vld [vmem:[%s321 + $0x30] sm:$0xff]
      %v4335 = vld [vmem:[%s321 + $0x40] sm:$0xff]
      %v4336 = vld [vmem:[%s321 + $0x50] sm:$0xff]
      %v4337 = vld [vmem:[%s321 + $0x60] sm:$0xff]
      %v4338 = vld [vmem:[%s321 + $0x70] sm:$0xff]
      %v4339 = vpack.c.bf16 %v4331, %v4331
      %v4340 = vpack.c.bf16 %v4332, %v4332
      %v4341 = vpack.c.bf16 %v4333, %v4333
      %v4342 = vpack.c.bf16 %v4334, %v4334
      %v4343 = vpack.c.bf16 %v4335, %v4335
      %v4344 = vpack.c.bf16 %v4336, %v4336
      %v4345 = vpack.c.bf16 %v4337, %v4337
      %v4346 = vpack.c.bf16 %v4338, %v4338
      %4355 = vrot.lane.b32.xlu0 %v4339, 64
      %v4356 = vpop.permute.xlu0 %4355
      %4357 = vrot.lane.b32.xlu0 %v4340, 64
      %v4358 = vpop.permute.xlu0 %4357
      %4359 = vrot.lane.b32.xlu0 %v4341, 64
      %v4360 = vpop.permute.xlu0 %4359
      %4361 = vrot.lane.b32.xlu0 %v4342, 64
      %v4362 = vpop.permute.xlu0 %4361
      %4363 = vrot.lane.b32.xlu0 %v4343, 64
      %v4364 = vpop.permute.xlu0 %4363
      %4365 = vrot.lane.b32.xlu0 %v4344, 64
      %v4366 = vpop.permute.xlu0 %4365
      %4367 = vrot.lane.b32.xlu0 %v4345, 64
      %v4368 = vpop.permute.xlu0 %4367
      %4369 = vrot.lane.b32.xlu0 %v4346, 64
      %v4370 = vpop.permute.xlu0 %4369
      %4379 = vst.msk [vmem:[#allocation3 + $0x4] sm:$0xf] %vm404, %v4356
      %4380 = vst.msk [vmem:[#allocation3 + $0x18] sm:$0xf] %vm404, %v4358
      %4381 = vst.msk [vmem:[#allocation3 + $0x2c] sm:$0xf] %vm404, %v4360
      %4382 = vst.msk [vmem:[#allocation3 + $0x40] sm:$0xf] %vm404, %v4362
      %4383 = vst.msk [vmem:[#allocation3 + $0x54] sm:$0xf] %vm404, %v4364
      %4384 = vst.msk [vmem:[#allocation3 + $0x68] sm:$0xf] %vm404, %v4366
      %4385 = vst.msk [vmem:[#allocation3 + $0x7c] sm:$0xf] %vm404, %v4368
      %4386 = vst.msk [vmem:[#allocation3 + $0x90] sm:$0xf] %vm404, %v4370
      %v4387 = vld [vmem:[%s321 + $0x1] sm:$0xff]
      %v4388 = vld [vmem:[%s321 + $0x11] sm:$0xff]
      %v4389 = vld [vmem:[%s321 + $0x21] sm:$0xff]
      %v4390 = vld [vmem:[%s321 + $0x31] sm:$0xff]
      %v4391 = vld [vmem:[%s321 + $0x41] sm:$0xff]
      %v4392 = vld [vmem:[%s321 + $0x51] sm:$0xff]
      %v4393 = vld [vmem:[%s321 + $0x61] sm:$0xff]
      %v4394 = vld [vmem:[%s321 + $0x71] sm:$0xff]
      %v4395 = vpack.c.bf16 %v4387, %v4387
      %v4396 = vpack.c.bf16 %v4388, %v4388
      %v4397 = vpack.c.bf16 %v4389, %v4389
      %v4398 = vpack.c.bf16 %v4390, %v4390
      %v4399 = vpack.c.bf16 %v4391, %v4391
      %v4400 = vpack.c.bf16 %v4392, %v4392
      %v4401 = vpack.c.bf16 %v4393, %v4393
      %v4402 = vpack.c.bf16 %v4394, %v4394
      %4403 = vst.msk [vmem:[#allocation3 + $0x8] sm:$0xf] %vm347, %v4395
      %4404 = vst.msk [vmem:[#allocation3 + $0x1c] sm:$0xf] %vm347, %v4396
      %4405 = vst.msk [vmem:[#allocation3 + $0x30] sm:$0xf] %vm347, %v4397
      %4406 = vst.msk [vmem:[#allocation3 + $0x44] sm:$0xf] %vm347, %v4398
      %4407 = vst.msk [vmem:[#allocation3 + $0x58] sm:$0xf] %vm347, %v4399
      %4408 = vst.msk [vmem:[#allocation3 + $0x6c] sm:$0xf] %vm347, %v4400
      %4409 = vst.msk [vmem:[#allocation3 + $0x80] sm:$0xf] %vm347, %v4401
      %4410 = vst.msk [vmem:[#allocation3 + $0x94] sm:$0xf] %vm347, %v4402
      %v4411 = vld [vmem:[%s321 + $0x2] sm:$0xff]
      %v4412 = vld [vmem:[%s321 + $0x12] sm:$0xff]
      %v4413 = vld [vmem:[%s321 + $0x22] sm:$0xff]
      %v4414 = vld [vmem:[%s321 + $0x32] sm:$0xff]
      %v4415 = vld [vmem:[%s321 + $0x42] sm:$0xff]
      %v4416 = vld [vmem:[%s321 + $0x52] sm:$0xff]
      %v4417 = vld [vmem:[%s321 + $0x62] sm:$0xff]
      %v4418 = vld [vmem:[%s321 + $0x72] sm:$0xff]
      %v4419 = vpack.c.bf16 %v4411, %v4411
      %v4420 = vpack.c.bf16 %v4412, %v4412
      %v4421 = vpack.c.bf16 %v4413, %v4413
      %v4422 = vpack.c.bf16 %v4414, %v4414
      %v4423 = vpack.c.bf16 %v4415, %v4415
      %v4424 = vpack.c.bf16 %v4416, %v4416
      %v4425 = vpack.c.bf16 %v4417, %v4417
      %v4426 = vpack.c.bf16 %v4418, %v4418
      %4435 = vrot.lane.b32.xlu0 %v4419, 64
      %v4436 = vpop.permute.xlu0 %4435
      %4437 = vrot.lane.b32.xlu0 %v4420, 64
      %v4438 = vpop.permute.xlu0 %4437
      %4439 = vrot.lane.b32.xlu0 %v4421, 64
      %v4440 = vpop.permute.xlu0 %4439
      %4441 = vrot.lane.b32.xlu0 %v4422, 64
      %v4442 = vpop.permute.xlu0 %4441
      %4443 = vrot.lane.b32.xlu0 %v4423, 64
      %v4444 = vpop.permute.xlu0 %4443
      %4445 = vrot.lane.b32.xlu0 %v4424, 64
      %v4446 = vpop.permute.xlu0 %4445
      %4447 = vrot.lane.b32.xlu0 %v4425, 64
      %v4448 = vpop.permute.xlu0 %4447
      %4449 = vrot.lane.b32.xlu0 %v4426, 64
      %v4450 = vpop.permute.xlu0 %4449
      %4459 = vst.msk [vmem:[#allocation3 + $0x8] sm:$0xf] %vm404, %v4436
      %4460 = vst.msk [vmem:[#allocation3 + $0x1c] sm:$0xf] %vm404, %v4438
      %4461 = vst.msk [vmem:[#allocation3 + $0x30] sm:$0xf] %vm404, %v4440
      %4462 = vst.msk [vmem:[#allocation3 + $0x44] sm:$0xf] %vm404, %v4442
      %4463 = vst.msk [vmem:[#allocation3 + $0x58] sm:$0xf] %vm404, %v4444
      %4464 = vst.msk [vmem:[#allocation3 + $0x6c] sm:$0xf] %vm404, %v4446
      %4465 = vst.msk [vmem:[#allocation3 + $0x80] sm:$0xf] %vm404, %v4448
      %4466 = vst.msk [vmem:[#allocation3 + $0x94] sm:$0xf] %vm404, %v4450
      %v4467 = vld [vmem:[%s573] sm:$0xff]
      %v4468 = vld [vmem:[%s573 + $0x10] sm:$0xff]
      %v4469 = vld [vmem:[%s573 + $0x20] sm:$0xff]
      %v4470 = vld [vmem:[%s573 + $0x30] sm:$0xff]
      %v4471 = vld [vmem:[%s573 + $0x40] sm:$0xff]
      %v4472 = vld [vmem:[%s573 + $0x50] sm:$0xff]
      %v4473 = vld [vmem:[%s573 + $0x60] sm:$0xff]
      %v4474 = vld [vmem:[%s573 + $0x70] sm:$0xff]
      %v4475 = vpack.c.bf16 %v4467, %v4467
      %v4476 = vpack.c.bf16 %v4468, %v4468
      %v4477 = vpack.c.bf16 %v4469, %v4469
      %v4478 = vpack.c.bf16 %v4470, %v4470
      %v4479 = vpack.c.bf16 %v4471, %v4471
      %v4480 = vpack.c.bf16 %v4472, %v4472
      %v4481 = vpack.c.bf16 %v4473, %v4473
      %v4482 = vpack.c.bf16 %v4474, %v4474
      %4483 = vst.msk [vmem:[#allocation3 + $0xc] sm:$0xf] %vm347, %v4475
      %4484 = vst.msk [vmem:[#allocation3 + $0x20] sm:$0xf] %vm347, %v4476
      %4485 = vst.msk [vmem:[#allocation3 + $0x34] sm:$0xf] %vm347, %v4477
      %4486 = vst.msk [vmem:[#allocation3 + $0x48] sm:$0xf] %vm347, %v4478
      %4487 = vst.msk [vmem:[#allocation3 + $0x5c] sm:$0xf] %vm347, %v4479
      %4488 = vst.msk [vmem:[#allocation3 + $0x70] sm:$0xf] %vm347, %v4480
      %4489 = vst.msk [vmem:[#allocation3 + $0x84] sm:$0xf] %vm347, %v4481
      %4490 = vst.msk [vmem:[#allocation3 + $0x98] sm:$0xf] %vm347, %v4482
      %v4491 = vld [vmem:[%s573 + $0x1] sm:$0xff]
      %v4492 = vld [vmem:[%s573 + $0x11] sm:$0xff]
      %v4493 = vld [vmem:[%s573 + $0x21] sm:$0xff]
      %v4494 = vld [vmem:[%s573 + $0x31] sm:$0xff]
      %v4495 = vld [vmem:[%s573 + $0x41] sm:$0xff]
      %v4496 = vld [vmem:[%s573 + $0x51] sm:$0xff]
      %v4497 = vld [vmem:[%s573 + $0x61] sm:$0xff]
      %v4498 = vld [vmem:[%s573 + $0x71] sm:$0xff]
      %v4499 = vpack.c.bf16 %v4491, %v4491
      %v4500 = vpack.c.bf16 %v4492, %v4492
      %v4501 = vpack.c.bf16 %v4493, %v4493
      %v4502 = vpack.c.bf16 %v4494, %v4494
      %v4503 = vpack.c.bf16 %v4495, %v4495
      %v4504 = vpack.c.bf16 %v4496, %v4496
      %v4505 = vpack.c.bf16 %v4497, %v4497
      %v4506 = vpack.c.bf16 %v4498, %v4498
      %4515 = vrot.lane.b32.xlu0 %v4499, 64
      %v4516 = vpop.permute.xlu0 %4515
      %4517 = vrot.lane.b32.xlu0 %v4500, 64
      %v4518 = vpop.permute.xlu0 %4517
      %4519 = vrot.lane.b32.xlu0 %v4501, 64
      %v4520 = vpop.permute.xlu0 %4519
      %4521 = vrot.lane.b32.xlu0 %v4502, 64
      %v4522 = vpop.permute.xlu0 %4521
      %4523 = vrot.lane.b32.xlu0 %v4503, 64
      %v4524 = vpop.permute.xlu0 %4523
      %4525 = vrot.lane.b32.xlu0 %v4504, 64
      %v4526 = vpop.permute.xlu0 %4525
      %4527 = vrot.lane.b32.xlu0 %v4505, 64
      %v4528 = vpop.permute.xlu0 %4527
      %4529 = vrot.lane.b32.xlu0 %v4506, 64
      %v4530 = vpop.permute.xlu0 %4529
      %4539 = vst.msk [vmem:[#allocation3 + $0xc] sm:$0xf] %vm404, %v4516
      %4540 = vst.msk [vmem:[#allocation3 + $0x20] sm:$0xf] %vm404, %v4518
      %4541 = vst.msk [vmem:[#allocation3 + $0x34] sm:$0xf] %vm404, %v4520
      %4542 = vst.msk [vmem:[#allocation3 + $0x48] sm:$0xf] %vm404, %v4522
      %4543 = vst.msk [vmem:[#allocation3 + $0x5c] sm:$0xf] %vm404, %v4524
      %4544 = vst.msk [vmem:[#allocation3 + $0x70] sm:$0xf] %vm404, %v4526
      %4545 = vst.msk [vmem:[#allocation3 + $0x84] sm:$0xf] %vm404, %v4528
      %4546 = vst.msk [vmem:[#allocation3 + $0x98] sm:$0xf] %vm404, %v4530
      %v4547 = vld [vmem:[%s573 + $0x2] sm:$0xff]
      %v4548 = vld [vmem:[%s573 + $0x12] sm:$0xff]
      %v4549 = vld [vmem:[%s573 + $0x22] sm:$0xff]
      %v4550 = vld [vmem:[%s573 + $0x32] sm:$0xff]
      %v4551 = vld [vmem:[%s573 + $0x42] sm:$0xff]
      %v4552 = vld [vmem:[%s573 + $0x52] sm:$0xff]
      %v4553 = vld [vmem:[%s573 + $0x62] sm:$0xff]
      %v4554 = vld [vmem:[%s573 + $0x72] sm:$0xff]
      %v4555 = vpack.c.bf16 %v4547, %v4547
      %v4556 = vpack.c.bf16 %v4548, %v4548
      %v4557 = vpack.c.bf16 %v4549, %v4549
      %v4558 = vpack.c.bf16 %v4550, %v4550
      %v4559 = vpack.c.bf16 %v4551, %v4551
      %v4560 = vpack.c.bf16 %v4552, %v4552
      %v4561 = vpack.c.bf16 %v4553, %v4553
      %v4562 = vpack.c.bf16 %v4554, %v4554
      %4563 = vst.msk [vmem:[#allocation3 + $0x10] sm:$0xf] %vm347, %v4555
      %4564 = vst.msk [vmem:[#allocation3 + $0x24] sm:$0xf] %vm347, %v4556
      %4565 = vst.msk [vmem:[#allocation3 + $0x38] sm:$0xf] %vm347, %v4557
      %4566 = vst.msk [vmem:[#allocation3 + $0x4c] sm:$0xf] %vm347, %v4558
      %4567 = vst.msk [vmem:[#allocation3 + $0x60] sm:$0xf] %vm347, %v4559
      %4568 = vst.msk [vmem:[#allocation3 + $0x74] sm:$0xf] %vm347, %v4560
      %4569 = vst.msk [vmem:[#allocation3 + $0x88] sm:$0xf] %vm347, %v4561
      %4570 = vst.msk [vmem:[#allocation3 + $0x9c] sm:$0xf] %vm347, %v4562
      %v4571 = vld [vmem:[#allocation3] sm:$0xff]
      %v4572 = vld [vmem:[#allocation3 + $0x8] sm:$0xff]
      %v4573 = vld [vmem:[#allocation3 + $0x10] sm:$0xf]
      %v4574 = vld [vmem:[#allocation3 + $0x14] sm:$0xff]
      %v4575 = vld [vmem:[#allocation3 + $0x1c] sm:$0xff]
      %v4576 = vld [vmem:[#allocation3 + $0x24] sm:$0xf]
      %v4577 = vld [vmem:[#allocation3 + $0x28] sm:$0xff]
      %v4578 = vld [vmem:[#allocation3 + $0x30] sm:$0xff]
      %v4579 = vld [vmem:[#allocation3 + $0x38] sm:$0xf]
      %v4580 = vld [vmem:[#allocation3 + $0x3c] sm:$0xff]
      %v4581 = vld [vmem:[#allocation3 + $0x44] sm:$0xff]
      %v4582 = vld [vmem:[#allocation3 + $0x4c] sm:$0xf]
      %v4583 = vld [vmem:[#allocation3 + $0x50] sm:$0xff]
      %v4584 = vld [vmem:[#allocation3 + $0x58] sm:$0xff]
      %v4585 = vld [vmem:[#allocation3 + $0x60] sm:$0xf]
      %v4586 = vld [vmem:[#allocation3 + $0x64] sm:$0xff]
      %v4587 = vld [vmem:[#allocation3 + $0x6c] sm:$0xff]
      %v4588 = vld [vmem:[#allocation3 + $0x74] sm:$0xf]
      %v4589 = vld [vmem:[#allocation3 + $0x78] sm:$0xff]
      %v4590 = vld [vmem:[#allocation3 + $0x80] sm:$0xff]
      %v4591 = vld [vmem:[#allocation3 + $0x88] sm:$0xf]
      %v4592 = vld [vmem:[#allocation3 + $0x8c] sm:$0xff]
      %v4593 = vld [vmem:[#allocation3 + $0x94] sm:$0xff]
      %v4594 = vld [vmem:[#allocation3 + $0x9c] sm:$0xf]
      %s4595 = scalar_lea.vmem %s2, 1152
      %v4596 = vld [vmem:[%s4595] sm:$0xf]
      %v4597 = vld [vmem:[%s4595 + $0x4] sm:$0xf]
      %v4598 = vld [vmem:[%s4595 + $0x8] sm:$0xf]
      %v4599 = vld [vmem:[%s4595 + $0xc] sm:$0xf]
      %v4600 = vld [vmem:[%s4595 + $0x10] sm:$0xf]
      %v4601 = vld [vmem:[%s4595 + $0x14] sm:$0xf]
      %v4602 = vld [vmem:[%s4595 + $0x18] sm:$0xf]
      %v4603 = vld [vmem:[%s4595 + $0x1c] sm:$0xf]
      %v4604 = vld [vmem:[%s4595 + $0x20] sm:$0xf]
      %v4605 = vld [vmem:[%s4595 + $0x24] sm:$0xf]
      %v4606 = vld [vmem:[%s4595 + $0x28] sm:$0xf]
      %v4607 = vld [vmem:[%s4595 + $0x2c] sm:$0xf]
      %v4608 = vld [vmem:[%s4595 + $0x30] sm:$0xf]
      %v4609 = vld [vmem:[%s4595 + $0x34] sm:$0xf]
      %v4610 = vld [vmem:[%s4595 + $0x38] sm:$0xf]
      %v4611 = vld [vmem:[%s4595 + $0x3c] sm:$0xf]
      %v4612 = vld [vmem:[%s4595 + $0x40] sm:$0xf]
      %v4613 = vld [vmem:[%s4595 + $0x44] sm:$0xf]
      %v4614 = vld [vmem:[%s4595 + $0x48] sm:$0xf]
      %v4615 = vld [vmem:[%s4595 + $0x4c] sm:$0xf]
      %v4616 = vld [vmem:[%s4595 + $0x50] sm:$0xf]
      %v4617 = vld [vmem:[%s4595 + $0x54] sm:$0xf]
      %v4618 = vld [vmem:[%s4595 + $0x58] sm:$0xf]
      %v4619 = vld [vmem:[%s4595 + $0x5c] sm:$0xf]
      %v4620 = vld [vmem:[%s4595 + $0x60] sm:$0xf]
      %v4621 = vld [vmem:[%s4595 + $0x64] sm:$0xf]
      %v4622 = vld [vmem:[%s4595 + $0x68] sm:$0xf]
      %v4623 = vld [vmem:[%s4595 + $0x6c] sm:$0xf]
      %v4624 = vld [vmem:[%s4595 + $0x70] sm:$0xf]
      %v4625 = vld [vmem:[%s4595 + $0x74] sm:$0xf]
      %v4626 = vld [vmem:[%s4595 + $0x78] sm:$0xf]
      %v4627 = vld [vmem:[%s4595 + $0x7c] sm:$0xf]
      %v4628 = vld [vmem:[%s4595 + $0x80] sm:$0xf]
      %v4629 = vld [vmem:[%s4595 + $0x84] sm:$0xf]
      %v4630 = vld [vmem:[%s4595 + $0x88] sm:$0xf]
      %v4631 = vld [vmem:[%s4595 + $0x8c] sm:$0xf]
      %v4632 = vld [vmem:[%s4595 + $0x90] sm:$0xf]
      %v4633 = vld [vmem:[%s4595 + $0x94] sm:$0xf]
      %v4634 = vld [vmem:[%s4595 + $0x98] sm:$0xf]
      %v4635 = vld [vmem:[%s4595 + $0x9c] sm:$0xf]
      %v4636 = vld [vmem:[%s4595 + $0xa0] sm:$0xf]
      %v4637 = vld [vmem:[%s4595 + $0xa4] sm:$0xf]
      %v4638 = vld [vmem:[%s4595 + $0xa8] sm:$0xf]
      %v4639 = vld [vmem:[%s4595 + $0xac] sm:$0xf]
      %v4640 = vld [vmem:[%s4595 + $0xb0] sm:$0xf]
      %v4641 = vld [vmem:[%s4595 + $0xb4] sm:$0xf]
      %v4642 = vld [vmem:[%s4595 + $0xb8] sm:$0xf]
      %v4643 = vld [vmem:[%s4595 + $0xbc] sm:$0xf]
      %v4644 = vld [vmem:[%s4595 + $0xc0] sm:$0xf]
      %v4645 = vld [vmem:[%s4595 + $0xc4] sm:$0xf]
      %v4646 = vld [vmem:[%s4595 + $0xc8] sm:$0xf]
      %v4647 = vld [vmem:[%s4595 + $0xcc] sm:$0xf]
      %v4648 = vld [vmem:[%s4595 + $0xd0] sm:$0xf]
      %v4649 = vld [vmem:[%s4595 + $0xd4] sm:$0xf]
      %v4650 = vld [vmem:[%s4595 + $0xd8] sm:$0xf]
      %v4651 = vld [vmem:[%s4595 + $0xdc] sm:$0xf]
      %v4652 = vld [vmem:[%s4595 + $0xe0] sm:$0xf]
      %v4653 = vld [vmem:[%s4595 + $0xe4] sm:$0xf]
      %v4654 = vld [vmem:[%s4595 + $0xe8] sm:$0xf]
      %v4655 = vld [vmem:[%s4595 + $0xec] sm:$0xf]
      %v4656 = vld [vmem:[%s4595 + $0xf0] sm:$0xf]
      %v4657 = vld [vmem:[%s4595 + $0xf4] sm:$0xf]
      %v4658 = vld [vmem:[%s4595 + $0xf8] sm:$0xf]
      %v4659 = vld [vmem:[%s4595 + $0xfc] sm:$0xf]
      %v4660 = vld [vmem:[%s4595 + $0x100] sm:$0xf]
      %v4661 = vld [vmem:[%s4595 + $0x104] sm:$0xf]
      %v4662 = vld [vmem:[%s4595 + $0x108] sm:$0xf]
      %v4663 = vld [vmem:[%s4595 + $0x10c] sm:$0xf]
      %v4664 = vld [vmem:[%s4595 + $0x110] sm:$0xf]
      %v4665 = vld [vmem:[%s4595 + $0x114] sm:$0xf]
      %v4666 = vld [vmem:[%s4595 + $0x118] sm:$0xf]
      %v4667 = vld [vmem:[%s4595 + $0x11c] sm:$0xf]
      %v4692 = vunpack.c.l.b16 %v4571
      %v4693 = vunpack.c.h.b16 %v4571
      %v4694 = vunpack.c.l.b16 %v4572
      %v4695 = vunpack.c.h.b16 %v4572
      %v4696 = vunpack.c.l.b16 %v4573
      %v4697 = vunpack.c.l.b16 %v4574
      %v4698 = vunpack.c.h.b16 %v4574
      %v4699 = vunpack.c.l.b16 %v4575
      %v4700 = vunpack.c.h.b16 %v4575
      %v4701 = vunpack.c.l.b16 %v4576
      %v4702 = vunpack.c.l.b16 %v4577
      %v4703 = vunpack.c.h.b16 %v4577
      %v4704 = vunpack.c.l.b16 %v4578
      %v4705 = vunpack.c.h.b16 %v4578
      %v4706 = vunpack.c.l.b16 %v4579
      %v4707 = vunpack.c.l.b16 %v4580
      %v4708 = vunpack.c.h.b16 %v4580
      %v4709 = vunpack.c.l.b16 %v4581
      %v4710 = vunpack.c.h.b16 %v4581
      %v4711 = vunpack.c.l.b16 %v4582
      %v4712 = vunpack.c.l.b16 %v4583
      %v4713 = vunpack.c.h.b16 %v4583
      %v4714 = vunpack.c.l.b16 %v4584
      %v4715 = vunpack.c.h.b16 %v4584
      %v4716 = vunpack.c.l.b16 %v4585
      %v4717 = vunpack.c.l.b16 %v4586
      %v4718 = vunpack.c.h.b16 %v4586
      %v4719 = vunpack.c.l.b16 %v4587
      %v4720 = vunpack.c.h.b16 %v4587
      %v4721 = vunpack.c.l.b16 %v4588
      %v4722 = vunpack.c.l.b16 %v4589
      %v4723 = vunpack.c.h.b16 %v4589
      %v4724 = vunpack.c.l.b16 %v4590
      %v4725 = vunpack.c.h.b16 %v4590
      %v4726 = vunpack.c.l.b16 %v4591
      %v4727 = vunpack.c.l.b16 %v4592
      %v4728 = vunpack.c.h.b16 %v4592
      %v4729 = vunpack.c.l.b16 %v4593
      %v4730 = vunpack.c.h.b16 %v4593
      %v4731 = vunpack.c.l.b16 %v4594
      %v4732 = vpack.c.b16 %v4697, %v4692
      %v4733 = vpack.c.b16 %v4698, %v4693
      %v4734 = vpack.c.b16 %v4699, %v4694
      %v4735 = vpack.c.b16 %v4700, %v4695
      %v4736 = vpack.c.b16 %v4701, %v4696
      %v4737 = vpack.c.b16 %v4707, %v4702
      %v4738 = vpack.c.b16 %v4708, %v4703
      %v4739 = vpack.c.b16 %v4709, %v4704
      %v4740 = vpack.c.b16 %v4710, %v4705
      %v4741 = vpack.c.b16 %v4711, %v4706
      %v4742 = vpack.c.b16 %v4717, %v4712
      %v4743 = vpack.c.b16 %v4718, %v4713
      %v4744 = vpack.c.b16 %v4719, %v4714
      %v4745 = vpack.c.b16 %v4720, %v4715
      %v4746 = vpack.c.b16 %v4721, %v4716
      %v4747 = vpack.c.b16 %v4727, %v4722
      %v4748 = vpack.c.b16 %v4728, %v4723
      %v4749 = vpack.c.b16 %v4729, %v4724
      %v4750 = vpack.c.b16 %v4730, %v4725
      %v4751 = vpack.c.b16 %v4731, %v4726
      %v4840 = vunpack.c.l.b16 %v4596
      %v4841 = vunpack.c.l.b16 %v4597
      %v4842 = vunpack.c.l.b16 %v4598
      %v4843 = vunpack.c.l.b16 %v4599
      %v4844 = vunpack.c.l.b16 %v4600
      %v4845 = vunpack.c.l.b16 %v4601
      %v4846 = vunpack.c.l.b16 %v4602
      %v4847 = vunpack.c.l.b16 %v4603
      %v4848 = vunpack.c.l.b16 %v4604
      %v4849 = vunpack.c.l.b16 %v4605
      %v4850 = vunpack.c.l.b16 %v4606
      %v4851 = vunpack.c.l.b16 %v4607
      %v4852 = vunpack.c.l.b16 %v4608
      %v4853 = vunpack.c.l.b16 %v4609
      %v4854 = vunpack.c.l.b16 %v4610
      %v4855 = vunpack.c.l.b16 %v4611
      %v4856 = vunpack.c.l.b16 %v4612
      %v4857 = vunpack.c.l.b16 %v4613
      %v4858 = vunpack.c.l.b16 %v4614
      %v4859 = vunpack.c.l.b16 %v4615
      %v4860 = vunpack.c.l.b16 %v4616
      %v4861 = vunpack.c.l.b16 %v4617
      %v4862 = vunpack.c.l.b16 %v4618
      %v4863 = vunpack.c.l.b16 %v4619
      %v4864 = vunpack.c.l.b16 %v4620
      %v4865 = vunpack.c.l.b16 %v4621
      %v4866 = vunpack.c.l.b16 %v4622
      %v4867 = vunpack.c.l.b16 %v4623
      %v4868 = vunpack.c.l.b16 %v4624
      %v4869 = vunpack.c.l.b16 %v4625
      %v4870 = vunpack.c.l.b16 %v4626
      %v4871 = vunpack.c.l.b16 %v4627
      %v4872 = vunpack.c.l.b16 %v4628
      %v4873 = vunpack.c.l.b16 %v4629
      %v4874 = vunpack.c.l.b16 %v4630
      %v4875 = vunpack.c.l.b16 %v4631
      %v4876 = vunpack.c.l.b16 %v4632
      %v4877 = vunpack.c.l.b16 %v4633
      %v4878 = vunpack.c.l.b16 %v4634
      %v4879 = vunpack.c.l.b16 %v4635
      %v4880 = vunpack.c.l.b16 %v4636
      %v4881 = vunpack.c.l.b16 %v4637
      %v4882 = vunpack.c.l.b16 %v4638
      %v4883 = vunpack.c.l.b16 %v4639
      %v4884 = vunpack.c.l.b16 %v4640
      %v4885 = vunpack.c.l.b16 %v4641
      %v4886 = vunpack.c.l.b16 %v4642
      %v4887 = vunpack.c.l.b16 %v4643
      %v4888 = vunpack.c.l.b16 %v4644
      %v4889 = vunpack.c.l.b16 %v4645
      %v4890 = vunpack.c.l.b16 %v4646
      %v4891 = vunpack.c.l.b16 %v4647
      %v4892 = vunpack.c.l.b16 %v4648
      %v4893 = vunpack.c.l.b16 %v4649
      %v4894 = vunpack.c.l.b16 %v4650
      %v4895 = vunpack.c.l.b16 %v4651
      %v4896 = vunpack.c.l.b16 %v4652
      %v4897 = vunpack.c.l.b16 %v4653
      %v4898 = vunpack.c.l.b16 %v4654
      %v4899 = vunpack.c.l.b16 %v4655
      %v4900 = vunpack.c.l.b16 %v4656
      %v4901 = vunpack.c.l.b16 %v4657
      %v4902 = vunpack.c.l.b16 %v4658
      %v4903 = vunpack.c.l.b16 %v4659
      %v4904 = vunpack.c.l.b16 %v4660
      %v4905 = vunpack.c.l.b16 %v4661
      %v4906 = vunpack.c.l.b16 %v4662
      %v4907 = vunpack.c.l.b16 %v4663
      %v4908 = vunpack.c.l.b16 %v4664
      %v4909 = vunpack.c.l.b16 %v4665
      %v4910 = vunpack.c.l.b16 %v4666
      %v4911 = vunpack.c.l.b16 %v4667
      %v4912 = vpack.c.b16 %v4841, %v4840
      %v4913 = vpack.c.b16 %v4843, %v4842
      %v4914 = vpack.c.b16 %v4845, %v4844
      %v4915 = vpack.c.b16 %v4847, %v4846
      %v4916 = vpack.c.b16 %v4849, %v4848
      %v4917 = vpack.c.b16 %v4851, %v4850
      %v4918 = vpack.c.b16 %v4853, %v4852
      %v4919 = vpack.c.b16 %v4855, %v4854
      %v4920 = vpack.c.b16 %v4857, %v4856
      %v4921 = vpack.c.b16 %v4859, %v4858
      %v4922 = vpack.c.b16 %v4861, %v4860
      %v4923 = vpack.c.b16 %v4863, %v4862
      %v4924 = vpack.c.b16 %v4865, %v4864
      %v4925 = vpack.c.b16 %v4867, %v4866
      %v4926 = vpack.c.b16 %v4869, %v4868
      %v4927 = vpack.c.b16 %v4871, %v4870
      %v4928 = vpack.c.b16 %v4873, %v4872
      %v4929 = vpack.c.b16 %v4875, %v4874
      %v4930 = vpack.c.b16 %v4877, %v4876
      %v4931 = vpack.c.b16 %v4879, %v4878
      %v4932 = vpack.c.b16 %v4881, %v4880
      %v4933 = vpack.c.b16 %v4883, %v4882
      %v4934 = vpack.c.b16 %v4885, %v4884
      %v4935 = vpack.c.b16 %v4887, %v4886
      %v4936 = vpack.c.b16 %v4889, %v4888
      %v4937 = vpack.c.b16 %v4891, %v4890
      %v4938 = vpack.c.b16 %v4893, %v4892
      %v4939 = vpack.c.b16 %v4895, %v4894
      %v4940 = vpack.c.b16 %v4897, %v4896
      %v4941 = vpack.c.b16 %v4899, %v4898
      %v4942 = vpack.c.b16 %v4901, %v4900
      %v4943 = vpack.c.b16 %v4903, %v4902
      %v4944 = vpack.c.b16 %v4905, %v4904
      %v4945 = vpack.c.b16 %v4907, %v4906
      %v4946 = vpack.c.b16 %v4909, %v4908
      %v4947 = vpack.c.b16 %v4911, %v4910
      %v4985 = vsel %vm291, %v4736, 0
      %v4988 = vsel %vm291, %v4741, 0
      %v4991 = vsel %vm291, %v4746, 0
      %v4994 = vsel %vm291, %v4751, 0
      %4996 = vmatpush.bf16.msra.mxu0 %v4919
      %4997 = vmatpush.bf16.msra.mxu0 %v4918
      %4998 = vmatpush.bf16.msra.mxu0 %v4917
      %4999 = vmatpush.bf16.msra.mxu0 %v4916
      %5000 = vmatpush.bf16.msra.mxu0 %v4915
      %5001 = vmatpush.bf16.msra.mxu0 %v4914
      %5002 = vmatpush.bf16.msra.mxu0 %v4913
      %5003 = vmatpush.bf16.msra.mxu0 %v4912
      %5004 = vmatmul.bf16.gmra.mxu0 %v4732
      %v5005 = vpop.f32.mrf.mxu0
      %v5006 = vadd.f32 0.0, %v5005
      %v5007 = vpop.f32.mrf.mxu0
      %v5008 = vadd.f32 0.0, %v5007
      %5009 = vmatmul.bf16.gmra.mxu0 %v4737
      %v5010 = vpop.f32.mrf.mxu0
      %v5011 = vadd.f32 0.0, %v5010
      %v5012 = vpop.f32.mrf.mxu0
      %v5013 = vadd.f32 0.0, %v5012
      %5014 = vmatmul.bf16.gmra.mxu0 %v4742
      %v5015 = vpop.f32.mrf.mxu0
      %v5016 = vadd.f32 0.0, %v5015
      %v5017 = vpop.f32.mrf.mxu0
      %v5018 = vadd.f32 0.0, %v5017
      %5019 = vmatmul.bf16.gmra.mxu0 %v4747
      %v5020 = vpop.f32.mrf.mxu0
      %v5021 = vadd.f32 0.0, %v5020
      %v5022 = vpop.f32.mrf.mxu0
      %v5023 = vadd.f32 0.0, %v5022
      %5024 = vdwg.mxu0
      %5025 = vmatpush.bf16.msra.mxu0 %v4927
      %5026 = vmatpush.bf16.msra.mxu0 %v4926
      %5027 = vmatpush.bf16.msra.mxu0 %v4925
      %5028 = vmatpush.bf16.msra.mxu0 %v4924
      %5029 = vmatpush.bf16.msra.mxu0 %v4923
      %5030 = vmatpush.bf16.msra.mxu0 %v4922
      %5031 = vmatpush.bf16.msra.mxu0 %v4921
      %5032 = vmatpush.bf16.msra.mxu0 %v4920
      %5033 = vmatmul.bf16.gmra.mxu0 %v4733
      %v5034 = vpop.f32.mrf.mxu0
      %v5035 = vadd.f32 %v5006, %v5034
      %v5036 = vpop.f32.mrf.mxu0
      %v5037 = vadd.f32 %v5008, %v5036
      %5038 = vmatmul.bf16.gmra.mxu0 %v4738
      %v5039 = vpop.f32.mrf.mxu0
      %v5040 = vadd.f32 %v5011, %v5039
      %v5041 = vpop.f32.mrf.mxu0
      %v5042 = vadd.f32 %v5013, %v5041
      %5043 = vmatmul.bf16.gmra.mxu0 %v4743
      %v5044 = vpop.f32.mrf.mxu0
      %v5045 = vadd.f32 %v5016, %v5044
      %v5046 = vpop.f32.mrf.mxu0
      %v5047 = vadd.f32 %v5018, %v5046
      %5048 = vmatmul.bf16.gmra.mxu0 %v4748
      %v5049 = vpop.f32.mrf.mxu0
      %v5050 = vadd.f32 %v5021, %v5049
      %v5051 = vpop.f32.mrf.mxu0
      %v5052 = vadd.f32 %v5023, %v5051
      %5053 = vdwg.mxu0
      %5054 = vmatpush.bf16.msra.mxu0 %v4935
      %5055 = vmatpush.bf16.msra.mxu0 %v4934
      %5056 = vmatpush.bf16.msra.mxu0 %v4933
      %5057 = vmatpush.bf16.msra.mxu0 %v4932
      %5058 = vmatpush.bf16.msra.mxu0 %v4931
      %5059 = vmatpush.bf16.msra.mxu0 %v4930
      %5060 = vmatpush.bf16.msra.mxu0 %v4929
      %5061 = vmatpush.bf16.msra.mxu0 %v4928
      %5062 = vmatmul.bf16.gmra.mxu0 %v4734
      %v5063 = vpop.f32.mrf.mxu0
      %v5064 = vadd.f32 %v5035, %v5063
      %v5065 = vpop.f32.mrf.mxu0
      %v5066 = vadd.f32 %v5037, %v5065
      %5067 = vmatmul.bf16.gmra.mxu0 %v4739
      %v5068 = vpop.f32.mrf.mxu0
      %v5069 = vadd.f32 %v5040, %v5068
      %v5070 = vpop.f32.mrf.mxu0
      %v5071 = vadd.f32 %v5042, %v5070
      %5072 = vmatmul.bf16.gmra.mxu0 %v4744
      %v5073 = vpop.f32.mrf.mxu0
      %v5074 = vadd.f32 %v5045, %v5073
      %v5075 = vpop.f32.mrf.mxu0
      %v5076 = vadd.f32 %v5047, %v5075
      %5077 = vmatmul.bf16.gmra.mxu0 %v4749
      %v5078 = vpop.f32.mrf.mxu0
      %v5079 = vadd.f32 %v5050, %v5078
      %v5080 = vpop.f32.mrf.mxu0
      %v5081 = vadd.f32 %v5052, %v5080
      %5082 = vdwg.mxu0
      %5083 = vmatpush.bf16.msra.mxu0 %v4943
      %5084 = vmatpush.bf16.msra.mxu0 %v4942
      %5085 = vmatpush.bf16.msra.mxu0 %v4941
      %5086 = vmatpush.bf16.msra.mxu0 %v4940
      %5087 = vmatpush.bf16.msra.mxu0 %v4939
      %5088 = vmatpush.bf16.msra.mxu0 %v4938
      %5089 = vmatpush.bf16.msra.mxu0 %v4937
      %5090 = vmatpush.bf16.msra.mxu0 %v4936
      %5091 = vmatmul.bf16.gmra.mxu0 %v4735
      %v5092 = vpop.f32.mrf.mxu0
      %v5093 = vadd.f32 %v5064, %v5092
      %v5094 = vpop.f32.mrf.mxu0
      %v5095 = vadd.f32 %v5066, %v5094
      %5096 = vmatmul.bf16.gmra.mxu0 %v4740
      %v5097 = vpop.f32.mrf.mxu0
      %v5098 = vadd.f32 %v5069, %v5097
      %v5099 = vpop.f32.mrf.mxu0
      %v5100 = vadd.f32 %v5071, %v5099
      %5101 = vmatmul.bf16.gmra.mxu0 %v4745
      %v5102 = vpop.f32.mrf.mxu0
      %v5103 = vadd.f32 %v5074, %v5102
      %v5104 = vpop.f32.mrf.mxu0
      %v5105 = vadd.f32 %v5076, %v5104
      %5106 = vmatmul.bf16.gmra.mxu0 %v4750
      %v5107 = vpop.f32.mrf.mxu0
      %v5108 = vadd.f32 %v5079, %v5107
      %v5109 = vpop.f32.mrf.mxu0
      %v5110 = vadd.f32 %v5081, %v5109
      %5111 = vdwg.mxu0
      %5112 = vmatpush.bf16.msra.mxu0 0
      %5113 = vmatpush.bf16.msra.mxu0 0
      %5114 = vmatpush.bf16.msra.mxu0 0
      %5115 = vmatpush.bf16.msra.mxu0 0
      %5116 = vmatpush.bf16.msra.mxu0 %v4947
      %5117 = vmatpush.bf16.msra.mxu0 %v4946
      %5118 = vmatpush.bf16.msra.mxu0 %v4945
      %5119 = vmatpush.bf16.msra.mxu0 %v4944
      %5120 = vmatmul.bf16.gmra.mxu0 %v4985
      %v5121 = vpop.f32.mrf.mxu0
      %v5122 = vadd.f32 %v5093, %v5121
      %v5123 = vpop.f32.mrf.mxu0
      %v5124 = vadd.f32 %v5095, %v5123
      %5125 = vmatmul.bf16.gmra.mxu0 %v4988
      %v5126 = vpop.f32.mrf.mxu0
      %v5127 = vadd.f32 %v5098, %v5126
      %v5128 = vpop.f32.mrf.mxu0
      %v5129 = vadd.f32 %v5100, %v5128
      %5130 = vmatmul.bf16.gmra.mxu0 %v4991
      %v5131 = vpop.f32.mrf.mxu0
      %v5132 = vadd.f32 %v5103, %v5131
      %v5133 = vpop.f32.mrf.mxu0
      %v5134 = vadd.f32 %v5105, %v5133
      %5135 = vmatmul.bf16.gmra.mxu0 %v4994
      %v5136 = vpop.f32.mrf.mxu0
      %v5137 = vadd.f32 %v5108, %v5136
      %v5138 = vpop.f32.mrf.mxu0
      %v5139 = vadd.f32 %v5110, %v5138
      %5140 = vdwg.mxu0
      %s5141 = scalar_lea.vmem %s3, 4
      %v5142 = vld [vmem:[%s5141] sm:$0x1]
      %v5144 = vperm.slane %v5142, 0
      %v5146 = vmul.f32 %v5122, %v5144
      %v5147 = vmul.f32 %v5124, %v5144
      %v5148 = vmul.f32 %v5127, %v5144
      %v5149 = vmul.f32 %v5129, %v5144
      %v5150 = vmul.f32 %v5132, %v5144
      %v5151 = vmul.f32 %v5134, %v5144
      %v5152 = vmul.f32 %v5137, %v5144
      %v5153 = vmul.f32 %v5139, %v5144
      %s5154 = scalar_lea.vmem %s4, 4
      %v5155 = vld [vmem:[%s5154] sm:$0x1]
      %v5157 = vperm.slane %v5155, 0
      %v5159 = vadd.f32 %v5146, %v5157
      %v5160 = vadd.f32 %v5147, %v5157
      %v5161 = vadd.f32 %v5148, %v5157
      %v5162 = vadd.f32 %v5149, %v5157
      %v5163 = vadd.f32 %v5150, %v5157
      %v5164 = vadd.f32 %v5151, %v5157
      %v5165 = vadd.f32 %v5152, %v5157
      %v5166 = vadd.f32 %v5153, %v5157
      %v5167 = vadd.f32 %v3239, %v5159
      %v5168 = vadd.f32 %v3240, %v5160
      %v5169 = vadd.f32 %v3241, %v5161
      %v5170 = vadd.f32 %v3242, %v5162
      %v5171 = vadd.f32 %v3243, %v5163
      %v5172 = vadd.f32 %v3244, %v5164
      %v5173 = vadd.f32 %v3245, %v5165
      %v5174 = vadd.f32 %v3246, %v5166
      %vm5175 = vcmp.ge.f32.partialorder %v5167, 0.0
      %vm5176 = vcmp.ge.f32.partialorder %v5168, 0.0
      %vm5177 = vcmp.ge.f32.partialorder %v5169, 0.0
      %vm5178 = vcmp.ge.f32.partialorder %v5170, 0.0
      %vm5179 = vcmp.ge.f32.partialorder %v5171, 0.0
      %vm5180 = vcmp.ge.f32.partialorder %v5172, 0.0
      %vm5181 = vcmp.ge.f32.partialorder %v5173, 0.0
      %vm5182 = vcmp.ge.f32.partialorder %v5174, 0.0
      %v5183 = vmul.f32 %v5167, 0.01
      %v5184 = vmul.f32 %v5168, 0.01
      %v5185 = vmul.f32 %v5169, 0.01
      %v5186 = vmul.f32 %v5170, 0.01
      %v5187 = vmul.f32 %v5171, 0.01
      %v5188 = vmul.f32 %v5172, 0.01
      %v5189 = vmul.f32 %v5173, 0.01
      %v5190 = vmul.f32 %v5174, 0.01
      %v5191 = vsel %vm5175, %v5167, %v5183
      %v5192 = vsel %vm5176, %v5168, %v5184
      %v5193 = vsel %vm5177, %v5169, %v5185
      %v5194 = vsel %vm5178, %v5170, %v5186
      %v5195 = vsel %vm5179, %v5171, %v5187
      %v5196 = vsel %vm5180, %v5172, %v5188
      %v5197 = vsel %vm5181, %v5173, %v5189
      %v5198 = vsel %vm5182, %v5174, %v5190
      %5199 = vst.msk [vmem:[%s321 + $0x1] sm:$0xff] %vm291, %v5191
      %5200 = vst.msk [vmem:[%s321 + $0x11] sm:$0xff] %vm291, %v5192
      %5201 = vst.msk [vmem:[%s321 + $0x21] sm:$0xff] %vm291, %v5193
      %5202 = vst.msk [vmem:[%s321 + $0x31] sm:$0xff] %vm291, %v5194
      %5203 = vst.msk [vmem:[%s321 + $0x41] sm:$0xff] %vm291, %v5195
      %5204 = vst.msk [vmem:[%s321 + $0x51] sm:$0xff] %vm291, %v5196
      %5205 = vst.msk [vmem:[%s321 + $0x61] sm:$0xff] %vm291, %v5197
      %5206 = vst.msk [vmem:[%s321 + $0x71] sm:$0xff] %vm291, %v5198
      %v5207 = vld [vmem:[#allocation2] sm:$0xff]
      %v5208 = vld [vmem:[#allocation2 + $0x10] sm:$0xff]
      %v5209 = vld [vmem:[#allocation2 + $0x20] sm:$0xff]
      %v5210 = vld [vmem:[#allocation2 + $0x30] sm:$0xff]
      %v5211 = vld [vmem:[#allocation2 + $0x40] sm:$0xff]
      %v5212 = vld [vmem:[#allocation2 + $0x50] sm:$0xff]
      %v5213 = vld [vmem:[#allocation2 + $0x60] sm:$0xff]
      %v5214 = vld [vmem:[#allocation2 + $0x70] sm:$0xff]
      %v5215 = vpack.c.bf16 %v5207, %v5207
      %v5216 = vpack.c.bf16 %v5208, %v5208
      %v5217 = vpack.c.bf16 %v5209, %v5209
      %v5218 = vpack.c.bf16 %v5210, %v5210
      %v5219 = vpack.c.bf16 %v5211, %v5211
      %v5220 = vpack.c.bf16 %v5212, %v5212
      %v5221 = vpack.c.bf16 %v5213, %v5213
      %v5222 = vpack.c.bf16 %v5214, %v5214
      %5223 = vst.msk [vmem:[#allocation3] sm:$0xf] %vm347, %v5215
      %5224 = vst.msk [vmem:[#allocation3 + $0x14] sm:$0xf] %vm347, %v5216
      %5225 = vst.msk [vmem:[#allocation3 + $0x28] sm:$0xf] %vm347, %v5217
      %5226 = vst.msk [vmem:[#allocation3 + $0x3c] sm:$0xf] %vm347, %v5218
      %5227 = vst.msk [vmem:[#allocation3 + $0x50] sm:$0xf] %vm347, %v5219
      %5228 = vst.msk [vmem:[#allocation3 + $0x64] sm:$0xf] %vm347, %v5220
      %5229 = vst.msk [vmem:[#allocation3 + $0x78] sm:$0xf] %vm347, %v5221
      %5230 = vst.msk [vmem:[#allocation3 + $0x8c] sm:$0xf] %vm347, %v5222
      %v5231 = vld [vmem:[#allocation2 + $0x1] sm:$0xff]
      %v5232 = vld [vmem:[#allocation2 + $0x11] sm:$0xff]
      %v5233 = vld [vmem:[#allocation2 + $0x21] sm:$0xff]
      %v5234 = vld [vmem:[#allocation2 + $0x31] sm:$0xff]
      %v5235 = vld [vmem:[#allocation2 + $0x41] sm:$0xff]
      %v5236 = vld [vmem:[#allocation2 + $0x51] sm:$0xff]
      %v5237 = vld [vmem:[#allocation2 + $0x61] sm:$0xff]
      %v5238 = vld [vmem:[#allocation2 + $0x71] sm:$0xff]
      %v5239 = vpack.c.bf16 %v5231, %v5231
      %v5240 = vpack.c.bf16 %v5232, %v5232
      %v5241 = vpack.c.bf16 %v5233, %v5233
      %v5242 = vpack.c.bf16 %v5234, %v5234
      %v5243 = vpack.c.bf16 %v5235, %v5235
      %v5244 = vpack.c.bf16 %v5236, %v5236
      %v5245 = vpack.c.bf16 %v5237, %v5237
      %v5246 = vpack.c.bf16 %v5238, %v5238
      %5255 = vrot.lane.b32.xlu0 %v5239, 64
      %v5256 = vpop.permute.xlu0 %5255
      %5257 = vrot.lane.b32.xlu0 %v5240, 64
      %v5258 = vpop.permute.xlu0 %5257
      %5259 = vrot.lane.b32.xlu0 %v5241, 64
      %v5260 = vpop.permute.xlu0 %5259
      %5261 = vrot.lane.b32.xlu0 %v5242, 64
      %v5262 = vpop.permute.xlu0 %5261
      %5263 = vrot.lane.b32.xlu0 %v5243, 64
      %v5264 = vpop.permute.xlu0 %5263
      %5265 = vrot.lane.b32.xlu0 %v5244, 64
      %v5266 = vpop.permute.xlu0 %5265
      %5267 = vrot.lane.b32.xlu0 %v5245, 64
      %v5268 = vpop.permute.xlu0 %5267
      %5269 = vrot.lane.b32.xlu0 %v5246, 64
      %v5270 = vpop.permute.xlu0 %5269
      %5279 = vst.msk [vmem:[#allocation3] sm:$0xf] %vm404, %v5256
      %5280 = vst.msk [vmem:[#allocation3 + $0x14] sm:$0xf] %vm404, %v5258
      %5281 = vst.msk [vmem:[#allocation3 + $0x28] sm:$0xf] %vm404, %v5260
      %5282 = vst.msk [vmem:[#allocation3 + $0x3c] sm:$0xf] %vm404, %v5262
      %5283 = vst.msk [vmem:[#allocation3 + $0x50] sm:$0xf] %vm404, %v5264
      %5284 = vst.msk [vmem:[#allocation3 + $0x64] sm:$0xf] %vm404, %v5266
      %5285 = vst.msk [vmem:[#allocation3 + $0x78] sm:$0xf] %vm404, %v5268
      %5286 = vst.msk [vmem:[#allocation3 + $0x8c] sm:$0xf] %vm404, %v5270
      %v5287 = vld [vmem:[#allocation2 + $0x2] sm:$0xff]
      %v5288 = vld [vmem:[#allocation2 + $0x12] sm:$0xff]
      %v5289 = vld [vmem:[#allocation2 + $0x22] sm:$0xff]
      %v5290 = vld [vmem:[#allocation2 + $0x32] sm:$0xff]
      %v5291 = vld [vmem:[#allocation2 + $0x42] sm:$0xff]
      %v5292 = vld [vmem:[#allocation2 + $0x52] sm:$0xff]
      %v5293 = vld [vmem:[#allocation2 + $0x62] sm:$0xff]
      %v5294 = vld [vmem:[#allocation2 + $0x72] sm:$0xff]
      %v5295 = vpack.c.bf16 %v5287, %v5287
      %v5296 = vpack.c.bf16 %v5288, %v5288
      %v5297 = vpack.c.bf16 %v5289, %v5289
      %v5298 = vpack.c.bf16 %v5290, %v5290
      %v5299 = vpack.c.bf16 %v5291, %v5291
      %v5300 = vpack.c.bf16 %v5292, %v5292
      %v5301 = vpack.c.bf16 %v5293, %v5293
      %v5302 = vpack.c.bf16 %v5294, %v5294
      %5303 = vst.msk [vmem:[#allocation3 + $0x4] sm:$0xf] %vm347, %v5295
      %5304 = vst.msk [vmem:[#allocation3 + $0x18] sm:$0xf] %vm347, %v5296
      %5305 = vst.msk [vmem:[#allocation3 + $0x2c] sm:$0xf] %vm347, %v5297
      %5306 = vst.msk [vmem:[#allocation3 + $0x40] sm:$0xf] %vm347, %v5298
      %5307 = vst.msk [vmem:[#allocation3 + $0x54] sm:$0xf] %vm347, %v5299
      %5308 = vst.msk [vmem:[#allocation3 + $0x68] sm:$0xf] %vm347, %v5300
      %5309 = vst.msk [vmem:[#allocation3 + $0x7c] sm:$0xf] %vm347, %v5301
      %5310 = vst.msk [vmem:[#allocation3 + $0x90] sm:$0xf] %vm347, %v5302
      %v5311 = vld [vmem:[%s321] sm:$0xff]
      %v5312 = vld [vmem:[%s321 + $0x10] sm:$0xff]
      %v5313 = vld [vmem:[%s321 + $0x20] sm:$0xff]
      %v5314 = vld [vmem:[%s321 + $0x30] sm:$0xff]
      %v5315 = vld [vmem:[%s321 + $0x40] sm:$0xff]
      %v5316 = vld [vmem:[%s321 + $0x50] sm:$0xff]
      %v5317 = vld [vmem:[%s321 + $0x60] sm:$0xff]
      %v5318 = vld [vmem:[%s321 + $0x70] sm:$0xff]
      %v5319 = vpack.c.bf16 %v5311, %v5311
      %v5320 = vpack.c.bf16 %v5312, %v5312
      %v5321 = vpack.c.bf16 %v5313, %v5313
      %v5322 = vpack.c.bf16 %v5314, %v5314
      %v5323 = vpack.c.bf16 %v5315, %v5315
      %v5324 = vpack.c.bf16 %v5316, %v5316
      %v5325 = vpack.c.bf16 %v5317, %v5317
      %v5326 = vpack.c.bf16 %v5318, %v5318
      %5335 = vrot.lane.b32.xlu0 %v5319, 64
      %v5336 = vpop.permute.xlu0 %5335
      %5337 = vrot.lane.b32.xlu0 %v5320, 64
      %v5338 = vpop.permute.xlu0 %5337
      %5339 = vrot.lane.b32.xlu0 %v5321, 64
      %v5340 = vpop.permute.xlu0 %5339
      %5341 = vrot.lane.b32.xlu0 %v5322, 64
      %v5342 = vpop.permute.xlu0 %5341
      %5343 = vrot.lane.b32.xlu0 %v5323, 64
      %v5344 = vpop.permute.xlu0 %5343
      %5345 = vrot.lane.b32.xlu0 %v5324, 64
      %v5346 = vpop.permute.xlu0 %5345
      %5347 = vrot.lane.b32.xlu0 %v5325, 64
      %v5348 = vpop.permute.xlu0 %5347
      %5349 = vrot.lane.b32.xlu0 %v5326, 64
      %v5350 = vpop.permute.xlu0 %5349
      %5359 = vst.msk [vmem:[#allocation3 + $0x4] sm:$0xf] %vm404, %v5336
      %5360 = vst.msk [vmem:[#allocation3 + $0x18] sm:$0xf] %vm404, %v5338
      %5361 = vst.msk [vmem:[#allocation3 + $0x2c] sm:$0xf] %vm404, %v5340
      %5362 = vst.msk [vmem:[#allocation3 + $0x40] sm:$0xf] %vm404, %v5342
      %5363 = vst.msk [vmem:[#allocation3 + $0x54] sm:$0xf] %vm404, %v5344
      %5364 = vst.msk [vmem:[#allocation3 + $0x68] sm:$0xf] %vm404, %v5346
      %5365 = vst.msk [vmem:[#allocation3 + $0x7c] sm:$0xf] %vm404, %v5348
      %5366 = vst.msk [vmem:[#allocation3 + $0x90] sm:$0xf] %vm404, %v5350
      %v5367 = vld [vmem:[%s321 + $0x1] sm:$0xff]
      %v5368 = vld [vmem:[%s321 + $0x11] sm:$0xff]
      %v5369 = vld [vmem:[%s321 + $0x21] sm:$0xff]
      %v5370 = vld [vmem:[%s321 + $0x31] sm:$0xff]
      %v5371 = vld [vmem:[%s321 + $0x41] sm:$0xff]
      %v5372 = vld [vmem:[%s321 + $0x51] sm:$0xff]
      %v5373 = vld [vmem:[%s321 + $0x61] sm:$0xff]
      %v5374 = vld [vmem:[%s321 + $0x71] sm:$0xff]
      %v5375 = vpack.c.bf16 %v5367, %v5367
      %v5376 = vpack.c.bf16 %v5368, %v5368
      %v5377 = vpack.c.bf16 %v5369, %v5369
      %v5378 = vpack.c.bf16 %v5370, %v5370
      %v5379 = vpack.c.bf16 %v5371, %v5371
      %v5380 = vpack.c.bf16 %v5372, %v5372
      %v5381 = vpack.c.bf16 %v5373, %v5373
      %v5382 = vpack.c.bf16 %v5374, %v5374
      %5383 = vst.msk [vmem:[#allocation3 + $0x8] sm:$0xf] %vm347, %v5375
      %5384 = vst.msk [vmem:[#allocation3 + $0x1c] sm:$0xf] %vm347, %v5376
      %5385 = vst.msk [vmem:[#allocation3 + $0x30] sm:$0xf] %vm347, %v5377
      %5386 = vst.msk [vmem:[#allocation3 + $0x44] sm:$0xf] %vm347, %v5378
      %5387 = vst.msk [vmem:[#allocation3 + $0x58] sm:$0xf] %vm347, %v5379
      %5388 = vst.msk [vmem:[#allocation3 + $0x6c] sm:$0xf] %vm347, %v5380
      %5389 = vst.msk [vmem:[#allocation3 + $0x80] sm:$0xf] %vm347, %v5381
      %5390 = vst.msk [vmem:[#allocation3 + $0x94] sm:$0xf] %vm347, %v5382
      %v5391 = vld [vmem:[%s321 + $0x2] sm:$0xff]
      %v5392 = vld [vmem:[%s321 + $0x12] sm:$0xff]
      %v5393 = vld [vmem:[%s321 + $0x22] sm:$0xff]
      %v5394 = vld [vmem:[%s321 + $0x32] sm:$0xff]
      %v5395 = vld [vmem:[%s321 + $0x42] sm:$0xff]
      %v5396 = vld [vmem:[%s321 + $0x52] sm:$0xff]
      %v5397 = vld [vmem:[%s321 + $0x62] sm:$0xff]
      %v5398 = vld [vmem:[%s321 + $0x72] sm:$0xff]
      %v5399 = vpack.c.bf16 %v5391, %v5391
      %v5400 = vpack.c.bf16 %v5392, %v5392
      %v5401 = vpack.c.bf16 %v5393, %v5393
      %v5402 = vpack.c.bf16 %v5394, %v5394
      %v5403 = vpack.c.bf16 %v5395, %v5395
      %v5404 = vpack.c.bf16 %v5396, %v5396
      %v5405 = vpack.c.bf16 %v5397, %v5397
      %v5406 = vpack.c.bf16 %v5398, %v5398
      %5415 = vrot.lane.b32.xlu0 %v5399, 64
      %v5416 = vpop.permute.xlu0 %5415
      %5417 = vrot.lane.b32.xlu0 %v5400, 64
      %v5418 = vpop.permute.xlu0 %5417
      %5419 = vrot.lane.b32.xlu0 %v5401, 64
      %v5420 = vpop.permute.xlu0 %5419
      %5421 = vrot.lane.b32.xlu0 %v5402, 64
      %v5422 = vpop.permute.xlu0 %5421
      %5423 = vrot.lane.b32.xlu0 %v5403, 64
      %v5424 = vpop.permute.xlu0 %5423
      %5425 = vrot.lane.b32.xlu0 %v5404, 64
      %v5426 = vpop.permute.xlu0 %5425
      %5427 = vrot.lane.b32.xlu0 %v5405, 64
      %v5428 = vpop.permute.xlu0 %5427
      %5429 = vrot.lane.b32.xlu0 %v5406, 64
      %v5430 = vpop.permute.xlu0 %5429
      %5439 = vst.msk [vmem:[#allocation3 + $0x8] sm:$0xf] %vm404, %v5416
      %5440 = vst.msk [vmem:[#allocation3 + $0x1c] sm:$0xf] %vm404, %v5418
      %5441 = vst.msk [vmem:[#allocation3 + $0x30] sm:$0xf] %vm404, %v5420
      %5442 = vst.msk [vmem:[#allocation3 + $0x44] sm:$0xf] %vm404, %v5422
      %5443 = vst.msk [vmem:[#allocation3 + $0x58] sm:$0xf] %vm404, %v5424
      %5444 = vst.msk [vmem:[#allocation3 + $0x6c] sm:$0xf] %vm404, %v5426
      %5445 = vst.msk [vmem:[#allocation3 + $0x80] sm:$0xf] %vm404, %v5428
      %5446 = vst.msk [vmem:[#allocation3 + $0x94] sm:$0xf] %vm404, %v5430
      %v5447 = vld [vmem:[%s573] sm:$0xff]
      %v5448 = vld [vmem:[%s573 + $0x10] sm:$0xff]
      %v5449 = vld [vmem:[%s573 + $0x20] sm:$0xff]
      %v5450 = vld [vmem:[%s573 + $0x30] sm:$0xff]
      %v5451 = vld [vmem:[%s573 + $0x40] sm:$0xff]
      %v5452 = vld [vmem:[%s573 + $0x50] sm:$0xff]
      %v5453 = vld [vmem:[%s573 + $0x60] sm:$0xff]
      %v5454 = vld [vmem:[%s573 + $0x70] sm:$0xff]
      %v5455 = vpack.c.bf16 %v5447, %v5447
      %v5456 = vpack.c.bf16 %v5448, %v5448
      %v5457 = vpack.c.bf16 %v5449, %v5449
      %v5458 = vpack.c.bf16 %v5450, %v5450
      %v5459 = vpack.c.bf16 %v5451, %v5451
      %v5460 = vpack.c.bf16 %v5452, %v5452
      %v5461 = vpack.c.bf16 %v5453, %v5453
      %v5462 = vpack.c.bf16 %v5454, %v5454
      %5463 = vst.msk [vmem:[#allocation3 + $0xc] sm:$0xf] %vm347, %v5455
      %5464 = vst.msk [vmem:[#allocation3 + $0x20] sm:$0xf] %vm347, %v5456
      %5465 = vst.msk [vmem:[#allocation3 + $0x34] sm:$0xf] %vm347, %v5457
      %5466 = vst.msk [vmem:[#allocation3 + $0x48] sm:$0xf] %vm347, %v5458
      %5467 = vst.msk [vmem:[#allocation3 + $0x5c] sm:$0xf] %vm347, %v5459
      %5468 = vst.msk [vmem:[#allocation3 + $0x70] sm:$0xf] %vm347, %v5460
      %5469 = vst.msk [vmem:[#allocation3 + $0x84] sm:$0xf] %vm347, %v5461
      %5470 = vst.msk [vmem:[#allocation3 + $0x98] sm:$0xf] %vm347, %v5462
      %v5471 = vld [vmem:[%s573 + $0x1] sm:$0xff]
      %v5472 = vld [vmem:[%s573 + $0x11] sm:$0xff]
      %v5473 = vld [vmem:[%s573 + $0x21] sm:$0xff]
      %v5474 = vld [vmem:[%s573 + $0x31] sm:$0xff]
      %v5475 = vld [vmem:[%s573 + $0x41] sm:$0xff]
      %v5476 = vld [vmem:[%s573 + $0x51] sm:$0xff]
      %v5477 = vld [vmem:[%s573 + $0x61] sm:$0xff]
      %v5478 = vld [vmem:[%s573 + $0x71] sm:$0xff]
      %v5479 = vpack.c.bf16 %v5471, %v5471
      %v5480 = vpack.c.bf16 %v5472, %v5472
      %v5481 = vpack.c.bf16 %v5473, %v5473
      %v5482 = vpack.c.bf16 %v5474, %v5474
      %v5483 = vpack.c.bf16 %v5475, %v5475
      %v5484 = vpack.c.bf16 %v5476, %v5476
      %v5485 = vpack.c.bf16 %v5477, %v5477
      %v5486 = vpack.c.bf16 %v5478, %v5478
      %5495 = vrot.lane.b32.xlu0 %v5479, 64
      %v5496 = vpop.permute.xlu0 %5495
      %5497 = vrot.lane.b32.xlu0 %v5480, 64
      %v5498 = vpop.permute.xlu0 %5497
      %5499 = vrot.lane.b32.xlu0 %v5481, 64
      %v5500 = vpop.permute.xlu0 %5499
      %5501 = vrot.lane.b32.xlu0 %v5482, 64
      %v5502 = vpop.permute.xlu0 %5501
      %5503 = vrot.lane.b32.xlu0 %v5483, 64
      %v5504 = vpop.permute.xlu0 %5503
      %5505 = vrot.lane.b32.xlu0 %v5484, 64
      %v5506 = vpop.permute.xlu0 %5505
      %5507 = vrot.lane.b32.xlu0 %v5485, 64
      %v5508 = vpop.permute.xlu0 %5507
      %5509 = vrot.lane.b32.xlu0 %v5486, 64
      %v5510 = vpop.permute.xlu0 %5509
      %5519 = vst.msk [vmem:[#allocation3 + $0xc] sm:$0xf] %vm404, %v5496
      %5520 = vst.msk [vmem:[#allocation3 + $0x20] sm:$0xf] %vm404, %v5498
      %5521 = vst.msk [vmem:[#allocation3 + $0x34] sm:$0xf] %vm404, %v5500
      %5522 = vst.msk [vmem:[#allocation3 + $0x48] sm:$0xf] %vm404, %v5502
      %5523 = vst.msk [vmem:[#allocation3 + $0x5c] sm:$0xf] %vm404, %v5504
      %5524 = vst.msk [vmem:[#allocation3 + $0x70] sm:$0xf] %vm404, %v5506
      %5525 = vst.msk [vmem:[#allocation3 + $0x84] sm:$0xf] %vm404, %v5508
      %5526 = vst.msk [vmem:[#allocation3 + $0x98] sm:$0xf] %vm404, %v5510
      %v5527 = vld [vmem:[%s573 + $0x2] sm:$0xff]
      %v5528 = vld [vmem:[%s573 + $0x12] sm:$0xff]
      %v5529 = vld [vmem:[%s573 + $0x22] sm:$0xff]
      %v5530 = vld [vmem:[%s573 + $0x32] sm:$0xff]
      %v5531 = vld [vmem:[%s573 + $0x42] sm:$0xff]
      %v5532 = vld [vmem:[%s573 + $0x52] sm:$0xff]
      %v5533 = vld [vmem:[%s573 + $0x62] sm:$0xff]
      %v5534 = vld [vmem:[%s573 + $0x72] sm:$0xff]
      %v5535 = vpack.c.bf16 %v5527, %v5527
      %v5536 = vpack.c.bf16 %v5528, %v5528
      %v5537 = vpack.c.bf16 %v5529, %v5529
      %v5538 = vpack.c.bf16 %v5530, %v5530
      %v5539 = vpack.c.bf16 %v5531, %v5531
      %v5540 = vpack.c.bf16 %v5532, %v5532
      %v5541 = vpack.c.bf16 %v5533, %v5533
      %v5542 = vpack.c.bf16 %v5534, %v5534
      %5543 = vst.msk [vmem:[#allocation3 + $0x10] sm:$0xf] %vm347, %v5535
      %5544 = vst.msk [vmem:[#allocation3 + $0x24] sm:$0xf] %vm347, %v5536
      %5545 = vst.msk [vmem:[#allocation3 + $0x38] sm:$0xf] %vm347, %v5537
      %5546 = vst.msk [vmem:[#allocation3 + $0x4c] sm:$0xf] %vm347, %v5538
      %5547 = vst.msk [vmem:[#allocation3 + $0x60] sm:$0xf] %vm347, %v5539
      %5548 = vst.msk [vmem:[#allocation3 + $0x74] sm:$0xf] %vm347, %v5540
      %5549 = vst.msk [vmem:[#allocation3 + $0x88] sm:$0xf] %vm347, %v5541
      %5550 = vst.msk [vmem:[#allocation3 + $0x9c] sm:$0xf] %vm347, %v5542
      %v5551 = vld [vmem:[#allocation3] sm:$0xff]
      %v5552 = vld [vmem:[#allocation3 + $0x8] sm:$0xff]
      %v5553 = vld [vmem:[#allocation3 + $0x10] sm:$0xf]
      %v5554 = vld [vmem:[#allocation3 + $0x14] sm:$0xff]
      %v5555 = vld [vmem:[#allocation3 + $0x1c] sm:$0xff]
      %v5556 = vld [vmem:[#allocation3 + $0x24] sm:$0xf]
      %v5557 = vld [vmem:[#allocation3 + $0x28] sm:$0xff]
      %v5558 = vld [vmem:[#allocation3 + $0x30] sm:$0xff]
      %v5559 = vld [vmem:[#allocation3 + $0x38] sm:$0xf]
      %v5560 = vld [vmem:[#allocation3 + $0x3c] sm:$0xff]
      %v5561 = vld [vmem:[#allocation3 + $0x44] sm:$0xff]
      %v5562 = vld [vmem:[#allocation3 + $0x4c] sm:$0xf]
      %v5563 = vld [vmem:[#allocation3 + $0x50] sm:$0xff]
      %v5564 = vld [vmem:[#allocation3 + $0x58] sm:$0xff]
      %v5565 = vld [vmem:[#allocation3 + $0x60] sm:$0xf]
      %v5566 = vld [vmem:[#allocation3 + $0x64] sm:$0xff]
      %v5567 = vld [vmem:[#allocation3 + $0x6c] sm:$0xff]
      %v5568 = vld [vmem:[#allocation3 + $0x74] sm:$0xf]
      %v5569 = vld [vmem:[#allocation3 + $0x78] sm:$0xff]
      %v5570 = vld [vmem:[#allocation3 + $0x80] sm:$0xff]
      %v5571 = vld [vmem:[#allocation3 + $0x88] sm:$0xf]
      %v5572 = vld [vmem:[#allocation3 + $0x8c] sm:$0xff]
      %v5573 = vld [vmem:[#allocation3 + $0x94] sm:$0xff]
      %v5574 = vld [vmem:[#allocation3 + $0x9c] sm:$0xf]
      %s5575 = scalar_lea.vmem %s2, 1440
      %v5576 = vld [vmem:[%s5575] sm:$0xf]
      %v5577 = vld [vmem:[%s5575 + $0x4] sm:$0xf]
      %v5578 = vld [vmem:[%s5575 + $0x8] sm:$0xf]
      %v5579 = vld [vmem:[%s5575 + $0xc] sm:$0xf]
      %v5580 = vld [vmem:[%s5575 + $0x10] sm:$0xf]
      %v5581 = vld [vmem:[%s5575 + $0x14] sm:$0xf]
      %v5582 = vld [vmem:[%s5575 + $0x18] sm:$0xf]
      %v5583 = vld [vmem:[%s5575 + $0x1c] sm:$0xf]
      %v5584 = vld [vmem:[%s5575 + $0x20] sm:$0xf]
      %v5585 = vld [vmem:[%s5575 + $0x24] sm:$0xf]
      %v5586 = vld [vmem:[%s5575 + $0x28] sm:$0xf]
      %v5587 = vld [vmem:[%s5575 + $0x2c] sm:$0xf]
      %v5588 = vld [vmem:[%s5575 + $0x30] sm:$0xf]
      %v5589 = vld [vmem:[%s5575 + $0x34] sm:$0xf]
      %v5590 = vld [vmem:[%s5575 + $0x38] sm:$0xf]
      %v5591 = vld [vmem:[%s5575 + $0x3c] sm:$0xf]
      %v5592 = vld [vmem:[%s5575 + $0x40] sm:$0xf]
      %v5593 = vld [vmem:[%s5575 + $0x44] sm:$0xf]
      %v5594 = vld [vmem:[%s5575 + $0x48] sm:$0xf]
      %v5595 = vld [vmem:[%s5575 + $0x4c] sm:$0xf]
      %v5596 = vld [vmem:[%s5575 + $0x50] sm:$0xf]
      %v5597 = vld [vmem:[%s5575 + $0x54] sm:$0xf]
      %v5598 = vld [vmem:[%s5575 + $0x58] sm:$0xf]
      %v5599 = vld [vmem:[%s5575 + $0x5c] sm:$0xf]
      %v5600 = vld [vmem:[%s5575 + $0x60] sm:$0xf]
      %v5601 = vld [vmem:[%s5575 + $0x64] sm:$0xf]
      %v5602 = vld [vmem:[%s5575 + $0x68] sm:$0xf]
      %v5603 = vld [vmem:[%s5575 + $0x6c] sm:$0xf]
      %v5604 = vld [vmem:[%s5575 + $0x70] sm:$0xf]
      %v5605 = vld [vmem:[%s5575 + $0x74] sm:$0xf]
      %v5606 = vld [vmem:[%s5575 + $0x78] sm:$0xf]
      %v5607 = vld [vmem:[%s5575 + $0x7c] sm:$0xf]
      %v5608 = vld [vmem:[%s5575 + $0x80] sm:$0xf]
      %v5609 = vld [vmem:[%s5575 + $0x84] sm:$0xf]
      %v5610 = vld [vmem:[%s5575 + $0x88] sm:$0xf]
      %v5611 = vld [vmem:[%s5575 + $0x8c] sm:$0xf]
      %v5612 = vld [vmem:[%s5575 + $0x90] sm:$0xf]
      %v5613 = vld [vmem:[%s5575 + $0x94] sm:$0xf]
      %v5614 = vld [vmem:[%s5575 + $0x98] sm:$0xf]
      %v5615 = vld [vmem:[%s5575 + $0x9c] sm:$0xf]
      %v5616 = vld [vmem:[%s5575 + $0xa0] sm:$0xf]
      %v5617 = vld [vmem:[%s5575 + $0xa4] sm:$0xf]
      %v5618 = vld [vmem:[%s5575 + $0xa8] sm:$0xf]
      %v5619 = vld [vmem:[%s5575 + $0xac] sm:$0xf]
      %v5620 = vld [vmem:[%s5575 + $0xb0] sm:$0xf]
      %v5621 = vld [vmem:[%s5575 + $0xb4] sm:$0xf]
      %v5622 = vld [vmem:[%s5575 + $0xb8] sm:$0xf]
      %v5623 = vld [vmem:[%s5575 + $0xbc] sm:$0xf]
      %v5624 = vld [vmem:[%s5575 + $0xc0] sm:$0xf]
      %v5625 = vld [vmem:[%s5575 + $0xc4] sm:$0xf]
      %v5626 = vld [vmem:[%s5575 + $0xc8] sm:$0xf]
      %v5627 = vld [vmem:[%s5575 + $0xcc] sm:$0xf]
      %v5628 = vld [vmem:[%s5575 + $0xd0] sm:$0xf]
      %v5629 = vld [vmem:[%s5575 + $0xd4] sm:$0xf]
      %v5630 = vld [vmem:[%s5575 + $0xd8] sm:$0xf]
      %v5631 = vld [vmem:[%s5575 + $0xdc] sm:$0xf]
      %v5632 = vld [vmem:[%s5575 + $0xe0] sm:$0xf]
      %v5633 = vld [vmem:[%s5575 + $0xe4] sm:$0xf]
      %v5634 = vld [vmem:[%s5575 + $0xe8] sm:$0xf]
      %v5635 = vld [vmem:[%s5575 + $0xec] sm:$0xf]
      %v5636 = vld [vmem:[%s5575 + $0xf0] sm:$0xf]
      %v5637 = vld [vmem:[%s5575 + $0xf4] sm:$0xf]
      %v5638 = vld [vmem:[%s5575 + $0xf8] sm:$0xf]
      %v5639 = vld [vmem:[%s5575 + $0xfc] sm:$0xf]
      %v5640 = vld [vmem:[%s5575 + $0x100] sm:$0xf]
      %v5641 = vld [vmem:[%s5575 + $0x104] sm:$0xf]
      %v5642 = vld [vmem:[%s5575 + $0x108] sm:$0xf]
      %v5643 = vld [vmem:[%s5575 + $0x10c] sm:$0xf]
      %v5644 = vld [vmem:[%s5575 + $0x110] sm:$0xf]
      %v5645 = vld [vmem:[%s5575 + $0x114] sm:$0xf]
      %v5646 = vld [vmem:[%s5575 + $0x118] sm:$0xf]
      %v5647 = vld [vmem:[%s5575 + $0x11c] sm:$0xf]
      %v5672 = vunpack.c.l.b16 %v5551
      %v5673 = vunpack.c.h.b16 %v5551
      %v5674 = vunpack.c.l.b16 %v5552
      %v5675 = vunpack.c.h.b16 %v5552
      %v5676 = vunpack.c.l.b16 %v5553
      %v5677 = vunpack.c.l.b16 %v5554
      %v5678 = vunpack.c.h.b16 %v5554
      %v5679 = vunpack.c.l.b16 %v5555
      %v5680 = vunpack.c.h.b16 %v5555
      %v5681 = vunpack.c.l.b16 %v5556
      %v5682 = vunpack.c.l.b16 %v5557
      %v5683 = vunpack.c.h.b16 %v5557
      %v5684 = vunpack.c.l.b16 %v5558
      %v5685 = vunpack.c.h.b16 %v5558
      %v5686 = vunpack.c.l.b16 %v5559
      %v5687 = vunpack.c.l.b16 %v5560
      %v5688 = vunpack.c.h.b16 %v5560
      %v5689 = vunpack.c.l.b16 %v5561
      %v5690 = vunpack.c.h.b16 %v5561
      %v5691 = vunpack.c.l.b16 %v5562
      %v5692 = vunpack.c.l.b16 %v5563
      %v5693 = vunpack.c.h.b16 %v5563
      %v5694 = vunpack.c.l.b16 %v5564
      %v5695 = vunpack.c.h.b16 %v5564
      %v5696 = vunpack.c.l.b16 %v5565
      %v5697 = vunpack.c.l.b16 %v5566
      %v5698 = vunpack.c.h.b16 %v5566
      %v5699 = vunpack.c.l.b16 %v5567
      %v5700 = vunpack.c.h.b16 %v5567
      %v5701 = vunpack.c.l.b16 %v5568
      %v5702 = vunpack.c.l.b16 %v5569
      %v5703 = vunpack.c.h.b16 %v5569
      %v5704 = vunpack.c.l.b16 %v5570
      %v5705 = vunpack.c.h.b16 %v5570
      %v5706 = vunpack.c.l.b16 %v5571
      %v5707 = vunpack.c.l.b16 %v5572
      %v5708 = vunpack.c.h.b16 %v5572
      %v5709 = vunpack.c.l.b16 %v5573
      %v5710 = vunpack.c.h.b16 %v5573
      %v5711 = vunpack.c.l.b16 %v5574
      %v5712 = vpack.c.b16 %v5677, %v5672
      %v5713 = vpack.c.b16 %v5678, %v5673
      %v5714 = vpack.c.b16 %v5679, %v5674
      %v5715 = vpack.c.b16 %v5680, %v5675
      %v5716 = vpack.c.b16 %v5681, %v5676
      %v5717 = vpack.c.b16 %v5687, %v5682
      %v5718 = vpack.c.b16 %v5688, %v5683
      %v5719 = vpack.c.b16 %v5689, %v5684
      %v5720 = vpack.c.b16 %v5690, %v5685
      %v5721 = vpack.c.b16 %v5691, %v5686
      %v5722 = vpack.c.b16 %v5697, %v5692
      %v5723 = vpack.c.b16 %v5698, %v5693
      %v5724 = vpack.c.b16 %v5699, %v5694
      %v5725 = vpack.c.b16 %v5700, %v5695
      %v5726 = vpack.c.b16 %v5701, %v5696
      %v5727 = vpack.c.b16 %v5707, %v5702
      %v5728 = vpack.c.b16 %v5708, %v5703
      %v5729 = vpack.c.b16 %v5709, %v5704
      %v5730 = vpack.c.b16 %v5710, %v5705
      %v5731 = vpack.c.b16 %v5711, %v5706
      %v5820 = vunpack.c.l.b16 %v5576
      %v5821 = vunpack.c.l.b16 %v5577
      %v5822 = vunpack.c.l.b16 %v5578
      %v5823 = vunpack.c.l.b16 %v5579
      %v5824 = vunpack.c.l.b16 %v5580
      %v5825 = vunpack.c.l.b16 %v5581
      %v5826 = vunpack.c.l.b16 %v5582
      %v5827 = vunpack.c.l.b16 %v5583
      %v5828 = vunpack.c.l.b16 %v5584
      %v5829 = vunpack.c.l.b16 %v5585
      %v5830 = vunpack.c.l.b16 %v5586
      %v5831 = vunpack.c.l.b16 %v5587
      %v5832 = vunpack.c.l.b16 %v5588
      %v5833 = vunpack.c.l.b16 %v5589
      %v5834 = vunpack.c.l.b16 %v5590
      %v5835 = vunpack.c.l.b16 %v5591
      %v5836 = vunpack.c.l.b16 %v5592
      %v5837 = vunpack.c.l.b16 %v5593
      %v5838 = vunpack.c.l.b16 %v5594
      %v5839 = vunpack.c.l.b16 %v5595
      %v5840 = vunpack.c.l.b16 %v5596
      %v5841 = vunpack.c.l.b16 %v5597
      %v5842 = vunpack.c.l.b16 %v5598
      %v5843 = vunpack.c.l.b16 %v5599
      %v5844 = vunpack.c.l.b16 %v5600
      %v5845 = vunpack.c.l.b16 %v5601
      %v5846 = vunpack.c.l.b16 %v5602
      %v5847 = vunpack.c.l.b16 %v5603
      %v5848 = vunpack.c.l.b16 %v5604
      %v5849 = vunpack.c.l.b16 %v5605
      %v5850 = vunpack.c.l.b16 %v5606
      %v5851 = vunpack.c.l.b16 %v5607
      %v5852 = vunpack.c.l.b16 %v5608
      %v5853 = vunpack.c.l.b16 %v5609
      %v5854 = vunpack.c.l.b16 %v5610
      %v5855 = vunpack.c.l.b16 %v5611
      %v5856 = vunpack.c.l.b16 %v5612
      %v5857 = vunpack.c.l.b16 %v5613
      %v5858 = vunpack.c.l.b16 %v5614
      %v5859 = vunpack.c.l.b16 %v5615
      %v5860 = vunpack.c.l.b16 %v5616
      %v5861 = vunpack.c.l.b16 %v5617
      %v5862 = vunpack.c.l.b16 %v5618
      %v5863 = vunpack.c.l.b16 %v5619
      %v5864 = vunpack.c.l.b16 %v5620
      %v5865 = vunpack.c.l.b16 %v5621
      %v5866 = vunpack.c.l.b16 %v5622
      %v5867 = vunpack.c.l.b16 %v5623
      %v5868 = vunpack.c.l.b16 %v5624
      %v5869 = vunpack.c.l.b16 %v5625
      %v5870 = vunpack.c.l.b16 %v5626
      %v5871 = vunpack.c.l.b16 %v5627
      %v5872 = vunpack.c.l.b16 %v5628
      %v5873 = vunpack.c.l.b16 %v5629
      %v5874 = vunpack.c.l.b16 %v5630
      %v5875 = vunpack.c.l.b16 %v5631
      %v5876 = vunpack.c.l.b16 %v5632
      %v5877 = vunpack.c.l.b16 %v5633
      %v5878 = vunpack.c.l.b16 %v5634
      %v5879 = vunpack.c.l.b16 %v5635
      %v5880 = vunpack.c.l.b16 %v5636
      %v5881 = vunpack.c.l.b16 %v5637
      %v5882 = vunpack.c.l.b16 %v5638
      %v5883 = vunpack.c.l.b16 %v5639
      %v5884 = vunpack.c.l.b16 %v5640
      %v5885 = vunpack.c.l.b16 %v5641
      %v5886 = vunpack.c.l.b16 %v5642
      %v5887 = vunpack.c.l.b16 %v5643
      %v5888 = vunpack.c.l.b16 %v5644
      %v5889 = vunpack.c.l.b16 %v5645
      %v5890 = vunpack.c.l.b16 %v5646
      %v5891 = vunpack.c.l.b16 %v5647
      %v5892 = vpack.c.b16 %v5821, %v5820
      %v5893 = vpack.c.b16 %v5823, %v5822
      %v5894 = vpack.c.b16 %v5825, %v5824
      %v5895 = vpack.c.b16 %v5827, %v5826
      %v5896 = vpack.c.b16 %v5829, %v5828
      %v5897 = vpack.c.b16 %v5831, %v5830
      %v5898 = vpack.c.b16 %v5833, %v5832
      %v5899 = vpack.c.b16 %v5835, %v5834
      %v5900 = vpack.c.b16 %v5837, %v5836
      %v5901 = vpack.c.b16 %v5839, %v5838
      %v5902 = vpack.c.b16 %v5841, %v5840
      %v5903 = vpack.c.b16 %v5843, %v5842
      %v5904 = vpack.c.b16 %v5845, %v5844
      %v5905 = vpack.c.b16 %v5847, %v5846
      %v5906 = vpack.c.b16 %v5849, %v5848
      %v5907 = vpack.c.b16 %v5851, %v5850
      %v5908 = vpack.c.b16 %v5853, %v5852
      %v5909 = vpack.c.b16 %v5855, %v5854
      %v5910 = vpack.c.b16 %v5857, %v5856
      %v5911 = vpack.c.b16 %v5859, %v5858
      %v5912 = vpack.c.b16 %v5861, %v5860
      %v5913 = vpack.c.b16 %v5863, %v5862
      %v5914 = vpack.c.b16 %v5865, %v5864
      %v5915 = vpack.c.b16 %v5867, %v5866
      %v5916 = vpack.c.b16 %v5869, %v5868
      %v5917 = vpack.c.b16 %v5871, %v5870
      %v5918 = vpack.c.b16 %v5873, %v5872
      %v5919 = vpack.c.b16 %v5875, %v5874
      %v5920 = vpack.c.b16 %v5877, %v5876
      %v5921 = vpack.c.b16 %v5879, %v5878
      %v5922 = vpack.c.b16 %v5881, %v5880
      %v5923 = vpack.c.b16 %v5883, %v5882
      %v5924 = vpack.c.b16 %v5885, %v5884
      %v5925 = vpack.c.b16 %v5887, %v5886
      %v5926 = vpack.c.b16 %v5889, %v5888
      %v5927 = vpack.c.b16 %v5891, %v5890
      %v5965 = vsel %vm291, %v5716, 0
      %v5968 = vsel %vm291, %v5721, 0
      %v5971 = vsel %vm291, %v5726, 0
      %v5974 = vsel %vm291, %v5731, 0
      %5976 = vmatpush.bf16.msra.mxu0 %v5899
      %5977 = vmatpush.bf16.msra.mxu0 %v5898
      %5978 = vmatpush.bf16.msra.mxu0 %v5897
      %5979 = vmatpush.bf16.msra.mxu0 %v5896
      %5980 = vmatpush.bf16.msra.mxu0 %v5895
      %5981 = vmatpush.bf16.msra.mxu0 %v5894
      %5982 = vmatpush.bf16.msra.mxu0 %v5893
      %5983 = vmatpush.bf16.msra.mxu0 %v5892
      %5984 = vmatmul.bf16.gmra.mxu0 %v5712
      %v5985 = vpop.f32.mrf.mxu0
      %v5986 = vadd.f32 0.0, %v5985
      %v5987 = vpop.f32.mrf.mxu0
      %v5988 = vadd.f32 0.0, %v5987
      %5989 = vmatmul.bf16.gmra.mxu0 %v5717
      %v5990 = vpop.f32.mrf.mxu0
      %v5991 = vadd.f32 0.0, %v5990
      %v5992 = vpop.f32.mrf.mxu0
      %v5993 = vadd.f32 0.0, %v5992
      %5994 = vmatmul.bf16.gmra.mxu0 %v5722
      %v5995 = vpop.f32.mrf.mxu0
      %v5996 = vadd.f32 0.0, %v5995
      %v5997 = vpop.f32.mrf.mxu0
      %v5998 = vadd.f32 0.0, %v5997
      %5999 = vmatmul.bf16.gmra.mxu0 %v5727
      %v6000 = vpop.f32.mrf.mxu0
      %v6001 = vadd.f32 0.0, %v6000
      %v6002 = vpop.f32.mrf.mxu0
      %v6003 = vadd.f32 0.0, %v6002
      %6004 = vdwg.mxu0
      %6005 = vmatpush.bf16.msra.mxu0 %v5907
      %6006 = vmatpush.bf16.msra.mxu0 %v5906
      %6007 = vmatpush.bf16.msra.mxu0 %v5905
      %6008 = vmatpush.bf16.msra.mxu0 %v5904
      %6009 = vmatpush.bf16.msra.mxu0 %v5903
      %6010 = vmatpush.bf16.msra.mxu0 %v5902
      %6011 = vmatpush.bf16.msra.mxu0 %v5901
      %6012 = vmatpush.bf16.msra.mxu0 %v5900
      %6013 = vmatmul.bf16.gmra.mxu0 %v5713
      %v6014 = vpop.f32.mrf.mxu0
      %v6015 = vadd.f32 %v5986, %v6014
      %v6016 = vpop.f32.mrf.mxu0
      %v6017 = vadd.f32 %v5988, %v6016
      %6018 = vmatmul.bf16.gmra.mxu0 %v5718
      %v6019 = vpop.f32.mrf.mxu0
      %v6020 = vadd.f32 %v5991, %v6019
      %v6021 = vpop.f32.mrf.mxu0
      %v6022 = vadd.f32 %v5993, %v6021
      %6023 = vmatmul.bf16.gmra.mxu0 %v5723
      %v6024 = vpop.f32.mrf.mxu0
      %v6025 = vadd.f32 %v5996, %v6024
      %v6026 = vpop.f32.mrf.mxu0
      %v6027 = vadd.f32 %v5998, %v6026
      %6028 = vmatmul.bf16.gmra.mxu0 %v5728
      %v6029 = vpop.f32.mrf.mxu0
      %v6030 = vadd.f32 %v6001, %v6029
      %v6031 = vpop.f32.mrf.mxu0
      %v6032 = vadd.f32 %v6003, %v6031
      %6033 = vdwg.mxu0
      %6034 = vmatpush.bf16.msra.mxu0 %v5915
      %6035 = vmatpush.bf16.msra.mxu0 %v5914
      %6036 = vmatpush.bf16.msra.mxu0 %v5913
      %6037 = vmatpush.bf16.msra.mxu0 %v5912
      %6038 = vmatpush.bf16.msra.mxu0 %v5911
      %6039 = vmatpush.bf16.msra.mxu0 %v5910
      %6040 = vmatpush.bf16.msra.mxu0 %v5909
      %6041 = vmatpush.bf16.msra.mxu0 %v5908
      %6042 = vmatmul.bf16.gmra.mxu0 %v5714
      %v6043 = vpop.f32.mrf.mxu0
      %v6044 = vadd.f32 %v6015, %v6043
      %v6045 = vpop.f32.mrf.mxu0
      %v6046 = vadd.f32 %v6017, %v6045
      %6047 = vmatmul.bf16.gmra.mxu0 %v5719
      %v6048 = vpop.f32.mrf.mxu0
      %v6049 = vadd.f32 %v6020, %v6048
      %v6050 = vpop.f32.mrf.mxu0
      %v6051 = vadd.f32 %v6022, %v6050
      %6052 = vmatmul.bf16.gmra.mxu0 %v5724
      %v6053 = vpop.f32.mrf.mxu0
      %v6054 = vadd.f32 %v6025, %v6053
      %v6055 = vpop.f32.mrf.mxu0
      %v6056 = vadd.f32 %v6027, %v6055
      %6057 = vmatmul.bf16.gmra.mxu0 %v5729
      %v6058 = vpop.f32.mrf.mxu0
      %v6059 = vadd.f32 %v6030, %v6058
      %v6060 = vpop.f32.mrf.mxu0
      %v6061 = vadd.f32 %v6032, %v6060
      %6062 = vdwg.mxu0
      %6063 = vmatpush.bf16.msra.mxu0 %v5923
      %6064 = vmatpush.bf16.msra.mxu0 %v5922
      %6065 = vmatpush.bf16.msra.mxu0 %v5921
      %6066 = vmatpush.bf16.msra.mxu0 %v5920
      %6067 = vmatpush.bf16.msra.mxu0 %v5919
      %6068 = vmatpush.bf16.msra.mxu0 %v5918
      %6069 = vmatpush.bf16.msra.mxu0 %v5917
      %6070 = vmatpush.bf16.msra.mxu0 %v5916
      %6071 = vmatmul.bf16.gmra.mxu0 %v5715
      %v6072 = vpop.f32.mrf.mxu0
      %v6073 = vadd.f32 %v6044, %v6072
      %v6074 = vpop.f32.mrf.mxu0
      %v6075 = vadd.f32 %v6046, %v6074
      %6076 = vmatmul.bf16.gmra.mxu0 %v5720
      %v6077 = vpop.f32.mrf.mxu0
      %v6078 = vadd.f32 %v6049, %v6077
      %v6079 = vpop.f32.mrf.mxu0
      %v6080 = vadd.f32 %v6051, %v6079
      %6081 = vmatmul.bf16.gmra.mxu0 %v5725
      %v6082 = vpop.f32.mrf.mxu0
      %v6083 = vadd.f32 %v6054, %v6082
      %v6084 = vpop.f32.mrf.mxu0
      %v6085 = vadd.f32 %v6056, %v6084
      %6086 = vmatmul.bf16.gmra.mxu0 %v5730
      %v6087 = vpop.f32.mrf.mxu0
      %v6088 = vadd.f32 %v6059, %v6087
      %v6089 = vpop.f32.mrf.mxu0
      %v6090 = vadd.f32 %v6061, %v6089
      %6091 = vdwg.mxu0
      %6092 = vmatpush.bf16.msra.mxu0 0
      %6093 = vmatpush.bf16.msra.mxu0 0
      %6094 = vmatpush.bf16.msra.mxu0 0
      %6095 = vmatpush.bf16.msra.mxu0 0
      %6096 = vmatpush.bf16.msra.mxu0 %v5927
      %6097 = vmatpush.bf16.msra.mxu0 %v5926
      %6098 = vmatpush.bf16.msra.mxu0 %v5925
      %6099 = vmatpush.bf16.msra.mxu0 %v5924
      %6100 = vmatmul.bf16.gmra.mxu0 %v5965
      %v6101 = vpop.f32.mrf.mxu0
      %v6102 = vadd.f32 %v6073, %v6101
      %v6103 = vpop.f32.mrf.mxu0
      %v6104 = vadd.f32 %v6075, %v6103
      %6105 = vmatmul.bf16.gmra.mxu0 %v5968
      %v6106 = vpop.f32.mrf.mxu0
      %v6107 = vadd.f32 %v6078, %v6106
      %v6108 = vpop.f32.mrf.mxu0
      %v6109 = vadd.f32 %v6080, %v6108
      %6110 = vmatmul.bf16.gmra.mxu0 %v5971
      %v6111 = vpop.f32.mrf.mxu0
      %v6112 = vadd.f32 %v6083, %v6111
      %v6113 = vpop.f32.mrf.mxu0
      %v6114 = vadd.f32 %v6085, %v6113
      %6115 = vmatmul.bf16.gmra.mxu0 %v5974
      %v6116 = vpop.f32.mrf.mxu0
      %v6117 = vadd.f32 %v6088, %v6116
      %v6118 = vpop.f32.mrf.mxu0
      %v6119 = vadd.f32 %v6090, %v6118
      %6120 = vdwg.mxu0
      %s6121 = scalar_lea.vmem %s3, 5
      %v6122 = vld [vmem:[%s6121] sm:$0x1]
      %v6124 = vperm.slane %v6122, 0
      %v6126 = vmul.f32 %v6102, %v6124
      %v6127 = vmul.f32 %v6104, %v6124
      %v6128 = vmul.f32 %v6107, %v6124
      %v6129 = vmul.f32 %v6109, %v6124
      %v6130 = vmul.f32 %v6112, %v6124
      %v6131 = vmul.f32 %v6114, %v6124
      %v6132 = vmul.f32 %v6117, %v6124
      %v6133 = vmul.f32 %v6119, %v6124
      %s6134 = scalar_lea.vmem %s4, 5
      %v6135 = vld [vmem:[%s6134] sm:$0x1]
      %v6137 = vperm.slane %v6135, 0
      %v6139 = vadd.f32 %v6126, %v6137
      %v6140 = vadd.f32 %v6127, %v6137
      %v6141 = vadd.f32 %v6128, %v6137
      %v6142 = vadd.f32 %v6129, %v6137
      %v6143 = vadd.f32 %v6130, %v6137
      %v6144 = vadd.f32 %v6131, %v6137
      %v6145 = vadd.f32 %v6132, %v6137
      %v6146 = vadd.f32 %v6133, %v6137
      %vm6147 = vcmp.ge.f32.partialorder %v6139, 0.0
      %vm6148 = vcmp.ge.f32.partialorder %v6140, 0.0
      %vm6149 = vcmp.ge.f32.partialorder %v6141, 0.0
      %vm6150 = vcmp.ge.f32.partialorder %v6142, 0.0
      %vm6151 = vcmp.ge.f32.partialorder %v6143, 0.0
      %vm6152 = vcmp.ge.f32.partialorder %v6144, 0.0
      %vm6153 = vcmp.ge.f32.partialorder %v6145, 0.0
      %vm6154 = vcmp.ge.f32.partialorder %v6146, 0.0
      %v6155 = vmul.f32 %v6139, 0.01
      %v6156 = vmul.f32 %v6140, 0.01
      %v6157 = vmul.f32 %v6141, 0.01
      %v6158 = vmul.f32 %v6142, 0.01
      %v6159 = vmul.f32 %v6143, 0.01
      %v6160 = vmul.f32 %v6144, 0.01
      %v6161 = vmul.f32 %v6145, 0.01
      %v6162 = vmul.f32 %v6146, 0.01
      %v6163 = vsel %vm6147, %v6139, %v6155
      %v6164 = vsel %vm6148, %v6140, %v6156
      %v6165 = vsel %vm6149, %v6141, %v6157
      %v6166 = vsel %vm6150, %v6142, %v6158
      %v6167 = vsel %vm6151, %v6143, %v6159
      %v6168 = vsel %vm6152, %v6144, %v6160
      %v6169 = vsel %vm6153, %v6145, %v6161
      %v6170 = vsel %vm6154, %v6146, %v6162
      %6171 = vst.msk [vmem:[%s321 + $0x1] sm:$0xff] %vm291, %v6163
      %6172 = vst.msk [vmem:[%s321 + $0x11] sm:$0xff] %vm291, %v6164
      %6173 = vst.msk [vmem:[%s321 + $0x21] sm:$0xff] %vm291, %v6165
      %6174 = vst.msk [vmem:[%s321 + $0x31] sm:$0xff] %vm291, %v6166
      %6175 = vst.msk [vmem:[%s321 + $0x41] sm:$0xff] %vm291, %v6167
      %6176 = vst.msk [vmem:[%s321 + $0x51] sm:$0xff] %vm291, %v6168
      %6177 = vst.msk [vmem:[%s321 + $0x61] sm:$0xff] %vm291, %v6169
      %6178 = vst.msk [vmem:[%s321 + $0x71] sm:$0xff] %vm291, %v6170
      %v6179 = vld [vmem:[#allocation2] sm:$0xff]
      %v6180 = vld [vmem:[#allocation2 + $0x10] sm:$0xff]
      %v6181 = vld [vmem:[#allocation2 + $0x20] sm:$0xff]
      %v6182 = vld [vmem:[#allocation2 + $0x30] sm:$0xff]
      %v6183 = vld [vmem:[#allocation2 + $0x40] sm:$0xff]
      %v6184 = vld [vmem:[#allocation2 + $0x50] sm:$0xff]
      %v6185 = vld [vmem:[#allocation2 + $0x60] sm:$0xff]
      %v6186 = vld [vmem:[#allocation2 + $0x70] sm:$0xff]
      %v6187 = vpack.c.bf16 %v6179, %v6179
      %v6188 = vpack.c.bf16 %v6180, %v6180
      %v6189 = vpack.c.bf16 %v6181, %v6181
      %v6190 = vpack.c.bf16 %v6182, %v6182
      %v6191 = vpack.c.bf16 %v6183, %v6183
      %v6192 = vpack.c.bf16 %v6184, %v6184
      %v6193 = vpack.c.bf16 %v6185, %v6185
      %v6194 = vpack.c.bf16 %v6186, %v6186
      %6195 = vst.msk [vmem:[#allocation3] sm:$0xf] %vm347, %v6187
      %6196 = vst.msk [vmem:[#allocation3 + $0x14] sm:$0xf] %vm347, %v6188
      %6197 = vst.msk [vmem:[#allocation3 + $0x28] sm:$0xf] %vm347, %v6189
      %6198 = vst.msk [vmem:[#allocation3 + $0x3c] sm:$0xf] %vm347, %v6190
      %6199 = vst.msk [vmem:[#allocation3 + $0x50] sm:$0xf] %vm347, %v6191
      %6200 = vst.msk [vmem:[#allocation3 + $0x64] sm:$0xf] %vm347, %v6192
      %6201 = vst.msk [vmem:[#allocation3 + $0x78] sm:$0xf] %vm347, %v6193
      %6202 = vst.msk [vmem:[#allocation3 + $0x8c] sm:$0xf] %vm347, %v6194
      %v6203 = vld [vmem:[#allocation2 + $0x1] sm:$0xff]
      %v6204 = vld [vmem:[#allocation2 + $0x11] sm:$0xff]
      %v6205 = vld [vmem:[#allocation2 + $0x21] sm:$0xff]
      %v6206 = vld [vmem:[#allocation2 + $0x31] sm:$0xff]
      %v6207 = vld [vmem:[#allocation2 + $0x41] sm:$0xff]
      %v6208 = vld [vmem:[#allocation2 + $0x51] sm:$0xff]
      %v6209 = vld [vmem:[#allocation2 + $0x61] sm:$0xff]
      %v6210 = vld [vmem:[#allocation2 + $0x71] sm:$0xff]
      %v6211 = vpack.c.bf16 %v6203, %v6203
      %v6212 = vpack.c.bf16 %v6204, %v6204
      %v6213 = vpack.c.bf16 %v6205, %v6205
      %v6214 = vpack.c.bf16 %v6206, %v6206
      %v6215 = vpack.c.bf16 %v6207, %v6207
      %v6216 = vpack.c.bf16 %v6208, %v6208
      %v6217 = vpack.c.bf16 %v6209, %v6209
      %v6218 = vpack.c.bf16 %v6210, %v6210
      %6227 = vrot.lane.b32.xlu0 %v6211, 64
      %v6228 = vpop.permute.xlu0 %6227
      %6229 = vrot.lane.b32.xlu0 %v6212, 64
      %v6230 = vpop.permute.xlu0 %6229
      %6231 = vrot.lane.b32.xlu0 %v6213, 64
      %v6232 = vpop.permute.xlu0 %6231
      %6233 = vrot.lane.b32.xlu0 %v6214, 64
      %v6234 = vpop.permute.xlu0 %6233
      %6235 = vrot.lane.b32.xlu0 %v6215, 64
      %v6236 = vpop.permute.xlu0 %6235
      %6237 = vrot.lane.b32.xlu0 %v6216, 64
      %v6238 = vpop.permute.xlu0 %6237
      %6239 = vrot.lane.b32.xlu0 %v6217, 64
      %v6240 = vpop.permute.xlu0 %6239
      %6241 = vrot.lane.b32.xlu0 %v6218, 64
      %v6242 = vpop.permute.xlu0 %6241
      %6251 = vst.msk [vmem:[#allocation3] sm:$0xf] %vm404, %v6228
      %6252 = vst.msk [vmem:[#allocation3 + $0x14] sm:$0xf] %vm404, %v6230
      %6253 = vst.msk [vmem:[#allocation3 + $0x28] sm:$0xf] %vm404, %v6232
      %6254 = vst.msk [vmem:[#allocation3 + $0x3c] sm:$0xf] %vm404, %v6234
      %6255 = vst.msk [vmem:[#allocation3 + $0x50] sm:$0xf] %vm404, %v6236
      %6256 = vst.msk [vmem:[#allocation3 + $0x64] sm:$0xf] %vm404, %v6238
      %6257 = vst.msk [vmem:[#allocation3 + $0x78] sm:$0xf] %vm404, %v6240
      %6258 = vst.msk [vmem:[#allocation3 + $0x8c] sm:$0xf] %vm404, %v6242
      %v6259 = vld [vmem:[#allocation2 + $0x2] sm:$0xff]
      %v6260 = vld [vmem:[#allocation2 + $0x12] sm:$0xff]
      %v6261 = vld [vmem:[#allocation2 + $0x22] sm:$0xff]
      %v6262 = vld [vmem:[#allocation2 + $0x32] sm:$0xff]
      %v6263 = vld [vmem:[#allocation2 + $0x42] sm:$0xff]
      %v6264 = vld [vmem:[#allocation2 + $0x52] sm:$0xff]
      %v6265 = vld [vmem:[#allocation2 + $0x62] sm:$0xff]
      %v6266 = vld [vmem:[#allocation2 + $0x72] sm:$0xff]
      %v6267 = vpack.c.bf16 %v6259, %v6259
      %v6268 = vpack.c.bf16 %v6260, %v6260
      %v6269 = vpack.c.bf16 %v6261, %v6261
      %v6270 = vpack.c.bf16 %v6262, %v6262
      %v6271 = vpack.c.bf16 %v6263, %v6263
      %v6272 = vpack.c.bf16 %v6264, %v6264
      %v6273 = vpack.c.bf16 %v6265, %v6265
      %v6274 = vpack.c.bf16 %v6266, %v6266
      %6275 = vst.msk [vmem:[#allocation3 + $0x4] sm:$0xf] %vm347, %v6267
      %6276 = vst.msk [vmem:[#allocation3 + $0x18] sm:$0xf] %vm347, %v6268
      %6277 = vst.msk [vmem:[#allocation3 + $0x2c] sm:$0xf] %vm347, %v6269
      %6278 = vst.msk [vmem:[#allocation3 + $0x40] sm:$0xf] %vm347, %v6270
      %6279 = vst.msk [vmem:[#allocation3 + $0x54] sm:$0xf] %vm347, %v6271
      %6280 = vst.msk [vmem:[#allocation3 + $0x68] sm:$0xf] %vm347, %v6272
      %6281 = vst.msk [vmem:[#allocation3 + $0x7c] sm:$0xf] %vm347, %v6273
      %6282 = vst.msk [vmem:[#allocation3 + $0x90] sm:$0xf] %vm347, %v6274
      %v6283 = vld [vmem:[%s321] sm:$0xff]
      %v6284 = vld [vmem:[%s321 + $0x10] sm:$0xff]
      %v6285 = vld [vmem:[%s321 + $0x20] sm:$0xff]
      %v6286 = vld [vmem:[%s321 + $0x30] sm:$0xff]
      %v6287 = vld [vmem:[%s321 + $0x40] sm:$0xff]
      %v6288 = vld [vmem:[%s321 + $0x50] sm:$0xff]
      %v6289 = vld [vmem:[%s321 + $0x60] sm:$0xff]
      %v6290 = vld [vmem:[%s321 + $0x70] sm:$0xff]
      %v6291 = vpack.c.bf16 %v6283, %v6283
      %v6292 = vpack.c.bf16 %v6284, %v6284
      %v6293 = vpack.c.bf16 %v6285, %v6285
      %v6294 = vpack.c.bf16 %v6286, %v6286
      %v6295 = vpack.c.bf16 %v6287, %v6287
      %v6296 = vpack.c.bf16 %v6288, %v6288
      %v6297 = vpack.c.bf16 %v6289, %v6289
      %v6298 = vpack.c.bf16 %v6290, %v6290
      %6307 = vrot.lane.b32.xlu0 %v6291, 64
      %v6308 = vpop.permute.xlu0 %6307
      %6309 = vrot.lane.b32.xlu0 %v6292, 64
      %v6310 = vpop.permute.xlu0 %6309
      %6311 = vrot.lane.b32.xlu0 %v6293, 64
      %v6312 = vpop.permute.xlu0 %6311
      %6313 = vrot.lane.b32.xlu0 %v6294, 64
      %v6314 = vpop.permute.xlu0 %6313
      %6315 = vrot.lane.b32.xlu0 %v6295, 64
      %v6316 = vpop.permute.xlu0 %6315
      %6317 = vrot.lane.b32.xlu0 %v6296, 64
      %v6318 = vpop.permute.xlu0 %6317
      %6319 = vrot.lane.b32.xlu0 %v6297, 64
      %v6320 = vpop.permute.xlu0 %6319
      %6321 = vrot.lane.b32.xlu0 %v6298, 64
      %v6322 = vpop.permute.xlu0 %6321
      %6331 = vst.msk [vmem:[#allocation3 + $0x4] sm:$0xf] %vm404, %v6308
      %6332 = vst.msk [vmem:[#allocation3 + $0x18] sm:$0xf] %vm404, %v6310
      %6333 = vst.msk [vmem:[#allocation3 + $0x2c] sm:$0xf] %vm404, %v6312
      %6334 = vst.msk [vmem:[#allocation3 + $0x40] sm:$0xf] %vm404, %v6314
      %6335 = vst.msk [vmem:[#allocation3 + $0x54] sm:$0xf] %vm404, %v6316
      %6336 = vst.msk [vmem:[#allocation3 + $0x68] sm:$0xf] %vm404, %v6318
      %6337 = vst.msk [vmem:[#allocation3 + $0x7c] sm:$0xf] %vm404, %v6320
      %6338 = vst.msk [vmem:[#allocation3 + $0x90] sm:$0xf] %vm404, %v6322
      %v6339 = vld [vmem:[%s321 + $0x1] sm:$0xff]
      %v6340 = vld [vmem:[%s321 + $0x11] sm:$0xff]
      %v6341 = vld [vmem:[%s321 + $0x21] sm:$0xff]
      %v6342 = vld [vmem:[%s321 + $0x31] sm:$0xff]
      %v6343 = vld [vmem:[%s321 + $0x41] sm:$0xff]
      %v6344 = vld [vmem:[%s321 + $0x51] sm:$0xff]
      %v6345 = vld [vmem:[%s321 + $0x61] sm:$0xff]
      %v6346 = vld [vmem:[%s321 + $0x71] sm:$0xff]
      %v6347 = vpack.c.bf16 %v6339, %v6339
      %v6348 = vpack.c.bf16 %v6340, %v6340
      %v6349 = vpack.c.bf16 %v6341, %v6341
      %v6350 = vpack.c.bf16 %v6342, %v6342
      %v6351 = vpack.c.bf16 %v6343, %v6343
      %v6352 = vpack.c.bf16 %v6344, %v6344
      %v6353 = vpack.c.bf16 %v6345, %v6345
      %v6354 = vpack.c.bf16 %v6346, %v6346
      %6355 = vst.msk [vmem:[#allocation3 + $0x8] sm:$0xf] %vm347, %v6347
      %6356 = vst.msk [vmem:[#allocation3 + $0x1c] sm:$0xf] %vm347, %v6348
      %6357 = vst.msk [vmem:[#allocation3 + $0x30] sm:$0xf] %vm347, %v6349
      %6358 = vst.msk [vmem:[#allocation3 + $0x44] sm:$0xf] %vm347, %v6350
      %6359 = vst.msk [vmem:[#allocation3 + $0x58] sm:$0xf] %vm347, %v6351
      %6360 = vst.msk [vmem:[#allocation3 + $0x6c] sm:$0xf] %vm347, %v6352
      %6361 = vst.msk [vmem:[#allocation3 + $0x80] sm:$0xf] %vm347, %v6353
      %6362 = vst.msk [vmem:[#allocation3 + $0x94] sm:$0xf] %vm347, %v6354
      %v6363 = vld [vmem:[%s321 + $0x2] sm:$0xff]
      %v6364 = vld [vmem:[%s321 + $0x12] sm:$0xff]
      %v6365 = vld [vmem:[%s321 + $0x22] sm:$0xff]
      %v6366 = vld [vmem:[%s321 + $0x32] sm:$0xff]
      %v6367 = vld [vmem:[%s321 + $0x42] sm:$0xff]
      %v6368 = vld [vmem:[%s321 + $0x52] sm:$0xff]
      %v6369 = vld [vmem:[%s321 + $0x62] sm:$0xff]
      %v6370 = vld [vmem:[%s321 + $0x72] sm:$0xff]
      %v6371 = vpack.c.bf16 %v6363, %v6363
      %v6372 = vpack.c.bf16 %v6364, %v6364
      %v6373 = vpack.c.bf16 %v6365, %v6365
      %v6374 = vpack.c.bf16 %v6366, %v6366
      %v6375 = vpack.c.bf16 %v6367, %v6367
      %v6376 = vpack.c.bf16 %v6368, %v6368
      %v6377 = vpack.c.bf16 %v6369, %v6369
      %v6378 = vpack.c.bf16 %v6370, %v6370
      %6387 = vrot.lane.b32.xlu0 %v6371, 64
      %v6388 = vpop.permute.xlu0 %6387
      %6389 = vrot.lane.b32.xlu0 %v6372, 64
      %v6390 = vpop.permute.xlu0 %6389
      %6391 = vrot.lane.b32.xlu0 %v6373, 64
      %v6392 = vpop.permute.xlu0 %6391
      %6393 = vrot.lane.b32.xlu0 %v6374, 64
      %v6394 = vpop.permute.xlu0 %6393
      %6395 = vrot.lane.b32.xlu0 %v6375, 64
      %v6396 = vpop.permute.xlu0 %6395
      %6397 = vrot.lane.b32.xlu0 %v6376, 64
      %v6398 = vpop.permute.xlu0 %6397
      %6399 = vrot.lane.b32.xlu0 %v6377, 64
      %v6400 = vpop.permute.xlu0 %6399
      %6401 = vrot.lane.b32.xlu0 %v6378, 64
      %v6402 = vpop.permute.xlu0 %6401
      %6411 = vst.msk [vmem:[#allocation3 + $0x8] sm:$0xf] %vm404, %v6388
      %6412 = vst.msk [vmem:[#allocation3 + $0x1c] sm:$0xf] %vm404, %v6390
      %6413 = vst.msk [vmem:[#allocation3 + $0x30] sm:$0xf] %vm404, %v6392
      %6414 = vst.msk [vmem:[#allocation3 + $0x44] sm:$0xf] %vm404, %v6394
      %6415 = vst.msk [vmem:[#allocation3 + $0x58] sm:$0xf] %vm404, %v6396
      %6416 = vst.msk [vmem:[#allocation3 + $0x6c] sm:$0xf] %vm404, %v6398
      %6417 = vst.msk [vmem:[#allocation3 + $0x80] sm:$0xf] %vm404, %v6400
      %6418 = vst.msk [vmem:[#allocation3 + $0x94] sm:$0xf] %vm404, %v6402
      %v6419 = vld [vmem:[%s573] sm:$0xff]
      %v6420 = vld [vmem:[%s573 + $0x10] sm:$0xff]
      %v6421 = vld [vmem:[%s573 + $0x20] sm:$0xff]
      %v6422 = vld [vmem:[%s573 + $0x30] sm:$0xff]
      %v6423 = vld [vmem:[%s573 + $0x40] sm:$0xff]
      %v6424 = vld [vmem:[%s573 + $0x50] sm:$0xff]
      %v6425 = vld [vmem:[%s573 + $0x60] sm:$0xff]
      %v6426 = vld [vmem:[%s573 + $0x70] sm:$0xff]
      %v6427 = vpack.c.bf16 %v6419, %v6419
      %v6428 = vpack.c.bf16 %v6420, %v6420
      %v6429 = vpack.c.bf16 %v6421, %v6421
      %v6430 = vpack.c.bf16 %v6422, %v6422
      %v6431 = vpack.c.bf16 %v6423, %v6423
      %v6432 = vpack.c.bf16 %v6424, %v6424
      %v6433 = vpack.c.bf16 %v6425, %v6425
      %v6434 = vpack.c.bf16 %v6426, %v6426
      %6435 = vst.msk [vmem:[#allocation3 + $0xc] sm:$0xf] %vm347, %v6427
      %6436 = vst.msk [vmem:[#allocation3 + $0x20] sm:$0xf] %vm347, %v6428
      %6437 = vst.msk [vmem:[#allocation3 + $0x34] sm:$0xf] %vm347, %v6429
      %6438 = vst.msk [vmem:[#allocation3 + $0x48] sm:$0xf] %vm347, %v6430
      %6439 = vst.msk [vmem:[#allocation3 + $0x5c] sm:$0xf] %vm347, %v6431
      %6440 = vst.msk [vmem:[#allocation3 + $0x70] sm:$0xf] %vm347, %v6432
      %6441 = vst.msk [vmem:[#allocation3 + $0x84] sm:$0xf] %vm347, %v6433
      %6442 = vst.msk [vmem:[#allocation3 + $0x98] sm:$0xf] %vm347, %v6434
      %v6443 = vld [vmem:[%s573 + $0x1] sm:$0xff]
      %v6444 = vld [vmem:[%s573 + $0x11] sm:$0xff]
      %v6445 = vld [vmem:[%s573 + $0x21] sm:$0xff]
      %v6446 = vld [vmem:[%s573 + $0x31] sm:$0xff]
      %v6447 = vld [vmem:[%s573 + $0x41] sm:$0xff]
      %v6448 = vld [vmem:[%s573 + $0x51] sm:$0xff]
      %v6449 = vld [vmem:[%s573 + $0x61] sm:$0xff]
      %v6450 = vld [vmem:[%s573 + $0x71] sm:$0xff]
      %v6451 = vpack.c.bf16 %v6443, %v6443
      %v6452 = vpack.c.bf16 %v6444, %v6444
      %v6453 = vpack.c.bf16 %v6445, %v6445
      %v6454 = vpack.c.bf16 %v6446, %v6446
      %v6455 = vpack.c.bf16 %v6447, %v6447
      %v6456 = vpack.c.bf16 %v6448, %v6448
      %v6457 = vpack.c.bf16 %v6449, %v6449
      %v6458 = vpack.c.bf16 %v6450, %v6450
      %6467 = vrot.lane.b32.xlu0 %v6451, 64
      %v6468 = vpop.permute.xlu0 %6467
      %6469 = vrot.lane.b32.xlu0 %v6452, 64
      %v6470 = vpop.permute.xlu0 %6469
      %6471 = vrot.lane.b32.xlu0 %v6453, 64
      %v6472 = vpop.permute.xlu0 %6471
      %6473 = vrot.lane.b32.xlu0 %v6454, 64
      %v6474 = vpop.permute.xlu0 %6473
      %6475 = vrot.lane.b32.xlu0 %v6455, 64
      %v6476 = vpop.permute.xlu0 %6475
      %6477 = vrot.lane.b32.xlu0 %v6456, 64
      %v6478 = vpop.permute.xlu0 %6477
      %6479 = vrot.lane.b32.xlu0 %v6457, 64
      %v6480 = vpop.permute.xlu0 %6479
      %6481 = vrot.lane.b32.xlu0 %v6458, 64
      %v6482 = vpop.permute.xlu0 %6481
      %6491 = vst.msk [vmem:[#allocation3 + $0xc] sm:$0xf] %vm404, %v6468
      %6492 = vst.msk [vmem:[#allocation3 + $0x20] sm:$0xf] %vm404, %v6470
      %6493 = vst.msk [vmem:[#allocation3 + $0x34] sm:$0xf] %vm404, %v6472
      %6494 = vst.msk [vmem:[#allocation3 + $0x48] sm:$0xf] %vm404, %v6474
      %6495 = vst.msk [vmem:[#allocation3 + $0x5c] sm:$0xf] %vm404, %v6476
      %6496 = vst.msk [vmem:[#allocation3 + $0x70] sm:$0xf] %vm404, %v6478
      %6497 = vst.msk [vmem:[#allocation3 + $0x84] sm:$0xf] %vm404, %v6480
      %6498 = vst.msk [vmem:[#allocation3 + $0x98] sm:$0xf] %vm404, %v6482
      %v6499 = vld [vmem:[%s573 + $0x2] sm:$0xff]
      %v6500 = vld [vmem:[%s573 + $0x12] sm:$0xff]
      %v6501 = vld [vmem:[%s573 + $0x22] sm:$0xff]
      %v6502 = vld [vmem:[%s573 + $0x32] sm:$0xff]
      %v6503 = vld [vmem:[%s573 + $0x42] sm:$0xff]
      %v6504 = vld [vmem:[%s573 + $0x52] sm:$0xff]
      %v6505 = vld [vmem:[%s573 + $0x62] sm:$0xff]
      %v6506 = vld [vmem:[%s573 + $0x72] sm:$0xff]
      %v6507 = vpack.c.bf16 %v6499, %v6499
      %v6508 = vpack.c.bf16 %v6500, %v6500
      %v6509 = vpack.c.bf16 %v6501, %v6501
      %v6510 = vpack.c.bf16 %v6502, %v6502
      %v6511 = vpack.c.bf16 %v6503, %v6503
      %v6512 = vpack.c.bf16 %v6504, %v6504
      %v6513 = vpack.c.bf16 %v6505, %v6505
      %v6514 = vpack.c.bf16 %v6506, %v6506
      %6515 = vst.msk [vmem:[#allocation3 + $0x10] sm:$0xf] %vm347, %v6507
      %6516 = vst.msk [vmem:[#allocation3 + $0x24] sm:$0xf] %vm347, %v6508
      %6517 = vst.msk [vmem:[#allocation3 + $0x38] sm:$0xf] %vm347, %v6509
      %6518 = vst.msk [vmem:[#allocation3 + $0x4c] sm:$0xf] %vm347, %v6510
      %6519 = vst.msk [vmem:[#allocation3 + $0x60] sm:$0xf] %vm347, %v6511
      %6520 = vst.msk [vmem:[#allocation3 + $0x74] sm:$0xf] %vm347, %v6512
      %6521 = vst.msk [vmem:[#allocation3 + $0x88] sm:$0xf] %vm347, %v6513
      %6522 = vst.msk [vmem:[#allocation3 + $0x9c] sm:$0xf] %vm347, %v6514
      %v6523 = vld [vmem:[#allocation3] sm:$0xff]
      %v6524 = vld [vmem:[#allocation3 + $0x8] sm:$0xff]
      %v6525 = vld [vmem:[#allocation3 + $0x10] sm:$0xf]
      %v6526 = vld [vmem:[#allocation3 + $0x14] sm:$0xff]
      %v6527 = vld [vmem:[#allocation3 + $0x1c] sm:$0xff]
      %v6528 = vld [vmem:[#allocation3 + $0x24] sm:$0xf]
      %v6529 = vld [vmem:[#allocation3 + $0x28] sm:$0xff]
      %v6530 = vld [vmem:[#allocation3 + $0x30] sm:$0xff]
      %v6531 = vld [vmem:[#allocation3 + $0x38] sm:$0xf]
      %v6532 = vld [vmem:[#allocation3 + $0x3c] sm:$0xff]
      %v6533 = vld [vmem:[#allocation3 + $0x44] sm:$0xff]
      %v6534 = vld [vmem:[#allocation3 + $0x4c] sm:$0xf]
      %v6535 = vld [vmem:[#allocation3 + $0x50] sm:$0xff]
      %v6536 = vld [vmem:[#allocation3 + $0x58] sm:$0xff]
      %v6537 = vld [vmem:[#allocation3 + $0x60] sm:$0xf]
      %v6538 = vld [vmem:[#allocation3 + $0x64] sm:$0xff]
      %v6539 = vld [vmem:[#allocation3 + $0x6c] sm:$0xff]
      %v6540 = vld [vmem:[#allocation3 + $0x74] sm:$0xf]
      %v6541 = vld [vmem:[#allocation3 + $0x78] sm:$0xff]
      %v6542 = vld [vmem:[#allocation3 + $0x80] sm:$0xff]
      %v6543 = vld [vmem:[#allocation3 + $0x88] sm:$0xf]
      %v6544 = vld [vmem:[#allocation3 + $0x8c] sm:$0xff]
      %v6545 = vld [vmem:[#allocation3 + $0x94] sm:$0xff]
      %v6546 = vld [vmem:[#allocation3 + $0x9c] sm:$0xf]
      %s6547 = scalar_lea.vmem %s2, 1728
      %v6548 = vld [vmem:[%s6547] sm:$0xf]
      %v6549 = vld [vmem:[%s6547 + $0x4] sm:$0xf]
      %v6550 = vld [vmem:[%s6547 + $0x8] sm:$0xf]
      %v6551 = vld [vmem:[%s6547 + $0xc] sm:$0xf]
      %v6552 = vld [vmem:[%s6547 + $0x10] sm:$0xf]
      %v6553 = vld [vmem:[%s6547 + $0x14] sm:$0xf]
      %v6554 = vld [vmem:[%s6547 + $0x18] sm:$0xf]
      %v6555 = vld [vmem:[%s6547 + $0x1c] sm:$0xf]
      %v6556 = vld [vmem:[%s6547 + $0x20] sm:$0xf]
      %v6557 = vld [vmem:[%s6547 + $0x24] sm:$0xf]
      %v6558 = vld [vmem:[%s6547 + $0x28] sm:$0xf]
      %v6559 = vld [vmem:[%s6547 + $0x2c] sm:$0xf]
      %v6560 = vld [vmem:[%s6547 + $0x30] sm:$0xf]
      %v6561 = vld [vmem:[%s6547 + $0x34] sm:$0xf]
      %v6562 = vld [vmem:[%s6547 + $0x38] sm:$0xf]
      %v6563 = vld [vmem:[%s6547 + $0x3c] sm:$0xf]
      %v6564 = vld [vmem:[%s6547 + $0x40] sm:$0xf]
      %v6565 = vld [vmem:[%s6547 + $0x44] sm:$0xf]
      %v6566 = vld [vmem:[%s6547 + $0x48] sm:$0xf]
      %v6567 = vld [vmem:[%s6547 + $0x4c] sm:$0xf]
      %v6568 = vld [vmem:[%s6547 + $0x50] sm:$0xf]
      %v6569 = vld [vmem:[%s6547 + $0x54] sm:$0xf]
      %v6570 = vld [vmem:[%s6547 + $0x58] sm:$0xf]
      %v6571 = vld [vmem:[%s6547 + $0x5c] sm:$0xf]
      %v6572 = vld [vmem:[%s6547 + $0x60] sm:$0xf]
      %v6573 = vld [vmem:[%s6547 + $0x64] sm:$0xf]
      %v6574 = vld [vmem:[%s6547 + $0x68] sm:$0xf]
      %v6575 = vld [vmem:[%s6547 + $0x6c] sm:$0xf]
      %v6576 = vld [vmem:[%s6547 + $0x70] sm:$0xf]
      %v6577 = vld [vmem:[%s6547 + $0x74] sm:$0xf]
      %v6578 = vld [vmem:[%s6547 + $0x78] sm:$0xf]
      %v6579 = vld [vmem:[%s6547 + $0x7c] sm:$0xf]
      %v6580 = vld [vmem:[%s6547 + $0x80] sm:$0xf]
      %v6581 = vld [vmem:[%s6547 + $0x84] sm:$0xf]
      %v6582 = vld [vmem:[%s6547 + $0x88] sm:$0xf]
      %v6583 = vld [vmem:[%s6547 + $0x8c] sm:$0xf]
      %v6584 = vld [vmem:[%s6547 + $0x90] sm:$0xf]
      %v6585 = vld [vmem:[%s6547 + $0x94] sm:$0xf]
      %v6586 = vld [vmem:[%s6547 + $0x98] sm:$0xf]
      %v6587 = vld [vmem:[%s6547 + $0x9c] sm:$0xf]
      %v6588 = vld [vmem:[%s6547 + $0xa0] sm:$0xf]
      %v6589 = vld [vmem:[%s6547 + $0xa4] sm:$0xf]
      %v6590 = vld [vmem:[%s6547 + $0xa8] sm:$0xf]
      %v6591 = vld [vmem:[%s6547 + $0xac] sm:$0xf]
      %v6592 = vld [vmem:[%s6547 + $0xb0] sm:$0xf]
      %v6593 = vld [vmem:[%s6547 + $0xb4] sm:$0xf]
      %v6594 = vld [vmem:[%s6547 + $0xb8] sm:$0xf]
      %v6595 = vld [vmem:[%s6547 + $0xbc] sm:$0xf]
      %v6596 = vld [vmem:[%s6547 + $0xc0] sm:$0xf]
      %v6597 = vld [vmem:[%s6547 + $0xc4] sm:$0xf]
      %v6598 = vld [vmem:[%s6547 + $0xc8] sm:$0xf]
      %v6599 = vld [vmem:[%s6547 + $0xcc] sm:$0xf]
      %v6600 = vld [vmem:[%s6547 + $0xd0] sm:$0xf]
      %v6601 = vld [vmem:[%s6547 + $0xd4] sm:$0xf]
      %v6602 = vld [vmem:[%s6547 + $0xd8] sm:$0xf]
      %v6603 = vld [vmem:[%s6547 + $0xdc] sm:$0xf]
      %v6604 = vld [vmem:[%s6547 + $0xe0] sm:$0xf]
      %v6605 = vld [vmem:[%s6547 + $0xe4] sm:$0xf]
      %v6606 = vld [vmem:[%s6547 + $0xe8] sm:$0xf]
      %v6607 = vld [vmem:[%s6547 + $0xec] sm:$0xf]
      %v6608 = vld [vmem:[%s6547 + $0xf0] sm:$0xf]
      %v6609 = vld [vmem:[%s6547 + $0xf4] sm:$0xf]
      %v6610 = vld [vmem:[%s6547 + $0xf8] sm:$0xf]
      %v6611 = vld [vmem:[%s6547 + $0xfc] sm:$0xf]
      %v6612 = vld [vmem:[%s6547 + $0x100] sm:$0xf]
      %v6613 = vld [vmem:[%s6547 + $0x104] sm:$0xf]
      %v6614 = vld [vmem:[%s6547 + $0x108] sm:$0xf]
      %v6615 = vld [vmem:[%s6547 + $0x10c] sm:$0xf]
      %v6616 = vld [vmem:[%s6547 + $0x110] sm:$0xf]
      %v6617 = vld [vmem:[%s6547 + $0x114] sm:$0xf]
      %v6618 = vld [vmem:[%s6547 + $0x118] sm:$0xf]
      %v6619 = vld [vmem:[%s6547 + $0x11c] sm:$0xf]
      %v6644 = vunpack.c.l.b16 %v6523
      %v6645 = vunpack.c.h.b16 %v6523
      %v6646 = vunpack.c.l.b16 %v6524
      %v6647 = vunpack.c.h.b16 %v6524
      %v6648 = vunpack.c.l.b16 %v6525
      %v6649 = vunpack.c.l.b16 %v6526
      %v6650 = vunpack.c.h.b16 %v6526
      %v6651 = vunpack.c.l.b16 %v6527
      %v6652 = vunpack.c.h.b16 %v6527
      %v6653 = vunpack.c.l.b16 %v6528
      %v6654 = vunpack.c.l.b16 %v6529
      %v6655 = vunpack.c.h.b16 %v6529
      %v6656 = vunpack.c.l.b16 %v6530
      %v6657 = vunpack.c.h.b16 %v6530
      %v6658 = vunpack.c.l.b16 %v6531
      %v6659 = vunpack.c.l.b16 %v6532
      %v6660 = vunpack.c.h.b16 %v6532
      %v6661 = vunpack.c.l.b16 %v6533
      %v6662 = vunpack.c.h.b16 %v6533
      %v6663 = vunpack.c.l.b16 %v6534
      %v6664 = vunpack.c.l.b16 %v6535
      %v6665 = vunpack.c.h.b16 %v6535
      %v6666 = vunpack.c.l.b16 %v6536
      %v6667 = vunpack.c.h.b16 %v6536
      %v6668 = vunpack.c.l.b16 %v6537
      %v6669 = vunpack.c.l.b16 %v6538
      %v6670 = vunpack.c.h.b16 %v6538
      %v6671 = vunpack.c.l.b16 %v6539
      %v6672 = vunpack.c.h.b16 %v6539
      %v6673 = vunpack.c.l.b16 %v6540
      %v6674 = vunpack.c.l.b16 %v6541
      %v6675 = vunpack.c.h.b16 %v6541
      %v6676 = vunpack.c.l.b16 %v6542
      %v6677 = vunpack.c.h.b16 %v6542
      %v6678 = vunpack.c.l.b16 %v6543
      %v6679 = vunpack.c.l.b16 %v6544
      %v6680 = vunpack.c.h.b16 %v6544
      %v6681 = vunpack.c.l.b16 %v6545
      %v6682 = vunpack.c.h.b16 %v6545
      %v6683 = vunpack.c.l.b16 %v6546
      %v6684 = vpack.c.b16 %v6649, %v6644
      %v6685 = vpack.c.b16 %v6650, %v6645
      %v6686 = vpack.c.b16 %v6651, %v6646
      %v6687 = vpack.c.b16 %v6652, %v6647
      %v6688 = vpack.c.b16 %v6653, %v6648
      %v6689 = vpack.c.b16 %v6659, %v6654
      %v6690 = vpack.c.b16 %v6660, %v6655
      %v6691 = vpack.c.b16 %v6661, %v6656
      %v6692 = vpack.c.b16 %v6662, %v6657
      %v6693 = vpack.c.b16 %v6663, %v6658
      %v6694 = vpack.c.b16 %v6669, %v6664
      %v6695 = vpack.c.b16 %v6670, %v6665
      %v6696 = vpack.c.b16 %v6671, %v6666
      %v6697 = vpack.c.b16 %v6672, %v6667
      %v6698 = vpack.c.b16 %v6673, %v6668
      %v6699 = vpack.c.b16 %v6679, %v6674
      %v6700 = vpack.c.b16 %v6680, %v6675
      %v6701 = vpack.c.b16 %v6681, %v6676
      %v6702 = vpack.c.b16 %v6682, %v6677
      %v6703 = vpack.c.b16 %v6683, %v6678
      %v6792 = vunpack.c.l.b16 %v6548
      %v6793 = vunpack.c.l.b16 %v6549
      %v6794 = vunpack.c.l.b16 %v6550
      %v6795 = vunpack.c.l.b16 %v6551
      %v6796 = vunpack.c.l.b16 %v6552
      %v6797 = vunpack.c.l.b16 %v6553
      %v6798 = vunpack.c.l.b16 %v6554
      %v6799 = vunpack.c.l.b16 %v6555
      %v6800 = vunpack.c.l.b16 %v6556
      %v6801 = vunpack.c.l.b16 %v6557
      %v6802 = vunpack.c.l.b16 %v6558
      %v6803 = vunpack.c.l.b16 %v6559
      %v6804 = vunpack.c.l.b16 %v6560
      %v6805 = vunpack.c.l.b16 %v6561
      %v6806 = vunpack.c.l.b16 %v6562
      %v6807 = vunpack.c.l.b16 %v6563
      %v6808 = vunpack.c.l.b16 %v6564
      %v6809 = vunpack.c.l.b16 %v6565
      %v6810 = vunpack.c.l.b16 %v6566
      %v6811 = vunpack.c.l.b16 %v6567
      %v6812 = vunpack.c.l.b16 %v6568
      %v6813 = vunpack.c.l.b16 %v6569
      %v6814 = vunpack.c.l.b16 %v6570
      %v6815 = vunpack.c.l.b16 %v6571
      %v6816 = vunpack.c.l.b16 %v6572
      %v6817 = vunpack.c.l.b16 %v6573
      %v6818 = vunpack.c.l.b16 %v6574
      %v6819 = vunpack.c.l.b16 %v6575
      %v6820 = vunpack.c.l.b16 %v6576
      %v6821 = vunpack.c.l.b16 %v6577
      %v6822 = vunpack.c.l.b16 %v6578
      %v6823 = vunpack.c.l.b16 %v6579
      %v6824 = vunpack.c.l.b16 %v6580
      %v6825 = vunpack.c.l.b16 %v6581
      %v6826 = vunpack.c.l.b16 %v6582
      %v6827 = vunpack.c.l.b16 %v6583
      %v6828 = vunpack.c.l.b16 %v6584
      %v6829 = vunpack.c.l.b16 %v6585
      %v6830 = vunpack.c.l.b16 %v6586
      %v6831 = vunpack.c.l.b16 %v6587
      %v6832 = vunpack.c.l.b16 %v6588
      %v6833 = vunpack.c.l.b16 %v6589
      %v6834 = vunpack.c.l.b16 %v6590
      %v6835 = vunpack.c.l.b16 %v6591
      %v6836 = vunpack.c.l.b16 %v6592
      %v6837 = vunpack.c.l.b16 %v6593
      %v6838 = vunpack.c.l.b16 %v6594
      %v6839 = vunpack.c.l.b16 %v6595
      %v6840 = vunpack.c.l.b16 %v6596
      %v6841 = vunpack.c.l.b16 %v6597
      %v6842 = vunpack.c.l.b16 %v6598
      %v6843 = vunpack.c.l.b16 %v6599
      %v6844 = vunpack.c.l.b16 %v6600
      %v6845 = vunpack.c.l.b16 %v6601
      %v6846 = vunpack.c.l.b16 %v6602
      %v6847 = vunpack.c.l.b16 %v6603
      %v6848 = vunpack.c.l.b16 %v6604
      %v6849 = vunpack.c.l.b16 %v6605
      %v6850 = vunpack.c.l.b16 %v6606
      %v6851 = vunpack.c.l.b16 %v6607
      %v6852 = vunpack.c.l.b16 %v6608
      %v6853 = vunpack.c.l.b16 %v6609
      %v6854 = vunpack.c.l.b16 %v6610
      %v6855 = vunpack.c.l.b16 %v6611
      %v6856 = vunpack.c.l.b16 %v6612
      %v6857 = vunpack.c.l.b16 %v6613
      %v6858 = vunpack.c.l.b16 %v6614
      %v6859 = vunpack.c.l.b16 %v6615
      %v6860 = vunpack.c.l.b16 %v6616
      %v6861 = vunpack.c.l.b16 %v6617
      %v6862 = vunpack.c.l.b16 %v6618
      %v6863 = vunpack.c.l.b16 %v6619
      %v6864 = vpack.c.b16 %v6793, %v6792
      %v6865 = vpack.c.b16 %v6795, %v6794
      %v6866 = vpack.c.b16 %v6797, %v6796
      %v6867 = vpack.c.b16 %v6799, %v6798
      %v6868 = vpack.c.b16 %v6801, %v6800
      %v6869 = vpack.c.b16 %v6803, %v6802
      %v6870 = vpack.c.b16 %v6805, %v6804
      %v6871 = vpack.c.b16 %v6807, %v6806
      %v6872 = vpack.c.b16 %v6809, %v6808
      %v6873 = vpack.c.b16 %v6811, %v6810
      %v6874 = vpack.c.b16 %v6813, %v6812
      %v6875 = vpack.c.b16 %v6815, %v6814
      %v6876 = vpack.c.b16 %v6817, %v6816
      %v6877 = vpack.c.b16 %v6819, %v6818
      %v6878 = vpack.c.b16 %v6821, %v6820
      %v6879 = vpack.c.b16 %v6823, %v6822
      %v6880 = vpack.c.b16 %v6825, %v6824
      %v6881 = vpack.c.b16 %v6827, %v6826
      %v6882 = vpack.c.b16 %v6829, %v6828
      %v6883 = vpack.c.b16 %v6831, %v6830
      %v6884 = vpack.c.b16 %v6833, %v6832
      %v6885 = vpack.c.b16 %v6835, %v6834
      %v6886 = vpack.c.b16 %v6837, %v6836
      %v6887 = vpack.c.b16 %v6839, %v6838
      %v6888 = vpack.c.b16 %v6841, %v6840
      %v6889 = vpack.c.b16 %v6843, %v6842
      %v6890 = vpack.c.b16 %v6845, %v6844
      %v6891 = vpack.c.b16 %v6847, %v6846
      %v6892 = vpack.c.b16 %v6849, %v6848
      %v6893 = vpack.c.b16 %v6851, %v6850
      %v6894 = vpack.c.b16 %v6853, %v6852
      %v6895 = vpack.c.b16 %v6855, %v6854
      %v6896 = vpack.c.b16 %v6857, %v6856
      %v6897 = vpack.c.b16 %v6859, %v6858
      %v6898 = vpack.c.b16 %v6861, %v6860
      %v6899 = vpack.c.b16 %v6863, %v6862
      %v6937 = vsel %vm291, %v6688, 0
      %v6940 = vsel %vm291, %v6693, 0
      %v6943 = vsel %vm291, %v6698, 0
      %v6946 = vsel %vm291, %v6703, 0
      %6948 = vmatpush.bf16.msra.mxu0 %v6871
      %6949 = vmatpush.bf16.msra.mxu0 %v6870
      %6950 = vmatpush.bf16.msra.mxu0 %v6869
      %6951 = vmatpush.bf16.msra.mxu0 %v6868
      %6952 = vmatpush.bf16.msra.mxu0 %v6867
      %6953 = vmatpush.bf16.msra.mxu0 %v6866
      %6954 = vmatpush.bf16.msra.mxu0 %v6865
      %6955 = vmatpush.bf16.msra.mxu0 %v6864
      %6956 = vmatmul.bf16.gmra.mxu0 %v6684
      %v6957 = vpop.f32.mrf.mxu0
      %v6958 = vadd.f32 0.0, %v6957
      %v6959 = vpop.f32.mrf.mxu0
      %v6960 = vadd.f32 0.0, %v6959
      %6961 = vmatmul.bf16.gmra.mxu0 %v6689
      %v6962 = vpop.f32.mrf.mxu0
      %v6963 = vadd.f32 0.0, %v6962
      %v6964 = vpop.f32.mrf.mxu0
      %v6965 = vadd.f32 0.0, %v6964
      %6966 = vmatmul.bf16.gmra.mxu0 %v6694
      %v6967 = vpop.f32.mrf.mxu0
      %v6968 = vadd.f32 0.0, %v6967
      %v6969 = vpop.f32.mrf.mxu0
      %v6970 = vadd.f32 0.0, %v6969
      %6971 = vmatmul.bf16.gmra.mxu0 %v6699
      %v6972 = vpop.f32.mrf.mxu0
      %v6973 = vadd.f32 0.0, %v6972
      %v6974 = vpop.f32.mrf.mxu0
      %v6975 = vadd.f32 0.0, %v6974
      %6976 = vdwg.mxu0
      %6977 = vmatpush.bf16.msra.mxu0 %v6879
      %6978 = vmatpush.bf16.msra.mxu0 %v6878
      %6979 = vmatpush.bf16.msra.mxu0 %v6877
      %6980 = vmatpush.bf16.msra.mxu0 %v6876
      %6981 = vmatpush.bf16.msra.mxu0 %v6875
      %6982 = vmatpush.bf16.msra.mxu0 %v6874
      %6983 = vmatpush.bf16.msra.mxu0 %v6873
      %6984 = vmatpush.bf16.msra.mxu0 %v6872
      %6985 = vmatmul.bf16.gmra.mxu0 %v6685
      %v6986 = vpop.f32.mrf.mxu0
      %v6987 = vadd.f32 %v6958, %v6986
      %v6988 = vpop.f32.mrf.mxu0
      %v6989 = vadd.f32 %v6960, %v6988
      %6990 = vmatmul.bf16.gmra.mxu0 %v6690
      %v6991 = vpop.f32.mrf.mxu0
      %v6992 = vadd.f32 %v6963, %v6991
      %v6993 = vpop.f32.mrf.mxu0
      %v6994 = vadd.f32 %v6965, %v6993
      %6995 = vmatmul.bf16.gmra.mxu0 %v6695
      %v6996 = vpop.f32.mrf.mxu0
      %v6997 = vadd.f32 %v6968, %v6996
      %v6998 = vpop.f32.mrf.mxu0
      %v6999 = vadd.f32 %v6970, %v6998
      %7000 = vmatmul.bf16.gmra.mxu0 %v6700
      %v7001 = vpop.f32.mrf.mxu0
      %v7002 = vadd.f32 %v6973, %v7001
      %v7003 = vpop.f32.mrf.mxu0
      %v7004 = vadd.f32 %v6975, %v7003
      %7005 = vdwg.mxu0
      %7006 = vmatpush.bf16.msra.mxu0 %v6887
      %7007 = vmatpush.bf16.msra.mxu0 %v6886
      %7008 = vmatpush.bf16.msra.mxu0 %v6885
      %7009 = vmatpush.bf16.msra.mxu0 %v6884
      %7010 = vmatpush.bf16.msra.mxu0 %v6883
      %7011 = vmatpush.bf16.msra.mxu0 %v6882
      %7012 = vmatpush.bf16.msra.mxu0 %v6881
      %7013 = vmatpush.bf16.msra.mxu0 %v6880
      %7014 = vmatmul.bf16.gmra.mxu0 %v6686
      %v7015 = vpop.f32.mrf.mxu0
      %v7016 = vadd.f32 %v6987, %v7015
      %v7017 = vpop.f32.mrf.mxu0
      %v7018 = vadd.f32 %v6989, %v7017
      %7019 = vmatmul.bf16.gmra.mxu0 %v6691
      %v7020 = vpop.f32.mrf.mxu0
      %v7021 = vadd.f32 %v6992, %v7020
      %v7022 = vpop.f32.mrf.mxu0
      %v7023 = vadd.f32 %v6994, %v7022
      %7024 = vmatmul.bf16.gmra.mxu0 %v6696
      %v7025 = vpop.f32.mrf.mxu0
      %v7026 = vadd.f32 %v6997, %v7025
      %v7027 = vpop.f32.mrf.mxu0
      %v7028 = vadd.f32 %v6999, %v7027
      %7029 = vmatmul.bf16.gmra.mxu0 %v6701
      %v7030 = vpop.f32.mrf.mxu0
      %v7031 = vadd.f32 %v7002, %v7030
      %v7032 = vpop.f32.mrf.mxu0
      %v7033 = vadd.f32 %v7004, %v7032
      %7034 = vdwg.mxu0
      %7035 = vmatpush.bf16.msra.mxu0 %v6895
      %7036 = vmatpush.bf16.msra.mxu0 %v6894
      %7037 = vmatpush.bf16.msra.mxu0 %v6893
      %7038 = vmatpush.bf16.msra.mxu0 %v6892
      %7039 = vmatpush.bf16.msra.mxu0 %v6891
      %7040 = vmatpush.bf16.msra.mxu0 %v6890
      %7041 = vmatpush.bf16.msra.mxu0 %v6889
      %7042 = vmatpush.bf16.msra.mxu0 %v6888
      %7043 = vmatmul.bf16.gmra.mxu0 %v6687
      %v7044 = vpop.f32.mrf.mxu0
      %v7045 = vadd.f32 %v7016, %v7044
      %v7046 = vpop.f32.mrf.mxu0
      %v7047 = vadd.f32 %v7018, %v7046
      %7048 = vmatmul.bf16.gmra.mxu0 %v6692
      %v7049 = vpop.f32.mrf.mxu0
      %v7050 = vadd.f32 %v7021, %v7049
      %v7051 = vpop.f32.mrf.mxu0
      %v7052 = vadd.f32 %v7023, %v7051
      %7053 = vmatmul.bf16.gmra.mxu0 %v6697
      %v7054 = vpop.f32.mrf.mxu0
      %v7055 = vadd.f32 %v7026, %v7054
      %v7056 = vpop.f32.mrf.mxu0
      %v7057 = vadd.f32 %v7028, %v7056
      %7058 = vmatmul.bf16.gmra.mxu0 %v6702
      %v7059 = vpop.f32.mrf.mxu0
      %v7060 = vadd.f32 %v7031, %v7059
      %v7061 = vpop.f32.mrf.mxu0
      %v7062 = vadd.f32 %v7033, %v7061
      %7063 = vdwg.mxu0
      %7064 = vmatpush.bf16.msra.mxu0 0
      %7065 = vmatpush.bf16.msra.mxu0 0
      %7066 = vmatpush.bf16.msra.mxu0 0
      %7067 = vmatpush.bf16.msra.mxu0 0
      %7068 = vmatpush.bf16.msra.mxu0 %v6899
      %7069 = vmatpush.bf16.msra.mxu0 %v6898
      %7070 = vmatpush.bf16.msra.mxu0 %v6897
      %7071 = vmatpush.bf16.msra.mxu0 %v6896
      %7072 = vmatmul.bf16.gmra.mxu0 %v6937
      %v7073 = vpop.f32.mrf.mxu0
      %v7074 = vadd.f32 %v7045, %v7073
      %v7075 = vpop.f32.mrf.mxu0
      %v7076 = vadd.f32 %v7047, %v7075
      %7077 = vmatmul.bf16.gmra.mxu0 %v6940
      %v7078 = vpop.f32.mrf.mxu0
      %v7079 = vadd.f32 %v7050, %v7078
      %v7080 = vpop.f32.mrf.mxu0
      %v7081 = vadd.f32 %v7052, %v7080
      %7082 = vmatmul.bf16.gmra.mxu0 %v6943
      %v7083 = vpop.f32.mrf.mxu0
      %v7084 = vadd.f32 %v7055, %v7083
      %v7085 = vpop.f32.mrf.mxu0
      %v7086 = vadd.f32 %v7057, %v7085
      %7087 = vmatmul.bf16.gmra.mxu0 %v6946
      %v7088 = vpop.f32.mrf.mxu0
      %v7089 = vadd.f32 %v7060, %v7088
      %v7090 = vpop.f32.mrf.mxu0
      %v7091 = vadd.f32 %v7062, %v7090
      %7092 = vdwg.mxu0
      %s7093 = scalar_lea.vmem %s3, 6
      %v7094 = vld [vmem:[%s7093] sm:$0x1]
      %v7096 = vperm.slane %v7094, 0
      %v7098 = vmul.f32 %v7074, %v7096
      %v7099 = vmul.f32 %v7076, %v7096
      %v7100 = vmul.f32 %v7079, %v7096
      %v7101 = vmul.f32 %v7081, %v7096
      %v7102 = vmul.f32 %v7084, %v7096
      %v7103 = vmul.f32 %v7086, %v7096
      %v7104 = vmul.f32 %v7089, %v7096
      %v7105 = vmul.f32 %v7091, %v7096
      %s7106 = scalar_lea.vmem %s4, 6
      %v7107 = vld [vmem:[%s7106] sm:$0x1]
      %v7109 = vperm.slane %v7107, 0
      %v7111 = vadd.f32 %v7098, %v7109
      %v7112 = vadd.f32 %v7099, %v7109
      %v7113 = vadd.f32 %v7100, %v7109
      %v7114 = vadd.f32 %v7101, %v7109
      %v7115 = vadd.f32 %v7102, %v7109
      %v7116 = vadd.f32 %v7103, %v7109
      %v7117 = vadd.f32 %v7104, %v7109
      %v7118 = vadd.f32 %v7105, %v7109
      %v7119 = vadd.f32 %v5191, %v7111
      %v7120 = vadd.f32 %v5192, %v7112
      %v7121 = vadd.f32 %v5193, %v7113
      %v7122 = vadd.f32 %v5194, %v7114
      %v7123 = vadd.f32 %v5195, %v7115
      %v7124 = vadd.f32 %v5196, %v7116
      %v7125 = vadd.f32 %v5197, %v7117
      %v7126 = vadd.f32 %v5198, %v7118
      %vm7127 = vcmp.ge.f32.partialorder %v7119, 0.0
      %vm7128 = vcmp.ge.f32.partialorder %v7120, 0.0
      %vm7129 = vcmp.ge.f32.partialorder %v7121, 0.0
      %vm7130 = vcmp.ge.f32.partialorder %v7122, 0.0
      %vm7131 = vcmp.ge.f32.partialorder %v7123, 0.0
      %vm7132 = vcmp.ge.f32.partialorder %v7124, 0.0
      %vm7133 = vcmp.ge.f32.partialorder %v7125, 0.0
      %vm7134 = vcmp.ge.f32.partialorder %v7126, 0.0
      %v7135 = vmul.f32 %v7119, 0.01
      %v7136 = vmul.f32 %v7120, 0.01
      %v7137 = vmul.f32 %v7121, 0.01
      %v7138 = vmul.f32 %v7122, 0.01
      %v7139 = vmul.f32 %v7123, 0.01
      %v7140 = vmul.f32 %v7124, 0.01
      %v7141 = vmul.f32 %v7125, 0.01
      %v7142 = vmul.f32 %v7126, 0.01
      %v7143 = vsel %vm7127, %v7119, %v7135
      %v7144 = vsel %vm7128, %v7120, %v7136
      %v7145 = vsel %vm7129, %v7121, %v7137
      %v7146 = vsel %vm7130, %v7122, %v7138
      %v7147 = vsel %vm7131, %v7123, %v7139
      %v7148 = vsel %vm7132, %v7124, %v7140
      %v7149 = vsel %vm7133, %v7125, %v7141
      %v7150 = vsel %vm7134, %v7126, %v7142
      %v7151 = vld [vmem:[%s5] sm:$0x1]
      %v7153 = vperm.slane %v7151, 0
      %v7155 = vmul.f32 %v7143, %v7153
      %v7156 = vmul.f32 %v7144, %v7153
      %v7157 = vmul.f32 %v7145, %v7153
      %v7158 = vmul.f32 %v7146, %v7153
      %v7159 = vmul.f32 %v7147, %v7153
      %v7160 = vmul.f32 %v7148, %v7153
      %v7161 = vmul.f32 %v7149, %v7153
      %v7162 = vmul.f32 %v7150, %v7153
      %v7163 = vsel %vm291, %v7155, 0.0
      %7164 = vadd.xlane.f32.xlu0 %v7163
      %v7165 = vpop.xlane.xlu0 %7164
      %v7166 = vsel %vm291, %v7156, 0.0
      %7167 = vadd.xlane.f32.xlu0 %v7166
      %v7168 = vpop.xlane.xlu0 %7167
      %v7169 = vsel %vm291, %v7157, 0.0
      %7170 = vadd.xlane.f32.xlu0 %v7169
      %v7171 = vpop.xlane.xlu0 %7170
      %v7172 = vsel %vm291, %v7158, 0.0
      %7173 = vadd.xlane.f32.xlu0 %v7172
      %v7174 = vpop.xlane.xlu0 %7173
      %v7175 = vsel %vm291, %v7159, 0.0
      %7176 = vadd.xlane.f32.xlu0 %v7175
      %v7177 = vpop.xlane.xlu0 %7176
      %v7178 = vsel %vm291, %v7160, 0.0
      %7179 = vadd.xlane.f32.xlu0 %v7178
      %v7180 = vpop.xlane.xlu0 %7179
      %v7181 = vsel %vm291, %v7161, 0.0
      %7182 = vadd.xlane.f32.xlu0 %v7181
      %v7183 = vpop.xlane.xlu0 %7182
      %v7184 = vsel %vm291, %v7162, 0.0
      %7185 = vadd.xlane.f32.xlu0 %v7184
      %v7186 = vpop.xlane.xlu0 %7185
      %s7187 = sld [smem:[#allocation4]]
      %v7188 = vstv %s7187
      %v7189 = vadd.f32 %v7165, %v7188
      %v7190 = vadd.f32 %v7168, %v7188
      %v7191 = vadd.f32 %v7171, %v7188
      %v7192 = vadd.f32 %v7174, %v7188
      %v7193 = vadd.f32 %v7177, %v7188
      %v7194 = vadd.f32 %v7180, %v7188
      %v7195 = vadd.f32 %v7183, %v7188
      %v7196 = vadd.f32 %v7186, %v7188
      %v7197 = vtanh.pop %v7189
      %v7198 = vtanh.pop %v7190
      %v7199 = vtanh.pop %v7191
      %v7200 = vtanh.pop %v7192
      %v7201 = vtanh.pop %v7193
      %v7202 = vtanh.pop %v7194
      %v7203 = vtanh.pop %v7195
      %v7204 = vtanh.pop %v7196
      %v7205 = vld [vmem:[%s286] sm:$0x1]
      %vm7206 = vcmp.eq.f32.partialorder %v7205, 0.0
      %v7215 = vperm.slane %v7197, 0
      %v7216 = vperm.slane %v7197, 1
      %v7217 = vperm.slane %v7197, 2
      %v7218 = vperm.slane %v7197, 3
      %v7219 = vperm.slane %v7197, 4
      %v7220 = vperm.slane %v7197, 5
      %v7221 = vperm.slane %v7197, 6
      %v7222 = vperm.slane %v7197, 7
      %v7223 = vperm.slane %v7198, 0
      %v7224 = vperm.slane %v7198, 1
      %v7225 = vperm.slane %v7198, 2
      %v7226 = vperm.slane %v7198, 3
      %v7227 = vperm.slane %v7198, 4
      %v7228 = vperm.slane %v7198, 5
      %v7229 = vperm.slane %v7198, 6
      %v7230 = vperm.slane %v7198, 7
      %v7231 = vperm.slane %v7199, 0
      %v7232 = vperm.slane %v7199, 1
      %v7233 = vperm.slane %v7199, 2
      %v7234 = vperm.slane %v7199, 3
      %v7235 = vperm.slane %v7199, 4
      %v7236 = vperm.slane %v7199, 5
      %v7237 = vperm.slane %v7199, 6
      %v7238 = vperm.slane %v7199, 7
      %v7239 = vperm.slane %v7200, 0
      %v7240 = vperm.slane %v7200, 1
      %v7241 = vperm.slane %v7200, 2
      %v7242 = vperm.slane %v7200, 3
      %v7243 = vperm.slane %v7200, 4
      %v7244 = vperm.slane %v7200, 5
      %v7245 = vperm.slane %v7200, 6
      %v7246 = vperm.slane %v7200, 7
      %v7247 = vperm.slane %v7201, 0
      %v7248 = vperm.slane %v7201, 1
      %v7249 = vperm.slane %v7201, 2
      %v7250 = vperm.slane %v7201, 3
      %v7251 = vperm.slane %v7201, 4
      %v7252 = vperm.slane %v7201, 5
      %v7253 = vperm.slane %v7201, 6
      %v7254 = vperm.slane %v7201, 7
      %v7255 = vperm.slane %v7202, 0
      %v7256 = vperm.slane %v7202, 1
      %v7257 = vperm.slane %v7202, 2
      %v7258 = vperm.slane %v7202, 3
      %v7259 = vperm.slane %v7202, 4
      %v7260 = vperm.slane %v7202, 5
      %v7261 = vperm.slane %v7202, 6
      %v7262 = vperm.slane %v7202, 7
      %v7263 = vperm.slane %v7203, 0
      %v7264 = vperm.slane %v7203, 1
      %v7265 = vperm.slane %v7203, 2
      %v7266 = vperm.slane %v7203, 3
      %v7267 = vperm.slane %v7203, 4
      %v7268 = vperm.slane %v7203, 5
      %v7269 = vperm.slane %v7203, 6
      %v7270 = vperm.slane %v7203, 7
      %v7271 = vperm.slane %v7204, 0
      %v7272 = vperm.slane %v7204, 1
      %v7273 = vperm.slane %v7204, 2
      %v7274 = vperm.slane %v7204, 3
      %v7275 = vperm.slane %v7204, 4
      %v7276 = vperm.slane %v7204, 5
      %v7277 = vperm.slane %v7204, 6
      %v7278 = vperm.slane %v7204, 7
      %7279 = vst [vmem:[#allocation1] ss:$9 sm:$0xff] %v7215
      %s7280 = scalar_lea.vmem [#allocation1], 1
      %7281 = vst [vmem:[%s7280] ss:$9 sm:$0xff] %v7216
      %s7282 = scalar_lea.vmem [#allocation1], 2
      %7283 = vst [vmem:[%s7282] ss:$9 sm:$0xff] %v7217
      %s7284 = scalar_lea.vmem [#allocation1], 3
      %7285 = vst [vmem:[%s7284] ss:$9 sm:$0xff] %v7218
      %s7286 = scalar_lea.vmem [#allocation1], 4
      %7287 = vst [vmem:[%s7286] ss:$9 sm:$0xff] %v7219
      %s7288 = scalar_lea.vmem [#allocation1], 5
      %7289 = vst [vmem:[%s7288] ss:$9 sm:$0xff] %v7220
      %s7290 = scalar_lea.vmem [#allocation1], 6
      %7291 = vst [vmem:[%s7290] ss:$9 sm:$0xff] %v7221
      %s7292 = scalar_lea.vmem [#allocation1], 7
      %7293 = vst [vmem:[%s7292] ss:$9 sm:$0xff] %v7222
      %v7294 = vld [vmem:[#allocation1] sm:$0xff]
      %7295 = vst [vmem:[#allocation1] ss:$9 sm:$0xff] %v7223
      %7296 = vst [vmem:[%s7280] ss:$9 sm:$0xff] %v7224
      %7297 = vst [vmem:[%s7282] ss:$9 sm:$0xff] %v7225
      %7298 = vst [vmem:[%s7284] ss:$9 sm:$0xff] %v7226
      %7299 = vst [vmem:[%s7286] ss:$9 sm:$0xff] %v7227
      %7300 = vst [vmem:[%s7288] ss:$9 sm:$0xff] %v7228
      %7301 = vst [vmem:[%s7290] ss:$9 sm:$0xff] %v7229
      %7302 = vst [vmem:[%s7292] ss:$9 sm:$0xff] %v7230
      %v7303 = vld [vmem:[#allocation1] sm:$0xff]
      %7304 = vst [vmem:[#allocation1] ss:$9 sm:$0xff] %v7231
      %7305 = vst [vmem:[%s7280] ss:$9 sm:$0xff] %v7232
      %7306 = vst [vmem:[%s7282] ss:$9 sm:$0xff] %v7233
      %7307 = vst [vmem:[%s7284] ss:$9 sm:$0xff] %v7234
      %7308 = vst [vmem:[%s7286] ss:$9 sm:$0xff] %v7235
      %7309 = vst [vmem:[%s7288] ss:$9 sm:$0xff] %v7236
      %7310 = vst [vmem:[%s7290] ss:$9 sm:$0xff] %v7237
      %7311 = vst [vmem:[%s7292] ss:$9 sm:$0xff] %v7238
      %v7312 = vld [vmem:[#allocation1] sm:$0xff]
      %7313 = vst [vmem:[#allocation1] ss:$9 sm:$0xff] %v7239
      %7314 = vst [vmem:[%s7280] ss:$9 sm:$0xff] %v7240
      %7315 = vst [vmem:[%s7282] ss:$9 sm:$0xff] %v7241
      %7316 = vst [vmem:[%s7284] ss:$9 sm:$0xff] %v7242
      %7317 = vst [vmem:[%s7286] ss:$9 sm:$0xff] %v7243
      %7318 = vst [vmem:[%s7288] ss:$9 sm:$0xff] %v7244
      %7319 = vst [vmem:[%s7290] ss:$9 sm:$0xff] %v7245
      %7320 = vst [vmem:[%s7292] ss:$9 sm:$0xff] %v7246
      %v7321 = vld [vmem:[#allocation1] sm:$0xff]
      %7322 = vst [vmem:[#allocation1] ss:$9 sm:$0xff] %v7247
      %7323 = vst [vmem:[%s7280] ss:$9 sm:$0xff] %v7248
      %7324 = vst [vmem:[%s7282] ss:$9 sm:$0xff] %v7249
      %7325 = vst [vmem:[%s7284] ss:$9 sm:$0xff] %v7250
      %7326 = vst [vmem:[%s7286] ss:$9 sm:$0xff] %v7251
      %7327 = vst [vmem:[%s7288] ss:$9 sm:$0xff] %v7252
      %7328 = vst [vmem:[%s7290] ss:$9 sm:$0xff] %v7253
      %7329 = vst [vmem:[%s7292] ss:$9 sm:$0xff] %v7254
      %v7330 = vld [vmem:[#allocation1] sm:$0xff]
      %7331 = vst [vmem:[#allocation1] ss:$9 sm:$0xff] %v7255
      %7332 = vst [vmem:[%s7280] ss:$9 sm:$0xff] %v7256
      %7333 = vst [vmem:[%s7282] ss:$9 sm:$0xff] %v7257
      %7334 = vst [vmem:[%s7284] ss:$9 sm:$0xff] %v7258
      %7335 = vst [vmem:[%s7286] ss:$9 sm:$0xff] %v7259
      %7336 = vst [vmem:[%s7288] ss:$9 sm:$0xff] %v7260
      %7337 = vst [vmem:[%s7290] ss:$9 sm:$0xff] %v7261
      %7338 = vst [vmem:[%s7292] ss:$9 sm:$0xff] %v7262
      %v7339 = vld [vmem:[#allocation1] sm:$0xff]
      %7340 = vst [vmem:[#allocation1] ss:$9 sm:$0xff] %v7263
      %7341 = vst [vmem:[%s7280] ss:$9 sm:$0xff] %v7264
      %7342 = vst [vmem:[%s7282] ss:$9 sm:$0xff] %v7265
      %7343 = vst [vmem:[%s7284] ss:$9 sm:$0xff] %v7266
      %7344 = vst [vmem:[%s7286] ss:$9 sm:$0xff] %v7267
      %7345 = vst [vmem:[%s7288] ss:$9 sm:$0xff] %v7268
      %7346 = vst [vmem:[%s7290] ss:$9 sm:$0xff] %v7269
      %7347 = vst [vmem:[%s7292] ss:$9 sm:$0xff] %v7270
      %v7348 = vld [vmem:[#allocation1] sm:$0xff]
      %7349 = vst [vmem:[#allocation1] ss:$9 sm:$0xff] %v7271
      %7350 = vst [vmem:[%s7280] ss:$9 sm:$0xff] %v7272
      %7351 = vst [vmem:[%s7282] ss:$9 sm:$0xff] %v7273
      %7352 = vst [vmem:[%s7284] ss:$9 sm:$0xff] %v7274
      %7353 = vst [vmem:[%s7286] ss:$9 sm:$0xff] %v7275
      %7354 = vst [vmem:[%s7288] ss:$9 sm:$0xff] %v7276
      %7355 = vst [vmem:[%s7290] ss:$9 sm:$0xff] %v7277
      %7356 = vst [vmem:[%s7292] ss:$9 sm:$0xff] %v7278
      %v7357 = vld [vmem:[#allocation1] sm:$0xff]
      %7358 = vset.pattern.permute.xlu0 0
      %7359 = vperm.xlu0 %7358, %v7294
      %v7360 = vpop.permute.xlu0 %7359
      %7361 = vset.pattern.permute.xlu0 0
      %7362 = vperm.xlu0 %7361, %v7303
      %v7363 = vpop.permute.xlu0 %7362
      %7364 = vset.pattern.permute.xlu0 0
      %7365 = vperm.xlu0 %7364, %v7312
      %v7366 = vpop.permute.xlu0 %7365
      %7367 = vset.pattern.permute.xlu0 0
      %7368 = vperm.xlu0 %7367, %v7321
      %v7369 = vpop.permute.xlu0 %7368
      %7370 = vset.pattern.permute.xlu0 0
      %7371 = vperm.xlu0 %7370, %v7330
      %v7372 = vpop.permute.xlu0 %7371
      %7373 = vset.pattern.permute.xlu0 0
      %7374 = vperm.xlu0 %7373, %v7339
      %v7375 = vpop.permute.xlu0 %7374
      %7376 = vset.pattern.permute.xlu0 0
      %7377 = vperm.xlu0 %7376, %v7348
      %v7378 = vpop.permute.xlu0 %7377
      %7379 = vset.pattern.permute.xlu0 0
      %7380 = vperm.xlu0 %7379, %v7357
      %v7381 = vpop.permute.xlu0 %7380
      %v7382 = vlaneseq
      %v7383 = vand.u32 %v7382, 127
      %v7384 = vperm.slane %v7360, %v7383
      %v7385 = vadd.s32 %v7383, 4294967288
      %v7386 = vperm.slane %v7363, %v7385
      %vm7387 = vcmask 130112
      %v7388 = vsel %vm7387, %v7386, %v7384
      %v7389 = vadd.s32 %v7383, 4294967280
      %v7390 = vperm.slane %v7366, %v7389
      %vm7391 = vcmask 195712
      %v7392 = vsel %vm7391, %v7390, %v7388
      %v7393 = vadd.s32 %v7383, 4294967272
      %v7394 = vperm.slane %v7369, %v7393
      %vm7395 = vcmask 261312
      %v7396 = vsel %vm7395, %v7394, %v7392
      %v7397 = vadd.s32 %v7383, 4294967264
      %v7398 = vperm.slane %v7372, %v7397
      %vm7399 = vcmask 326912
      %v7400 = vsel %vm7399, %v7398, %v7396
      %v7401 = vadd.s32 %v7383, 4294967256
      %v7402 = vperm.slane %v7375, %v7401
      %vm7403 = vcmask 392512
      %v7404 = vsel %vm7403, %v7402, %v7400
      %v7405 = vadd.s32 %v7383, 4294967248
      %v7406 = vperm.slane %v7378, %v7405
      %vm7407 = vcmask 458112
      %v7408 = vsel %vm7407, %v7406, %v7404
      %v7409 = vadd.s32 %v7383, 4294967240
      %v7410 = vperm.slane %v7381, %v7409
      %vm7411 = vcmask 523712
      %v7412 = vsel %vm7411, %v7410, %v7408
      %v7414 = vsel %vm7206, %v7412, -inf
      %vm7415 = vcmask 516096
      %7416 = vst.msk [vmem:[%s289] sm:$0x1] %vm7415, %v7414
      %p7417 = scmp.lt.s32.totalorder %s19, 1
      %s7418 = scalar_select %p7417, %s19, 1
      %s7419 = scalar_lea.vmem %s7, %s7418
      // Predicated region
      $region49: #{dqn_forward.1} parent=47 // pred_check
        %p7420 = pneg %p194
      $region50: #{dqn_forward.1} parent=47 // pred_check_branch
        %7422 = sbr.rel (%p7420) target = $region52
      $region51: #{dqn_forward.1} parent=47 // pred_region
        _
      $region52: #{dqn_forward.1} parent=47 // pred_fallthru
        _
    $region48: #{dqn_forward.1} parent=5 // pred_fallthru
      _
    %p7423 = scmp.le.s32.totalorder 2, %s14
    // Predicated region
    $region53: #{dqn_forward.1} parent=5 // pred_check
      %p7424 = pneg %p7423
    $region54: #{dqn_forward.1} parent=5 // pred_check_branch
      %7426 = sbr.rel (%p7424) target = $region56
    $region55: #{dqn_forward.1} parent=5 // pred_region
      %s7427 = ssub.s32 %s14, 2
      // Predicated region
      $region57: #{dqn_forward.1} parent=55 // pred_check
        %p7428 = pneg %p200
      $region58: #{dqn_forward.1} parent=55 // pred_check_branch
        %7430 = sbr.rel (%p7428) target = $region60
      $region59: #{dqn_forward.1} parent=55 // pred_region
        %p7431 = scmp.lt.s32.totalorder %s20, 1
        %s7432 = scalar_select %p7431, %s20, 1
        %s7433 = scalar_lea.vmem %s7, %s7432
      $region60: #{dqn_forward.1} parent=55 // pred_fallthru
        _
    $region56: #{dqn_forward.1} parent=5 // pred_fallthru
      _
  $region6: #{dqn_forward.1} parent=0 // loop_footer
    %s18 = sadd.s32 1, %s14
  $region7: #{dqn_forward.1} parent=0 // loop_footer_branch
    %13 = sbr.rel target = $region3
  $region8: #{dqn_forward.1} parent=0 // loop_exit
    _

</llo_original>
